<compile_context>
chip_gen: v7x
topology: tpu7x:2x2x1
jax: 0.10.0
libtpu: 0.0.40
codegen_flags: <defaults>
</compile_context>

<pallas_src>
import numpy as np

import jax
import jax.numpy as jnp
from jax import lax
from jax.experimental import pallas as pl
from jax.experimental.pallas import tpu as pltpu


# ----------------------------------------------------------------------------
# Precomputed constant operators (built with numpy in the wrapper, passed as inputs)
# ----------------------------------------------------------------------------
def _tap_masks(H, W):
    """(9, H*W) f32 validity masks for the 3x3 taps (oy, ox) in row-major order."""
    n = H * W
    p = np.arange(n)
    row, col = p // W, p % W
    m = np.zeros((9, n), np.float32)
    t = 0
    for oy in (-1, 0, 1):
        for ox in (-1, 0, 1):
            m[t] = ((row + oy >= 0) & (row + oy < H) &
                    (col + ox >= 0) & (col + ox < W)).astype(np.float32)
            t += 1
    return jnp.asarray(m)


def _pool_matrix(H, W):
    """(H*W, (H/2)*(W/2)) operator implementing AvgPool2d(kernel=2, stride=2)."""
    Hq, Wq = H // 2, W // 2
    n = H * W
    p = np.arange(n)
    q = ((p // W) // 2) * Wq + (p % W) // 2
    P = np.zeros((n, Hq * Wq), np.float32)
    P[p, q] = 0.25
    return jnp.asarray(P)


def _upsample_matrix(Hq, Wq):
    """((Hq*Wq), (2Hq*2Wq)) operator implementing nearest-neighbor x2 upsample."""
    H, W = 2 * Hq, 2 * Wq
    n = H * W
    p = np.arange(n)
    q = ((p // W) // 2) * Wq + (p % W) // 2
    U = np.zeros((Hq * Wq, n), np.float32)
    U[q, p] = 1.0
    return jnp.asarray(U)


# ----------------------------------------------------------------------------
# Weight preprocessing (glue; runs once at trace time)
# ----------------------------------------------------------------------------
def _flatten_conv_weight(w):
    """torch layout (Cout, Cin, 3, 3) -> (Cout, 9*Cin) bf16, tap-major / channel-minor."""
    co, ci, kh, kw = w.shape
    return jnp.transpose(w, (0, 2, 3, 1)).reshape(co, kh * kw * ci).astype(jnp.bfloat16)


def _conv_wsq(w):
    """Demod weight term: sum over (kh, kw) of w^2 -> (Cout, Cin) f32."""
    return jnp.sum(w.astype(jnp.float32) ** 2, axis=(2, 3))


# ----------------------------------------------------------------------------
# In-kernel helpers
# ----------------------------------------------------------------------------
def _conv3x3(x, w_flat, b_col, H, W, masks):
    """'same' 3x3 conv via roll+mask im2col and a single bf16 MXU matmul.

    x:      (Cin, H*W)      f32
    w_flat: (Cout, 9*Cin)   bf16
    b_col:  (Cout, 1)       f32
    masks:  (9, H*W)        f32
    returns (Cout, H*W)     f32 (bias added)
    """
    n = H * W
    taps = []
    t = 0
    for oy in (-1, 0, 1):
        for ox in (-1, 0, 1):
            d = oy * W + ox                       # flattened neighbor offset
            if d == 0:
                sh = x
            else:
                # out[:, p] = x[:, p + d]; wrapped lanes are exactly the masked ones.
                sh = pltpu.roll(x, shift=(-d) % n, axis=1)
            taps.append(sh * masks[t:t + 1, :])
            t += 1
    xcol = jnp.concatenate(taps, axis=0).astype(jnp.bfloat16)      # (9*Cin, H*W)
    y = jnp.dot(w_flat, xcol, preferred_element_type=jnp.float32)  # (Cout, H*W)
    return y + b_col


# ----------------------------------------------------------------------------
# Kernel factories
# ----------------------------------------------------------------------------
def make_encoder_kernel(H, W, n_conv, with_bottleneck, slope):
    """Fused: [conv3x3 + LeakyReLU] * n_conv, 2x2 avg-pool, optional bottleneck linear."""

    def kernel(*refs):
        i = 0
        x_ref = refs[i]; i += 1
        masks_ref = refs[i]; i += 1
        conv_refs = []
        for _ in range(n_conv):
            conv_refs.append((refs[i], refs[i + 1])); i += 2
        pool_ref = refs[i]; i += 1
        if with_bottleneck:
            wbT_ref = refs[i]; bb_ref = refs[i + 1]; i += 2
        r_ref = refs[i]; i += 1
        y_ref = refs[i]; i += 1
        if with_bottleneck:
            mod_ref = refs[i]; i += 1

        masks = masks_ref[...]                       # (9, H*W), hoisted once
        h = x_ref[0]                                 # (Cin, H*W) f32
        for (w_ref, b_ref) in conv_refs:
            h = _conv3x3(h, w_ref[...], b_ref[...], H, W, masks)
            h = jnp.where(h >= 0.0, h, slope * h)    # LeakyReLU(0.2)
        r_ref[0] = h                                 # skip connection (pre-pool)

        # 2x2 average pool as a constant-matrix matmul, fused in the epilogue.
        y = jnp.dot(h.astype(jnp.bfloat16), pool_ref[...],
                    preferred_element_type=jnp.float32)            # (C, H*W/4)
        y_ref[0] = y

        if with_bottleneck:
            # TODO(synk): the real bottleneck is an external module (set_bottleneck);
            # synthesized here as mod = Linear(global_avg_pool(y)), pass-through y.
            y_mean = jnp.mean(y, axis=-1, keepdims=True)            # (C, 1)
            mod = jnp.sum(wbT_ref[...] * y_mean, axis=0, keepdims=True) + bb_ref[...]
            mod_ref[0] = mod                                        # (1, Mf)

    return kernel


def make_decoder_kernel(H, W, slope, eps, with_final):
    """Fused ModNetDecBlock: rezero nearest-upsample (matmul) + concat + two
    (style affine -> modulated conv -> demod -> LeakyReLU), optional final 1x1 conv."""

    def kernel(*refs):
        (y_ref, r_ref, mod_ref, up_ref, rea_ref, masks_ref,
         ws1_ref, bs1_ref, a1_ref, w1_ref, b1_ref, wsq1_ref,
         ws2_ref, bs2_ref, a2_ref, w2_ref, b2_ref, wsq2_ref) = refs[:18]
        if with_final:
            wo_ref, bo_ref, out_ref = refs[18:]
        else:
            out_ref = refs[18]

        masks = masks_ref[...]                       # (9, H*W)
        mod = mod_ref[0]                             # (1, Mf)

        # x = re_alpha * upsample(y); y = cat([x, r], channel axis)
        x_up = jnp.dot(y_ref[0].astype(jnp.bfloat16), up_ref[...],
                       preferred_element_type=jnp.float32)          # (Cy, H*W)
        x_up = rea_ref[...] * x_up
        h = jnp.concatenate([x_up, r_ref[0]], axis=0)               # (Ccat, H*W)

        def style_scale(wsT_ref, bs_ref, a_ref):
            # s = 1 + re_alpha * (W_s @ mod + b_s), computed directly as a column (C, 1)
            aff = jnp.sum(wsT_ref[...] * mod, axis=-1, keepdims=True) + bs_ref[...]
            return 1.0 + a_ref[...] * aff

        def mod_conv(x, s, w_ref_, b_ref_, wsq_ref_):
            # ModulatedConv2d: conv(x * s) (bias inside), then demod scale, then activ.
            y = _conv3x3(x * s, w_ref_[...], b_ref_[...], H, W, masks)
            sigma = jnp.dot(wsq_ref_[...], s * s,
                            preferred_element_type=jnp.float32)     # (Cout, 1)
            y = y * lax.rsqrt(sigma + eps)
            return jnp.where(y >= 0.0, y, slope * y)

        h = mod_conv(h, style_scale(ws1_ref, bs1_ref, a1_ref), w1_ref, b1_ref, wsq1_ref)
        h = mod_conv(h, style_scale(ws2_ref, bs2_ref, a2_ref), w2_ref, b2_ref, wsq2_ref)

        if with_final:                              # fused layer_output 1x1 conv
            h = jnp.dot(wo_ref[...], h.astype(jnp.bfloat16),
                        preferred_element_type=jnp.float32) + bo_ref[...]
        out_ref[0] = h

    return kernel


# ----------------------------------------------------------------------------
# Pallas wrappers
# ----------------------------------------------------------------------------
def encoder_forward(x, H, W, convs, bottleneck=None, slope=0.2):
    """x: (N, Cin, H*W) f32.  convs: list of {'w': (Co,Ci,3,3), 'b': (Co,)}."""
    N = x.shape[0]
    HW = H * W
    HWq = (H // 2) * (W // 2)
    C_out = convs[-1]["w"].shape[0]
    with_bn = bottleneck is not None

    inputs = [x, _tap_masks(H, W)]
    in_specs = [
        pl.BlockSpec((1, x.shape[1], HW), lambda n: (n, 0, 0)),
        pl.BlockSpec((9, HW), lambda n: (0, 0)),
    ]
    for c in convs:
        co, ci = c["w"].shape[0], c["w"].shape[1]
        inputs += [_flatten_conv_weight(c["w"]), c["b"].reshape(co, 1)]
        in_specs += [pl.BlockSpec((co, 9 * ci), lambda n: (0, 0)),
                     pl.BlockSpec((co, 1), lambda n: (0, 0))]
    inputs.append(_pool_matrix(H, W).astype(jnp.bfloat16))
    in_specs.append(pl.BlockSpec((HW, HWq), lambda n: (0, 0)))

    out_shapes = [jax.ShapeDtypeStruct((N, C_out, HW), jnp.float32),
                  jax.ShapeDtypeStruct((N, C_out, HWq), jnp.float32)]
    out_specs = [pl.BlockSpec((1, C_out, HW), lambda n: (n, 0, 0)),
                 pl.BlockSpec((1, C_out, HWq), lambda n: (n, 0, 0))]

    if with_bn:
        Mf = bottleneck["w"].shape[0]
        inputs += [jnp.transpose(bottleneck["w"]).astype(jnp.float32),   # (C_out, Mf)
                   bottleneck["b"].reshape(1, Mf)]
        in_specs += [pl.BlockSpec((C_out, Mf), lambda n: (0, 0)),
                     pl.BlockSpec((1, Mf), lambda n: (0, 0))]
        out_shapes.append(jax.ShapeDtypeStruct((N, 1, Mf), jnp.float32))
        out_specs.append(pl.BlockSpec((1, 1, Mf), lambda n: (n, 0, 0)))

    return pl.pallas_call(
        make_encoder_kernel(H, W, len(convs), with_bn, slope),
        out_shape=tuple(out_shapes),
        grid=(N,),
        in_specs=in_specs,
        out_specs=tuple(out_specs),
        compiler_params=pltpu.CompilerParams(dimension_semantics=("parallel",)),
    )(*inputs)


def decoder_forward(y, r, mod, H, W, dec, final=None, slope=0.2, eps=1e-6):
    """y: (N,Cy,HW/4) inner output; r: (N,Cskip,HW) skip; mod: (N,1,Mf)."""
    N, Cy, HWq = y.shape
    _, Cskip, HW = r.shape
    Mf = mod.shape[-1]
    Ccat = Cy + Cskip
    w1, w2 = dec["conv1"]["w"], dec["conv2"]["w"]
    Cmid, Cout = w1.shape[0], w2.shape[0]
    with_final = final is not None
    Cfinal = final["w"].shape[0] if with_final else Cout

    inputs = [
        y, r, mod,
        _upsample_matrix(H // 2, W // 2).astype(jnp.bfloat16),
        dec["re_alpha"].reshape(1, 1),
        _tap_masks(H, W),
        dec["style1"]["w"].astype(jnp.float32), dec["style1"]["b"].reshape(-1, 1),
        dec["style1"]["re_alpha"].reshape(1, 1),
        _flatten_conv_weight(w1), dec["conv1"]["b"].reshape(-1, 1), _conv_wsq(w1),
        dec["style2"]["w"].astype(jnp.float32), dec["style2"]["b"].reshape(-1, 1),
        dec["style2"]["re_alpha"].reshape(1, 1),
        _flatten_conv_weight(w2), dec["conv2"]["b"].reshape(-1, 1), _conv_wsq(w2),
    ]
    in_specs = [
        pl.BlockSpec((1, Cy, HWq), lambda n: (n, 0, 0)),
        pl.BlockSpec((1, Cskip, HW), lambda n: (n, 0, 0)),
        pl.BlockSpec((1, 1, Mf), lambda n: (n, 0, 0)),
        pl.BlockSpec((HWq, HW), lambda n: (0, 0)),
        pl.BlockSpec((1, 1), lambda n: (0, 0)),
        pl.BlockSpec((9, HW), lambda n: (0, 0)),
        pl.BlockSpec((Ccat, Mf), lambda n: (0, 0)),
        pl.BlockSpec((Ccat, 1), lambda n: (0, 0)),
        pl.BlockSpec((1, 1), lambda n: (0, 0)),
        pl.BlockSpec((Cmid, 9 * Ccat), lambda n: (0, 0)),
        pl.BlockSpec((Cmid, 1), lambda n: (0, 0)),
        pl.BlockSpec((Cmid, Ccat), lambda n: (0, 0)),
        pl.BlockSpec((Cmid, Mf), lambda n: (0, 0)),
        pl.BlockSpec((Cmid, 1), lambda n: (0, 0)),
        pl.BlockSpec((1, 1), lambda n: (0, 0)),
        pl.BlockSpec((Cout, 9 * Cmid), lambda n: (0, 0)),
        pl.BlockSpec((Cout, 1), lambda n: (0, 0)),
        pl.BlockSpec((Cout, Cmid), lambda n: (0, 0)),
    ]
    if with_final:
        inputs += [final["w"].reshape(Cfinal, Cout).astype(jnp.bfloat16),
                   final["b"].reshape(Cfinal, 1)]
        in_specs += [pl.BlockSpec((Cfinal, Cout), lambda n: (0, 0)),
                     pl.BlockSpec((Cfinal, 1), lambda n: (0, 0))]

    return pl.pallas_call(
        make_decoder_kernel(H, W, slope, eps, with_final),
        out_shape=jax.ShapeDtypeStruct((N, Cfinal, HW), jnp.float32),
        grid=(N,),
        in_specs=in_specs,
        out_specs=pl.BlockSpec((1, Cfinal, HW), lambda n: (n, 0, 0)),
        compiler_params=pltpu.CompilerParams(dimension_semantics=("parallel",)),
    )(*inputs)


# ----------------------------------------------------------------------------
# Parameter construction (deterministic, synthetic; torch-like layouts)
# ----------------------------------------------------------------------------
def conv_init(key, cin, cout, k):
    kw, kb = jax.random.split(key)
    return {"w": jax.random.normal(kw, (cout, cin, k, k), jnp.float32) * 0.1,
            "b": jax.random.normal(kb, (cout,), jnp.float32) * 0.1}


def linear_init(key, fin, fout):
    kw, kb = jax.random.split(key)
    return {"w": jax.random.normal(kw, (fout, fin), jnp.float32) * 0.1,
            "b": jax.random.normal(kb, (fout,), jnp.float32) * 0.1}


def build_params(key, image_shape, features_list, mod_features):
    C0, H, W = image_shape
    keys = iter(jax.random.split(key, 8 * len(features_list) + 8))

    params = {
        "layer_input": conv_init(next(keys), C0, features_list[0], 3),
        "layer_output": conv_init(next(keys), features_list[0], C0, 1),
        "blocks": [],
    }

    # TODO(synk): UNetEncBlock is not given; assumed conv3x3+act, conv3x3+act, avgpool.
    cur = (features_list[0], H, W)
    for features in features_list:
        cin, ch, cw = cur
        mid_enc = max(features, cin)
        inner_shape = (features, ch // 2, cw // 2)
        in_feat = features + features               # skip_features + input_features
        mid_dec = max(features, inner_shape[0])
        out_feat = cin                              # output_features = image_shape[0]
        block = {
            "enc1": conv_init(next(keys), cin, mid_enc, 3),
            "enc2": conv_init(next(keys), mid_enc, features, 3),
            "dec": {
                # PyTorch initializes re_alpha to 0; use small nonzero values so the
                # modulation / upsample paths are numerically exercised.
                "re_alpha": jnp.array([0.3], jnp.float32),
                "style1": {**linear_init(next(keys), mod_features, in_feat),
                           "re_alpha": jnp.array([0.2], jnp.float32)},
                "conv1": conv_init(next(keys), in_feat, mid_dec, 3),
                "style2": {**linear_init(next(keys), mod_features, mid_dec),
                           "re_alpha": jnp.array([0.2], jnp.float32)},
                "conv2": conv_init(next(keys), mid_dec, out_feat, 3),
            },
        }
        params["blocks"].append(block)
        cur = inner_shape

    # TODO(synk): the innermost inner_module (bottleneck) is external to ModNetStar
    # (installed via set_bottleneck); synthesized as a deterministic pass-through:
    # mod = Linear(global_avg_pool(y)), y passes through unchanged.
    params["bottleneck"] = linear_init(next(keys), cur[0], mod_features)
    return params


# ----------------------------------------------------------------------------
# Functional forward pass (mirrors ModNetStar.forward, return_mod=False)
# ----------------------------------------------------------------------------
def modnet_star_forward(params, x_nchw):
    N, C, H, W = x_nchw.shape
    x = x_nchw.reshape(N, C, H * W)                 # NCHW with flattened spatial axis

    blocks = params["blocks"]
    n_blocks = len(blocks)

    # Encoders (outer -> inner); layer_input fused into block 0, bottleneck into last.
    skips, sizes = [], []
    h = x
    cur_H, cur_W = H, W
    mod = None
    for idx, blk in enumerate(blocks):
        convs = ([params["layer_input"]] if idx == 0 else []) + [blk["enc1"], blk["enc2"]]
        if idx == n_blocks - 1:
            r, y, mod = encoder_forward(h, cur_H, cur_W, convs,
                                        bottleneck=params["bottleneck"])
        else:
            r, y = encoder_forward(h, cur_H, cur_W, convs, bottleneck=None)
        skips.append(r)
        sizes.append((cur_H, cur_W))
        h = y
        cur_H, cur_W = cur_H // 2, cur_W // 2

    # Decoders (inner -> outer); layer_output (1x1 conv) fused into block 0's decoder.
    y = h
    for idx in range(n_blocks - 1, -1, -1):
        Hb, Wb = sizes[idx]
        final = params["layer_output"] if idx == 0 else None
        y = decoder_forward(y, skips[idx], mod, Hb, Wb, blocks[idx]["dec"], final=final)

    return y.reshape(N, -1, H, W)                   # back to NCHW


# ----------------------------------------------------------------------------
if __name__ == "__main__":
    IMAGE_SHAPE = (3, 16, 16)      # (C, H, W)
    FEATURES_LIST = (4, 8)
    MOD_FEATURES = 16
    N = 2

    key = jax.random.PRNGKey(0)
    kp, kx = jax.random.split(key)
    params = build_params(kp, IMAGE_SHAPE, FEATURES_LIST, MOD_FEATURES)
    x = jax.random.normal(kx, (N, *IMAGE_SHAPE), jnp.float32)

    fwd = jax.jit(modnet_star_forward)
    out = jax.block_until_ready(fwd(params, x))
    assert out.shape == (N, *IMAGE_SHAPE), out.shape
    assert bool(jnp.all(jnp.isfinite(out)))
    print("KERNEL_OK")
</pallas_src>

<mosaic_0001>
module attributes {stable_mosaic.version = 11 : i64} {
  func.func @kernel(%arg0: i32, %arg1: memref<1x3x256xf32, #tpu.memory_space<vmem>>, %arg2: memref<9x256xf32, #tpu.memory_space<vmem>>, %arg3: memref<4x27xbf16, #tpu.memory_space<vmem>>, %arg4: memref<4x1xf32, #tpu.memory_space<vmem>>, %arg5: memref<4x36xbf16, #tpu.memory_space<vmem>>, %arg6: memref<4x1xf32, #tpu.memory_space<vmem>>, %arg7: memref<4x36xbf16, #tpu.memory_space<vmem>>, %arg8: memref<4x1xf32, #tpu.memory_space<vmem>>, %arg9: memref<256x64xbf16, #tpu.memory_space<vmem>>, %arg10: memref<1x4x256xf32, #tpu.memory_space<vmem>>, %arg11: memref<1x4x64xf32, #tpu.memory_space<vmem>>) attributes {dimension_semantics = [#tpu.dimension_semantics<parallel>], iteration_bounds = array<i64: 2>, scalar_prefetch = 0 : i64, scratch_operands = 0 : i64, tpu.core_type = #tpu.core_type<tc>, window_params = [{transform_indices = @transform_0, window_bounds = array<i64: 1, 3, 256>}, {pipeline_mode = #tpu.pipeline_mode<synchronous>, transform_indices = @transform_1, window_bounds = array<i64: 9, 256>}, {pipeline_mode = #tpu.pipeline_mode<synchronous>, transform_indices = @transform_2, window_bounds = array<i64: 4, 27>}, {pipeline_mode = #tpu.pipeline_mode<synchronous>, transform_indices = @transform_3, window_bounds = array<i64: 4, 1>}, {pipeline_mode = #tpu.pipeline_mode<synchronous>, transform_indices = @transform_4, window_bounds = array<i64: 4, 36>}, {pipeline_mode = #tpu.pipeline_mode<synchronous>, transform_indices = @transform_5, window_bounds = array<i64: 4, 1>}, {pipeline_mode = #tpu.pipeline_mode<synchronous>, transform_indices = @transform_6, window_bounds = array<i64: 4, 36>}, {pipeline_mode = #tpu.pipeline_mode<synchronous>, transform_indices = @transform_7, window_bounds = array<i64: 4, 1>}, {pipeline_mode = #tpu.pipeline_mode<synchronous>, transform_indices = @transform_8, window_bounds = array<i64: 256, 64>}, {transform_indices = @transform_9, window_bounds = array<i64: 1, 4, 256>}, {transform_indices = @transform_10, window_bounds = array<i64: 1, 4, 64>}]} {
    %c0 = arith.constant 0 : index
    %c0_0 = arith.constant 0 : index
    %0 = vector.load %arg2[%c0, %c0_0] : memref<9x256xf32, #tpu.memory_space<vmem>>, vector<9x256xf32>
    %c0_1 = arith.constant 0 : index
    %c0_2 = arith.constant 0 : index
    %c0_3 = arith.constant 0 : index
    %1 = vector.load %arg1[%c0_1, %c0_2, %c0_3] : memref<1x3x256xf32, #tpu.memory_space<vmem>>, vector<1x3x256xf32>
    %2 = vector.shape_cast %1 : vector<1x3x256xf32> to vector<3x256xf32>
    %c0_4 = arith.constant 0 : index
    %c0_5 = arith.constant 0 : index
    %3 = vector.load %arg3[%c0_4, %c0_5] : memref<4x27xbf16, #tpu.memory_space<vmem>>, vector<4x27xbf16>
    %c0_6 = arith.constant 0 : index
    %c0_7 = arith.constant 0 : index
    %4 = vector.load %arg4[%c0_6, %c0_7] : memref<4x1xf32, #tpu.memory_space<vmem>>, vector<4x1xf32>
    %c17_i32 = arith.constant 17 : i32
    %5 = tpu.dynamic_rotate %2 by %c17_i32 dim 1 : vector<3x256xf32>, i32 -> vector<3x256xf32>
    %6 = vector.extract_strided_slice %0 {offsets = [0, 0], sizes = [1, 256], strides = [1, 1]} : vector<9x256xf32> to vector<1x256xf32>
    %7 = vector.broadcast %6 : vector<1x256xf32> to vector<3x256xf32>
    %8 = arith.mulf %5, %7 : vector<3x256xf32>
    %c16_i32 = arith.constant 16 : i32
    %9 = tpu.dynamic_rotate %2 by %c16_i32 dim 1 : vector<3x256xf32>, i32 -> vector<3x256xf32>
    %10 = vector.extract_strided_slice %0 {offsets = [1, 0], sizes = [1, 256], strides = [1, 1]} : vector<9x256xf32> to vector<1x256xf32>
    %11 = vector.broadcast %10 : vector<1x256xf32> to vector<3x256xf32>
    %12 = arith.mulf %9, %11 : vector<3x256xf32>
    %c15_i32 = arith.constant 15 : i32
    %13 = tpu.dynamic_rotate %2 by %c15_i32 dim 1 : vector<3x256xf32>, i32 -> vector<3x256xf32>
    %14 = vector.extract_strided_slice %0 {offsets = [2, 0], sizes = [1, 256], strides = [1, 1]} : vector<9x256xf32> to vector<1x256xf32>
    %15 = vector.broadcast %14 : vector<1x256xf32> to vector<3x256xf32>
    %16 = arith.mulf %13, %15 : vector<3x256xf32>
    %c1_i32 = arith.constant 1 : i32
    %17 = tpu.dynamic_rotate %2 by %c1_i32 dim 1 : vector<3x256xf32>, i32 -> vector<3x256xf32>
    %18 = vector.extract_strided_slice %0 {offsets = [3, 0], sizes = [1, 256], strides = [1, 1]} : vector<9x256xf32> to vector<1x256xf32>
    %19 = vector.broadcast %18 : vector<1x256xf32> to vector<3x256xf32>
    %20 = arith.mulf %17, %19 : vector<3x256xf32>
    %21 = vector.extract_strided_slice %0 {offsets = [4, 0], sizes = [1, 256], strides = [1, 1]} : vector<9x256xf32> to vector<1x256xf32>
    %22 = vector.broadcast %21 : vector<1x256xf32> to vector<3x256xf32>
    %23 = arith.mulf %2, %22 : vector<3x256xf32>
    %c255_i32 = arith.constant 255 : i32
    %24 = tpu.dynamic_rotate %2 by %c255_i32 dim 1 : vector<3x256xf32>, i32 -> vector<3x256xf32>
    %25 = vector.extract_strided_slice %0 {offsets = [5, 0], sizes = [1, 256], strides = [1, 1]} : vector<9x256xf32> to vector<1x256xf32>
    %26 = vector.broadcast %25 : vector<1x256xf32> to vector<3x256xf32>
    %27 = arith.mulf %24, %26 : vector<3x256xf32>
    %c241_i32 = arith.constant 241 : i32
    %28 = tpu.dynamic_rotate %2 by %c241_i32 dim 1 : vector<3x256xf32>, i32 -> vector<3x256xf32>
    %29 = vector.extract_strided_slice %0 {offsets = [6, 0], sizes = [1, 256], strides = [1, 1]} : vector<9x256xf32> to vector<1x256xf32>
    %30 = vector.broadcast %29 : vector<1x256xf32> to vector<3x256xf32>
    %31 = arith.mulf %28, %30 : vector<3x256xf32>
    %c240_i32 = arith.constant 240 : i32
    %32 = tpu.dynamic_rotate %2 by %c240_i32 dim 1 : vector<3x256xf32>, i32 -> vector<3x256xf32>
    %33 = vector.extract_strided_slice %0 {offsets = [7, 0], sizes = [1, 256], strides = [1, 1]} : vector<9x256xf32> to vector<1x256xf32>
    %34 = vector.broadcast %33 : vector<1x256xf32> to vector<3x256xf32>
    %35 = arith.mulf %32, %34 : vector<3x256xf32>
    %c239_i32 = arith.constant 239 : i32
    %36 = tpu.dynamic_rotate %2 by %c239_i32 dim 1 : vector<3x256xf32>, i32 -> vector<3x256xf32>
    %37 = vector.extract_strided_slice %0 {offsets = [8, 0], sizes = [1, 256], strides = [1, 1]} : vector<9x256xf32> to vector<1x256xf32>
    %38 = vector.broadcast %37 : vector<1x256xf32> to vector<3x256xf32>
    %39 = arith.mulf %36, %38 : vector<3x256xf32>
    %40 = tpu.concatenate %8, %12, %16, %20, %23, %27, %31, %35, %39 in 0 : vector<3x256xf32>, vector<3x256xf32>, vector<3x256xf32>, vector<3x256xf32>, vector<3x256xf32>, vector<3x256xf32>, vector<3x256xf32>, vector<3x256xf32>, vector<3x256xf32> -> vector<27x256xf32>
    %41 = arith.truncf %40 : vector<27x256xf32> to vector<27x256xbf16>
    %cst = arith.constant dense<0.000000e+00> : vector<4x256xf32>
    %42 = tpu.matmul %3, %41, %cst {dimension_numbers = #tpu.dot_dimension_numbers<[1], [0], [0], [1], [0, 0, 1, 1], [], []>} : vector<4x27xbf16>, vector<27x256xbf16>, vector<4x256xf32> -> vector<4x256xf32>
    %43 = vector.broadcast %4 : vector<4x1xf32> to vector<4x256xf32>
    %44 = arith.addf %42, %43 : vector<4x256xf32>
    %cst_8 = arith.constant 0.000000e+00 : f32
    %45 = vector.broadcast %cst_8 : f32 to vector<4x256xf32>
    %46 = arith.cmpf oge, %44, %45 : vector<4x256xf32>
    %cst_9 = arith.constant 2.000000e-01 : f32
    %47 = vector.broadcast %cst_9 : f32 to vector<4x256xf32>
    %48 = arith.mulf %47, %44 : vector<4x256xf32>
    %49 = arith.select %46, %44, %48 : vector<4x256xi1>, vector<4x256xf32>
    %c0_10 = arith.constant 0 : index
    %c0_11 = arith.constant 0 : index
    %50 = vector.load %arg5[%c0_10, %c0_11] : memref<4x36xbf16, #tpu.memory_space<vmem>>, vector<4x36xbf16>
    %c0_12 = arith.constant 0 : index
    %c0_13 = arith.constant 0 : index
    %51 = vector.load %arg6[%c0_12, %c0_13] : memref<4x1xf32, #tpu.memory_space<vmem>>, vector<4x1xf32>
    %c17_i32_14 = arith.constant 17 : i32
    %52 = tpu.dynamic_rotate %49 by %c17_i32_14 dim 1 : vector<4x256xf32>, i32 -> vector<4x256xf32>
    %53 = vector.extract_strided_slice %0 {offsets = [0, 0], sizes = [1, 256], strides = [1, 1]} : vector<9x256xf32> to vector<1x256xf32>
    %54 = vector.broadcast %53 : vector<1x256xf32> to vector<4x256xf32>
    %55 = arith.mulf %52, %54 : vector<4x256xf32>
    %c16_i32_15 = arith.constant 16 : i32
    %56 = tpu.dynamic_rotate %49 by %c16_i32_15 dim 1 : vector<4x256xf32>, i32 -> vector<4x256xf32>
    %57 = vector.extract_strided_slice %0 {offsets = [1, 0], sizes = [1, 256], strides = [1, 1]} : vector<9x256xf32> to vector<1x256xf32>
    %58 = vector.broadcast %57 : vector<1x256xf32> to vector<4x256xf32>
    %59 = arith.mulf %56, %58 : vector<4x256xf32>
    %c15_i32_16 = arith.constant 15 : i32
    %60 = tpu.dynamic_rotate %49 by %c15_i32_16 dim 1 : vector<4x256xf32>, i32 -> vector<4x256xf32>
    %61 = vector.extract_strided_slice %0 {offsets = [2, 0], sizes = [1, 256], strides = [1, 1]} : vector<9x256xf32> to vector<1x256xf32>
    %62 = vector.broadcast %61 : vector<1x256xf32> to vector<4x256xf32>
    %63 = arith.mulf %60, %62 : vector<4x256xf32>
    %c1_i32_17 = arith.constant 1 : i32
    %64 = tpu.dynamic_rotate %49 by %c1_i32_17 dim 1 : vector<4x256xf32>, i32 -> vector<4x256xf32>
    %65 = vector.extract_strided_slice %0 {offsets = [3, 0], sizes = [1, 256], strides = [1, 1]} : vector<9x256xf32> to vector<1x256xf32>
    %66 = vector.broadcast %65 : vector<1x256xf32> to vector<4x256xf32>
    %67 = arith.mulf %64, %66 : vector<4x256xf32>
    %68 = vector.extract_strided_slice %0 {offsets = [4, 0], sizes = [1, 256], strides = [1, 1]} : vector<9x256xf32> to vector<1x256xf32>
    %69 = vector.broadcast %68 : vector<1x256xf32> to vector<4x256xf32>
    %70 = arith.mulf %49, %69 : vector<4x256xf32>
    %c255_i32_18 = arith.constant 255 : i32
    %71 = tpu.dynamic_rotate %49 by %c255_i32_18 dim 1 : vector<4x256xf32>, i32 -> vector<4x256xf32>
    %72 = vector.extract_strided_slice %0 {offsets = [5, 0], sizes = [1, 256], strides = [1, 1]} : vector<9x256xf32> to vector<1x256xf32>
    %73 = vector.broadcast %72 : vector<1x256xf32> to vector<4x256xf32>
    %74 = arith.mulf %71, %73 : vector<4x256xf32>
    %c241_i32_19 = arith.constant 241 : i32
    %75 = tpu.dynamic_rotate %49 by %c241_i32_19 dim 1 : vector<4x256xf32>, i32 -> vector<4x256xf32>
    %76 = vector.extract_strided_slice %0 {offsets = [6, 0], sizes = [1, 256], strides = [1, 1]} : vector<9x256xf32> to vector<1x256xf32>
    %77 = vector.broadcast %76 : vector<1x256xf32> to vector<4x256xf32>
    %78 = arith.mulf %75, %77 : vector<4x256xf32>
    %c240_i32_20 = arith.constant 240 : i32
    %79 = tpu.dynamic_rotate %49 by %c240_i32_20 dim 1 : vector<4x256xf32>, i32 -> vector<4x256xf32>
    %80 = vector.extract_strided_slice %0 {offsets = [7, 0], sizes = [1, 256], strides = [1, 1]} : vector<9x256xf32> to vector<1x256xf32>
    %81 = vector.broadcast %80 : vector<1x256xf32> to vector<4x256xf32>
    %82 = arith.mulf %79, %81 : vector<4x256xf32>
    %c239_i32_21 = arith.constant 239 : i32
    %83 = tpu.dynamic_rotate %49 by %c239_i32_21 dim 1 : vector<4x256xf32>, i32 -> vector<4x256xf32>
    %84 = vector.extract_strided_slice %0 {offsets = [8, 0], sizes = [1, 256], strides = [1, 1]} : vector<9x256xf32> to vector<1x256xf32>
    %85 = vector.broadcast %84 : vector<1x256xf32> to vector<4x256xf32>
    %86 = arith.mulf %83, %85 : vector<4x256xf32>
    %87 = tpu.concatenate %55, %59, %63, %67, %70, %74, %78, %82, %86 in 0 : vector<4x256xf32>, vector<4x256xf32>, vector<4x256xf32>, vector<4x256xf32>, vector<4x256xf32>, vector<4x256xf32>, vector<4x256xf32>, vector<4x256xf32>, vector<4x256xf32> -> vector<36x256xf32>
    %88 = arith.truncf %87 : vector<36x256xf32> to vector<36x256xbf16>
    %cst_22 = arith.constant dense<0.000000e+00> : vector<4x256xf32>
    %89 = tpu.matmul %50, %88, %cst_22 {dimension_numbers = #tpu.dot_dimension_numbers<[1], [0], [0], [1], [0, 0, 1, 1], [], []>} : vector<4x36xbf16>, vector<36x256xbf16>, vector<4x256xf32> -> vector<4x256xf32>
    %90 = vector.broadcast %51 : vector<4x1xf32> to vector<4x256xf32>
    %91 = arith.addf %89, %90 : vector<4x256xf32>
    %cst_23 = arith.constant 0.000000e+00 : f32
    %92 = vector.broadcast %cst_23 : f32 to vector<4x256xf32>
    %93 = arith.cmpf oge, %91, %92 : vector<4x256xf32>
    %cst_24 = arith.constant 2.000000e-01 : f32
    %94 = vector.broadcast %cst_24 : f32 to vector<4x256xf32>
    %95 = arith.mulf %94, %91 : vector<4x256xf32>
    %96 = arith.select %93, %91, %95 : vector<4x256xi1>, vector<4x256xf32>
    %c0_25 = arith.constant 0 : index
    %c0_26 = arith.constant 0 : index
    %97 = vector.load %arg7[%c0_25, %c0_26] : memref<4x36xbf16, #tpu.memory_space<vmem>>, vector<4x36xbf16>
    %c0_27 = arith.constant 0 : index
    %c0_28 = arith.constant 0 : index
    %98 = vector.load %arg8[%c0_27, %c0_28] : memref<4x1xf32, #tpu.memory_space<vmem>>, vector<4x1xf32>
    %c17_i32_29 = arith.constant 17 : i32
    %99 = tpu.dynamic_rotate %96 by %c17_i32_29 dim 1 : vector<4x256xf32>, i32 -> vector<4x256xf32>
    %100 = vector.extract_strided_slice %0 {offsets = [0, 0], sizes = [1, 256], strides = [1, 1]} : vector<9x256xf32> to vector<1x256xf32>
    %101 = vector.broadcast %100 : vector<1x256xf32> to vector<4x256xf32>
    %102 = arith.mulf %99, %101 : vector<4x256xf32>
    %c16_i32_30 = arith.constant 16 : i32
    %103 = tpu.dynamic_rotate %96 by %c16_i32_30 dim 1 : vector<4x256xf32>, i32 -> vector<4x256xf32>
    %104 = vector.extract_strided_slice %0 {offsets = [1, 0], sizes = [1, 256], strides = [1, 1]} : vector<9x256xf32> to vector<1x256xf32>
    %105 = vector.broadcast %104 : vector<1x256xf32> to vector<4x256xf32>
    %106 = arith.mulf %103, %105 : vector<4x256xf32>
    %c15_i32_31 = arith.constant 15 : i32
    %107 = tpu.dynamic_rotate %96 by %c15_i32_31 dim 1 : vector<4x256xf32>, i32 -> vector<4x256xf32>
    %108 = vector.extract_strided_slice %0 {offsets = [2, 0], sizes = [1, 256], strides = [1, 1]} : vector<9x256xf32> to vector<1x256xf32>
    %109 = vector.broadcast %108 : vector<1x256xf32> to vector<4x256xf32>
    %110 = arith.mulf %107, %109 : vector<4x256xf32>
    %c1_i32_32 = arith.constant 1 : i32
    %111 = tpu.dynamic_rotate %96 by %c1_i32_32 dim 1 : vector<4x256xf32>, i32 -> vector<4x256xf32>
    %112 = vector.extract_strided_slice %0 {offsets = [3, 0], sizes = [1, 256], strides = [1, 1]} : vector<9x256xf32> to vector<1x256xf32>
    %113 = vector.broadcast %112 : vector<1x256xf32> to vector<4x256xf32>
    %114 = arith.mulf %111, %113 : vector<4x256xf32>
    %115 = vector.extract_strided_slice %0 {offsets = [4, 0], sizes = [1, 256], strides = [1, 1]} : vector<9x256xf32> to vector<1x256xf32>
    %116 = vector.broadcast %115 : vector<1x256xf32> to vector<4x256xf32>
    %117 = arith.mulf %96, %116 : vector<4x256xf32>
    %c255_i32_33 = arith.constant 255 : i32
    %118 = tpu.dynamic_rotate %96 by %c255_i32_33 dim 1 : vector<4x256xf32>, i32 -> vector<4x256xf32>
    %119 = vector.extract_strided_slice %0 {offsets = [5, 0], sizes = [1, 256], strides = [1, 1]} : vector<9x256xf32> to vector<1x256xf32>
    %120 = vector.broadcast %119 : vector<1x256xf32> to vector<4x256xf32>
    %121 = arith.mulf %118, %120 : vector<4x256xf32>
    %c241_i32_34 = arith.constant 241 : i32
    %122 = tpu.dynamic_rotate %96 by %c241_i32_34 dim 1 : vector<4x256xf32>, i32 -> vector<4x256xf32>
    %123 = vector.extract_strided_slice %0 {offsets = [6, 0], sizes = [1, 256], strides = [1, 1]} : vector<9x256xf32> to vector<1x256xf32>
    %124 = vector.broadcast %123 : vector<1x256xf32> to vector<4x256xf32>
    %125 = arith.mulf %122, %124 : vector<4x256xf32>
    %c240_i32_35 = arith.constant 240 : i32
    %126 = tpu.dynamic_rotate %96 by %c240_i32_35 dim 1 : vector<4x256xf32>, i32 -> vector<4x256xf32>
    %127 = vector.extract_strided_slice %0 {offsets = [7, 0], sizes = [1, 256], strides = [1, 1]} : vector<9x256xf32> to vector<1x256xf32>
    %128 = vector.broadcast %127 : vector<1x256xf32> to vector<4x256xf32>
    %129 = arith.mulf %126, %128 : vector<4x256xf32>
    %c239_i32_36 = arith.constant 239 : i32
    %130 = tpu.dynamic_rotate %96 by %c239_i32_36 dim 1 : vector<4x256xf32>, i32 -> vector<4x256xf32>
    %131 = vector.extract_strided_slice %0 {offsets = [8, 0], sizes = [1, 256], strides = [1, 1]} : vector<9x256xf32> to vector<1x256xf32>
    %132 = vector.broadcast %131 : vector<1x256xf32> to vector<4x256xf32>
    %133 = arith.mulf %130, %132 : vector<4x256xf32>
    %134 = tpu.concatenate %102, %106, %110, %114, %117, %121, %125, %129, %133 in 0 : vector<4x256xf32>, vector<4x256xf32>, vector<4x256xf32>, vector<4x256xf32>, vector<4x256xf32>, vector<4x256xf32>, vector<4x256xf32>, vector<4x256xf32>, vector<4x256xf32> -> vector<36x256xf32>
    %135 = arith.truncf %134 : vector<36x256xf32> to vector<36x256xbf16>
    %cst_37 = arith.constant dense<0.000000e+00> : vector<4x256xf32>
    %136 = tpu.matmul %97, %135, %cst_37 {dimension_numbers = #tpu.dot_dimension_numbers<[1], [0], [0], [1], [0, 0, 1, 1], [], []>} : vector<4x36xbf16>, vector<36x256xbf16>, vector<4x256xf32> -> vector<4x256xf32>
    %137 = vector.broadcast %98 : vector<4x1xf32> to vector<4x256xf32>
    %138 = arith.addf %136, %137 : vector<4x256xf32>
    %cst_38 = arith.constant 0.000000e+00 : f32
    %139 = vector.broadcast %cst_38 : f32 to vector<4x256xf32>
    %140 = arith.cmpf oge, %138, %139 : vector<4x256xf32>
    %cst_39 = arith.constant 2.000000e-01 : f32
    %141 = vector.broadcast %cst_39 : f32 to vector<4x256xf32>
    %142 = arith.mulf %141, %138 : vector<4x256xf32>
    %143 = arith.select %140, %138, %142 : vector<4x256xi1>, vector<4x256xf32>
    %c0_40 = arith.constant 0 : index
    %c0_41 = arith.constant 0 : index
    %c0_42 = arith.constant 0 : index
    %144 = vector.load %arg10[%c0_40, %c0_41, %c0_42] : memref<1x4x256xf32, #tpu.memory_space<vmem>>, vector<1x4x256xf32>
    %145 = vector.shape_cast %144 : vector<1x4x256xf32> to vector<4x256xf32>
    %146 = vector.shape_cast %143 : vector<4x256xf32> to vector<1x4x256xf32>
    tpu.vector_store %arg10[%c0_40, %c0_41, %c0_42], %146 {strides = array<i32>} : memref<1x4x256xf32, #tpu.memory_space<vmem>>, vector<1x4x256xf32>,
    %147 = arith.truncf %143 : vector<4x256xf32> to vector<4x256xbf16>
    %c0_43 = arith.constant 0 : index
    %c0_44 = arith.constant 0 : index
    %148 = vector.load %arg9[%c0_43, %c0_44] : memref<256x64xbf16, #tpu.memory_space<vmem>>, vector<256x64xbf16>
    %cst_45 = arith.constant dense<0.000000e+00> : vector<4x64xf32>
    %149 = tpu.matmul %147, %148, %cst_45 {dimension_numbers = #tpu.dot_dimension_numbers<[1], [0], [0], [1], [0, 0, 1, 1], [], []>} : vector<4x256xbf16>, vector<256x64xbf16>, vector<4x64xf32> -> vector<4x64xf32>
    %c0_46 = arith.constant 0 : index
    %c0_47 = arith.constant 0 : index
    %c0_48 = arith.constant 0 : index
    %150 = vector.load %arg11[%c0_46, %c0_47, %c0_48] : memref<1x4x64xf32, #tpu.memory_space<vmem>>, vector<1x4x64xf32>
    %151 = vector.shape_cast %150 : vector<1x4x64xf32> to vector<4x64xf32>
    %152 = vector.shape_cast %149 : vector<4x64xf32> to vector<1x4x64xf32>
    tpu.vector_store %arg11[%c0_46, %c0_47, %c0_48], %152 {strides = array<i32>} : memref<1x4x64xf32, #tpu.memory_space<vmem>>, vector<1x4x64xf32>,
    return
  }
  func.func @transform_0(%arg0: i32) -> (i32, i32, i32) {
    %c0_i32 = arith.constant 0 : i32
    %c0_i32_0 = arith.constant 0 : i32
    %c0_i32_1 = arith.constant 0 : i32
    return %arg0, %c0_i32, %c0_i32_0 : i32, i32, i32
  }
  func.func @transform_1(%arg0: i32) -> (i32, i32) {
    %c0_i32 = arith.constant 0 : i32
    %c0_i32_0 = arith.constant 0 : i32
    %c0_i32_1 = arith.constant 0 : i32
    return %c0_i32, %c0_i32_0 : i32, i32
  }
  func.func @transform_2(%arg0: i32) -> (i32, i32) {
    %c0_i32 = arith.constant 0 : i32
    %c0_i32_0 = arith.constant 0 : i32
    %c0_i32_1 = arith.constant 0 : i32
    return %c0_i32, %c0_i32_0 : i32, i32
  }
  func.func @transform_3(%arg0: i32) -> (i32, i32) {
    %c0_i32 = arith.constant 0 : i32
    %c0_i32_0 = arith.constant 0 : i32
    %c0_i32_1 = arith.constant 0 : i32
    return %c0_i32, %c0_i32_0 : i32, i32
  }
  func.func @transform_4(%arg0: i32) -> (i32, i32) {
    %c0_i32 = arith.constant 0 : i32
    %c0_i32_0 = arith.constant 0 : i32
    %c0_i32_1 = arith.constant 0 : i32
    return %c0_i32, %c0_i32_0 : i32, i32
  }
  func.func @transform_5(%arg0: i32) -> (i32, i32) {
    %c0_i32 = arith.constant 0 : i32
    %c0_i32_0 = arith.constant 0 : i32
    %c0_i32_1 = arith.constant 0 : i32
    return %c0_i32, %c0_i32_0 : i32, i32
  }
  func.func @transform_6(%arg0: i32) -> (i32, i32) {
    %c0_i32 = arith.constant 0 : i32
    %c0_i32_0 = arith.constant 0 : i32
    %c0_i32_1 = arith.constant 0 : i32
    return %c0_i32, %c0_i32_0 : i32, i32
  }
  func.func @transform_7(%arg0: i32) -> (i32, i32) {
    %c0_i32 = arith.constant 0 : i32
    %c0_i32_0 = arith.constant 0 : i32
    %c0_i32_1 = arith.constant 0 : i32
    return %c0_i32, %c0_i32_0 : i32, i32
  }
  func.func @transform_8(%arg0: i32) -> (i32, i32) {
    %c0_i32 = arith.constant 0 : i32
    %c0_i32_0 = arith.constant 0 : i32
    %c0_i32_1 = arith.constant 0 : i32
    return %c0_i32, %c0_i32_0 : i32, i32
  }
  func.func @transform_9(%arg0: i32) -> (i32, i32, i32) {
    %c0_i32 = arith.constant 0 : i32
    %c0_i32_0 = arith.constant 0 : i32
    %c0_i32_1 = arith.constant 0 : i32
    return %arg0, %c0_i32, %c0_i32_0 : i32, i32, i32
  }
  func.func @transform_10(%arg0: i32) -> (i32, i32, i32) {
    %c0_i32 = arith.constant 0 : i32
    %c0_i32_0 = arith.constant 0 : i32
    %c0_i32_1 = arith.constant 0 : i32
    return %arg0, %c0_i32, %c0_i32_0 : i32, i32, i32
  }
}

module attributes {stable_mosaic.version = 11 : i64} {
  func.func @kernel(%arg0: i32, %arg1: memref<1x4x64xf32, #tpu.memory_space<vmem>>, %arg2: memref<9x64xf32, #tpu.memory_space<vmem>>, %arg3: memref<8x36xbf16, #tpu.memory_space<vmem>>, %arg4: memref<8x1xf32, #tpu.memory_space<vmem>>, %arg5: memref<8x72xbf16, #tpu.memory_space<vmem>>, %arg6: memref<8x1xf32, #tpu.memory_space<vmem>>, %arg7: memref<64x16xbf16, #tpu.memory_space<vmem>>, %arg8: memref<8x16xf32, #tpu.memory_space<vmem>>, %arg9: memref<1x16xf32, #tpu.memory_space<vmem>>, %arg10: memref<1x8x64xf32, #tpu.memory_space<vmem>>, %arg11: memref<1x8x16xf32, #tpu.memory_space<vmem>>, %arg12: memref<1x1x16xf32, #tpu.memory_space<vmem>>) attributes {dimension_semantics = [#tpu.dimension_semantics<parallel>], iteration_bounds = array<i64: 2>, scalar_prefetch = 0 : i64, scratch_operands = 0 : i64, tpu.core_type = #tpu.core_type<tc>, window_params = [{transform_indices = @transform_0, window_bounds = array<i64: 1, 4, 64>}, {pipeline_mode = #tpu.pipeline_mode<synchronous>, transform_indices = @transform_1, window_bounds = array<i64: 9, 64>}, {pipeline_mode = #tpu.pipeline_mode<synchronous>, transform_indices = @transform_2, window_bounds = array<i64: 8, 36>}, {pipeline_mode = #tpu.pipeline_mode<synchronous>, transform_indices = @transform_3, window_bounds = array<i64: 8, 1>}, {pipeline_mode = #tpu.pipeline_mode<synchronous>, transform_indices = @transform_4, window_bounds = array<i64: 8, 72>}, {pipeline_mode = #tpu.pipeline_mode<synchronous>, transform_indices = @transform_5, window_bounds = array<i64: 8, 1>}, {pipeline_mode = #tpu.pipeline_mode<synchronous>, transform_indices = @transform_6, window_bounds = array<i64: 64, 16>}, {pipeline_mode = #tpu.pipeline_mode<synchronous>, transform_indices = @transform_7, window_bounds = array<i64: 8, 16>}, {pipeline_mode = #tpu.pipeline_mode<synchronous>, transform_indices = @transform_8, window_bounds = array<i64: 1, 16>}, {transform_indices = @transform_9, window_bounds = array<i64: 1, 8, 64>}, {transform_indices = @transform_10, window_bounds = array<i64: 1, 8, 16>}, {transform_indices = @transform_11, window_bounds = array<i64: 1, 1, 16>}]} {
    %c0 = arith.constant 0 : index
    %c0_0 = arith.constant 0 : index
    %0 = vector.load %arg2[%c0, %c0_0] : memref<9x64xf32, #tpu.memory_space<vmem>>, vector<9x64xf32>
    %c0_1 = arith.constant 0 : index
    %c0_2 = arith.constant 0 : index
    %c0_3 = arith.constant 0 : index
    %1 = vector.load %arg1[%c0_1, %c0_2, %c0_3] : memref<1x4x64xf32, #tpu.memory_space<vmem>>, vector<1x4x64xf32>
    %2 = vector.shape_cast %1 : vector<1x4x64xf32> to vector<4x64xf32>
    %c0_4 = arith.constant 0 : index
    %c0_5 = arith.constant 0 : index
    %3 = vector.load %arg3[%c0_4, %c0_5] : memref<8x36xbf16, #tpu.memory_space<vmem>>, vector<8x36xbf16>
    %c0_6 = arith.constant 0 : index
    %c0_7 = arith.constant 0 : index
    %4 = vector.load %arg4[%c0_6, %c0_7] : memref<8x1xf32, #tpu.memory_space<vmem>>, vector<8x1xf32>
    %c9_i32 = arith.constant 9 : i32
    %5 = tpu.dynamic_rotate %2 by %c9_i32 dim 1 : vector<4x64xf32>, i32 -> vector<4x64xf32>
    %6 = vector.extract_strided_slice %0 {offsets = [0, 0], sizes = [1, 64], strides = [1, 1]} : vector<9x64xf32> to vector<1x64xf32>
    %7 = vector.broadcast %6 : vector<1x64xf32> to vector<4x64xf32>
    %8 = arith.mulf %5, %7 : vector<4x64xf32>
    %c8_i32 = arith.constant 8 : i32
    %9 = tpu.dynamic_rotate %2 by %c8_i32 dim 1 : vector<4x64xf32>, i32 -> vector<4x64xf32>
    %10 = vector.extract_strided_slice %0 {offsets = [1, 0], sizes = [1, 64], strides = [1, 1]} : vector<9x64xf32> to vector<1x64xf32>
    %11 = vector.broadcast %10 : vector<1x64xf32> to vector<4x64xf32>
    %12 = arith.mulf %9, %11 : vector<4x64xf32>
    %c7_i32 = arith.constant 7 : i32
    %13 = tpu.dynamic_rotate %2 by %c7_i32 dim 1 : vector<4x64xf32>, i32 -> vector<4x64xf32>
    %14 = vector.extract_strided_slice %0 {offsets = [2, 0], sizes = [1, 64], strides = [1, 1]} : vector<9x64xf32> to vector<1x64xf32>
    %15 = vector.broadcast %14 : vector<1x64xf32> to vector<4x64xf32>
    %16 = arith.mulf %13, %15 : vector<4x64xf32>
    %c1_i32 = arith.constant 1 : i32
    %17 = tpu.dynamic_rotate %2 by %c1_i32 dim 1 : vector<4x64xf32>, i32 -> vector<4x64xf32>
    %18 = vector.extract_strided_slice %0 {offsets = [3, 0], sizes = [1, 64], strides = [1, 1]} : vector<9x64xf32> to vector<1x64xf32>
    %19 = vector.broadcast %18 : vector<1x64xf32> to vector<4x64xf32>
    %20 = arith.mulf %17, %19 : vector<4x64xf32>
    %21 = vector.extract_strided_slice %0 {offsets = [4, 0], sizes = [1, 64], strides = [1, 1]} : vector<9x64xf32> to vector<1x64xf32>
    %22 = vector.broadcast %21 : vector<1x64xf32> to vector<4x64xf32>
    %23 = arith.mulf %2, %22 : vector<4x64xf32>
    %c63_i32 = arith.constant 63 : i32
    %24 = tpu.dynamic_rotate %2 by %c63_i32 dim 1 : vector<4x64xf32>, i32 -> vector<4x64xf32>
    %25 = vector.extract_strided_slice %0 {offsets = [5, 0], sizes = [1, 64], strides = [1, 1]} : vector<9x64xf32> to vector<1x64xf32>
    %26 = vector.broadcast %25 : vector<1x64xf32> to vector<4x64xf32>
    %27 = arith.mulf %24, %26 : vector<4x64xf32>
    %c57_i32 = arith.constant 57 : i32
    %28 = tpu.dynamic_rotate %2 by %c57_i32 dim 1 : vector<4x64xf32>, i32 -> vector<4x64xf32>
    %29 = vector.extract_strided_slice %0 {offsets = [6, 0], sizes = [1, 64], strides = [1, 1]} : vector<9x64xf32> to vector<1x64xf32>
    %30 = vector.broadcast %29 : vector<1x64xf32> to vector<4x64xf32>
    %31 = arith.mulf %28, %30 : vector<4x64xf32>
    %c56_i32 = arith.constant 56 : i32
    %32 = tpu.dynamic_rotate %2 by %c56_i32 dim 1 : vector<4x64xf32>, i32 -> vector<4x64xf32>
    %33 = vector.extract_strided_slice %0 {offsets = [7, 0], sizes = [1, 64], strides = [1, 1]} : vector<9x64xf32> to vector<1x64xf32>
    %34 = vector.broadcast %33 : vector<1x64xf32> to vector<4x64xf32>
    %35 = arith.mulf %32, %34 : vector<4x64xf32>
    %c55_i32 = arith.constant 55 : i32
    %36 = tpu.dynamic_rotate %2 by %c55_i32 dim 1 : vector<4x64xf32>, i32 -> vector<4x64xf32>
    %37 = vector.extract_strided_slice %0 {offsets = [8, 0], sizes = [1, 64], strides = [1, 1]} : vector<9x64xf32> to vector<1x64xf32>
    %38 = vector.broadcast %37 : vector<1x64xf32> to vector<4x64xf32>
    %39 = arith.mulf %36, %38 : vector<4x64xf32>
    %40 = tpu.concatenate %8, %12, %16, %20, %23, %27, %31, %35, %39 in 0 : vector<4x64xf32>, vector<4x64xf32>, vector<4x64xf32>, vector<4x64xf32>, vector<4x64xf32>, vector<4x64xf32>, vector<4x64xf32>, vector<4x64xf32>, vector<4x64xf32> -> vector<36x64xf32>
    %41 = arith.truncf %40 : vector<36x64xf32> to vector<36x64xbf16>
    %cst = arith.constant dense<0.000000e+00> : vector<8x64xf32>
    %42 = tpu.matmul %3, %41, %cst {dimension_numbers = #tpu.dot_dimension_numbers<[1], [0], [0], [1], [0, 0, 1, 1], [], []>} : vector<8x36xbf16>, vector<36x64xbf16>, vector<8x64xf32> -> vector<8x64xf32>
    %43 = vector.broadcast %4 : vector<8x1xf32> to vector<8x64xf32>
    %44 = arith.addf %42, %43 : vector<8x64xf32>
    %cst_8 = arith.constant 0.000000e+00 : f32
    %45 = vector.broadcast %cst_8 : f32 to vector<8x64xf32>
    %46 = arith.cmpf oge, %44, %45 : vector<8x64xf32>
    %cst_9 = arith.constant 2.000000e-01 : f32
    %47 = vector.broadcast %cst_9 : f32 to vector<8x64xf32>
    %48 = arith.mulf %47, %44 : vector<8x64xf32>
    %49 = arith.select %46, %44, %48 : vector<8x64xi1>, vector<8x64xf32>
    %c0_10 = arith.constant 0 : index
    %c0_11 = arith.constant 0 : index
    %50 = vector.load %arg5[%c0_10, %c0_11] : memref<8x72xbf16, #tpu.memory_space<vmem>>, vector<8x72xbf16>
    %c0_12 = arith.constant 0 : index
    %c0_13 = arith.constant 0 : index
    %51 = vector.load %arg6[%c0_12, %c0_13] : memref<8x1xf32, #tpu.memory_space<vmem>>, vector<8x1xf32>
    %c9_i32_14 = arith.constant 9 : i32
    %52 = tpu.dynamic_rotate %49 by %c9_i32_14 dim 1 : vector<8x64xf32>, i32 -> vector<8x64xf32>
    %53 = vector.extract_strided_slice %0 {offsets = [0, 0], sizes = [1, 64], strides = [1, 1]} : vector<9x64xf32> to vector<1x64xf32>
    %54 = vector.broadcast %53 : vector<1x64xf32> to vector<8x64xf32>
    %55 = arith.mulf %52, %54 : vector<8x64xf32>
    %c8_i32_15 = arith.constant 8 : i32
    %56 = tpu.dynamic_rotate %49 by %c8_i32_15 dim 1 : vector<8x64xf32>, i32 -> vector<8x64xf32>
    %57 = vector.extract_strided_slice %0 {offsets = [1, 0], sizes = [1, 64], strides = [1, 1]} : vector<9x64xf32> to vector<1x64xf32>
    %58 = vector.broadcast %57 : vector<1x64xf32> to vector<8x64xf32>
    %59 = arith.mulf %56, %58 : vector<8x64xf32>
    %c7_i32_16 = arith.constant 7 : i32
    %60 = tpu.dynamic_rotate %49 by %c7_i32_16 dim 1 : vector<8x64xf32>, i32 -> vector<8x64xf32>
    %61 = vector.extract_strided_slice %0 {offsets = [2, 0], sizes = [1, 64], strides = [1, 1]} : vector<9x64xf32> to vector<1x64xf32>
    %62 = vector.broadcast %61 : vector<1x64xf32> to vector<8x64xf32>
    %63 = arith.mulf %60, %62 : vector<8x64xf32>
    %c1_i32_17 = arith.constant 1 : i32
    %64 = tpu.dynamic_rotate %49 by %c1_i32_17 dim 1 : vector<8x64xf32>, i32 -> vector<8x64xf32>
    %65 = vector.extract_strided_slice %0 {offsets = [3, 0], sizes = [1, 64], strides = [1, 1]} : vector<9x64xf32> to vector<1x64xf32>
    %66 = vector.broadcast %65 : vector<1x64xf32> to vector<8x64xf32>
    %67 = arith.mulf %64, %66 : vector<8x64xf32>
    %68 = vector.extract_strided_slice %0 {offsets = [4, 0], sizes = [1, 64], strides = [1, 1]} : vector<9x64xf32> to vector<1x64xf32>
    %69 = vector.broadcast %68 : vector<1x64xf32> to vector<8x64xf32>
    %70 = arith.mulf %49, %69 : vector<8x64xf32>
    %c63_i32_18 = arith.constant 63 : i32
    %71 = tpu.dynamic_rotate %49 by %c63_i32_18 dim 1 : vector<8x64xf32>, i32 -> vector<8x64xf32>
    %72 = vector.extract_strided_slice %0 {offsets = [5, 0], sizes = [1, 64], strides = [1, 1]} : vector<9x64xf32> to vector<1x64xf32>
    %73 = vector.broadcast %72 : vector<1x64xf32> to vector<8x64xf32>
    %74 = arith.mulf %71, %73 : vector<8x64xf32>
    %c57_i32_19 = arith.constant 57 : i32
    %75 = tpu.dynamic_rotate %49 by %c57_i32_19 dim 1 : vector<8x64xf32>, i32 -> vector<8x64xf32>
    %76 = vector.extract_strided_slice %0 {offsets = [6, 0], sizes = [1, 64], strides = [1, 1]} : vector<9x64xf32> to vector<1x64xf32>
    %77 = vector.broadcast %76 : vector<1x64xf32> to vector<8x64xf32>
    %78 = arith.mulf %75, %77 : vector<8x64xf32>
    %c56_i32_20 = arith.constant 56 : i32
    %79 = tpu.dynamic_rotate %49 by %c56_i32_20 dim 1 : vector<8x64xf32>, i32 -> vector<8x64xf32>
    %80 = vector.extract_strided_slice %0 {offsets = [7, 0], sizes = [1, 64], strides = [1, 1]} : vector<9x64xf32> to vector<1x64xf32>
    %81 = vector.broadcast %80 : vector<1x64xf32> to vector<8x64xf32>
    %82 = arith.mulf %79, %81 : vector<8x64xf32>
    %c55_i32_21 = arith.constant 55 : i32
    %83 = tpu.dynamic_rotate %49 by %c55_i32_21 dim 1 : vector<8x64xf32>, i32 -> vector<8x64xf32>
    %84 = vector.extract_strided_slice %0 {offsets = [8, 0], sizes = [1, 64], strides = [1, 1]} : vector<9x64xf32> to vector<1x64xf32>
    %85 = vector.broadcast %84 : vector<1x64xf32> to vector<8x64xf32>
    %86 = arith.mulf %83, %85 : vector<8x64xf32>
    %87 = tpu.concatenate %55, %59, %63, %67, %70, %74, %78, %82, %86 in 0 : vector<8x64xf32>, vector<8x64xf32>, vector<8x64xf32>, vector<8x64xf32>, vector<8x64xf32>, vector<8x64xf32>, vector<8x64xf32>, vector<8x64xf32>, vector<8x64xf32> -> vector<72x64xf32>
    %88 = arith.truncf %87 : vector<72x64xf32> to vector<72x64xbf16>
    %cst_22 = arith.constant dense<0.000000e+00> : vector<8x64xf32>
    %89 = tpu.matmul %50, %88, %cst_22 {dimension_numbers = #tpu.dot_dimension_numbers<[1], [0], [0], [1], [0, 0, 1, 1], [], []>} : vector<8x72xbf16>, vector<72x64xbf16>, vector<8x64xf32> -> vector<8x64xf32>
    %90 = vector.broadcast %51 : vector<8x1xf32> to vector<8x64xf32>
    %91 = arith.addf %89, %90 : vector<8x64xf32>
    %cst_23 = arith.constant 0.000000e+00 : f32
    %92 = vector.broadcast %cst_23 : f32 to vector<8x64xf32>
    %93 = arith.cmpf oge, %91, %92 : vector<8x64xf32>
    %cst_24 = arith.constant 2.000000e-01 : f32
    %94 = vector.broadcast %cst_24 : f32 to vector<8x64xf32>
    %95 = arith.mulf %94, %91 : vector<8x64xf32>
    %96 = arith.select %93, %91, %95 : vector<8x64xi1>, vector<8x64xf32>
    %c0_25 = arith.constant 0 : index
    %c0_26 = arith.constant 0 : index
    %c0_27 = arith.constant 0 : index
    %97 = vector.load %arg10[%c0_25, %c0_26, %c0_27] : memref<1x8x64xf32, #tpu.memory_space<vmem>>, vector<1x8x64xf32>
    %98 = vector.shape_cast %97 : vector<1x8x64xf32> to vector<8x64xf32>
    %99 = vector.shape_cast %96 : vector<8x64xf32> to vector<1x8x64xf32>
    tpu.vector_store %arg10[%c0_25, %c0_26, %c0_27], %99 {strides = array<i32>} : memref<1x8x64xf32, #tpu.memory_space<vmem>>, vector<1x8x64xf32>,
    %100 = arith.truncf %96 : vector<8x64xf32> to vector<8x64xbf16>
    %c0_28 = arith.constant 0 : index
    %c0_29 = arith.constant 0 : index
    %101 = vector.load %arg7[%c0_28, %c0_29] : memref<64x16xbf16, #tpu.memory_space<vmem>>, vector<64x16xbf16>
    %cst_30 = arith.constant dense<0.000000e+00> : vector<8x16xf32>
    %102 = tpu.matmul %100, %101, %cst_30 {dimension_numbers = #tpu.dot_dimension_numbers<[1], [0], [0], [1], [0, 0, 1, 1], [], []>} : vector<8x64xbf16>, vector<64x16xbf16>, vector<8x16xf32> -> vector<8x16xf32>
    %c0_31 = arith.constant 0 : index
    %c0_32 = arith.constant 0 : index
    %c0_33 = arith.constant 0 : index
    %103 = vector.load %arg11[%c0_31, %c0_32, %c0_33] : memref<1x8x16xf32, #tpu.memory_space<vmem>>, vector<1x8x16xf32>
    %104 = vector.shape_cast %103 : vector<1x8x16xf32> to vector<8x16xf32>
    %105 = vector.shape_cast %102 : vector<8x16xf32> to vector<1x8x16xf32>
    tpu.vector_store %arg11[%c0_31, %c0_32, %c0_33], %105 {strides = array<i32>} : memref<1x8x16xf32, #tpu.memory_space<vmem>>, vector<1x8x16xf32>,
    %cst_34 = arith.constant dense<0.000000e+00> : vector<8xf32>
    %106 = vector.multi_reduction <add>, %102, %cst_34 [1] : vector<8x16xf32> to vector<8xf32>
    %107 = vector.shape_cast %106 : vector<8xf32> to vector<8x1xf32>
    %cst_35 = arith.constant 1.600000e+01 : f32
    %108 = vector.broadcast %cst_35 : f32 to vector<8x1xf32>
    %109 = arith.divf %107, %108 : vector<8x1xf32>
    %c0_36 = arith.constant 0 : index
    %c0_37 = arith.constant 0 : index
    %110 = vector.load %arg8[%c0_36, %c0_37] : memref<8x16xf32, #tpu.memory_space<vmem>>, vector<8x16xf32>
    %111 = vector.broadcast %109 : vector<8x1xf32> to vector<8x16xf32>
    %112 = arith.mulf %110, %111 : vector<8x16xf32>
    %cst_38 = arith.constant dense<0.000000e+00> : vector<16xf32>
    %113 = vector.multi_reduction <add>, %112, %cst_38 [0] : vector<8x16xf32> to vector<16xf32>
    %114 = vector.shape_cast %113 : vector<16xf32> to vector<1x16xf32>
    %c0_39 = arith.constant 0 : index
    %c0_40 = arith.constant 0 : index
    %115 = vector.load %arg9[%c0_39, %c0_40] : memref<1x16xf32, #tpu.memory_space<vmem>>, vector<1x16xf32>
    %116 = arith.addf %114, %115 : vector<1x16xf32>
    %c0_41 = arith.constant 0 : index
    %c0_42 = arith.constant 0 : index
    %c0_43 = arith.constant 0 : index
    %117 = vector.load %arg12[%c0_41, %c0_42, %c0_43] : memref<1x1x16xf32, #tpu.memory_space<vmem>>, vector<1x1x16xf32>
    %118 = vector.shape_cast %117 : vector<1x1x16xf32> to vector<1x16xf32>
    %119 = vector.shape_cast %116 : vector<1x16xf32> to vector<1x1x16xf32>
    tpu.vector_store %arg12[%c0_41, %c0_42, %c0_43], %119 {strides = array<i32>} : memref<1x1x16xf32, #tpu.memory_space<vmem>>, vector<1x1x16xf32>,
    return
  }
  func.func @transform_0(%arg0: i32) -> (i32, i32, i32) {
    %c0_i32 = arith.constant 0 : i32
    %c0_i32_0 = arith.constant 0 : i32
    %c0_i32_1 = arith.constant 0 : i32
    return %arg0, %c0_i32, %c0_i32_0 : i32, i32, i32
  }
  func.func @transform_1(%arg0: i32) -> (i32, i32) {
    %c0_i32 = arith.constant 0 : i32
    %c0_i32_0 = arith.constant 0 : i32
    %c0_i32_1 = arith.constant 0 : i32
    return %c0_i32, %c0_i32_0 : i32, i32
  }
  func.func @transform_2(%arg0: i32) -> (i32, i32) {
    %c0_i32 = arith.constant 0 : i32
    %c0_i32_0 = arith.constant 0 : i32
    %c0_i32_1 = arith.constant 0 : i32
    return %c0_i32, %c0_i32_0 : i32, i32
  }
  func.func @transform_3(%arg0: i32) -> (i32, i32) {
    %c0_i32 = arith.constant 0 : i32
    %c0_i32_0 = arith.constant 0 : i32
    %c0_i32_1 = arith.constant 0 : i32
    return %c0_i32, %c0_i32_0 : i32, i32
  }
  func.func @transform_4(%arg0: i32) -> (i32, i32) {
    %c0_i32 = arith.constant 0 : i32
    %c0_i32_0 = arith.constant 0 : i32
    %c0_i32_1 = arith.constant 0 : i32
    return %c0_i32, %c0_i32_0 : i32, i32
  }
  func.func @transform_5(%arg0: i32) -> (i32, i32) {
    %c0_i32 = arith.constant 0 : i32
    %c0_i32_0 = arith.constant 0 : i32
    %c0_i32_1 = arith.constant 0 : i32
    return %c0_i32, %c0_i32_0 : i32, i32
  }
  func.func @transform_6(%arg0: i32) -> (i32, i32) {
    %c0_i32 = arith.constant 0 : i32
    %c0_i32_0 = arith.constant 0 : i32
    %c0_i32_1 = arith.constant 0 : i32
    return %c0_i32, %c0_i32_0 : i32, i32
  }
  func.func @transform_7(%arg0: i32) -> (i32, i32) {
    %c0_i32 = arith.constant 0 : i32
    %c0_i32_0 = arith.constant 0 : i32
    %c0_i32_1 = arith.constant 0 : i32
    return %c0_i32, %c0_i32_0 : i32, i32
  }
  func.func @transform_8(%arg0: i32) -> (i32, i32) {
    %c0_i32 = arith.constant 0 : i32
    %c0_i32_0 = arith.constant 0 : i32
    %c0_i32_1 = arith.constant 0 : i32
    return %c0_i32, %c0_i32_0 : i32, i32
  }
  func.func @transform_9(%arg0: i32) -> (i32, i32, i32) {
    %c0_i32 = arith.constant 0 : i32
    %c0_i32_0 = arith.constant 0 : i32
    %c0_i32_1 = arith.constant 0 : i32
    return %arg0, %c0_i32, %c0_i32_0 : i32, i32, i32
  }
  func.func @transform_10(%arg0: i32) -> (i32, i32, i32) {
    %c0_i32 = arith.constant 0 : i32
    %c0_i32_0 = arith.constant 0 : i32
    %c0_i32_1 = arith.constant 0 : i32
    return %arg0, %c0_i32, %c0_i32_0 : i32, i32, i32
  }
  func.func @transform_11(%arg0: i32) -> (i32, i32, i32) {
    %c0_i32 = arith.constant 0 : i32
    %c0_i32_0 = arith.constant 0 : i32
    %c0_i32_1 = arith.constant 0 : i32
    return %arg0, %c0_i32, %c0_i32_0 : i32, i32, i32
  }
}

module attributes {stable_mosaic.version = 11 : i64} {
  func.func @kernel(%arg0: i32, %arg1: memref<1x8x16xf32, #tpu.memory_space<vmem>>, %arg2: memref<1x8x64xf32, #tpu.memory_space<vmem>>, %arg3: memref<1x1x16xf32, #tpu.memory_space<vmem>>, %arg4: memref<16x64xbf16, #tpu.memory_space<vmem>>, %arg5: memref<1x1xf32, #tpu.memory_space<vmem>>, %arg6: memref<9x64xf32, #tpu.memory_space<vmem>>, %arg7: memref<16x16xf32, #tpu.memory_space<vmem>>, %arg8: memref<16x1xf32, #tpu.memory_space<vmem>>, %arg9: memref<1x1xf32, #tpu.memory_space<vmem>>, %arg10: memref<8x144xbf16, #tpu.memory_space<vmem>>, %arg11: memref<8x1xf32, #tpu.memory_space<vmem>>, %arg12: memref<8x16xf32, #tpu.memory_space<vmem>>, %arg13: memref<8x16xf32, #tpu.memory_space<vmem>>, %arg14: memref<8x1xf32, #tpu.memory_space<vmem>>, %arg15: memref<1x1xf32, #tpu.memory_space<vmem>>, %arg16: memref<4x72xbf16, #tpu.memory_space<vmem>>, %arg17: memref<4x1xf32, #tpu.memory_space<vmem>>, %arg18: memref<4x8xf32, #tpu.memory_space<vmem>>, %arg19: memref<1x4x64xf32, #tpu.memory_space<vmem>>) attributes {dimension_semantics = [#tpu.dimension_semantics<parallel>], iteration_bounds = array<i64: 2>, scalar_prefetch = 0 : i64, scratch_operands = 0 : i64, tpu.core_type = #tpu.core_type<tc>, window_params = [{transform_indices = @transform_0, window_bounds = array<i64: 1, 8, 16>}, {transform_indices = @transform_1, window_bounds = array<i64: 1, 8, 64>}, {transform_indices = @transform_2, window_bounds = array<i64: 1, 1, 16>}, {pipeline_mode = #tpu.pipeline_mode<synchronous>, transform_indices = @transform_3, window_bounds = array<i64: 16, 64>}, {pipeline_mode = #tpu.pipeline_mode<synchronous>, transform_indices = @transform_4, window_bounds = array<i64: 1, 1>}, {pipeline_mode = #tpu.pipeline_mode<synchronous>, transform_indices = @transform_5, window_bounds = array<i64: 9, 64>}, {pipeline_mode = #tpu.pipeline_mode<synchronous>, transform_indices = @transform_6, window_bounds = array<i64: 16, 16>}, {pipeline_mode = #tpu.pipeline_mode<synchronous>, transform_indices = @transform_7, window_bounds = array<i64: 16, 1>}, {pipeline_mode = #tpu.pipeline_mode<synchronous>, transform_indices = @transform_8, window_bounds = array<i64: 1, 1>}, {pipeline_mode = #tpu.pipeline_mode<synchronous>, transform_indices = @transform_9, window_bounds = array<i64: 8, 144>}, {pipeline_mode = #tpu.pipeline_mode<synchronous>, transform_indices = @transform_10, window_bounds = array<i64: 8, 1>}, {pipeline_mode = #tpu.pipeline_mode<synchronous>, transform_indices = @transform_11, window_bounds = array<i64: 8, 16>}, {pipeline_mode = #tpu.pipeline_mode<synchronous>, transform_indices = @transform_12, window_bounds = array<i64: 8, 16>}, {pipeline_mode = #tpu.pipeline_mode<synchronous>, transform_indices = @transform_13, window_bounds = array<i64: 8, 1>}, {pipeline_mode = #tpu.pipeline_mode<synchronous>, transform_indices = @transform_14, window_bounds = array<i64: 1, 1>}, {pipeline_mode = #tpu.pipeline_mode<synchronous>, transform_indices = @transform_15, window_bounds = array<i64: 4, 72>}, {pipeline_mode = #tpu.pipeline_mode<synchronous>, transform_indices = @transform_16, window_bounds = array<i64: 4, 1>}, {pipeline_mode = #tpu.pipeline_mode<synchronous>, transform_indices = @transform_17, window_bounds = array<i64: 4, 8>}, {transform_indices = @transform_18, window_bounds = array<i64: 1, 4, 64>}]} {
    %c0 = arith.constant 0 : index
    %c0_0 = arith.constant 0 : index
    %0 = vector.load %arg6[%c0, %c0_0] : memref<9x64xf32, #tpu.memory_space<vmem>>, vector<9x64xf32>
    %c0_1 = arith.constant 0 : index
    %c0_2 = arith.constant 0 : index
    %c0_3 = arith.constant 0 : index
    %1 = vector.load %arg3[%c0_1, %c0_2, %c0_3] : memref<1x1x16xf32, #tpu.memory_space<vmem>>, vector<1x1x16xf32>
    %2 = vector.shape_cast %1 : vector<1x1x16xf32> to vector<1x16xf32>
    %c0_4 = arith.constant 0 : index
    %c0_5 = arith.constant 0 : index
    %c0_6 = arith.constant 0 : index
    %3 = vector.load %arg1[%c0_4, %c0_5, %c0_6] : memref<1x8x16xf32, #tpu.memory_space<vmem>>, vector<1x8x16xf32>
    %4 = vector.shape_cast %3 : vector<1x8x16xf32> to vector<8x16xf32>
    %5 = arith.truncf %4 : vector<8x16xf32> to vector<8x16xbf16>
    %c0_7 = arith.constant 0 : index
    %c0_8 = arith.constant 0 : index
    %6 = vector.load %arg4[%c0_7, %c0_8] : memref<16x64xbf16, #tpu.memory_space<vmem>>, vector<16x64xbf16>
    %cst = arith.constant dense<0.000000e+00> : vector<8x64xf32>
    %7 = tpu.matmul %5, %6, %cst {dimension_numbers = #tpu.dot_dimension_numbers<[1], [0], [0], [1], [0, 0, 1, 1], [], []>} : vector<8x16xbf16>, vector<16x64xbf16>, vector<8x64xf32> -> vector<8x64xf32>
    %c0_9 = arith.constant 0 : index
    %c0_10 = arith.constant 0 : index
    %8 = vector.load %arg5[%c0_9, %c0_10] : memref<1x1xf32, #tpu.memory_space<vmem>>, vector<1x1xf32>
    %9 = vector.broadcast %8 : vector<1x1xf32> to vector<8x64xf32>
    %10 = arith.mulf %9, %7 : vector<8x64xf32>
    %c0_11 = arith.constant 0 : index
    %c0_12 = arith.constant 0 : index
    %c0_13 = arith.constant 0 : index
    %11 = vector.load %arg2[%c0_11, %c0_12, %c0_13] : memref<1x8x64xf32, #tpu.memory_space<vmem>>, vector<1x8x64xf32>
    %12 = vector.shape_cast %11 : vector<1x8x64xf32> to vector<8x64xf32>
    %13 = tpu.concatenate %10, %12 in 0 : vector<8x64xf32>, vector<8x64xf32> -> vector<16x64xf32>
    %c0_14 = arith.constant 0 : index
    %c0_15 = arith.constant 0 : index
    %14 = vector.load %arg7[%c0_14, %c0_15] : memref<16x16xf32, #tpu.memory_space<vmem>>, vector<16x16xf32>
    %15 = vector.broadcast %2 : vector<1x16xf32> to vector<16x16xf32>
    %16 = arith.mulf %14, %15 : vector<16x16xf32>
    %cst_16 = arith.constant dense<0.000000e+00> : vector<16xf32>
    %17 = vector.multi_reduction <add>, %16, %cst_16 [1] : vector<16x16xf32> to vector<16xf32>
    %18 = vector.shape_cast %17 : vector<16xf32> to vector<16x1xf32>
    %c0_17 = arith.constant 0 : index
    %c0_18 = arith.constant 0 : index
    %19 = vector.load %arg8[%c0_17, %c0_18] : memref<16x1xf32, #tpu.memory_space<vmem>>, vector<16x1xf32>
    %20 = arith.addf %18, %19 : vector<16x1xf32>
    %c0_19 = arith.constant 0 : index
    %c0_20 = arith.constant 0 : index
    %21 = vector.load %arg9[%c0_19, %c0_20] : memref<1x1xf32, #tpu.memory_space<vmem>>, vector<1x1xf32>
    %22 = vector.broadcast %21 : vector<1x1xf32> to vector<16x1xf32>
    %23 = arith.mulf %22, %20 : vector<16x1xf32>
    %cst_21 = arith.constant 1.000000e+00 : f32
    %24 = vector.broadcast %cst_21 : f32 to vector<16x1xf32>
    %25 = arith.addf %24, %23 : vector<16x1xf32>
    %26 = vector.broadcast %25 : vector<16x1xf32> to vector<16x64xf32>
    %27 = arith.mulf %13, %26 : vector<16x64xf32>
    %c0_22 = arith.constant 0 : index
    %c0_23 = arith.constant 0 : index
    %28 = vector.load %arg10[%c0_22, %c0_23] : memref<8x144xbf16, #tpu.memory_space<vmem>>, vector<8x144xbf16>
    %c0_24 = arith.constant 0 : index
    %c0_25 = arith.constant 0 : index
    %29 = vector.load %arg11[%c0_24, %c0_25] : memref<8x1xf32, #tpu.memory_space<vmem>>, vector<8x1xf32>
    %c9_i32 = arith.constant 9 : i32
    %30 = tpu.dynamic_rotate %27 by %c9_i32 dim 1 : vector<16x64xf32>, i32 -> vector<16x64xf32>
    %31 = vector.extract_strided_slice %0 {offsets = [0, 0], sizes = [1, 64], strides = [1, 1]} : vector<9x64xf32> to vector<1x64xf32>
    %32 = vector.broadcast %31 : vector<1x64xf32> to vector<16x64xf32>
    %33 = arith.mulf %30, %32 : vector<16x64xf32>
    %c8_i32 = arith.constant 8 : i32
    %34 = tpu.dynamic_rotate %27 by %c8_i32 dim 1 : vector<16x64xf32>, i32 -> vector<16x64xf32>
    %35 = vector.extract_strided_slice %0 {offsets = [1, 0], sizes = [1, 64], strides = [1, 1]} : vector<9x64xf32> to vector<1x64xf32>
    %36 = vector.broadcast %35 : vector<1x64xf32> to vector<16x64xf32>
    %37 = arith.mulf %34, %36 : vector<16x64xf32>
    %c7_i32 = arith.constant 7 : i32
    %38 = tpu.dynamic_rotate %27 by %c7_i32 dim 1 : vector<16x64xf32>, i32 -> vector<16x64xf32>
    %39 = vector.extract_strided_slice %0 {offsets = [2, 0], sizes = [1, 64], strides = [1, 1]} : vector<9x64xf32> to vector<1x64xf32>
    %40 = vector.broadcast %39 : vector<1x64xf32> to vector<16x64xf32>
    %41 = arith.mulf %38, %40 : vector<16x64xf32>
    %c1_i32 = arith.constant 1 : i32
    %42 = tpu.dynamic_rotate %27 by %c1_i32 dim 1 : vector<16x64xf32>, i32 -> vector<16x64xf32>
    %43 = vector.extract_strided_slice %0 {offsets = [3, 0], sizes = [1, 64], strides = [1, 1]} : vector<9x64xf32> to vector<1x64xf32>
    %44 = vector.broadcast %43 : vector<1x64xf32> to vector<16x64xf32>
    %45 = arith.mulf %42, %44 : vector<16x64xf32>
    %46 = vector.extract_strided_slice %0 {offsets = [4, 0], sizes = [1, 64], strides = [1, 1]} : vector<9x64xf32> to vector<1x64xf32>
    %47 = vector.broadcast %46 : vector<1x64xf32> to vector<16x64xf32>
    %48 = arith.mulf %27, %47 : vector<16x64xf32>
    %c63_i32 = arith.constant 63 : i32
    %49 = tpu.dynamic_rotate %27 by %c63_i32 dim 1 : vector<16x64xf32>, i32 -> vector<16x64xf32>
    %50 = vector.extract_strided_slice %0 {offsets = [5, 0], sizes = [1, 64], strides = [1, 1]} : vector<9x64xf32> to vector<1x64xf32>
    %51 = vector.broadcast %50 : vector<1x64xf32> to vector<16x64xf32>
    %52 = arith.mulf %49, %51 : vector<16x64xf32>
    %c57_i32 = arith.constant 57 : i32
    %53 = tpu.dynamic_rotate %27 by %c57_i32 dim 1 : vector<16x64xf32>, i32 -> vector<16x64xf32>
    %54 = vector.extract_strided_slice %0 {offsets = [6, 0], sizes = [1, 64], strides = [1, 1]} : vector<9x64xf32> to vector<1x64xf32>
    %55 = vector.broadcast %54 : vector<1x64xf32> to vector<16x64xf32>
    %56 = arith.mulf %53, %55 : vector<16x64xf32>
    %c56_i32 = arith.constant 56 : i32
    %57 = tpu.dynamic_rotate %27 by %c56_i32 dim 1 : vector<16x64xf32>, i32 -> vector<16x64xf32>
    %58 = vector.extract_strided_slice %0 {offsets = [7, 0], sizes = [1, 64], strides = [1, 1]} : vector<9x64xf32> to vector<1x64xf32>
    %59 = vector.broadcast %58 : vector<1x64xf32> to vector<16x64xf32>
    %60 = arith.mulf %57, %59 : vector<16x64xf32>
    %c55_i32 = arith.constant 55 : i32
    %61 = tpu.dynamic_rotate %27 by %c55_i32 dim 1 : vector<16x64xf32>, i32 -> vector<16x64xf32>
    %62 = vector.extract_strided_slice %0 {offsets = [8, 0], sizes = [1, 64], strides = [1, 1]} : vector<9x64xf32> to vector<1x64xf32>
    %63 = vector.broadcast %62 : vector<1x64xf32> to vector<16x64xf32>
    %64 = arith.mulf %61, %63 : vector<16x64xf32>
    %65 = tpu.concatenate %33, %37, %41, %45, %48, %52, %56, %60, %64 in 0 : vector<16x64xf32>, vector<16x64xf32>, vector<16x64xf32>, vector<16x64xf32>, vector<16x64xf32>, vector<16x64xf32>, vector<16x64xf32>, vector<16x64xf32>, vector<16x64xf32> -> vector<144x64xf32>
    %66 = arith.truncf %65 : vector<144x64xf32> to vector<144x64xbf16>
    %cst_26 = arith.constant dense<0.000000e+00> : vector<8x64xf32>
    %67 = tpu.matmul %28, %66, %cst_26 {dimension_numbers = #tpu.dot_dimension_numbers<[1], [0], [0], [1], [0, 0, 1, 1], [], []>} : vector<8x144xbf16>, vector<144x64xbf16>, vector<8x64xf32> -> vector<8x64xf32>
    %68 = vector.broadcast %29 : vector<8x1xf32> to vector<8x64xf32>
    %69 = arith.addf %67, %68 : vector<8x64xf32>
    %c0_27 = arith.constant 0 : index
    %c0_28 = arith.constant 0 : index
    %70 = vector.load %arg12[%c0_27, %c0_28] : memref<8x16xf32, #tpu.memory_space<vmem>>, vector<8x16xf32>
    %71 = arith.mulf %25, %25 : vector<16x1xf32>
    %cst_29 = arith.constant dense<0.000000e+00> : vector<8x1xf32>
    %72 = tpu.matmul %70, %71, %cst_29 {dimension_numbers = #tpu.dot_dimension_numbers<[1], [0], [0], [1], [0, 0, 1, 1], [], []>} : vector<8x16xf32>, vector<16x1xf32>, vector<8x1xf32> -> vector<8x1xf32>
    %cst_30 = arith.constant 9.99999997E-7 : f32
    %73 = vector.broadcast %cst_30 : f32 to vector<8x1xf32>
    %74 = arith.addf %72, %73 : vector<8x1xf32>
    %75 = math.rsqrt %74 : vector<8x1xf32>
    %76 = vector.broadcast %75 : vector<8x1xf32> to vector<8x64xf32>
    %77 = arith.mulf %69, %76 : vector<8x64xf32>
    %cst_31 = arith.constant 0.000000e+00 : f32
    %78 = vector.broadcast %cst_31 : f32 to vector<8x64xf32>
    %79 = arith.cmpf oge, %77, %78 : vector<8x64xf32>
    %cst_32 = arith.constant 2.000000e-01 : f32
    %80 = vector.broadcast %cst_32 : f32 to vector<8x64xf32>
    %81 = arith.mulf %80, %77 : vector<8x64xf32>
    %82 = arith.select %79, %77, %81 : vector<8x64xi1>, vector<8x64xf32>
    %c0_33 = arith.constant 0 : index
    %c0_34 = arith.constant 0 : index
    %83 = vector.load %arg13[%c0_33, %c0_34] : memref<8x16xf32, #tpu.memory_space<vmem>>, vector<8x16xf32>
    %84 = vector.broadcast %2 : vector<1x16xf32> to vector<8x16xf32>
    %85 = arith.mulf %83, %84 : vector<8x16xf32>
    %cst_35 = arith.constant dense<0.000000e+00> : vector<8xf32>
    %86 = vector.multi_reduction <add>, %85, %cst_35 [1] : vector<8x16xf32> to vector<8xf32>
    %87 = vector.shape_cast %86 : vector<8xf32> to vector<8x1xf32>
    %c0_36 = arith.constant 0 : index
    %c0_37 = arith.constant 0 : index
    %88 = vector.load %arg14[%c0_36, %c0_37] : memref<8x1xf32, #tpu.memory_space<vmem>>, vector<8x1xf32>
    %89 = arith.addf %87, %88 : vector<8x1xf32>
    %c0_38 = arith.constant 0 : index
    %c0_39 = arith.constant 0 : index
    %90 = vector.load %arg15[%c0_38, %c0_39] : memref<1x1xf32, #tpu.memory_space<vmem>>, vector<1x1xf32>
    %91 = vector.broadcast %90 : vector<1x1xf32> to vector<8x1xf32>
    %92 = arith.mulf %91, %89 : vector<8x1xf32>
    %cst_40 = arith.constant 1.000000e+00 : f32
    %93 = vector.broadcast %cst_40 : f32 to vector<8x1xf32>
    %94 = arith.addf %93, %92 : vector<8x1xf32>
    %95 = vector.broadcast %94 : vector<8x1xf32> to vector<8x64xf32>
    %96 = arith.mulf %82, %95 : vector<8x64xf32>
    %c0_41 = arith.constant 0 : index
    %c0_42 = arith.constant 0 : index
    %97 = vector.load %arg16[%c0_41, %c0_42] : memref<4x72xbf16, #tpu.memory_space<vmem>>, vector<4x72xbf16>
    %c0_43 = arith.constant 0 : index
    %c0_44 = arith.constant 0 : index
    %98 = vector.load %arg17[%c0_43, %c0_44] : memref<4x1xf32, #tpu.memory_space<vmem>>, vector<4x1xf32>
    %c9_i32_45 = arith.constant 9 : i32
    %99 = tpu.dynamic_rotate %96 by %c9_i32_45 dim 1 : vector<8x64xf32>, i32 -> vector<8x64xf32>
    %100 = vector.extract_strided_slice %0 {offsets = [0, 0], sizes = [1, 64], strides = [1, 1]} : vector<9x64xf32> to vector<1x64xf32>
    %101 = vector.broadcast %100 : vector<1x64xf32> to vector<8x64xf32>
    %102 = arith.mulf %99, %101 : vector<8x64xf32>
    %c8_i32_46 = arith.constant 8 : i32
    %103 = tpu.dynamic_rotate %96 by %c8_i32_46 dim 1 : vector<8x64xf32>, i32 -> vector<8x64xf32>
    %104 = vector.extract_strided_slice %0 {offsets = [1, 0], sizes = [1, 64], strides = [1, 1]} : vector<9x64xf32> to vector<1x64xf32>
    %105 = vector.broadcast %104 : vector<1x64xf32> to vector<8x64xf32>
    %106 = arith.mulf %103, %105 : vector<8x64xf32>
    %c7_i32_47 = arith.constant 7 : i32
    %107 = tpu.dynamic_rotate %96 by %c7_i32_47 dim 1 : vector<8x64xf32>, i32 -> vector<8x64xf32>
    %108 = vector.extract_strided_slice %0 {offsets = [2, 0], sizes = [1, 64], strides = [1, 1]} : vector<9x64xf32> to vector<1x64xf32>
    %109 = vector.broadcast %108 : vector<1x64xf32> to vector<8x64xf32>
    %110 = arith.mulf %107, %109 : vector<8x64xf32>
    %c1_i32_48 = arith.constant 1 : i32
    %111 = tpu.dynamic_rotate %96 by %c1_i32_48 dim 1 : vector<8x64xf32>, i32 -> vector<8x64xf32>
    %112 = vector.extract_strided_slice %0 {offsets = [3, 0], sizes = [1, 64], strides = [1, 1]} : vector<9x64xf32> to vector<1x64xf32>
    %113 = vector.broadcast %112 : vector<1x64xf32> to vector<8x64xf32>
    %114 = arith.mulf %111, %113 : vector<8x64xf32>
    %115 = vector.extract_strided_slice %0 {offsets = [4, 0], sizes = [1, 64], strides = [1, 1]} : vector<9x64xf32> to vector<1x64xf32>
    %116 = vector.broadcast %115 : vector<1x64xf32> to vector<8x64xf32>
    %117 = arith.mulf %96, %116 : vector<8x64xf32>
    %c63_i32_49 = arith.constant 63 : i32
    %118 = tpu.dynamic_rotate %96 by %c63_i32_49 dim 1 : vector<8x64xf32>, i32 -> vector<8x64xf32>
    %119 = vector.extract_strided_slice %0 {offsets = [5, 0], sizes = [1, 64], strides = [1, 1]} : vector<9x64xf32> to vector<1x64xf32>
    %120 = vector.broadcast %119 : vector<1x64xf32> to vector<8x64xf32>
    %121 = arith.mulf %118, %120 : vector<8x64xf32>
    %c57_i32_50 = arith.constant 57 : i32
    %122 = tpu.dynamic_rotate %96 by %c57_i32_50 dim 1 : vector<8x64xf32>, i32 -> vector<8x64xf32>
    %123 = vector.extract_strided_slice %0 {offsets = [6, 0], sizes = [1, 64], strides = [1, 1]} : vector<9x64xf32> to vector<1x64xf32>
    %124 = vector.broadcast %123 : vector<1x64xf32> to vector<8x64xf32>
    %125 = arith.mulf %122, %124 : vector<8x64xf32>
    %c56_i32_51 = arith.constant 56 : i32
    %126 = tpu.dynamic_rotate %96 by %c56_i32_51 dim 1 : vector<8x64xf32>, i32 -> vector<8x64xf32>
    %127 = vector.extract_strided_slice %0 {offsets = [7, 0], sizes = [1, 64], strides = [1, 1]} : vector<9x64xf32> to vector<1x64xf32>
    %128 = vector.broadcast %127 : vector<1x64xf32> to vector<8x64xf32>
    %129 = arith.mulf %126, %128 : vector<8x64xf32>
    %c55_i32_52 = arith.constant 55 : i32
    %130 = tpu.dynamic_rotate %96 by %c55_i32_52 dim 1 : vector<8x64xf32>, i32 -> vector<8x64xf32>
    %131 = vector.extract_strided_slice %0 {offsets = [8, 0], sizes = [1, 64], strides = [1, 1]} : vector<9x64xf32> to vector<1x64xf32>
    %132 = vector.broadcast %131 : vector<1x64xf32> to vector<8x64xf32>
    %133 = arith.mulf %130, %132 : vector<8x64xf32>
    %134 = tpu.concatenate %102, %106, %110, %114, %117, %121, %125, %129, %133 in 0 : vector<8x64xf32>, vector<8x64xf32>, vector<8x64xf32>, vector<8x64xf32>, vector<8x64xf32>, vector<8x64xf32>, vector<8x64xf32>, vector<8x64xf32>, vector<8x64xf32> -> vector<72x64xf32>
    %135 = arith.truncf %134 : vector<72x64xf32> to vector<72x64xbf16>
    %cst_53 = arith.constant dense<0.000000e+00> : vector<4x64xf32>
    %136 = tpu.matmul %97, %135, %cst_53 {dimension_numbers = #tpu.dot_dimension_numbers<[1], [0], [0], [1], [0, 0, 1, 1], [], []>} : vector<4x72xbf16>, vector<72x64xbf16>, vector<4x64xf32> -> vector<4x64xf32>
    %137 = vector.broadcast %98 : vector<4x1xf32> to vector<4x64xf32>
    %138 = arith.addf %136, %137 : vector<4x64xf32>
    %c0_54 = arith.constant 0 : index
    %c0_55 = arith.constant 0 : index
    %139 = vector.load %arg18[%c0_54, %c0_55] : memref<4x8xf32, #tpu.memory_space<vmem>>, vector<4x8xf32>
    %140 = arith.mulf %94, %94 : vector<8x1xf32>
    %cst_56 = arith.constant dense<0.000000e+00> : vector<4x1xf32>
    %141 = tpu.matmul %139, %140, %cst_56 {dimension_numbers = #tpu.dot_dimension_numbers<[1], [0], [0], [1], [0, 0, 1, 1], [], []>} : vector<4x8xf32>, vector<8x1xf32>, vector<4x1xf32> -> vector<4x1xf32>
    %cst_57 = arith.constant 9.99999997E-7 : f32
    %142 = vector.broadcast %cst_57 : f32 to vector<4x1xf32>
    %143 = arith.addf %141, %142 : vector<4x1xf32>
    %144 = math.rsqrt %143 : vector<4x1xf32>
    %145 = vector.broadcast %144 : vector<4x1xf32> to vector<4x64xf32>
    %146 = arith.mulf %138, %145 : vector<4x64xf32>
    %cst_58 = arith.constant 0.000000e+00 : f32
    %147 = vector.broadcast %cst_58 : f32 to vector<4x64xf32>
    %148 = arith.cmpf oge, %146, %147 : vector<4x64xf32>
    %cst_59 = arith.constant 2.000000e-01 : f32
    %149 = vector.broadcast %cst_59 : f32 to vector<4x64xf32>
    %150 = arith.mulf %149, %146 : vector<4x64xf32>
    %151 = arith.select %148, %146, %150 : vector<4x64xi1>, vector<4x64xf32>
    %c0_60 = arith.constant 0 : index
    %c0_61 = arith.constant 0 : index
    %c0_62 = arith.constant 0 : index
    %152 = vector.load %arg19[%c0_60, %c0_61, %c0_62] : memref<1x4x64xf32, #tpu.memory_space<vmem>>, vector<1x4x64xf32>
    %153 = vector.shape_cast %152 : vector<1x4x64xf32> to vector<4x64xf32>
    %154 = vector.shape_cast %151 : vector<4x64xf32> to vector<1x4x64xf32>
    tpu.vector_store %arg19[%c0_60, %c0_61, %c0_62], %154 {strides = array<i32>} : memref<1x4x64xf32, #tpu.memory_space<vmem>>, vector<1x4x64xf32>,
    return
  }
  func.func @transform_0(%arg0: i32) -> (i32, i32, i32) {
    %c0_i32 = arith.constant 0 : i32
    %c0_i32_0 = arith.constant 0 : i32
    %c0_i32_1 = arith.constant 0 : i32
    return %arg0, %c0_i32, %c0_i32_0 : i32, i32, i32
  }
  func.func @transform_1(%arg0: i32) -> (i32, i32, i32) {
    %c0_i32 = arith.constant 0 : i32
    %c0_i32_0 = arith.constant 0 : i32
    %c0_i32_1 = arith.constant 0 : i32
    return %arg0, %c0_i32, %c0_i32_0 : i32, i32, i32
  }
  func.func @transform_2(%arg0: i32) -> (i32, i32, i32) {
    %c0_i32 = arith.constant 0 : i32
    %c0_i32_0 = arith.constant 0 : i32
    %c0_i32_1 = arith.constant 0 : i32
    return %arg0, %c0_i32, %c0_i32_0 : i32, i32, i32
  }
  func.func @transform_3(%arg0: i32) -> (i32, i32) {
    %c0_i32 = arith.constant 0 : i32
    %c0_i32_0 = arith.constant 0 : i32
    %c0_i32_1 = arith.constant 0 : i32
    return %c0_i32, %c0_i32_0 : i32, i32
  }
  func.func @transform_4(%arg0: i32) -> (i32, i32) {
    %c0_i32 = arith.constant 0 : i32
    %c0_i32_0 = arith.constant 0 : i32
    %c0_i32_1 = arith.constant 0 : i32
    return %c0_i32, %c0_i32_0 : i32, i32
  }
  func.func @transform_5(%arg0: i32) -> (i32, i32) {
    %c0_i32 = arith.constant 0 : i32
    %c0_i32_0 = arith.constant 0 : i32
    %c0_i32_1 = arith.constant 0 : i32
    return %c0_i32, %c0_i32_0 : i32, i32
  }
  func.func @transform_6(%arg0: i32) -> (i32, i32) {
    %c0_i32 = arith.constant 0 : i32
    %c0_i32_0 = arith.constant 0 : i32
    %c0_i32_1 = arith.constant 0 : i32
    return %c0_i32, %c0_i32_0 : i32, i32
  }
  func.func @transform_7(%arg0: i32) -> (i32, i32) {
    %c0_i32 = arith.constant 0 : i32
    %c0_i32_0 = arith.constant 0 : i32
    %c0_i32_1 = arith.constant 0 : i32
    return %c0_i32, %c0_i32_0 : i32, i32
  }
  func.func @transform_8(%arg0: i32) -> (i32, i32) {
    %c0_i32 = arith.constant 0 : i32
    %c0_i32_0 = arith.constant 0 : i32
    %c0_i32_1 = arith.constant 0 : i32
    return %c0_i32, %c0_i32_0 : i32, i32
  }
  func.func @transform_9(%arg0: i32) -> (i32, i32) {
    %c0_i32 = arith.constant 0 : i32
    %c0_i32_0 = arith.constant 0 : i32
    %c0_i32_1 = arith.constant 0 : i32
    return %c0_i32, %c0_i32_0 : i32, i32
  }
  func.func @transform_10(%arg0: i32) -> (i32, i32) {
    %c0_i32 = arith.constant 0 : i32
    %c0_i32_0 = arith.constant 0 : i32
    %c0_i32_1 = arith.constant 0 : i32
    return %c0_i32, %c0_i32_0 : i32, i32
  }
  func.func @transform_11(%arg0: i32) -> (i32, i32) {
    %c0_i32 = arith.constant 0 : i32
    %c0_i32_0 = arith.constant 0 : i32
    %c0_i32_1 = arith.constant 0 : i32
    return %c0_i32, %c0_i32_0 : i32, i32
  }
  func.func @transform_12(%arg0: i32) -> (i32, i32) {
    %c0_i32 = arith.constant 0 : i32
    %c0_i32_0 = arith.constant 0 : i32
    %c0_i32_1 = arith.constant 0 : i32
    return %c0_i32, %c0_i32_0 : i32, i32
  }
  func.func @transform_13(%arg0: i32) -> (i32, i32) {
    %c0_i32 = arith.constant 0 : i32
    %c0_i32_0 = arith.constant 0 : i32
    %c0_i32_1 = arith.constant 0 : i32
    return %c0_i32, %c0_i32_0 : i32, i32
  }
  func.func @transform_14(%arg0: i32) -> (i32, i32) {
    %c0_i32 = arith.constant 0 : i32
    %c0_i32_0 = arith.constant 0 : i32
    %c0_i32_1 = arith.constant 0 : i32
    return %c0_i32, %c0_i32_0 : i32, i32
  }
  func.func @transform_15(%arg0: i32) -> (i32, i32) {
    %c0_i32 = arith.constant 0 : i32
    %c0_i32_0 = arith.constant 0 : i32
    %c0_i32_1 = arith.constant 0 : i32
    return %c0_i32, %c0_i32_0 : i32, i32
  }
  func.func @transform_16(%arg0: i32) -> (i32, i32) {
    %c0_i32 = arith.constant 0 : i32
    %c0_i32_0 = arith.constant 0 : i32
    %c0_i32_1 = arith.constant 0 : i32
    return %c0_i32, %c0_i32_0 : i32, i32
  }
  func.func @transform_17(%arg0: i32) -> (i32, i32) {
    %c0_i32 = arith.constant 0 : i32
    %c0_i32_0 = arith.constant 0 : i32
    %c0_i32_1 = arith.constant 0 : i32
    return %c0_i32, %c0_i32_0 : i32, i32
  }
  func.func @transform_18(%arg0: i32) -> (i32, i32, i32) {
    %c0_i32 = arith.constant 0 : i32
    %c0_i32_0 = arith.constant 0 : i32
    %c0_i32_1 = arith.constant 0 : i32
    return %arg0, %c0_i32, %c0_i32_0 : i32, i32, i32
  }
}

module attributes {stable_mosaic.version = 11 : i64} {
  func.func @kernel(%arg0: i32, %arg1: memref<1x4x64xf32, #tpu.memory_space<vmem>>, %arg2: memref<1x4x256xf32, #tpu.memory_space<vmem>>, %arg3: memref<1x1x16xf32, #tpu.memory_space<vmem>>, %arg4: memref<64x256xbf16, #tpu.memory_space<vmem>>, %arg5: memref<1x1xf32, #tpu.memory_space<vmem>>, %arg6: memref<9x256xf32, #tpu.memory_space<vmem>>, %arg7: memref<8x16xf32, #tpu.memory_space<vmem>>, %arg8: memref<8x1xf32, #tpu.memory_space<vmem>>, %arg9: memref<1x1xf32, #tpu.memory_space<vmem>>, %arg10: memref<4x72xbf16, #tpu.memory_space<vmem>>, %arg11: memref<4x1xf32, #tpu.memory_space<vmem>>, %arg12: memref<4x8xf32, #tpu.memory_space<vmem>>, %arg13: memref<4x16xf32, #tpu.memory_space<vmem>>, %arg14: memref<4x1xf32, #tpu.memory_space<vmem>>, %arg15: memref<1x1xf32, #tpu.memory_space<vmem>>, %arg16: memref<4x36xbf16, #tpu.memory_space<vmem>>, %arg17: memref<4x1xf32, #tpu.memory_space<vmem>>, %arg18: memref<4x4xf32, #tpu.memory_space<vmem>>, %arg19: memref<3x4xbf16, #tpu.memory_space<vmem>>, %arg20: memref<3x1xf32, #tpu.memory_space<vmem>>, %arg21: memref<1x3x256xf32, #tpu.memory_space<vmem>>) attributes {dimension_semantics = [#tpu.dimension_semantics<parallel>], iteration_bounds = array<i64: 2>, scalar_prefetch = 0 : i64, scratch_operands = 0 : i64, tpu.core_type = #tpu.core_type<tc>, window_params = [{transform_indices = @transform_0, window_bounds = array<i64: 1, 4, 64>}, {transform_indices = @transform_1, window_bounds = array<i64: 1, 4, 256>}, {transform_indices = @transform_2, window_bounds = array<i64: 1, 1, 16>}, {pipeline_mode = #tpu.pipeline_mode<synchronous>, transform_indices = @transform_3, window_bounds = array<i64: 64, 256>}, {pipeline_mode = #tpu.pipeline_mode<synchronous>, transform_indices = @transform_4, window_bounds = array<i64: 1, 1>}, {pipeline_mode = #tpu.pipeline_mode<synchronous>, transform_indices = @transform_5, window_bounds = array<i64: 9, 256>}, {pipeline_mode = #tpu.pipeline_mode<synchronous>, transform_indices = @transform_6, window_bounds = array<i64: 8, 16>}, {pipeline_mode = #tpu.pipeline_mode<synchronous>, transform_indices = @transform_7, window_bounds = array<i64: 8, 1>}, {pipeline_mode = #tpu.pipeline_mode<synchronous>, transform_indices = @transform_8, window_bounds = array<i64: 1, 1>}, {pipeline_mode = #tpu.pipeline_mode<synchronous>, transform_indices = @transform_9, window_bounds = array<i64: 4, 72>}, {pipeline_mode = #tpu.pipeline_mode<synchronous>, transform_indices = @transform_10, window_bounds = array<i64: 4, 1>}, {pipeline_mode = #tpu.pipeline_mode<synchronous>, transform_indices = @transform_11, window_bounds = array<i64: 4, 8>}, {pipeline_mode = #tpu.pipeline_mode<synchronous>, transform_indices = @transform_12, window_bounds = array<i64: 4, 16>}, {pipeline_mode = #tpu.pipeline_mode<synchronous>, transform_indices = @transform_13, window_bounds = array<i64: 4, 1>}, {pipeline_mode = #tpu.pipeline_mode<synchronous>, transform_indices = @transform_14, window_bounds = array<i64: 1, 1>}, {pipeline_mode = #tpu.pipeline_mode<synchronous>, transform_indices = @transform_15, window_bounds = array<i64: 4, 36>}, {pipeline_mode = #tpu.pipeline_mode<synchronous>, transform_indices = @transform_16, window_bounds = array<i64: 4, 1>}, {pipeline_mode = #tpu.pipeline_mode<synchronous>, transform_indices = @transform_17, window_bounds = array<i64: 4, 4>}, {pipeline_mode = #tpu.pipeline_mode<synchronous>, transform_indices = @transform_18, window_bounds = array<i64: 3, 4>}, {pipeline_mode = #tpu.pipeline_mode<synchronous>, transform_indices = @transform_19, window_bounds = array<i64: 3, 1>}, {transform_indices = @transform_20, window_bounds = array<i64: 1, 3, 256>}]} {
    %c0 = arith.constant 0 : index
    %c0_0 = arith.constant 0 : index
    %0 = vector.load %arg6[%c0, %c0_0] : memref<9x256xf32, #tpu.memory_space<vmem>>, vector<9x256xf32>
    %c0_1 = arith.constant 0 : index
    %c0_2 = arith.constant 0 : index
    %c0_3 = arith.constant 0 : index
    %1 = vector.load %arg3[%c0_1, %c0_2, %c0_3] : memref<1x1x16xf32, #tpu.memory_space<vmem>>, vector<1x1x16xf32>
    %2 = vector.shape_cast %1 : vector<1x1x16xf32> to vector<1x16xf32>
    %c0_4 = arith.constant 0 : index
    %c0_5 = arith.constant 0 : index
    %c0_6 = arith.constant 0 : index
    %3 = vector.load %arg1[%c0_4, %c0_5, %c0_6] : memref<1x4x64xf32, #tpu.memory_space<vmem>>, vector<1x4x64xf32>
    %4 = vector.shape_cast %3 : vector<1x4x64xf32> to vector<4x64xf32>
    %5 = arith.truncf %4 : vector<4x64xf32> to vector<4x64xbf16>
    %c0_7 = arith.constant 0 : index
    %c0_8 = arith.constant 0 : index
    %6 = vector.load %arg4[%c0_7, %c0_8] : memref<64x256xbf16, #tpu.memory_space<vmem>>, vector<64x256xbf16>
    %cst = arith.constant dense<0.000000e+00> : vector<4x256xf32>
    %7 = tpu.matmul %5, %6, %cst {dimension_numbers = #tpu.dot_dimension_numbers<[1], [0], [0], [1], [0, 0, 1, 1], [], []>} : vector<4x64xbf16>, vector<64x256xbf16>, vector<4x256xf32> -> vector<4x256xf32>
    %c0_9 = arith.constant 0 : index
    %c0_10 = arith.constant 0 : index
    %8 = vector.load %arg5[%c0_9, %c0_10] : memref<1x1xf32, #tpu.memory_space<vmem>>, vector<1x1xf32>
    %9 = vector.broadcast %8 : vector<1x1xf32> to vector<4x256xf32>
    %10 = arith.mulf %9, %7 : vector<4x256xf32>
    %c0_11 = arith.constant 0 : index
    %c0_12 = arith.constant 0 : index
    %c0_13 = arith.constant 0 : index
    %11 = vector.load %arg2[%c0_11, %c0_12, %c0_13] : memref<1x4x256xf32, #tpu.memory_space<vmem>>, vector<1x4x256xf32>
    %12 = vector.shape_cast %11 : vector<1x4x256xf32> to vector<4x256xf32>
    %13 = tpu.concatenate %10, %12 in 0 : vector<4x256xf32>, vector<4x256xf32> -> vector<8x256xf32>
    %c0_14 = arith.constant 0 : index
    %c0_15 = arith.constant 0 : index
    %14 = vector.load %arg7[%c0_14, %c0_15] : memref<8x16xf32, #tpu.memory_space<vmem>>, vector<8x16xf32>
    %15 = vector.broadcast %2 : vector<1x16xf32> to vector<8x16xf32>
    %16 = arith.mulf %14, %15 : vector<8x16xf32>
    %cst_16 = arith.constant dense<0.000000e+00> : vector<8xf32>
    %17 = vector.multi_reduction <add>, %16, %cst_16 [1] : vector<8x16xf32> to vector<8xf32>
    %18 = vector.shape_cast %17 : vector<8xf32> to vector<8x1xf32>
    %c0_17 = arith.constant 0 : index
    %c0_18 = arith.constant 0 : index
    %19 = vector.load %arg8[%c0_17, %c0_18] : memref<8x1xf32, #tpu.memory_space<vmem>>, vector<8x1xf32>
    %20 = arith.addf %18, %19 : vector<8x1xf32>
    %c0_19 = arith.constant 0 : index
    %c0_20 = arith.constant 0 : index
    %21 = vector.load %arg9[%c0_19, %c0_20] : memref<1x1xf32, #tpu.memory_space<vmem>>, vector<1x1xf32>
    %22 = vector.broadcast %21 : vector<1x1xf32> to vector<8x1xf32>
    %23 = arith.mulf %22, %20 : vector<8x1xf32>
    %cst_21 = arith.constant 1.000000e+00 : f32
    %24 = vector.broadcast %cst_21 : f32 to vector<8x1xf32>
    %25 = arith.addf %24, %23 : vector<8x1xf32>
    %26 = vector.broadcast %25 : vector<8x1xf32> to vector<8x256xf32>
    %27 = arith.mulf %13, %26 : vector<8x256xf32>
    %c0_22 = arith.constant 0 : index
    %c0_23 = arith.constant 0 : index
    %28 = vector.load %arg10[%c0_22, %c0_23] : memref<4x72xbf16, #tpu.memory_space<vmem>>, vector<4x72xbf16>
    %c0_24 = arith.constant 0 : index
    %c0_25 = arith.constant 0 : index
    %29 = vector.load %arg11[%c0_24, %c0_25] : memref<4x1xf32, #tpu.memory_space<vmem>>, vector<4x1xf32>
    %c17_i32 = arith.constant 17 : i32
    %30 = tpu.dynamic_rotate %27 by %c17_i32 dim 1 : vector<8x256xf32>, i32 -> vector<8x256xf32>
    %31 = vector.extract_strided_slice %0 {offsets = [0, 0], sizes = [1, 256], strides = [1, 1]} : vector<9x256xf32> to vector<1x256xf32>
    %32 = vector.broadcast %31 : vector<1x256xf32> to vector<8x256xf32>
    %33 = arith.mulf %30, %32 : vector<8x256xf32>
    %c16_i32 = arith.constant 16 : i32
    %34 = tpu.dynamic_rotate %27 by %c16_i32 dim 1 : vector<8x256xf32>, i32 -> vector<8x256xf32>
    %35 = vector.extract_strided_slice %0 {offsets = [1, 0], sizes = [1, 256], strides = [1, 1]} : vector<9x256xf32> to vector<1x256xf32>
    %36 = vector.broadcast %35 : vector<1x256xf32> to vector<8x256xf32>
    %37 = arith.mulf %34, %36 : vector<8x256xf32>
    %c15_i32 = arith.constant 15 : i32
    %38 = tpu.dynamic_rotate %27 by %c15_i32 dim 1 : vector<8x256xf32>, i32 -> vector<8x256xf32>
    %39 = vector.extract_strided_slice %0 {offsets = [2, 0], sizes = [1, 256], strides = [1, 1]} : vector<9x256xf32> to vector<1x256xf32>
    %40 = vector.broadcast %39 : vector<1x256xf32> to vector<8x256xf32>
    %41 = arith.mulf %38, %40 : vector<8x256xf32>
    %c1_i32 = arith.constant 1 : i32
    %42 = tpu.dynamic_rotate %27 by %c1_i32 dim 1 : vector<8x256xf32>, i32 -> vector<8x256xf32>
    %43 = vector.extract_strided_slice %0 {offsets = [3, 0], sizes = [1, 256], strides = [1, 1]} : vector<9x256xf32> to vector<1x256xf32>
    %44 = vector.broadcast %43 : vector<1x256xf32> to vector<8x256xf32>
    %45 = arith.mulf %42, %44 : vector<8x256xf32>
    %46 = vector.extract_strided_slice %0 {offsets = [4, 0], sizes = [1, 256], strides = [1, 1]} : vector<9x256xf32> to vector<1x256xf32>
    %47 = vector.broadcast %46 : vector<1x256xf32> to vector<8x256xf32>
    %48 = arith.mulf %27, %47 : vector<8x256xf32>
    %c255_i32 = arith.constant 255 : i32
    %49 = tpu.dynamic_rotate %27 by %c255_i32 dim 1 : vector<8x256xf32>, i32 -> vector<8x256xf32>
    %50 = vector.extract_strided_slice %0 {offsets = [5, 0], sizes = [1, 256], strides = [1, 1]} : vector<9x256xf32> to vector<1x256xf32>
    %51 = vector.broadcast %50 : vector<1x256xf32> to vector<8x256xf32>
    %52 = arith.mulf %49, %51 : vector<8x256xf32>
    %c241_i32 = arith.constant 241 : i32
    %53 = tpu.dynamic_rotate %27 by %c241_i32 dim 1 : vector<8x256xf32>, i32 -> vector<8x256xf32>
    %54 = vector.extract_strided_slice %0 {offsets = [6, 0], sizes = [1, 256], strides = [1, 1]} : vector<9x256xf32> to vector<1x256xf32>
    %55 = vector.broadcast %54 : vector<1x256xf32> to vector<8x256xf32>
    %56 = arith.mulf %53, %55 : vector<8x256xf32>
    %c240_i32 = arith.constant 240 : i32
    %57 = tpu.dynamic_rotate %27 by %c240_i32 dim 1 : vector<8x256xf32>, i32 -> vector<8x256xf32>
    %58 = vector.extract_strided_slice %0 {offsets = [7, 0], sizes = [1, 256], strides = [1, 1]} : vector<9x256xf32> to vector<1x256xf32>
    %59 = vector.broadcast %58 : vector<1x256xf32> to vector<8x256xf32>
    %60 = arith.mulf %57, %59 : vector<8x256xf32>
    %c239_i32 = arith.constant 239 : i32
    %61 = tpu.dynamic_rotate %27 by %c239_i32 dim 1 : vector<8x256xf32>, i32 -> vector<8x256xf32>
    %62 = vector.extract_strided_slice %0 {offsets = [8, 0], sizes = [1, 256], strides = [1, 1]} : vector<9x256xf32> to vector<1x256xf32>
    %63 = vector.broadcast %62 : vector<1x256xf32> to vector<8x256xf32>
    %64 = arith.mulf %61, %63 : vector<8x256xf32>
    %65 = tpu.concatenate %33, %37, %41, %45, %48, %52, %56, %60, %64 in 0 : vector<8x256xf32>, vector<8x256xf32>, vector<8x256xf32>, vector<8x256xf32>, vector<8x256xf32>, vector<8x256xf32>, vector<8x256xf32>, vector<8x256xf32>, vector<8x256xf32> -> vector<72x256xf32>
    %66 = arith.truncf %65 : vector<72x256xf32> to vector<72x256xbf16>
    %cst_26 = arith.constant dense<0.000000e+00> : vector<4x256xf32>
    %67 = tpu.matmul %28, %66, %cst_26 {dimension_numbers = #tpu.dot_dimension_numbers<[1], [0], [0], [1], [0, 0, 1, 1], [], []>} : vector<4x72xbf16>, vector<72x256xbf16>, vector<4x256xf32> -> vector<4x256xf32>
    %68 = vector.broadcast %29 : vector<4x1xf32> to vector<4x256xf32>
    %69 = arith.addf %67, %68 : vector<4x256xf32>
    %c0_27 = arith.constant 0 : index
    %c0_28 = arith.constant 0 : index
    %70 = vector.load %arg12[%c0_27, %c0_28] : memref<4x8xf32, #tpu.memory_space<vmem>>, vector<4x8xf32>
    %71 = arith.mulf %25, %25 : vector<8x1xf32>
    %cst_29 = arith.constant dense<0.000000e+00> : vector<4x1xf32>
    %72 = tpu.matmul %70, %71, %cst_29 {dimension_numbers = #tpu.dot_dimension_numbers<[1], [0], [0], [1], [0, 0, 1, 1], [], []>} : vector<4x8xf32>, vector<8x1xf32>, vector<4x1xf32> -> vector<4x1xf32>
    %cst_30 = arith.constant 9.99999997E-7 : f32
    %73 = vector.broadcast %cst_30 : f32 to vector<4x1xf32>
    %74 = arith.addf %72, %73 : vector<4x1xf32>
    %75 = math.rsqrt %74 : vector<4x1xf32>
    %76 = vector.broadcast %75 : vector<4x1xf32> to vector<4x256xf32>
    %77 = arith.mulf %69, %76 : vector<4x256xf32>
    %cst_31 = arith.constant 0.000000e+00 : f32
    %78 = vector.broadcast %cst_31 : f32 to vector<4x256xf32>
    %79 = arith.cmpf oge, %77, %78 : vector<4x256xf32>
    %cst_32 = arith.constant 2.000000e-01 : f32
    %80 = vector.broadcast %cst_32 : f32 to vector<4x256xf32>
    %81 = arith.mulf %80, %77 : vector<4x256xf32>
    %82 = arith.select %79, %77, %81 : vector<4x256xi1>, vector<4x256xf32>
    %c0_33 = arith.constant 0 : index
    %c0_34 = arith.constant 0 : index
    %83 = vector.load %arg13[%c0_33, %c0_34] : memref<4x16xf32, #tpu.memory_space<vmem>>, vector<4x16xf32>
    %84 = vector.broadcast %2 : vector<1x16xf32> to vector<4x16xf32>
    %85 = arith.mulf %83, %84 : vector<4x16xf32>
    %cst_35 = arith.constant dense<0.000000e+00> : vector<4xf32>
    %86 = vector.multi_reduction <add>, %85, %cst_35 [1] : vector<4x16xf32> to vector<4xf32>
    %87 = vector.shape_cast %86 : vector<4xf32> to vector<4x1xf32>
    %c0_36 = arith.constant 0 : index
    %c0_37 = arith.constant 0 : index
    %88 = vector.load %arg14[%c0_36, %c0_37] : memref<4x1xf32, #tpu.memory_space<vmem>>, vector<4x1xf32>
    %89 = arith.addf %87, %88 : vector<4x1xf32>
    %c0_38 = arith.constant 0 : index
    %c0_39 = arith.constant 0 : index
    %90 = vector.load %arg15[%c0_38, %c0_39] : memref<1x1xf32, #tpu.memory_space<vmem>>, vector<1x1xf32>
    %91 = vector.broadcast %90 : vector<1x1xf32> to vector<4x1xf32>
    %92 = arith.mulf %91, %89 : vector<4x1xf32>
    %cst_40 = arith.constant 1.000000e+00 : f32
    %93 = vector.broadcast %cst_40 : f32 to vector<4x1xf32>
    %94 = arith.addf %93, %92 : vector<4x1xf32>
    %95 = vector.broadcast %94 : vector<4x1xf32> to vector<4x256xf32>
    %96 = arith.mulf %82, %95 : vector<4x256xf32>
    %c0_41 = arith.constant 0 : index
    %c0_42 = arith.constant 0 : index
    %97 = vector.load %arg16[%c0_41, %c0_42] : memref<4x36xbf16, #tpu.memory_space<vmem>>, vector<4x36xbf16>
    %c0_43 = arith.constant 0 : index
    %c0_44 = arith.constant 0 : index
    %98 = vector.load %arg17[%c0_43, %c0_44] : memref<4x1xf32, #tpu.memory_space<vmem>>, vector<4x1xf32>
    %c17_i32_45 = arith.constant 17 : i32
    %99 = tpu.dynamic_rotate %96 by %c17_i32_45 dim 1 : vector<4x256xf32>, i32 -> vector<4x256xf32>
    %100 = vector.extract_strided_slice %0 {offsets = [0, 0], sizes = [1, 256], strides = [1, 1]} : vector<9x256xf32> to vector<1x256xf32>
    %101 = vector.broadcast %100 : vector<1x256xf32> to vector<4x256xf32>
    %102 = arith.mulf %99, %101 : vector<4x256xf32>
    %c16_i32_46 = arith.constant 16 : i32
    %103 = tpu.dynamic_rotate %96 by %c16_i32_46 dim 1 : vector<4x256xf32>, i32 -> vector<4x256xf32>
    %104 = vector.extract_strided_slice %0 {offsets = [1, 0], sizes = [1, 256], strides = [1, 1]} : vector<9x256xf32> to vector<1x256xf32>
    %105 = vector.broadcast %104 : vector<1x256xf32> to vector<4x256xf32>
    %106 = arith.mulf %103, %105 : vector<4x256xf32>
    %c15_i32_47 = arith.constant 15 : i32
    %107 = tpu.dynamic_rotate %96 by %c15_i32_47 dim 1 : vector<4x256xf32>, i32 -> vector<4x256xf32>
    %108 = vector.extract_strided_slice %0 {offsets = [2, 0], sizes = [1, 256], strides = [1, 1]} : vector<9x256xf32> to vector<1x256xf32>
    %109 = vector.broadcast %108 : vector<1x256xf32> to vector<4x256xf32>
    %110 = arith.mulf %107, %109 : vector<4x256xf32>
    %c1_i32_48 = arith.constant 1 : i32
    %111 = tpu.dynamic_rotate %96 by %c1_i32_48 dim 1 : vector<4x256xf32>, i32 -> vector<4x256xf32>
    %112 = vector.extract_strided_slice %0 {offsets = [3, 0], sizes = [1, 256], strides = [1, 1]} : vector<9x256xf32> to vector<1x256xf32>
    %113 = vector.broadcast %112 : vector<1x256xf32> to vector<4x256xf32>
    %114 = arith.mulf %111, %113 : vector<4x256xf32>
    %115 = vector.extract_strided_slice %0 {offsets = [4, 0], sizes = [1, 256], strides = [1, 1]} : vector<9x256xf32> to vector<1x256xf32>
    %116 = vector.broadcast %115 : vector<1x256xf32> to vector<4x256xf32>
    %117 = arith.mulf %96, %116 : vector<4x256xf32>
    %c255_i32_49 = arith.constant 255 : i32
    %118 = tpu.dynamic_rotate %96 by %c255_i32_49 dim 1 : vector<4x256xf32>, i32 -> vector<4x256xf32>
    %119 = vector.extract_strided_slice %0 {offsets = [5, 0], sizes = [1, 256], strides = [1, 1]} : vector<9x256xf32> to vector<1x256xf32>
    %120 = vector.broadcast %119 : vector<1x256xf32> to vector<4x256xf32>
    %121 = arith.mulf %118, %120 : vector<4x256xf32>
    %c241_i32_50 = arith.constant 241 : i32
    %122 = tpu.dynamic_rotate %96 by %c241_i32_50 dim 1 : vector<4x256xf32>, i32 -> vector<4x256xf32>
    %123 = vector.extract_strided_slice %0 {offsets = [6, 0], sizes = [1, 256], strides = [1, 1]} : vector<9x256xf32> to vector<1x256xf32>
    %124 = vector.broadcast %123 : vector<1x256xf32> to vector<4x256xf32>
    %125 = arith.mulf %122, %124 : vector<4x256xf32>
    %c240_i32_51 = arith.constant 240 : i32
    %126 = tpu.dynamic_rotate %96 by %c240_i32_51 dim 1 : vector<4x256xf32>, i32 -> vector<4x256xf32>
    %127 = vector.extract_strided_slice %0 {offsets = [7, 0], sizes = [1, 256], strides = [1, 1]} : vector<9x256xf32> to vector<1x256xf32>
    %128 = vector.broadcast %127 : vector<1x256xf32> to vector<4x256xf32>
    %129 = arith.mulf %126, %128 : vector<4x256xf32>
    %c239_i32_52 = arith.constant 239 : i32
    %130 = tpu.dynamic_rotate %96 by %c239_i32_52 dim 1 : vector<4x256xf32>, i32 -> vector<4x256xf32>
    %131 = vector.extract_strided_slice %0 {offsets = [8, 0], sizes = [1, 256], strides = [1, 1]} : vector<9x256xf32> to vector<1x256xf32>
    %132 = vector.broadcast %131 : vector<1x256xf32> to vector<4x256xf32>
    %133 = arith.mulf %130, %132 : vector<4x256xf32>
    %134 = tpu.concatenate %102, %106, %110, %114, %117, %121, %125, %129, %133 in 0 : vector<4x256xf32>, vector<4x256xf32>, vector<4x256xf32>, vector<4x256xf32>, vector<4x256xf32>, vector<4x256xf32>, vector<4x256xf32>, vector<4x256xf32>, vector<4x256xf32> -> vector<36x256xf32>
    %135 = arith.truncf %134 : vector<36x256xf32> to vector<36x256xbf16>
    %cst_53 = arith.constant dense<0.000000e+00> : vector<4x256xf32>
    %136 = tpu.matmul %97, %135, %cst_53 {dimension_numbers = #tpu.dot_dimension_numbers<[1], [0], [0], [1], [0, 0, 1, 1], [], []>} : vector<4x36xbf16>, vector<36x256xbf16>, vector<4x256xf32> -> vector<4x256xf32>
    %137 = vector.broadcast %98 : vector<4x1xf32> to vector<4x256xf32>
    %138 = arith.addf %136, %137 : vector<4x256xf32>
    %c0_54 = arith.constant 0 : index
    %c0_55 = arith.constant 0 : index
    %139 = vector.load %arg18[%c0_54, %c0_55] : memref<4x4xf32, #tpu.memory_space<vmem>>, vector<4x4xf32>
    %140 = arith.mulf %94, %94 : vector<4x1xf32>
    %cst_56 = arith.constant dense<0.000000e+00> : vector<4x1xf32>
    %141 = tpu.matmul %139, %140, %cst_56 {dimension_numbers = #tpu.dot_dimension_numbers<[1], [0], [0], [1], [0, 0, 1, 1], [], []>} : vector<4x4xf32>, vector<4x1xf32>, vector<4x1xf32> -> vector<4x1xf32>
    %cst_57 = arith.constant 9.99999997E-7 : f32
    %142 = vector.broadcast %cst_57 : f32 to vector<4x1xf32>
    %143 = arith.addf %141, %142 : vector<4x1xf32>
    %144 = math.rsqrt %143 : vector<4x1xf32>
    %145 = vector.broadcast %144 : vector<4x1xf32> to vector<4x256xf32>
    %146 = arith.mulf %138, %145 : vector<4x256xf32>
    %cst_58 = arith.constant 0.000000e+00 : f32
    %147 = vector.broadcast %cst_58 : f32 to vector<4x256xf32>
    %148 = arith.cmpf oge, %146, %147 : vector<4x256xf32>
    %cst_59 = arith.constant 2.000000e-01 : f32
    %149 = vector.broadcast %cst_59 : f32 to vector<4x256xf32>
    %150 = arith.mulf %149, %146 : vector<4x256xf32>
    %151 = arith.select %148, %146, %150 : vector<4x256xi1>, vector<4x256xf32>
    %c0_60 = arith.constant 0 : index
    %c0_61 = arith.constant 0 : index
    %152 = vector.load %arg19[%c0_60, %c0_61] : memref<3x4xbf16, #tpu.memory_space<vmem>>, vector<3x4xbf16>
    %153 = arith.truncf %151 : vector<4x256xf32> to vector<4x256xbf16>
    %cst_62 = arith.constant dense<0.000000e+00> : vector<3x256xf32>
    %154 = tpu.matmul %152, %153, %cst_62 {dimension_numbers = #tpu.dot_dimension_numbers<[1], [0], [0], [1], [0, 0, 1, 1], [], []>} : vector<3x4xbf16>, vector<4x256xbf16>, vector<3x256xf32> -> vector<3x256xf32>
    %c0_63 = arith.constant 0 : index
    %c0_64 = arith.constant 0 : index
    %155 = vector.load %arg20[%c0_63, %c0_64] : memref<3x1xf32, #tpu.memory_space<vmem>>, vector<3x1xf32>
    %156 = vector.broadcast %155 : vector<3x1xf32> to vector<3x256xf32>
    %157 = arith.addf %154, %156 : vector<3x256xf32>
    %c0_65 = arith.constant 0 : index
    %c0_66 = arith.constant 0 : index
    %c0_67 = arith.constant 0 : index
    %158 = vector.load %arg21[%c0_65, %c0_66, %c0_67] : memref<1x3x256xf32, #tpu.memory_space<vmem>>, vector<1x3x256xf32>
    %159 = vector.shape_cast %158 : vector<1x3x256xf32> to vector<3x256xf32>
    %160 = vector.shape_cast %157 : vector<3x256xf32> to vector<1x3x256xf32>
    tpu.vector_store %arg21[%c0_65, %c0_66, %c0_67], %160 {strides = array<i32>} : memref<1x3x256xf32, #tpu.memory_space<vmem>>, vector<1x3x256xf32>,
    return
  }
  func.func @transform_0(%arg0: i32) -> (i32, i32, i32) {
    %c0_i32 = arith.constant 0 : i32
    %c0_i32_0 = arith.constant 0 : i32
    %c0_i32_1 = arith.constant 0 : i32
    return %arg0, %c0_i32, %c0_i32_0 : i32, i32, i32
  }
  func.func @transform_1(%arg0: i32) -> (i32, i32, i32) {
    %c0_i32 = arith.constant 0 : i32
    %c0_i32_0 = arith.constant 0 : i32
    %c0_i32_1 = arith.constant 0 : i32
    return %arg0, %c0_i32, %c0_i32_0 : i32, i32, i32
  }
  func.func @transform_2(%arg0: i32) -> (i32, i32, i32) {
    %c0_i32 = arith.constant 0 : i32
    %c0_i32_0 = arith.constant 0 : i32
    %c0_i32_1 = arith.constant 0 : i32
    return %arg0, %c0_i32, %c0_i32_0 : i32, i32, i32
  }
  func.func @transform_3(%arg0: i32) -> (i32, i32) {
    %c0_i32 = arith.constant 0 : i32
    %c0_i32_0 = arith.constant 0 : i32
    %c0_i32_1 = arith.constant 0 : i32
    return %c0_i32, %c0_i32_0 : i32, i32
  }
  func.func @transform_4(%arg0: i32) -> (i32, i32) {
    %c0_i32 = arith.constant 0 : i32
    %c0_i32_0 = arith.constant 0 : i32
    %c0_i32_1 = arith.constant 0 : i32
    return %c0_i32, %c0_i32_0 : i32, i32
  }
  func.func @transform_5(%arg0: i32) -> (i32, i32) {
    %c0_i32 = arith.constant 0 : i32
    %c0_i32_0 = arith.constant 0 : i32
    %c0_i32_1 = arith.constant 0 : i32
    return %c0_i32, %c0_i32_0 : i32, i32
  }
  func.func @transform_6(%arg0: i32) -> (i32, i32) {
    %c0_i32 = arith.constant 0 : i32
    %c0_i32_0 = arith.constant 0 : i32
    %c0_i32_1 = arith.constant 0 : i32
    return %c0_i32, %c0_i32_0 : i32, i32
  }
  func.func @transform_7(%arg0: i32) -> (i32, i32) {
    %c0_i32 = arith.constant 0 : i32
    %c0_i32_0 = arith.constant 0 : i32
    %c0_i32_1 = arith.constant 0 : i32
    return %c0_i32, %c0_i32_0 : i32, i32
  }
  func.func @transform_8(%arg0: i32) -> (i32, i32) {
    %c0_i32 = arith.constant 0 : i32
    %c0_i32_0 = arith.constant 0 : i32
    %c0_i32_1 = arith.constant 0 : i32
    return %c0_i32, %c0_i32_0 : i32, i32
  }
  func.func @transform_9(%arg0: i32) -> (i32, i32) {
    %c0_i32 = arith.constant 0 : i32
    %c0_i32_0 = arith.constant 0 : i32
    %c0_i32_1 = arith.constant 0 : i32
    return %c0_i32, %c0_i32_0 : i32, i32
  }
  func.func @transform_10(%arg0: i32) -> (i32, i32) {
    %c0_i32 = arith.constant 0 : i32
    %c0_i32_0 = arith.constant 0 : i32
    %c0_i32_1 = arith.constant 0 : i32
    return %c0_i32, %c0_i32_0 : i32, i32
  }
  func.func @transform_11(%arg0: i32) -> (i32, i32) {
    %c0_i32 = arith.constant 0 : i32
    %c0_i32_0 = arith.constant 0 : i32
    %c0_i32_1 = arith.constant 0 : i32
    return %c0_i32, %c0_i32_0 : i32, i32
  }
  func.func @transform_12(%arg0: i32) -> (i32, i32) {
    %c0_i32 = arith.constant 0 : i32
    %c0_i32_0 = arith.constant 0 : i32
    %c0_i32_1 = arith.constant 0 : i32
    return %c0_i32, %c0_i32_0 : i32, i32
  }
  func.func @transform_13(%arg0: i32) -> (i32, i32) {
    %c0_i32 = arith.constant 0 : i32
    %c0_i32_0 = arith.constant 0 : i32
    %c0_i32_1 = arith.constant 0 : i32
    return %c0_i32, %c0_i32_0 : i32, i32
  }
  func.func @transform_14(%arg0: i32) -> (i32, i32) {
    %c0_i32 = arith.constant 0 : i32
    %c0_i32_0 = arith.constant 0 : i32
    %c0_i32_1 = arith.constant 0 : i32
    return %c0_i32, %c0_i32_0 : i32, i32
  }
  func.func @transform_15(%arg0: i32) -> (i32, i32) {
    %c0_i32 = arith.constant 0 : i32
    %c0_i32_0 = arith.constant 0 : i32
    %c0_i32_1 = arith.constant 0 : i32
    return %c0_i32, %c0_i32_0 : i32, i32
  }
  func.func @transform_16(%arg0: i32) -> (i32, i32) {
    %c0_i32 = arith.constant 0 : i32
    %c0_i32_0 = arith.constant 0 : i32
    %c0_i32_1 = arith.constant 0 : i32
    return %c0_i32, %c0_i32_0 : i32, i32
  }
  func.func @transform_17(%arg0: i32) -> (i32, i32) {
    %c0_i32 = arith.constant 0 : i32
    %c0_i32_0 = arith.constant 0 : i32
    %c0_i32_1 = arith.constant 0 : i32
    return %c0_i32, %c0_i32_0 : i32, i32
  }
  func.func @transform_18(%arg0: i32) -> (i32, i32) {
    %c0_i32 = arith.constant 0 : i32
    %c0_i32_0 = arith.constant 0 : i32
    %c0_i32_1 = arith.constant 0 : i32
    return %c0_i32, %c0_i32_0 : i32, i32
  }
  func.func @transform_19(%arg0: i32) -> (i32, i32) {
    %c0_i32 = arith.constant 0 : i32
    %c0_i32_0 = arith.constant 0 : i32
    %c0_i32_1 = arith.constant 0 : i32
    return %c0_i32, %c0_i32_0 : i32, i32
  }
  func.func @transform_20(%arg0: i32) -> (i32, i32, i32) {
    %c0_i32 = arith.constant 0 : i32
    %c0_i32_0 = arith.constant 0 : i32
    %c0_i32_1 = arith.constant 0 : i32
    return %arg0, %c0_i32, %c0_i32_0 : i32, i32, i32
  }
}

</mosaic_0001>

<llo_original>
// kernel: modnet_star_forward.5
$region0: #{modnet_star_forward.5}
  #allocation0 [shape = 'u32[]', space=smem, size = 0x4, offset = 0x4, fixed_abs, tag = 'smem constant byte address 0x4 - core index']
  #allocation1 [shape = 'u32[144,128]{1,0:T(1,128)}', space=vmem, size = 0x12000, scoped, tag = 'internal scratch']
  %s0 = inlined_call_operand.vmem [shape: f32[2,4,64], index: 0, kind: input, shape index: {}]
  %s1 = inlined_call_operand.vmem [shape: f32[9,64], index: 1, kind: input, shape index: {}]
  %s2 = inlined_call_operand.vmem [shape: bf16[8,36], index: 2, kind: input, shape index: {}]
  %s3 = inlined_call_operand.vmem [shape: f32[8,1], index: 3, kind: input, shape index: {}]
  %s4 = inlined_call_operand.vmem [shape: bf16[8,72], index: 4, kind: input, shape index: {}]
  %s5 = inlined_call_operand.vmem [shape: f32[8,1], index: 5, kind: input, shape index: {}]
  %s6 = inlined_call_operand.vmem [shape: bf16[64,16], index: 6, kind: input, shape index: {}]
  %s7 = inlined_call_operand.vmem [shape: f32[8,16], index: 7, kind: input, shape index: {}]
  %s8 = inlined_call_operand.vmem [shape: f32[1,16], index: 8, kind: input, shape index: {}]
  %s9 = inlined_call_operand.vmem [shape: f32[2,8,64], index: 9, kind: output, shape index: {0}]
  %s10 = inlined_call_operand.vmem [shape: f32[2,8,16], index: 10, kind: output, shape index: {1}]
  %s11 = inlined_call_operand.vmem [shape: f32[2,1,16], index: 11, kind: output, shape index: {2}]
  %12 = xla_tuple %s9, %s10, %s11
  %s13 = sld [smem:[#allocation0]]
  $region85: #{modnet_star_forward.5} parent=0
    _
  %s15 = ssub.s32 1, %s13
  %s16 = scalar_select 0, %s15, %s13
  loop: start=0, step=1, limit=4
  $region2: #{modnet_star_forward.5} parent=0 // loop_pre_header
    _
  $region3: #{modnet_star_forward.5} parent=0 // loop_header
    %s18 = sphi 0, %s22
    %p19 = scmp.ge.s32.totalorder %s18, 4
    %s28 = sphi 0, %s30
    %s31 = sphi 0, %s28
    %s32 = sphi 0, %s31
    %s48 = sphi 0, %s32
    %s52 = sphi 0, %s52
    %s54 = sphi 0, %s52
    %s55 = sphi 0, %s54
    %s69 = sphi 0, %s55
    %s73 = sphi 0, %s73
    %s75 = sphi 0, %s73
    %s76 = sphi 0, %s75
    %s90 = sphi 0, %s76
    %s94 = sphi 0, %s94
    %s96 = sphi 0, %s94
    %s97 = sphi 0, %s96
    %s111 = sphi 0, %s97
    %s115 = sphi 0, %s115
    %s117 = sphi 0, %s115
    %s118 = sphi 0, %s117
    %s132 = sphi 0, %s118
    %s136 = sphi 0, %s136
    %s138 = sphi 0, %s136
    %s139 = sphi 0, %s138
    %s153 = sphi 0, %s139
    %s157 = sphi 0, %s157
    %s159 = sphi 0, %s157
    %s160 = sphi 0, %s159
    %s174 = sphi 0, %s160
    %s178 = sphi 0, %s178
    %s180 = sphi 0, %s178
    %s181 = sphi 0, %s180
    %s195 = sphi 0, %s181
    %s199 = sphi 0, %s199
    %s201 = sphi 0, %s199
    %s202 = sphi 0, %s201
    %s216 = sphi 0, %s202
    %s222 = sphi 0, %s224
    %s225 = sphi 0, %s222
    %s226 = sphi 0, %s225
    %s242 = sphi 0, %s226
    %s248 = sphi 0, %s250
    %s251 = sphi 0, %s248
    %s252 = sphi 0, %s251
    %s268 = sphi 0, %s252
    %s274 = sphi 0, %s276
    %s277 = sphi 0, %s274
    %s278 = sphi 0, %s277
    %s294 = sphi 0, %s278
  $region4: #{modnet_star_forward.5} parent=0 // loop_header_branch
    %21 = sbr.rel (%p19) target = $region8
  $region5: #{modnet_star_forward.5} parent=0 // loop_body
    %s23 = ssub.s32 %s18, 1
    %s24 = ssub.s32 %s18, 2
    %s25 = sadd.s32 %s18, 1
    %s26 = ssub.s32 %s18, %s25
    %p27 = scmp.eq.s32.totalorder %s26, 0
    %s29 = sadd.s32 %s28, 1
    %s30 = scalar_select %p27, %s28, %s29
    %p33 = pneg %p27
    %p34 = scmp.eq.s32.totalorder %s18, 1
    %p35 = por %p33, %p34
    %p36 = scmp.ne.s32.totalorder %s28, %s31
    %p37 = scmp.eq.s32.totalorder %s18, 0
    %p38 = por %p36, %p37
    %p39 = scmp.ne.s32.totalorder %s28, %s31
    %p40 = scmp.eq.s32.totalorder %s23, 1
    %p41 = por %p39, %p40
    %p42 = scmp.ne.s32.totalorder %s31, %s32
    %p43 = scmp.eq.s32.totalorder %s23, 0
    %p44 = por %p42, %p43
    %p45 = scmp.ne.s32.totalorder %s31, %s32
    %p46 = scmp.eq.s32.totalorder %s24, 1
    %p47 = por %p45, %p46
    %p49 = scmp.ne.s32.totalorder %s32, %s48
    %p50 = scmp.eq.s32.totalorder %s24, 0
    %p51 = por %p49, %p50
    %s53 = sadd.s32 %s52, 1
    %p56 = scmp.eq.s32.totalorder %s18, 1
    %p57 = scmp.ne.s32.totalorder %s52, %s54
    %p58 = scmp.eq.s32.totalorder %s18, 0
    %p59 = por %p57, %p58
    %p60 = scmp.ne.s32.totalorder %s52, %s54
    %p61 = scmp.eq.s32.totalorder %s23, 1
    %p62 = por %p60, %p61
    %p63 = scmp.ne.s32.totalorder %s54, %s55
    %p64 = scmp.eq.s32.totalorder %s23, 0
    %p65 = por %p63, %p64
    %p66 = scmp.ne.s32.totalorder %s54, %s55
    %p67 = scmp.eq.s32.totalorder %s24, 1
    %p68 = por %p66, %p67
    %p70 = scmp.ne.s32.totalorder %s55, %s69
    %p71 = scmp.eq.s32.totalorder %s24, 0
    %p72 = por %p70, %p71
    %s74 = sadd.s32 %s73, 1
    %p77 = scmp.eq.s32.totalorder %s18, 1
    %p78 = scmp.ne.s32.totalorder %s73, %s75
    %p79 = scmp.eq.s32.totalorder %s18, 0
    %p80 = por %p78, %p79
    %p81 = scmp.ne.s32.totalorder %s73, %s75
    %p82 = scmp.eq.s32.totalorder %s23, 1
    %p83 = por %p81, %p82
    %p84 = scmp.ne.s32.totalorder %s75, %s76
    %p85 = scmp.eq.s32.totalorder %s23, 0
    %p86 = por %p84, %p85
    %p87 = scmp.ne.s32.totalorder %s75, %s76
    %p88 = scmp.eq.s32.totalorder %s24, 1
    %p89 = por %p87, %p88
    %p91 = scmp.ne.s32.totalorder %s76, %s90
    %p92 = scmp.eq.s32.totalorder %s24, 0
    %p93 = por %p91, %p92
    %s95 = sadd.s32 %s94, 1
    %p98 = scmp.eq.s32.totalorder %s18, 1
    %p99 = scmp.ne.s32.totalorder %s94, %s96
    %p100 = scmp.eq.s32.totalorder %s18, 0
    %p101 = por %p99, %p100
    %p102 = scmp.ne.s32.totalorder %s94, %s96
    %p103 = scmp.eq.s32.totalorder %s23, 1
    %p104 = por %p102, %p103
    %p105 = scmp.ne.s32.totalorder %s96, %s97
    %p106 = scmp.eq.s32.totalorder %s23, 0
    %p107 = por %p105, %p106
    %p108 = scmp.ne.s32.totalorder %s96, %s97
    %p109 = scmp.eq.s32.totalorder %s24, 1
    %p110 = por %p108, %p109
    %p112 = scmp.ne.s32.totalorder %s97, %s111
    %p113 = scmp.eq.s32.totalorder %s24, 0
    %p114 = por %p112, %p113
    %s116 = sadd.s32 %s115, 1
    %p119 = scmp.eq.s32.totalorder %s18, 1
    %p120 = scmp.ne.s32.totalorder %s115, %s117
    %p121 = scmp.eq.s32.totalorder %s18, 0
    %p122 = por %p120, %p121
    %p123 = scmp.ne.s32.totalorder %s115, %s117
    %p124 = scmp.eq.s32.totalorder %s23, 1
    %p125 = por %p123, %p124
    %p126 = scmp.ne.s32.totalorder %s117, %s118
    %p127 = scmp.eq.s32.totalorder %s23, 0
    %p128 = por %p126, %p127
    %p129 = scmp.ne.s32.totalorder %s117, %s118
    %p130 = scmp.eq.s32.totalorder %s24, 1
    %p131 = por %p129, %p130
    %p133 = scmp.ne.s32.totalorder %s118, %s132
    %p134 = scmp.eq.s32.totalorder %s24, 0
    %p135 = por %p133, %p134
    %s137 = sadd.s32 %s136, 1
    %p140 = scmp.eq.s32.totalorder %s18, 1
    %p141 = scmp.ne.s32.totalorder %s136, %s138
    %p142 = scmp.eq.s32.totalorder %s18, 0
    %p143 = por %p141, %p142
    %p144 = scmp.ne.s32.totalorder %s136, %s138
    %p145 = scmp.eq.s32.totalorder %s23, 1
    %p146 = por %p144, %p145
    %p147 = scmp.ne.s32.totalorder %s138, %s139
    %p148 = scmp.eq.s32.totalorder %s23, 0
    %p149 = por %p147, %p148
    %p150 = scmp.ne.s32.totalorder %s138, %s139
    %p151 = scmp.eq.s32.totalorder %s24, 1
    %p152 = por %p150, %p151
    %p154 = scmp.ne.s32.totalorder %s139, %s153
    %p155 = scmp.eq.s32.totalorder %s24, 0
    %p156 = por %p154, %p155
    %s158 = sadd.s32 %s157, 1
    %p161 = scmp.eq.s32.totalorder %s18, 1
    %p162 = scmp.ne.s32.totalorder %s157, %s159
    %p163 = scmp.eq.s32.totalorder %s18, 0
    %p164 = por %p162, %p163
    %p165 = scmp.ne.s32.totalorder %s157, %s159
    %p166 = scmp.eq.s32.totalorder %s23, 1
    %p167 = por %p165, %p166
    %p168 = scmp.ne.s32.totalorder %s159, %s160
    %p169 = scmp.eq.s32.totalorder %s23, 0
    %p170 = por %p168, %p169
    %p171 = scmp.ne.s32.totalorder %s159, %s160
    %p172 = scmp.eq.s32.totalorder %s24, 1
    %p173 = por %p171, %p172
    %p175 = scmp.ne.s32.totalorder %s160, %s174
    %p176 = scmp.eq.s32.totalorder %s24, 0
    %p177 = por %p175, %p176
    %s179 = sadd.s32 %s178, 1
    %p182 = scmp.eq.s32.totalorder %s18, 1
    %p183 = scmp.ne.s32.totalorder %s178, %s180
    %p184 = scmp.eq.s32.totalorder %s18, 0
    %p185 = por %p183, %p184
    %p186 = scmp.ne.s32.totalorder %s178, %s180
    %p187 = scmp.eq.s32.totalorder %s23, 1
    %p188 = por %p186, %p187
    %p189 = scmp.ne.s32.totalorder %s180, %s181
    %p190 = scmp.eq.s32.totalorder %s23, 0
    %p191 = por %p189, %p190
    %p192 = scmp.ne.s32.totalorder %s180, %s181
    %p193 = scmp.eq.s32.totalorder %s24, 1
    %p194 = por %p192, %p193
    %p196 = scmp.ne.s32.totalorder %s181, %s195
    %p197 = scmp.eq.s32.totalorder %s24, 0
    %p198 = por %p196, %p197
    %s200 = sadd.s32 %s199, 1
    %p203 = scmp.eq.s32.totalorder %s18, 1
    %p204 = scmp.ne.s32.totalorder %s199, %s201
    %p205 = scmp.eq.s32.totalorder %s18, 0
    %p206 = por %p204, %p205
    %p207 = scmp.ne.s32.totalorder %s199, %s201
    %p208 = scmp.eq.s32.totalorder %s23, 1
    %p209 = por %p207, %p208
    %p210 = scmp.ne.s32.totalorder %s201, %s202
    %p211 = scmp.eq.s32.totalorder %s23, 0
    %p212 = por %p210, %p211
    %p213 = scmp.ne.s32.totalorder %s201, %s202
    %p214 = scmp.eq.s32.totalorder %s24, 1
    %p215 = por %p213, %p214
    %p217 = scmp.ne.s32.totalorder %s202, %s216
    %p218 = scmp.eq.s32.totalorder %s24, 0
    %p219 = por %p217, %p218
    %s220 = ssub.s32 %s18, %s25
    %p221 = scmp.eq.s32.totalorder %s220, 0
    %s223 = sadd.s32 %s222, 1
    %s224 = scalar_select %p221, %s222, %s223
    %p227 = pneg %p221
    %p228 = scmp.eq.s32.totalorder %s18, 1
    %p229 = por %p227, %p228
    %p230 = scmp.ne.s32.totalorder %s222, %s225
    %p231 = scmp.eq.s32.totalorder %s18, 0
    %p232 = por %p230, %p231
    %p233 = scmp.ne.s32.totalorder %s222, %s225
    %p234 = scmp.eq.s32.totalorder %s23, 1
    %p235 = por %p233, %p234
    %p236 = scmp.ne.s32.totalorder %s225, %s226
    %p237 = scmp.eq.s32.totalorder %s23, 0
    %p238 = por %p236, %p237
    %p239 = scmp.ne.s32.totalorder %s225, %s226
    %p240 = scmp.eq.s32.totalorder %s24, 1
    %p241 = por %p239, %p240
    %p243 = scmp.ne.s32.totalorder %s226, %s242
    %p244 = scmp.eq.s32.totalorder %s24, 0
    %p245 = por %p243, %p244
    %s246 = ssub.s32 %s18, %s25
    %p247 = scmp.eq.s32.totalorder %s246, 0
    %s249 = sadd.s32 %s248, 1
    %s250 = scalar_select %p247, %s248, %s249
    %p253 = pneg %p247
    %p254 = scmp.eq.s32.totalorder %s18, 1
    %p255 = por %p253, %p254
    %p256 = scmp.ne.s32.totalorder %s248, %s251
    %p257 = scmp.eq.s32.totalorder %s18, 0
    %p258 = por %p256, %p257
    %p259 = scmp.ne.s32.totalorder %s248, %s251
    %p260 = scmp.eq.s32.totalorder %s23, 1
    %p261 = por %p259, %p260
    %p262 = scmp.ne.s32.totalorder %s251, %s252
    %p263 = scmp.eq.s32.totalorder %s23, 0
    %p264 = por %p262, %p263
    %p265 = scmp.ne.s32.totalorder %s251, %s252
    %p266 = scmp.eq.s32.totalorder %s24, 1
    %p267 = por %p265, %p266
    %p269 = scmp.ne.s32.totalorder %s252, %s268
    %p270 = scmp.eq.s32.totalorder %s24, 0
    %p271 = por %p269, %p270
    %s272 = ssub.s32 %s18, %s25
    %p273 = scmp.eq.s32.totalorder %s272, 0
    %s275 = sadd.s32 %s274, 1
    %s276 = scalar_select %p273, %s274, %s275
    %p279 = pneg %p273
    %p280 = scmp.eq.s32.totalorder %s18, 1
    %p281 = por %p279, %p280
    %p282 = scmp.ne.s32.totalorder %s274, %s277
    %p283 = scmp.eq.s32.totalorder %s18, 0
    %p284 = por %p282, %p283
    %p285 = scmp.ne.s32.totalorder %s274, %s277
    %p286 = scmp.eq.s32.totalorder %s23, 1
    %p287 = por %p285, %p286
    %p288 = scmp.ne.s32.totalorder %s277, %s278
    %p289 = scmp.eq.s32.totalorder %s23, 0
    %p290 = por %p288, %p289
    %p291 = scmp.ne.s32.totalorder %s277, %s278
    %p292 = scmp.eq.s32.totalorder %s24, 1
    %p293 = por %p291, %p292
    %p295 = scmp.ne.s32.totalorder %s278, %s294
    %p296 = scmp.eq.s32.totalorder %s24, 0
    %p297 = por %p295, %p296
    %p298 = scmp.le.s32.totalorder 1, %s18
    %p299 = scmp.lt.s32.totalorder %s18, 3
    %p300 = pnand %p298, %p299
    %p301 = pneg %p300
    // Predicated region
    $region9: #{modnet_star_forward.5} parent=5 // pred_check
      _
    $region10: #{modnet_star_forward.5} parent=5 // pred_check_branch
      %303 = sbr.rel (%p300) target = $region12
    $region11: #{modnet_star_forward.5} parent=5 // pred_region
      %s304 = ssub.s32 %s18, 1
      // Predicated region
      $region13: #{modnet_star_forward.5} parent=11 // pred_check
        %p305 = pneg %p65
      $region14: #{modnet_star_forward.5} parent=11 // pred_check_branch
        %307 = sbr.rel (%p305) target = $region16
      $region15: #{modnet_star_forward.5} parent=11 // pred_region
        _
      $region16: #{modnet_star_forward.5} parent=11 // pred_fallthru
        _
      // Predicated region
      $region17: #{modnet_star_forward.5} parent=11 // pred_check
        %p308 = pneg %p86
      $region18: #{modnet_star_forward.5} parent=11 // pred_check_branch
        %310 = sbr.rel (%p308) target = $region20
      $region19: #{modnet_star_forward.5} parent=11 // pred_region
        _
      $region20: #{modnet_star_forward.5} parent=11 // pred_fallthru
        _
      // Predicated region
      $region21: #{modnet_star_forward.5} parent=11 // pred_check
        %p311 = pneg %p107
      $region22: #{modnet_star_forward.5} parent=11 // pred_check_branch
        %313 = sbr.rel (%p311) target = $region24
      $region23: #{modnet_star_forward.5} parent=11 // pred_region
        _
      $region24: #{modnet_star_forward.5} parent=11 // pred_fallthru
        _
      // Predicated region
      $region25: #{modnet_star_forward.5} parent=11 // pred_check
        %p314 = pneg %p128
      $region26: #{modnet_star_forward.5} parent=11 // pred_check_branch
        %316 = sbr.rel (%p314) target = $region28
      $region27: #{modnet_star_forward.5} parent=11 // pred_region
        _
      $region28: #{modnet_star_forward.5} parent=11 // pred_fallthru
        _
      // Predicated region
      $region29: #{modnet_star_forward.5} parent=11 // pred_check
        %p317 = pneg %p149
      $region30: #{modnet_star_forward.5} parent=11 // pred_check_branch
        %319 = sbr.rel (%p317) target = $region32
      $region31: #{modnet_star_forward.5} parent=11 // pred_region
        _
      $region32: #{modnet_star_forward.5} parent=11 // pred_fallthru
        _
      // Predicated region
      $region33: #{modnet_star_forward.5} parent=11 // pred_check
        %p320 = pneg %p170
      $region34: #{modnet_star_forward.5} parent=11 // pred_check_branch
        %322 = sbr.rel (%p320) target = $region36
      $region35: #{modnet_star_forward.5} parent=11 // pred_region
        _
      $region36: #{modnet_star_forward.5} parent=11 // pred_fallthru
        _
      // Predicated region
      $region37: #{modnet_star_forward.5} parent=11 // pred_check
        %p323 = pneg %p191
      $region38: #{modnet_star_forward.5} parent=11 // pred_check_branch
        %325 = sbr.rel (%p323) target = $region40
      $region39: #{modnet_star_forward.5} parent=11 // pred_region
        _
      $region40: #{modnet_star_forward.5} parent=11 // pred_fallthru
        _
      // Predicated region
      $region41: #{modnet_star_forward.5} parent=11 // pred_check
        %p326 = pneg %p212
      $region42: #{modnet_star_forward.5} parent=11 // pred_check_branch
        %328 = sbr.rel (%p326) target = $region44
      $region43: #{modnet_star_forward.5} parent=11 // pred_region
        _
      $region44: #{modnet_star_forward.5} parent=11 // pred_fallthru
        _
    $region12: #{modnet_star_forward.5} parent=5 // pred_fallthru
      _
    %p329 = scmp.lt.s32.totalorder %s18, 2
    // Predicated region
    $region45: #{modnet_star_forward.5} parent=5 // pred_check
      %p330 = pneg %p329
    $region46: #{modnet_star_forward.5} parent=5 // pred_check_branch
      %332 = sbr.rel (%p330) target = $region48
    $region47: #{modnet_star_forward.5} parent=5 // pred_region
      // Predicated region
      $region49: #{modnet_star_forward.5} parent=47 // pred_check
        %p333 = pneg %p38
      $region50: #{modnet_star_forward.5} parent=47 // pred_check_branch
        %335 = sbr.rel (%p333) target = $region52
      $region51: #{modnet_star_forward.5} parent=47 // pred_region
        %p336 = scmp.lt.s32.totalorder %s18, 1
        %s337 = scalar_select %p336, %s18, 1
        %s338 = smul.addr %s337, 4
        %s339 = scalar_lea.vmem %s0, %s338
      $region52: #{modnet_star_forward.5} parent=47 // pred_fallthru
        _
    $region48: #{modnet_star_forward.5} parent=5 // pred_fallthru
      _
    %p340 = scmp.le.s32.totalorder 1, %s18
    %p341 = scmp.lt.s32.totalorder %s18, 3
    %p342 = pnand %p340, %p341
    %p343 = pneg %p342
    // Predicated region
    $region53: #{modnet_star_forward.5} parent=5 // pred_check
      _
    $region54: #{modnet_star_forward.5} parent=5 // pred_check_branch
      %345 = sbr.rel (%p342) target = $region56
    $region55: #{modnet_star_forward.5} parent=5 // pred_region
      %s346 = ssub.s32 %s18, 1
      %p347 = scmp.lt.s32.totalorder %s23, 1
      %s348 = scalar_select %p347, %s23, 1
      %s349 = smul.addr %s348, 4
      %s350 = scalar_lea.vmem %s0, %s349
      %p351 = pneg %p44
      %p352 = pneg %p41
      %p353 = pneg %p65
      %p354 = pneg %p62
      %p355 = pneg %p86
      %p356 = pneg %p83
      %p357 = pneg %p107
      %p358 = pneg %p104
      %p359 = pneg %p128
      %p360 = pneg %p125
      %p361 = pneg %p149
      %p362 = pneg %p146
      %p363 = pneg %p170
      %p364 = pneg %p167
      %p365 = pneg %p191
      %p366 = pneg %p188
      %p367 = pneg %p212
      %p368 = pneg %p209
      %p369 = pneg %p238
      %p370 = pneg %p235
      %p371 = scmp.lt.s32.totalorder %s23, 1
      %s372 = scalar_select %p371, %s23, 1
      %s373 = smul.addr %s372, 8
      %s374 = scalar_lea.vmem %s9, %s373
      %p375 = pneg %p264
      %p376 = pneg %p261
      %p377 = scmp.lt.s32.totalorder %s23, 1
      %s378 = scalar_select %p377, %s23, 1
      %s379 = smul.addr %s378, 8
      %s380 = scalar_lea.vmem %s10, %s379
      %p381 = pneg %p290
      %p382 = pneg %p287
      %p383 = scmp.lt.s32.totalorder %s23, 1
      %s384 = scalar_select %p383, %s23, 1
      %s385 = scalar_lea.vmem %s11, %s384
      %p386 = scmp.lt.s32.totalorder %s23, 1
      %s387 = scalar_select %p386, %s23, 1
      %s388 = smul.addr %s387, 4
      %s389 = scalar_lea.vmem %s0, %s388
      %p390 = scmp.lt.s32.totalorder %s23, 1
      %s391 = scalar_select %p390, %s23, 1
      %s392 = smul.addr %s391, 8
      %s393 = scalar_lea.vmem %s9, %s392
      %p394 = scmp.lt.s32.totalorder %s23, 1
      %s395 = scalar_select %p394, %s23, 1
      %s396 = smul.addr %s395, 8
      %s397 = scalar_lea.vmem %s10, %s396
      %p398 = scmp.lt.s32.totalorder %s23, 1
      %s399 = scalar_select %p398, %s23, 1
      %s400 = scalar_lea.vmem %s11, %s399
      %v402 = vld [vmem:[%s1] sm:$0xff]
      %v403 = vld [vmem:[%s1 + $0x8] sm:$0x1]
      %v404 = vld [vmem:[%s389] sm:$0xf]
      %v405 = vld [vmem:[%s2] sm:$0xf]
      %v406 = vld [vmem:[%s3] sm:$0xff]
      %vm407 = vcmask 1048064
      %408 = vrot.lane.b32.xlu0 %v404, 64
      %v409 = vpop.permute.xlu0 %408
      %v410 = vsel %vm407, %v409, %v404
      %411 = vrot.lane.b32.xlu0 %v410, 64
      %v412 = vpop.permute.xlu0 %411
      %v413 = vsel %vm407, %v412, %v404
      %v414 = vlaneseq
      %v415 = vshrl.u32 %v414, 7
      %v416 = vsub.s32 0, %v415
      %v417 = vrot.slane %v402, %v416
      %419 = vrot.lane.b32.xlu0 %v417, 55
      %v420 = vpop.permute.xlu0 %419
      %v422 = vmul.f32 %v413, %v420
      %v423 = vlaneseq
      %v424 = vshrl.u32 %v423, 7
      %v425 = vsub.s32 1, %v424
      %v426 = vrot.slane %v402, %v425
      %428 = vrot.lane.b32.xlu0 %v426, 56
      %v429 = vpop.permute.xlu0 %428
      %v431 = vmul.f32 %v413, %v429
      %v432 = vlaneseq
      %v433 = vshrl.u32 %v432, 7
      %v434 = vsub.s32 2, %v433
      %v435 = vrot.slane %v402, %v434
      %437 = vrot.lane.b32.xlu0 %v435, 57
      %v438 = vpop.permute.xlu0 %437
      %v440 = vmul.f32 %v413, %v438
      %v441 = vlaneseq
      %v442 = vshrl.u32 %v441, 7
      %v443 = vsub.s32 3, %v442
      %v444 = vrot.slane %v402, %v443
      %446 = vrot.lane.b32.xlu0 %v444, 63
      %v447 = vpop.permute.xlu0 %446
      %v449 = vmul.f32 %v413, %v447
      %v450 = vlaneseq
      %v451 = vshrl.u32 %v450, 7
      %v452 = vsub.s32 4, %v451
      %v453 = vrot.slane %v402, %v452
      %v454 = vmul.f32 %v404, %v453
      %v455 = vlaneseq
      %v456 = vshrl.u32 %v455, 7
      %v457 = vsub.s32 5, %v456
      %v458 = vrot.slane %v402, %v457
      %460 = vrot.lane.b32.xlu0 %v458, 1
      %v461 = vpop.permute.xlu0 %460
      %v463 = vmul.f32 %v413, %v461
      %v464 = vlaneseq
      %v465 = vshrl.u32 %v464, 7
      %v466 = vsub.s32 6, %v465
      %v467 = vrot.slane %v402, %v466
      %469 = vrot.lane.b32.xlu0 %v467, 7
      %v470 = vpop.permute.xlu0 %469
      %v472 = vmul.f32 %v413, %v470
      %v473 = vlaneseq
      %v474 = vshrl.u32 %v473, 7
      %v475 = vsub.s32 7, %v474
      %v476 = vrot.slane %v402, %v475
      %478 = vrot.lane.b32.xlu0 %v476, 8
      %v479 = vpop.permute.xlu0 %478
      %v481 = vmul.f32 %v413, %v479
      %v482 = vlaneseq
      %v483 = vshrl.u32 %v482, 7
      %v484 = vsub.s32 0, %v483
      %v485 = vrot.slane %v403, %v484
      %487 = vrot.lane.b32.xlu0 %v485, 9
      %v488 = vpop.permute.xlu0 %487
      %v490 = vmul.f32 %v413, %v488
      %v492 = vrot.slane %v431, 4
      %493 = vrot.lane.b32.xlu0 %v492, 127
      %v494 = vpop.permute.xlu0 %493
      %497 = vrot.lane.b32.xlu0 %v440, 126
      %v498 = vpop.permute.xlu0 %497
      %v501 = vrot.slane %v449, 4
      %502 = vrot.lane.b32.xlu0 %v501, 120
      %v503 = vpop.permute.xlu0 %502
      %506 = vrot.lane.b32.xlu0 %v454, 55
      %v507 = vpop.permute.xlu0 %506
      %v510 = vrot.slane %v463, 4
      %511 = vrot.lane.b32.xlu0 %v510, 54
      %v512 = vpop.permute.xlu0 %511
      %515 = vrot.lane.b32.xlu0 %v472, 48
      %v516 = vpop.permute.xlu0 %515
      %v519 = vrot.slane %v481, 4
      %520 = vrot.lane.b32.xlu0 %v519, 47
      %v521 = vpop.permute.xlu0 %520
      %524 = vrot.lane.b32.xlu0 %v490, 46
      %v525 = vpop.permute.xlu0 %524
      %vm527 = vcmask 1043456
      %v528 = vsel %vm527, %v422, %v494
      %v529 = vsel %vm527, %v498, %v503
      %v530 = vsel %vm527, %v507, %v512
      %v531 = vsel %vm527, %v516, %v521
      %v532 = vpack.c.bf16 %v529, %v528
      %v533 = vpack.c.bf16 %v531, %v530
      %v534 = vpack.c.bf16 %v525, %v525
      %536 = vset.pattern.permute.xlu0 0
      %537 = vperm.xlu0 %536, %v406
      %v538 = vpop.permute.xlu0 %537
      %543 = vrot.lane.b32.xlu0 %v532, 73
      %v544 = vpop.permute.xlu0 %543
      %545 = vrot.lane.b32.xlu0 %v533, 73
      %v546 = vpop.permute.xlu0 %545
      %547 = vrot.lane.b32.xlu0 %v534, 73
      %v548 = vpop.permute.xlu0 %547
      %vm551 = vcmask 293888
      %v553 = vsel %vm551, %v405, 0
      %vm555 = vcmask 1041408
      %v557 = vsel %vm555, %v548, 0
      %559 = vmatprep.subr.bf16.mxu0 0
      %560 = vmatpush1.bf16.msra.mxu0 %v544
      %561 = vmatprep.subr.bf16.mxu0 0
      %562 = vmatpush1.bf16.msra.mxu0 %v546
      %563 = vmatprep.subr.bf16.mxu0 0
      %564 = vmatpush1.bf16.msra.mxu0 %v557
      %565 = vmatprep.subr.bf16.mxu0 0
      %566 = vmatpush1.bf16.msra.mxu0 0
      %567 = vmatprep.subr.bf16.mxu0 0
      %568 = vmatpush1.bf16.msra.mxu0 0
      %569 = vmatprep.subr.bf16.mxu0 0
      %570 = vmatpush1.bf16.msra.mxu0 0
      %571 = vmatprep.subr.bf16.mxu0 0
      %572 = vmatpush1.bf16.msra.mxu0 0
      %573 = vmatprep.subr.bf16.mxu0 0
      %574 = vmatpush1.bf16.msra.mxu0 0
      %575 = vmatprep.subr.bf16.mxu0 0
      %576 = vmatpush1.bf16.msra.mxu0 0
      %577 = vmatprep.subr.bf16.mxu0 0
      %578 = vmatpush1.bf16.msra.mxu0 0
      %579 = vmatprep.subr.bf16.mxu0 0
      %580 = vmatpush1.bf16.msra.mxu0 0
      %581 = vmatprep.subr.bf16.mxu0 0
      %582 = vmatpush1.bf16.msra.mxu0 0
      %583 = vmatprep.subr.bf16.mxu0 0
      %584 = vmatpush1.bf16.msra.mxu0 0
      %585 = vmatprep.subr.bf16.mxu0 0
      %586 = vmatpush1.bf16.msra.mxu0 0
      %587 = vmatprep.subr.bf16.mxu0 0
      %588 = vmatpush1.bf16.msra.mxu0 0
      %589 = vmatprep.subr.bf16.mxu0 0
      %590 = vmatpush1.bf16.msra.mxu0 0
      %591 = vmatprep.mubr.bf16.mxu0 0
      %592 = vmatmul.mubr.bf16.gmra.mrb[0].mxu0 %v553
      %v593 = vpop.f32.mrb[0].mxu0
      %v594 = vadd.f32 %v538, %v593
      %v595 = vpop.f32.mrb[0].mxu0
      %v596 = vpop.f32.mrb[0].mxu0
      %v597 = vpop.f32.mrb[0].mxu0
      %598 = vdwg.mxu0
      %vm599 = vcmp.ge.f32.partialorder %v594, 0.0
      %v600 = vmul.f32 %v594, 0.2
      %v601 = vsel %vm599, %v594, %v600
      %v602 = vld [vmem:[%s4] sm:$0xf]
      %v603 = vld [vmem:[%s5] sm:$0xff]
      %604 = vrot.lane.b32.xlu0 %v601, 64
      %v605 = vpop.permute.xlu0 %604
      %v606 = vsel %vm407, %v605, %v601
      %607 = vrot.lane.b32.xlu0 %v606, 64
      %v608 = vpop.permute.xlu0 %607
      %v609 = vsel %vm407, %v608, %v601
      %v610 = vmul.f32 %v609, %v420
      %v611 = vmul.f32 %v609, %v429
      %v612 = vmul.f32 %v609, %v438
      %v613 = vmul.f32 %v609, %v447
      %v614 = vmul.f32 %v601, %v453
      %v615 = vmul.f32 %v609, %v461
      %v616 = vmul.f32 %v609, %v470
      %v617 = vmul.f32 %v609, %v479
      %v618 = vmul.f32 %v609, %v488
      %620 = vrot.lane.b32.xlu0 %v611, 127
      %v621 = vpop.permute.xlu0 %620
      %624 = vrot.lane.b32.xlu0 %v612, 126
      %v625 = vpop.permute.xlu0 %624
      %628 = vrot.lane.b32.xlu0 %v613, 120
      %v629 = vpop.permute.xlu0 %628
      %632 = vrot.lane.b32.xlu0 %v614, 55
      %v633 = vpop.permute.xlu0 %632
      %636 = vrot.lane.b32.xlu0 %v615, 54
      %v637 = vpop.permute.xlu0 %636
      %640 = vrot.lane.b32.xlu0 %v616, 48
      %v641 = vpop.permute.xlu0 %640
      %644 = vrot.lane.b32.xlu0 %v617, 47
      %v645 = vpop.permute.xlu0 %644
      %648 = vrot.lane.b32.xlu0 %v618, 46
      %v649 = vpop.permute.xlu0 %648
      %v651 = vpack.c.bf16 %v621, %v610
      %v652 = vpack.c.bf16 %v629, %v625
      %v653 = vpack.c.bf16 %v637, %v633
      %v654 = vpack.c.bf16 %v645, %v641
      %v655 = vpack.c.bf16 %v649, %v649
      %657 = vset.pattern.permute.xlu0 0
      %658 = vperm.xlu0 %657, %v603
      %v659 = vpop.permute.xlu0 %658
      %666 = vrot.lane.b32.xlu0 %v651, 73
      %v667 = vpop.permute.xlu0 %666
      %668 = vrot.lane.b32.xlu0 %v652, 73
      %v669 = vpop.permute.xlu0 %668
      %670 = vrot.lane.b32.xlu0 %v653, 73
      %v671 = vpop.permute.xlu0 %670
      %672 = vrot.lane.b32.xlu0 %v654, 73
      %v673 = vpop.permute.xlu0 %672
      %674 = vrot.lane.b32.xlu0 %v655, 73
      %v675 = vpop.permute.xlu0 %674
      %vm680 = vcmask 588800
      %v682 = vsel %vm680, %v602, 0
      %v685 = vsel %vm527, %v675, 0
      %687 = vmatprep.subr.bf16.mxu0 0
      %688 = vmatpush1.bf16.msra.mxu0 %v667
      %689 = vmatprep.subr.bf16.mxu0 0
      %690 = vmatpush1.bf16.msra.mxu0 %v669
      %691 = vmatprep.subr.bf16.mxu0 0
      %692 = vmatpush1.bf16.msra.mxu0 %v671
      %693 = vmatprep.subr.bf16.mxu0 0
      %694 = vmatpush1.bf16.msra.mxu0 %v673
      %695 = vmatprep.subr.bf16.mxu0 0
      %696 = vmatpush1.bf16.msra.mxu0 %v685
      %697 = vmatprep.subr.bf16.mxu0 0
      %698 = vmatpush1.bf16.msra.mxu0 0
      %699 = vmatprep.subr.bf16.mxu0 0
      %700 = vmatpush1.bf16.msra.mxu0 0
      %701 = vmatprep.subr.bf16.mxu0 0
      %702 = vmatpush1.bf16.msra.mxu0 0
      %703 = vmatprep.subr.bf16.mxu0 0
      %704 = vmatpush1.bf16.msra.mxu0 0
      %705 = vmatprep.subr.bf16.mxu0 0
      %706 = vmatpush1.bf16.msra.mxu0 0
      %707 = vmatprep.subr.bf16.mxu0 0
      %708 = vmatpush1.bf16.msra.mxu0 0
      %709 = vmatprep.subr.bf16.mxu0 0
      %710 = vmatpush1.bf16.msra.mxu0 0
      %711 = vmatprep.subr.bf16.mxu0 0
      %712 = vmatpush1.bf16.msra.mxu0 0
      %713 = vmatprep.subr.bf16.mxu0 0
      %714 = vmatpush1.bf16.msra.mxu0 0
      %715 = vmatprep.subr.bf16.mxu0 0
      %716 = vmatpush1.bf16.msra.mxu0 0
      %717 = vmatprep.subr.bf16.mxu0 0
      %718 = vmatpush1.bf16.msra.mxu0 0
      %719 = vmatprep.mubr.bf16.mxu0 0
      %720 = vmatmul.mubr.bf16.gmra.mrb[0].mxu0 %v682
      %v721 = vpop.f32.mrb[0].mxu0
      %v722 = vadd.f32 %v659, %v721
      %v723 = vpop.f32.mrb[0].mxu0
      %v724 = vpop.f32.mrb[0].mxu0
      %v725 = vpop.f32.mrb[0].mxu0
      %726 = vdwg.mxu0
      %vm727 = vcmp.ge.f32.partialorder %v722, 0.0
      %v728 = vmul.f32 %v722, 0.2
      %v729 = vsel %vm727, %v722, %v728
      %vm730 = vcmask 523264
      %731 = vst.msk [vmem:[%s393] sm:$0xff] %vm730, %v729
      %v732 = vpack.c.bf16 %v729, %v729
      %v733 = vld [vmem:[%s6] sm:$0xf]
      %v734 = vld [vmem:[%s6 + $0x4] sm:$0xf]
      %v735 = vld [vmem:[%s6 + $0x8] sm:$0xf]
      %v736 = vld [vmem:[%s6 + $0xc] sm:$0xf]
      %v737 = vld [vmem:[%s6 + $0x10] sm:$0xf]
      %v738 = vld [vmem:[%s6 + $0x14] sm:$0xf]
      %v739 = vld [vmem:[%s6 + $0x18] sm:$0xf]
      %v740 = vld [vmem:[%s6 + $0x1c] sm:$0xf]
      %v749 = vunpack.c.l.b16 %v733
      %v750 = vunpack.c.l.b16 %v734
      %v751 = vunpack.c.l.b16 %v735
      %v752 = vunpack.c.l.b16 %v736
      %v753 = vunpack.c.l.b16 %v737
      %v754 = vunpack.c.l.b16 %v738
      %v755 = vunpack.c.l.b16 %v739
      %v756 = vunpack.c.l.b16 %v740
      %v757 = vpack.c.b16 %v750, %v749
      %v758 = vpack.c.b16 %v752, %v751
      %v759 = vpack.c.b16 %v754, %v753
      %v760 = vpack.c.b16 %v756, %v755
      %v766 = vsel %vm730, %v732, 0
      %768 = vmatprep.subr.bf16.mxu0 0
      %769 = vmatpush1.bf16.msra.mxu0 %v757
      %770 = vmatprep.subr.bf16.mxu0 0
      %771 = vmatpush1.bf16.msra.mxu0 %v758
      %772 = vmatprep.subr.bf16.mxu0 0
      %773 = vmatpush1.bf16.msra.mxu0 %v759
      %774 = vmatprep.subr.bf16.mxu0 0
      %775 = vmatpush1.bf16.msra.mxu0 %v760
      %776 = vmatprep.subr.bf16.mxu0 0
      %777 = vmatpush1.bf16.msra.mxu0 0
      %778 = vmatprep.subr.bf16.mxu0 0
      %779 = vmatpush1.bf16.msra.mxu0 0
      %780 = vmatprep.subr.bf16.mxu0 0
      %781 = vmatpush1.bf16.msra.mxu0 0
      %782 = vmatprep.subr.bf16.mxu0 0
      %783 = vmatpush1.bf16.msra.mxu0 0
      %784 = vmatprep.subr.bf16.mxu0 0
      %785 = vmatpush1.bf16.msra.mxu0 0
      %786 = vmatprep.subr.bf16.mxu0 0
      %787 = vmatpush1.bf16.msra.mxu0 0
      %788 = vmatprep.subr.bf16.mxu0 0
      %789 = vmatpush1.bf16.msra.mxu0 0
      %790 = vmatprep.subr.bf16.mxu0 0
      %791 = vmatpush1.bf16.msra.mxu0 0
      %792 = vmatprep.subr.bf16.mxu0 0
      %793 = vmatpush1.bf16.msra.mxu0 0
      %794 = vmatprep.subr.bf16.mxu0 0
      %795 = vmatpush1.bf16.msra.mxu0 0
      %796 = vmatprep.subr.bf16.mxu0 0
      %797 = vmatpush1.bf16.msra.mxu0 0
      %798 = vmatprep.subr.bf16.mxu0 0
      %799 = vmatpush1.bf16.msra.mxu0 0
      %800 = vmatprep.mubr.bf16.mxu0 0
      %801 = vmatmul.mubr.bf16.gmra.mrb[0].mxu0 %v766
      %v802 = vpop.f32.mrb[0].mxu0
      %v803 = vadd.f32 0.0, %v802
      %v804 = vpop.f32.mrb[0].mxu0
      %v805 = vpop.f32.mrb[0].mxu0
      %v806 = vpop.f32.mrb[0].mxu0
      %807 = vdwg.mxu0
      %vm808 = vcmask 130048
      %809 = vst.msk [vmem:[%s397] sm:$0xff] %vm808, %v803
      %v810 = vsel %vm808, %v803, 0.0
      %811 = vadd.xlane.f32.xlu0 %v810
      %v812 = vpop.xlane.xlu0 %811
      %v813 = vrcp.pop 16.0
      %v814 = vmul.f32 %v812, %v813
      %v815 = vld [vmem:[%s7] sm:$0xff]
      %v816 = vmul.f32 %v815, %v814
      %v817 = vsel %vm808, %v816, 0.0
      %v818 = vrot.slane %v817, 4
      %v819 = vadd.f32 %v817, %v818
      %v820 = vrot.slane %v819, 2
      %v821 = vadd.f32 %v819, %v820
      %v822 = vrot.slane %v821, 1
      %v823 = vadd.f32 %v821, %v822
      %v824 = vld [vmem:[%s8] sm:$0x1]
      %v825 = vadd.f32 %v823, %v824
      %vm826 = vcmask 122880
      %827 = vst.msk [vmem:[%s400] sm:$0x1] %vm826, %v825
      %p828 = scmp.lt.s32.totalorder %s23, 1
      %s829 = scalar_select %p828, %s23, 1
      %s830 = smul.addr %s829, 8
      %s831 = scalar_lea.vmem %s9, %s830
      %p832 = scmp.lt.s32.totalorder %s23, 1
      %s833 = scalar_select %p832, %s23, 1
      %s834 = smul.addr %s833, 8
      %s835 = scalar_lea.vmem %s10, %s834
      %p836 = scmp.lt.s32.totalorder %s23, 1
      %s837 = scalar_select %p836, %s23, 1
      %s838 = scalar_lea.vmem %s11, %s837
      // Predicated region
      $region57: #{modnet_star_forward.5} parent=55 // pred_check
        %p839 = pneg %p235
      $region58: #{modnet_star_forward.5} parent=55 // pred_check_branch
        %841 = sbr.rel (%p839) target = $region60
      $region59: #{modnet_star_forward.5} parent=55 // pred_region
        _
      $region60: #{modnet_star_forward.5} parent=55 // pred_fallthru
        _
      // Predicated region
      $region61: #{modnet_star_forward.5} parent=55 // pred_check
        %p842 = pneg %p261
      $region62: #{modnet_star_forward.5} parent=55 // pred_check_branch
        %844 = sbr.rel (%p842) target = $region64
      $region63: #{modnet_star_forward.5} parent=55 // pred_region
        _
      $region64: #{modnet_star_forward.5} parent=55 // pred_fallthru
        _
      // Predicated region
      $region65: #{modnet_star_forward.5} parent=55 // pred_check
        %p845 = pneg %p287
      $region66: #{modnet_star_forward.5} parent=55 // pred_check_branch
        %847 = sbr.rel (%p845) target = $region68
      $region67: #{modnet_star_forward.5} parent=55 // pred_region
        _
      $region68: #{modnet_star_forward.5} parent=55 // pred_fallthru
        _
    $region56: #{modnet_star_forward.5} parent=5 // pred_fallthru
      _
    %p848 = scmp.le.s32.totalorder 2, %s18
    // Predicated region
    $region69: #{modnet_star_forward.5} parent=5 // pred_check
      %p849 = pneg %p848
    $region70: #{modnet_star_forward.5} parent=5 // pred_check_branch
      %851 = sbr.rel (%p849) target = $region72
    $region71: #{modnet_star_forward.5} parent=5 // pred_region
      %s852 = ssub.s32 %s18, 2
      // Predicated region
      $region73: #{modnet_star_forward.5} parent=71 // pred_check
        %p853 = pneg %p241
      $region74: #{modnet_star_forward.5} parent=71 // pred_check_branch
        %855 = sbr.rel (%p853) target = $region76
      $region75: #{modnet_star_forward.5} parent=71 // pred_region
        %p856 = scmp.lt.s32.totalorder %s24, 1
        %s857 = scalar_select %p856, %s24, 1
        %s858 = smul.addr %s857, 8
        %s859 = scalar_lea.vmem %s9, %s858
      $region76: #{modnet_star_forward.5} parent=71 // pred_fallthru
        _
      // Predicated region
      $region77: #{modnet_star_forward.5} parent=71 // pred_check
        %p860 = pneg %p267
      $region78: #{modnet_star_forward.5} parent=71 // pred_check_branch
        %862 = sbr.rel (%p860) target = $region80
      $region79: #{modnet_star_forward.5} parent=71 // pred_region
        %p863 = scmp.lt.s32.totalorder %s24, 1
        %s864 = scalar_select %p863, %s24, 1
        %s865 = smul.addr %s864, 8
        %s866 = scalar_lea.vmem %s10, %s865
      $region80: #{modnet_star_forward.5} parent=71 // pred_fallthru
        _
      // Predicated region
      $region81: #{modnet_star_forward.5} parent=71 // pred_check
        %p867 = pneg %p293
      $region82: #{modnet_star_forward.5} parent=71 // pred_check_branch
        %869 = sbr.rel (%p867) target = $region84
      $region83: #{modnet_star_forward.5} parent=71 // pred_region
        %p870 = scmp.lt.s32.totalorder %s24, 1
        %s871 = scalar_select %p870, %s24, 1
        %s872 = scalar_lea.vmem %s11, %s871
      $region84: #{modnet_star_forward.5} parent=71 // pred_fallthru
        _
    $region72: #{modnet_star_forward.5} parent=5 // pred_fallthru
      _
  $region6: #{modnet_star_forward.5} parent=0 // loop_footer
    %s22 = sadd.s32 1, %s18
  $region7: #{modnet_star_forward.5} parent=0 // loop_footer_branch
    %17 = sbr.rel target = $region3
  $region8: #{modnet_star_forward.5} parent=0 // loop_exit
    _

// kernel: modnet_star_forward.4
$region0: #{modnet_star_forward.4}
  #allocation0 [shape = 'u32[]', space=smem, size = 0x4, offset = 0x4, fixed_abs, tag = 'smem constant byte address 0x4 - core index']
  #allocation1 [shape = 'u32[144,128]{1,0:T(1,128)}', space=vmem, size = 0x12000, scoped, tag = 'internal scratch']
  %s0 = inlined_call_operand.vmem [shape: f32[2,3,256], index: 0, kind: input, shape index: {}]
  %s1 = inlined_call_operand.vmem [shape: f32[9,256], index: 1, kind: input, shape index: {}]
  %s2 = inlined_call_operand.vmem [shape: bf16[4,27], index: 2, kind: input, shape index: {}]
  %s3 = inlined_call_operand.vmem [shape: f32[4,1], index: 3, kind: input, shape index: {}]
  %s4 = inlined_call_operand.vmem [shape: bf16[4,36], index: 4, kind: input, shape index: {}]
  %s5 = inlined_call_operand.vmem [shape: f32[4,1], index: 5, kind: input, shape index: {}]
  %s6 = inlined_call_operand.vmem [shape: bf16[4,36], index: 6, kind: input, shape index: {}]
  %s7 = inlined_call_operand.vmem [shape: f32[4,1], index: 7, kind: input, shape index: {}]
  %s8 = inlined_call_operand.vmem [shape: bf16[256,64], index: 8, kind: input, shape index: {}]
  %s9 = inlined_call_operand.vmem [shape: f32[2,4,256], index: 9, kind: output, shape index: {0}]
  %s10 = inlined_call_operand.vmem [shape: f32[2,4,64], index: 10, kind: output, shape index: {1}]
  %11 = xla_tuple %s9, %s10
  %s12 = sld [smem:[#allocation0]]
  $region77: #{modnet_star_forward.4} parent=0
    _
  %s14 = ssub.s32 1, %s12
  %s15 = scalar_select 0, %s14, %s12
  loop: start=0, step=1, limit=4
  $region2: #{modnet_star_forward.4} parent=0 // loop_pre_header
    _
  $region3: #{modnet_star_forward.4} parent=0 // loop_header
    %s17 = sphi 0, %s21
    %p18 = scmp.ge.s32.totalorder %s17, 4
    %s27 = sphi 0, %s29
    %s30 = sphi 0, %s27
    %s31 = sphi 0, %s30
    %s47 = sphi 0, %s31
    %s51 = sphi 0, %s51
    %s53 = sphi 0, %s51
    %s54 = sphi 0, %s53
    %s68 = sphi 0, %s54
    %s72 = sphi 0, %s72
    %s74 = sphi 0, %s72
    %s75 = sphi 0, %s74
    %s89 = sphi 0, %s75
    %s93 = sphi 0, %s93
    %s95 = sphi 0, %s93
    %s96 = sphi 0, %s95
    %s110 = sphi 0, %s96
    %s114 = sphi 0, %s114
    %s116 = sphi 0, %s114
    %s117 = sphi 0, %s116
    %s131 = sphi 0, %s117
    %s135 = sphi 0, %s135
    %s137 = sphi 0, %s135
    %s138 = sphi 0, %s137
    %s152 = sphi 0, %s138
    %s156 = sphi 0, %s156
    %s158 = sphi 0, %s156
    %s159 = sphi 0, %s158
    %s173 = sphi 0, %s159
    %s177 = sphi 0, %s177
    %s179 = sphi 0, %s177
    %s180 = sphi 0, %s179
    %s194 = sphi 0, %s180
    %s198 = sphi 0, %s198
    %s200 = sphi 0, %s198
    %s201 = sphi 0, %s200
    %s215 = sphi 0, %s201
    %s221 = sphi 0, %s223
    %s224 = sphi 0, %s221
    %s225 = sphi 0, %s224
    %s241 = sphi 0, %s225
    %s247 = sphi 0, %s249
    %s250 = sphi 0, %s247
    %s251 = sphi 0, %s250
    %s267 = sphi 0, %s251
  $region4: #{modnet_star_forward.4} parent=0 // loop_header_branch
    %20 = sbr.rel (%p18) target = $region8
  $region5: #{modnet_star_forward.4} parent=0 // loop_body
    %s22 = ssub.s32 %s17, 1
    %s23 = ssub.s32 %s17, 2
    %s24 = sadd.s32 %s17, 1
    %s25 = ssub.s32 %s17, %s24
    %p26 = scmp.eq.s32.totalorder %s25, 0
    %s28 = sadd.s32 %s27, 1
    %s29 = scalar_select %p26, %s27, %s28
    %p32 = pneg %p26
    %p33 = scmp.eq.s32.totalorder %s17, 1
    %p34 = por %p32, %p33
    %p35 = scmp.ne.s32.totalorder %s27, %s30
    %p36 = scmp.eq.s32.totalorder %s17, 0
    %p37 = por %p35, %p36
    %p38 = scmp.ne.s32.totalorder %s27, %s30
    %p39 = scmp.eq.s32.totalorder %s22, 1
    %p40 = por %p38, %p39
    %p41 = scmp.ne.s32.totalorder %s30, %s31
    %p42 = scmp.eq.s32.totalorder %s22, 0
    %p43 = por %p41, %p42
    %p44 = scmp.ne.s32.totalorder %s30, %s31
    %p45 = scmp.eq.s32.totalorder %s23, 1
    %p46 = por %p44, %p45
    %p48 = scmp.ne.s32.totalorder %s31, %s47
    %p49 = scmp.eq.s32.totalorder %s23, 0
    %p50 = por %p48, %p49
    %s52 = sadd.s32 %s51, 1
    %p55 = scmp.eq.s32.totalorder %s17, 1
    %p56 = scmp.ne.s32.totalorder %s51, %s53
    %p57 = scmp.eq.s32.totalorder %s17, 0
    %p58 = por %p56, %p57
    %p59 = scmp.ne.s32.totalorder %s51, %s53
    %p60 = scmp.eq.s32.totalorder %s22, 1
    %p61 = por %p59, %p60
    %p62 = scmp.ne.s32.totalorder %s53, %s54
    %p63 = scmp.eq.s32.totalorder %s22, 0
    %p64 = por %p62, %p63
    %p65 = scmp.ne.s32.totalorder %s53, %s54
    %p66 = scmp.eq.s32.totalorder %s23, 1
    %p67 = por %p65, %p66
    %p69 = scmp.ne.s32.totalorder %s54, %s68
    %p70 = scmp.eq.s32.totalorder %s23, 0
    %p71 = por %p69, %p70
    %s73 = sadd.s32 %s72, 1
    %p76 = scmp.eq.s32.totalorder %s17, 1
    %p77 = scmp.ne.s32.totalorder %s72, %s74
    %p78 = scmp.eq.s32.totalorder %s17, 0
    %p79 = por %p77, %p78
    %p80 = scmp.ne.s32.totalorder %s72, %s74
    %p81 = scmp.eq.s32.totalorder %s22, 1
    %p82 = por %p80, %p81
    %p83 = scmp.ne.s32.totalorder %s74, %s75
    %p84 = scmp.eq.s32.totalorder %s22, 0
    %p85 = por %p83, %p84
    %p86 = scmp.ne.s32.totalorder %s74, %s75
    %p87 = scmp.eq.s32.totalorder %s23, 1
    %p88 = por %p86, %p87
    %p90 = scmp.ne.s32.totalorder %s75, %s89
    %p91 = scmp.eq.s32.totalorder %s23, 0
    %p92 = por %p90, %p91
    %s94 = sadd.s32 %s93, 1
    %p97 = scmp.eq.s32.totalorder %s17, 1
    %p98 = scmp.ne.s32.totalorder %s93, %s95
    %p99 = scmp.eq.s32.totalorder %s17, 0
    %p100 = por %p98, %p99
    %p101 = scmp.ne.s32.totalorder %s93, %s95
    %p102 = scmp.eq.s32.totalorder %s22, 1
    %p103 = por %p101, %p102
    %p104 = scmp.ne.s32.totalorder %s95, %s96
    %p105 = scmp.eq.s32.totalorder %s22, 0
    %p106 = por %p104, %p105
    %p107 = scmp.ne.s32.totalorder %s95, %s96
    %p108 = scmp.eq.s32.totalorder %s23, 1
    %p109 = por %p107, %p108
    %p111 = scmp.ne.s32.totalorder %s96, %s110
    %p112 = scmp.eq.s32.totalorder %s23, 0
    %p113 = por %p111, %p112
    %s115 = sadd.s32 %s114, 1
    %p118 = scmp.eq.s32.totalorder %s17, 1
    %p119 = scmp.ne.s32.totalorder %s114, %s116
    %p120 = scmp.eq.s32.totalorder %s17, 0
    %p121 = por %p119, %p120
    %p122 = scmp.ne.s32.totalorder %s114, %s116
    %p123 = scmp.eq.s32.totalorder %s22, 1
    %p124 = por %p122, %p123
    %p125 = scmp.ne.s32.totalorder %s116, %s117
    %p126 = scmp.eq.s32.totalorder %s22, 0
    %p127 = por %p125, %p126
    %p128 = scmp.ne.s32.totalorder %s116, %s117
    %p129 = scmp.eq.s32.totalorder %s23, 1
    %p130 = por %p128, %p129
    %p132 = scmp.ne.s32.totalorder %s117, %s131
    %p133 = scmp.eq.s32.totalorder %s23, 0
    %p134 = por %p132, %p133
    %s136 = sadd.s32 %s135, 1
    %p139 = scmp.eq.s32.totalorder %s17, 1
    %p140 = scmp.ne.s32.totalorder %s135, %s137
    %p141 = scmp.eq.s32.totalorder %s17, 0
    %p142 = por %p140, %p141
    %p143 = scmp.ne.s32.totalorder %s135, %s137
    %p144 = scmp.eq.s32.totalorder %s22, 1
    %p145 = por %p143, %p144
    %p146 = scmp.ne.s32.totalorder %s137, %s138
    %p147 = scmp.eq.s32.totalorder %s22, 0
    %p148 = por %p146, %p147
    %p149 = scmp.ne.s32.totalorder %s137, %s138
    %p150 = scmp.eq.s32.totalorder %s23, 1
    %p151 = por %p149, %p150
    %p153 = scmp.ne.s32.totalorder %s138, %s152
    %p154 = scmp.eq.s32.totalorder %s23, 0
    %p155 = por %p153, %p154
    %s157 = sadd.s32 %s156, 1
    %p160 = scmp.eq.s32.totalorder %s17, 1
    %p161 = scmp.ne.s32.totalorder %s156, %s158
    %p162 = scmp.eq.s32.totalorder %s17, 0
    %p163 = por %p161, %p162
    %p164 = scmp.ne.s32.totalorder %s156, %s158
    %p165 = scmp.eq.s32.totalorder %s22, 1
    %p166 = por %p164, %p165
    %p167 = scmp.ne.s32.totalorder %s158, %s159
    %p168 = scmp.eq.s32.totalorder %s22, 0
    %p169 = por %p167, %p168
    %p170 = scmp.ne.s32.totalorder %s158, %s159
    %p171 = scmp.eq.s32.totalorder %s23, 1
    %p172 = por %p170, %p171
    %p174 = scmp.ne.s32.totalorder %s159, %s173
    %p175 = scmp.eq.s32.totalorder %s23, 0
    %p176 = por %p174, %p175
    %s178 = sadd.s32 %s177, 1
    %p181 = scmp.eq.s32.totalorder %s17, 1
    %p182 = scmp.ne.s32.totalorder %s177, %s179
    %p183 = scmp.eq.s32.totalorder %s17, 0
    %p184 = por %p182, %p183
    %p185 = scmp.ne.s32.totalorder %s177, %s179
    %p186 = scmp.eq.s32.totalorder %s22, 1
    %p187 = por %p185, %p186
    %p188 = scmp.ne.s32.totalorder %s179, %s180
    %p189 = scmp.eq.s32.totalorder %s22, 0
    %p190 = por %p188, %p189
    %p191 = scmp.ne.s32.totalorder %s179, %s180
    %p192 = scmp.eq.s32.totalorder %s23, 1
    %p193 = por %p191, %p192
    %p195 = scmp.ne.s32.totalorder %s180, %s194
    %p196 = scmp.eq.s32.totalorder %s23, 0
    %p197 = por %p195, %p196
    %s199 = sadd.s32 %s198, 1
    %p202 = scmp.eq.s32.totalorder %s17, 1
    %p203 = scmp.ne.s32.totalorder %s198, %s200
    %p204 = scmp.eq.s32.totalorder %s17, 0
    %p205 = por %p203, %p204
    %p206 = scmp.ne.s32.totalorder %s198, %s200
    %p207 = scmp.eq.s32.totalorder %s22, 1
    %p208 = por %p206, %p207
    %p209 = scmp.ne.s32.totalorder %s200, %s201
    %p210 = scmp.eq.s32.totalorder %s22, 0
    %p211 = por %p209, %p210
    %p212 = scmp.ne.s32.totalorder %s200, %s201
    %p213 = scmp.eq.s32.totalorder %s23, 1
    %p214 = por %p212, %p213
    %p216 = scmp.ne.s32.totalorder %s201, %s215
    %p217 = scmp.eq.s32.totalorder %s23, 0
    %p218 = por %p216, %p217
    %s219 = ssub.s32 %s17, %s24
    %p220 = scmp.eq.s32.totalorder %s219, 0
    %s222 = sadd.s32 %s221, 1
    %s223 = scalar_select %p220, %s221, %s222
    %p226 = pneg %p220
    %p227 = scmp.eq.s32.totalorder %s17, 1
    %p228 = por %p226, %p227
    %p229 = scmp.ne.s32.totalorder %s221, %s224
    %p230 = scmp.eq.s32.totalorder %s17, 0
    %p231 = por %p229, %p230
    %p232 = scmp.ne.s32.totalorder %s221, %s224
    %p233 = scmp.eq.s32.totalorder %s22, 1
    %p234 = por %p232, %p233
    %p235 = scmp.ne.s32.totalorder %s224, %s225
    %p236 = scmp.eq.s32.totalorder %s22, 0
    %p237 = por %p235, %p236
    %p238 = scmp.ne.s32.totalorder %s224, %s225
    %p239 = scmp.eq.s32.totalorder %s23, 1
    %p240 = por %p238, %p239
    %p242 = scmp.ne.s32.totalorder %s225, %s241
    %p243 = scmp.eq.s32.totalorder %s23, 0
    %p244 = por %p242, %p243
    %s245 = ssub.s32 %s17, %s24
    %p246 = scmp.eq.s32.totalorder %s245, 0
    %s248 = sadd.s32 %s247, 1
    %s249 = scalar_select %p246, %s247, %s248
    %p252 = pneg %p246
    %p253 = scmp.eq.s32.totalorder %s17, 1
    %p254 = por %p252, %p253
    %p255 = scmp.ne.s32.totalorder %s247, %s250
    %p256 = scmp.eq.s32.totalorder %s17, 0
    %p257 = por %p255, %p256
    %p258 = scmp.ne.s32.totalorder %s247, %s250
    %p259 = scmp.eq.s32.totalorder %s22, 1
    %p260 = por %p258, %p259
    %p261 = scmp.ne.s32.totalorder %s250, %s251
    %p262 = scmp.eq.s32.totalorder %s22, 0
    %p263 = por %p261, %p262
    %p264 = scmp.ne.s32.totalorder %s250, %s251
    %p265 = scmp.eq.s32.totalorder %s23, 1
    %p266 = por %p264, %p265
    %p268 = scmp.ne.s32.totalorder %s251, %s267
    %p269 = scmp.eq.s32.totalorder %s23, 0
    %p270 = por %p268, %p269
    %p271 = scmp.le.s32.totalorder 1, %s17
    %p272 = scmp.lt.s32.totalorder %s17, 3
    %p273 = pnand %p271, %p272
    %p274 = pneg %p273
    // Predicated region
    $region9: #{modnet_star_forward.4} parent=5 // pred_check
      _
    $region10: #{modnet_star_forward.4} parent=5 // pred_check_branch
      %276 = sbr.rel (%p273) target = $region12
    $region11: #{modnet_star_forward.4} parent=5 // pred_region
      %s277 = ssub.s32 %s17, 1
      // Predicated region
      $region13: #{modnet_star_forward.4} parent=11 // pred_check
        %p278 = pneg %p64
      $region14: #{modnet_star_forward.4} parent=11 // pred_check_branch
        %280 = sbr.rel (%p278) target = $region16
      $region15: #{modnet_star_forward.4} parent=11 // pred_region
        _
      $region16: #{modnet_star_forward.4} parent=11 // pred_fallthru
        _
      // Predicated region
      $region17: #{modnet_star_forward.4} parent=11 // pred_check
        %p281 = pneg %p85
      $region18: #{modnet_star_forward.4} parent=11 // pred_check_branch
        %283 = sbr.rel (%p281) target = $region20
      $region19: #{modnet_star_forward.4} parent=11 // pred_region
        _
      $region20: #{modnet_star_forward.4} parent=11 // pred_fallthru
        _
      // Predicated region
      $region21: #{modnet_star_forward.4} parent=11 // pred_check
        %p284 = pneg %p106
      $region22: #{modnet_star_forward.4} parent=11 // pred_check_branch
        %286 = sbr.rel (%p284) target = $region24
      $region23: #{modnet_star_forward.4} parent=11 // pred_region
        _
      $region24: #{modnet_star_forward.4} parent=11 // pred_fallthru
        _
      // Predicated region
      $region25: #{modnet_star_forward.4} parent=11 // pred_check
        %p287 = pneg %p127
      $region26: #{modnet_star_forward.4} parent=11 // pred_check_branch
        %289 = sbr.rel (%p287) target = $region28
      $region27: #{modnet_star_forward.4} parent=11 // pred_region
        _
      $region28: #{modnet_star_forward.4} parent=11 // pred_fallthru
        _
      // Predicated region
      $region29: #{modnet_star_forward.4} parent=11 // pred_check
        %p290 = pneg %p148
      $region30: #{modnet_star_forward.4} parent=11 // pred_check_branch
        %292 = sbr.rel (%p290) target = $region32
      $region31: #{modnet_star_forward.4} parent=11 // pred_region
        _
      $region32: #{modnet_star_forward.4} parent=11 // pred_fallthru
        _
      // Predicated region
      $region33: #{modnet_star_forward.4} parent=11 // pred_check
        %p293 = pneg %p169
      $region34: #{modnet_star_forward.4} parent=11 // pred_check_branch
        %295 = sbr.rel (%p293) target = $region36
      $region35: #{modnet_star_forward.4} parent=11 // pred_region
        _
      $region36: #{modnet_star_forward.4} parent=11 // pred_fallthru
        _
      // Predicated region
      $region37: #{modnet_star_forward.4} parent=11 // pred_check
        %p296 = pneg %p190
      $region38: #{modnet_star_forward.4} parent=11 // pred_check_branch
        %298 = sbr.rel (%p296) target = $region40
      $region39: #{modnet_star_forward.4} parent=11 // pred_region
        _
      $region40: #{modnet_star_forward.4} parent=11 // pred_fallthru
        _
      // Predicated region
      $region41: #{modnet_star_forward.4} parent=11 // pred_check
        %p299 = pneg %p211
      $region42: #{modnet_star_forward.4} parent=11 // pred_check_branch
        %301 = sbr.rel (%p299) target = $region44
      $region43: #{modnet_star_forward.4} parent=11 // pred_region
        _
      $region44: #{modnet_star_forward.4} parent=11 // pred_fallthru
        _
    $region12: #{modnet_star_forward.4} parent=5 // pred_fallthru
      _
    %p302 = scmp.lt.s32.totalorder %s17, 2
    // Predicated region
    $region45: #{modnet_star_forward.4} parent=5 // pred_check
      %p303 = pneg %p302
    $region46: #{modnet_star_forward.4} parent=5 // pred_check_branch
      %305 = sbr.rel (%p303) target = $region48
    $region47: #{modnet_star_forward.4} parent=5 // pred_region
      // Predicated region
      $region49: #{modnet_star_forward.4} parent=47 // pred_check
        %p306 = pneg %p37
      $region50: #{modnet_star_forward.4} parent=47 // pred_check_branch
        %308 = sbr.rel (%p306) target = $region52
      $region51: #{modnet_star_forward.4} parent=47 // pred_region
        %p309 = scmp.lt.s32.totalorder %s17, 1
        %s310 = scalar_select %p309, %s17, 1
        %s311 = smul.addr %s310, 2
        %s312 = smul.addr %s311, 4
        %s313 = scalar_lea.vmem %s0, %s312
      $region52: #{modnet_star_forward.4} parent=47 // pred_fallthru
        _
    $region48: #{modnet_star_forward.4} parent=5 // pred_fallthru
      _
    %p314 = scmp.le.s32.totalorder 1, %s17
    %p315 = scmp.lt.s32.totalorder %s17, 3
    %p316 = pnand %p314, %p315
    %p317 = pneg %p316
    // Predicated region
    $region53: #{modnet_star_forward.4} parent=5 // pred_check
      _
    $region54: #{modnet_star_forward.4} parent=5 // pred_check_branch
      %319 = sbr.rel (%p316) target = $region56
    $region55: #{modnet_star_forward.4} parent=5 // pred_region
      %s320 = ssub.s32 %s17, 1
      %p321 = scmp.lt.s32.totalorder %s22, 1
      %s322 = scalar_select %p321, %s22, 1
      %s323 = smul.addr %s322, 2
      %s324 = smul.addr %s323, 4
      %s325 = scalar_lea.vmem %s0, %s324
      %p326 = pneg %p43
      %p327 = pneg %p40
      %p328 = pneg %p64
      %p329 = pneg %p61
      %p330 = pneg %p85
      %p331 = pneg %p82
      %p332 = pneg %p106
      %p333 = pneg %p103
      %p334 = pneg %p127
      %p335 = pneg %p124
      %p336 = pneg %p148
      %p337 = pneg %p145
      %p338 = pneg %p169
      %p339 = pneg %p166
      %p340 = pneg %p190
      %p341 = pneg %p187
      %p342 = pneg %p211
      %p343 = pneg %p208
      %p344 = pneg %p237
      %p345 = pneg %p234
      %p346 = scmp.lt.s32.totalorder %s22, 1
      %s347 = scalar_select %p346, %s22, 1
      %s348 = smul.addr %s347, 2
      %s349 = smul.addr %s348, 4
      %s350 = scalar_lea.vmem %s9, %s349
      %p351 = pneg %p263
      %p352 = pneg %p260
      %p353 = scmp.lt.s32.totalorder %s22, 1
      %s354 = scalar_select %p353, %s22, 1
      %s355 = smul.addr %s354, 4
      %s356 = scalar_lea.vmem %s10, %s355
      %p357 = scmp.lt.s32.totalorder %s22, 1
      %s358 = scalar_select %p357, %s22, 1
      %s359 = smul.addr %s358, 2
      %s360 = smul.addr %s359, 4
      %s361 = scalar_lea.vmem %s0, %s360
      %p362 = scmp.lt.s32.totalorder %s22, 1
      %s363 = scalar_select %p362, %s22, 1
      %s364 = smul.addr %s363, 2
      %s365 = smul.addr %s364, 4
      %s366 = scalar_lea.vmem %s9, %s365
      %p367 = scmp.lt.s32.totalorder %s22, 1
      %s368 = scalar_select %p367, %s22, 1
      %s369 = smul.addr %s368, 4
      %s370 = scalar_lea.vmem %s10, %s369
      %v372 = vld [vmem:[%s1] sm:$0xff]
      %v373 = vld [vmem:[%s1 + $0x8] sm:$0xff]
      %v374 = vld [vmem:[%s1 + $0x10] sm:$0x1]
      %v375 = vld [vmem:[%s1 + $0x18] sm:$0x1]
      %v376 = vld [vmem:[%s361] sm:$0x77]
      %v377 = vld [vmem:[%s2] sm:$0x3]
      %v378 = vld [vmem:[%s3] sm:$0xf]
      %v380 = vcombine.high %v376, %v376
      %382 = vrot.lane.b32.xlu0 %v376, 17
      %v383 = vpop.permute.xlu0 %382
      %384 = vrot.lane.b32.xlu0 %v380, 17
      %v385 = vpop.permute.xlu0 %384
      %v386 = vlaneseq
      %v387 = vand.u32 %v386, 127
      %vm388 = vcmp.lt.s32.totalorder %v387, 17
      %v389 = vsel %vm388, %v383, %v385
      %v390 = vsel %vm388, %v385, %v383
      %v391 = vlaneseq
      %v392 = vshrl.u32 %v391, 7
      %v393 = vsub.s32 0, %v392
      %v394 = vrot.slane %v372, %v393
      %v395 = vlaneseq
      %v396 = vshrl.u32 %v395, 7
      %v397 = vsub.s32 0, %v396
      %v398 = vrot.slane %v373, %v397
      %v399 = vmul.f32 %v390, %v394
      %v400 = vmul.f32 %v389, %v398
      %401 = vrot.lane.b32.xlu0 %v376, 16
      %v402 = vpop.permute.xlu0 %401
      %403 = vrot.lane.b32.xlu0 %v380, 16
      %v404 = vpop.permute.xlu0 %403
      %vm405 = vcmp.lt.s32.totalorder %v387, 16
      %v406 = vsel %vm405, %v402, %v404
      %v407 = vsel %vm405, %v404, %v402
      %v408 = vlaneseq
      %v409 = vshrl.u32 %v408, 7
      %v410 = vsub.s32 1, %v409
      %v411 = vrot.slane %v372, %v410
      %v412 = vlaneseq
      %v413 = vshrl.u32 %v412, 7
      %v414 = vsub.s32 1, %v413
      %v415 = vrot.slane %v373, %v414
      %v416 = vmul.f32 %v407, %v411
      %v417 = vmul.f32 %v406, %v415
      %418 = vrot.lane.b32.xlu0 %v376, 15
      %v419 = vpop.permute.xlu0 %418
      %420 = vrot.lane.b32.xlu0 %v380, 15
      %v421 = vpop.permute.xlu0 %420
      %vm422 = vcmp.lt.s32.totalorder %v387, 15
      %v423 = vsel %vm422, %v419, %v421
      %v424 = vsel %vm422, %v421, %v419
      %v425 = vlaneseq
      %v426 = vshrl.u32 %v425, 7
      %v427 = vsub.s32 2, %v426
      %v428 = vrot.slane %v372, %v427
      %v429 = vlaneseq
      %v430 = vshrl.u32 %v429, 7
      %v431 = vsub.s32 2, %v430
      %v432 = vrot.slane %v373, %v431
      %v433 = vmul.f32 %v424, %v428
      %v434 = vmul.f32 %v423, %v432
      %435 = vrot.lane.b32.xlu0 %v376, 1
      %v436 = vpop.permute.xlu0 %435
      %437 = vrot.lane.b32.xlu0 %v380, 1
      %v438 = vpop.permute.xlu0 %437
      %vm439 = vcmp.lt.s32.totalorder %v387, 1
      %v440 = vsel %vm439, %v436, %v438
      %v441 = vsel %vm439, %v438, %v436
      %v442 = vlaneseq
      %v443 = vshrl.u32 %v442, 7
      %v444 = vsub.s32 3, %v443
      %v445 = vrot.slane %v372, %v444
      %v446 = vlaneseq
      %v447 = vshrl.u32 %v446, 7
      %v448 = vsub.s32 3, %v447
      %v449 = vrot.slane %v373, %v448
      %v450 = vmul.f32 %v441, %v445
      %v451 = vmul.f32 %v440, %v449
      %v452 = vlaneseq
      %v453 = vshrl.u32 %v452, 7
      %v454 = vsub.s32 4, %v453
      %v455 = vrot.slane %v372, %v454
      %v456 = vlaneseq
      %v457 = vshrl.u32 %v456, 7
      %v458 = vsub.s32 4, %v457
      %v459 = vrot.slane %v373, %v458
      %v462 = vcombine.low %v455, %v459
      %v464 = vmul.f32 %v376, %v462
      %465 = vrot.lane.b32.xlu0 %v376, 127
      %v466 = vpop.permute.xlu0 %465
      %467 = vrot.lane.b32.xlu0 %v380, 127
      %v468 = vpop.permute.xlu0 %467
      %vm469 = vcmp.lt.s32.totalorder %v387, 127
      %v470 = vsel %vm469, %v466, %v468
      %v471 = vsel %vm469, %v468, %v466
      %v472 = vlaneseq
      %v473 = vshrl.u32 %v472, 7
      %v474 = vsub.s32 5, %v473
      %v475 = vrot.slane %v372, %v474
      %v476 = vlaneseq
      %v477 = vshrl.u32 %v476, 7
      %v478 = vsub.s32 5, %v477
      %v479 = vrot.slane %v373, %v478
      %v480 = vmul.f32 %v470, %v475
      %v481 = vmul.f32 %v471, %v479
      %482 = vrot.lane.b32.xlu0 %v376, 113
      %v483 = vpop.permute.xlu0 %482
      %484 = vrot.lane.b32.xlu0 %v380, 113
      %v485 = vpop.permute.xlu0 %484
      %vm486 = vcmp.lt.s32.totalorder %v387, 113
      %v487 = vsel %vm486, %v483, %v485
      %v488 = vsel %vm486, %v485, %v483
      %v489 = vlaneseq
      %v490 = vshrl.u32 %v489, 7
      %v491 = vsub.s32 6, %v490
      %v492 = vrot.slane %v372, %v491
      %v493 = vlaneseq
      %v494 = vshrl.u32 %v493, 7
      %v495 = vsub.s32 6, %v494
      %v496 = vrot.slane %v373, %v495
      %v497 = vmul.f32 %v487, %v492
      %v498 = vmul.f32 %v488, %v496
      %499 = vrot.lane.b32.xlu0 %v376, 112
      %v500 = vpop.permute.xlu0 %499
      %501 = vrot.lane.b32.xlu0 %v380, 112
      %v502 = vpop.permute.xlu0 %501
      %vm503 = vcmp.lt.s32.totalorder %v387, 112
      %v504 = vsel %vm503, %v500, %v502
      %v505 = vsel %vm503, %v502, %v500
      %v506 = vlaneseq
      %v507 = vshrl.u32 %v506, 7
      %v508 = vsub.s32 7, %v507
      %v509 = vrot.slane %v372, %v508
      %v510 = vlaneseq
      %v511 = vshrl.u32 %v510, 7
      %v512 = vsub.s32 7, %v511
      %v513 = vrot.slane %v373, %v512
      %v514 = vmul.f32 %v504, %v509
      %v515 = vmul.f32 %v505, %v513
      %516 = vrot.lane.b32.xlu0 %v376, 111
      %v517 = vpop.permute.xlu0 %516
      %518 = vrot.lane.b32.xlu0 %v380, 111
      %v519 = vpop.permute.xlu0 %518
      %vm520 = vcmp.lt.s32.totalorder %v387, 111
      %v521 = vsel %vm520, %v517, %v519
      %v522 = vsel %vm520, %v519, %v517
      %v523 = vlaneseq
      %v524 = vshrl.u32 %v523, 7
      %v525 = vsub.s32 0, %v524
      %v526 = vrot.slane %v374, %v525
      %v527 = vlaneseq
      %v528 = vshrl.u32 %v527, 7
      %v529 = vsub.s32 0, %v528
      %v530 = vrot.slane %v375, %v529
      %v531 = vmul.f32 %v521, %v526
      %v532 = vmul.f32 %v522, %v530
      %v535 = vrot.slane %v416, 5
      %v536 = vrot.slane %v417, 5
      %v541 = vrot.slane %v433, 2
      %v542 = vrot.slane %v434, 2
      %v547 = vrot.slane %v450, 7
      %v548 = vrot.slane %v451, 7
      %v552 = vcombine.low %v464, %v464
      %v556 = vrot.slane %v480, 1
      %v557 = vrot.slane %v481, 1
      %v562 = vrot.slane %v497, 6
      %v563 = vrot.slane %v498, 6
      %v568 = vrot.slane %v514, 3
      %v569 = vrot.slane %v515, 3
      %vm572 = vcmask 1042432
      %v573 = vsel %vm572, %v399, %v535
      %v574 = vsel %vm572, %v400, %v536
      %vm575 = vcmask 1045504
      %v576 = vsel %vm575, %v573, %v541
      %v577 = vsel %vm575, %v574, %v542
      %vm578 = vcmask 1040384
      %v579 = vsel %vm578, %v541, %v547
      %v580 = vsel %vm578, %v542, %v548
      %vm581 = vcmask 1043456
      %v582 = vsel %vm581, %v579, %v552
      %v583 = vsel %vm581, %v580, %v464
      %vm584 = vcmask 1046528
      %v585 = vsel %vm584, %v582, %v556
      %v586 = vsel %vm584, %v583, %v557
      %vm587 = vcmask 1041408
      %v588 = vsel %vm587, %v556, %v562
      %v589 = vsel %vm587, %v557, %v563
      %vm590 = vcmask 1044480
      %v591 = vsel %vm590, %v588, %v568
      %v592 = vsel %vm590, %v589, %v569
      %v593 = vpack.c.bf16 %v585, %v576
      %v594 = vpack.c.bf16 %v586, %v577
      %v595 = vpack.c.bf16 %v531, %v591
      %v596 = vpack.c.bf16 %v532, %v592
      %598 = vset.pattern.permute.xlu0 0
      %599 = vperm.xlu0 %598, %v378
      %v600 = vpop.permute.xlu0 %599
      %vm602 = vcmask 220160
      %v604 = vsel %vm602, %v377, 0
      %v606 = vsel %vm590, 4294967295, 65535
      %v607 = vsel %vm575, %v606, 0
      %v609 = vand.u32 %v595, %v607
      %v612 = vand.u32 %v596, %v607
      %614 = vmatprep.subr.bf16.mxu0 %v594
      %615 = vmatpush1.bf16.msra.mxu0 %v593
      %616 = vmatprep.subr.bf16.mxu0 %v612
      %617 = vmatpush1.bf16.msra.mxu0 %v609
      %618 = vmatprep.subr.bf16.mxu0 0
      %619 = vmatpush1.bf16.msra.mxu0 0
      %620 = vmatprep.subr.bf16.mxu0 0
      %621 = vmatpush1.bf16.msra.mxu0 0
      %622 = vmatprep.subr.bf16.mxu0 0
      %623 = vmatpush1.bf16.msra.mxu0 0
      %624 = vmatprep.subr.bf16.mxu0 0
      %625 = vmatpush1.bf16.msra.mxu0 0
      %626 = vmatprep.subr.bf16.mxu0 0
      %627 = vmatpush1.bf16.msra.mxu0 0
      %628 = vmatprep.subr.bf16.mxu0 0
      %629 = vmatpush1.bf16.msra.mxu0 0
      %630 = vmatprep.subr.bf16.mxu0 0
      %631 = vmatpush1.bf16.msra.mxu0 0
      %632 = vmatprep.subr.bf16.mxu0 0
      %633 = vmatpush1.bf16.msra.mxu0 0
      %634 = vmatprep.subr.bf16.mxu0 0
      %635 = vmatpush1.bf16.msra.mxu0 0
      %636 = vmatprep.subr.bf16.mxu0 0
      %637 = vmatpush1.bf16.msra.mxu0 0
      %638 = vmatprep.subr.bf16.mxu0 0
      %639 = vmatpush1.bf16.msra.mxu0 0
      %640 = vmatprep.subr.bf16.mxu0 0
      %641 = vmatpush1.bf16.msra.mxu0 0
      %642 = vmatprep.subr.bf16.mxu0 0
      %643 = vmatpush1.bf16.msra.mxu0 0
      %644 = vmatprep.subr.bf16.mxu0 0
      %645 = vmatpush1.bf16.msra.mxu0 0
      %646 = vmatprep.mubr.bf16.mxu0 0
      %647 = vmatmul.mubr.bf16.gmra.mrb[0].mxu0 %v604
      %v648 = vpop.f32.mrb[0].mxu0
      %v649 = vadd.f32 %v600, %v648
      %v650 = vpop.f32.mrb[0].mxu0
      %v651 = vadd.f32 %v600, %v650
      %v652 = vpop.f32.mrb[0].mxu0
      %v653 = vpop.f32.mrb[0].mxu0
      %654 = vdwg.mxu0
      %vm655 = vcmp.ge.f32.partialorder %v649, 0.0
      %vm656 = vcmp.ge.f32.partialorder %v651, 0.0
      %v657 = vmul.f32 %v649, 0.2
      %v658 = vmul.f32 %v651, 0.2
      %v659 = vsel %vm655, %v649, %v657
      %v660 = vsel %vm656, %v651, %v658
      %v661 = vld [vmem:[%s4] sm:$0x3]
      %v662 = vld [vmem:[%s5] sm:$0xf]
      %663 = vrot.lane.b32.xlu0 %v659, 17
      %v664 = vpop.permute.xlu0 %663
      %665 = vrot.lane.b32.xlu0 %v660, 17
      %v666 = vpop.permute.xlu0 %665
      %v667 = vsel %vm388, %v664, %v666
      %v668 = vsel %vm388, %v666, %v664
      %v669 = vmul.f32 %v668, %v394
      %v670 = vmul.f32 %v667, %v398
      %671 = vrot.lane.b32.xlu0 %v659, 16
      %v672 = vpop.permute.xlu0 %671
      %673 = vrot.lane.b32.xlu0 %v660, 16
      %v674 = vpop.permute.xlu0 %673
      %v675 = vsel %vm405, %v672, %v674
      %v676 = vsel %vm405, %v674, %v672
      %v677 = vmul.f32 %v676, %v411
      %v678 = vmul.f32 %v675, %v415
      %679 = vrot.lane.b32.xlu0 %v659, 15
      %v680 = vpop.permute.xlu0 %679
      %681 = vrot.lane.b32.xlu0 %v660, 15
      %v682 = vpop.permute.xlu0 %681
      %v683 = vsel %vm422, %v680, %v682
      %v684 = vsel %vm422, %v682, %v680
      %v685 = vmul.f32 %v684, %v428
      %v686 = vmul.f32 %v683, %v432
      %687 = vrot.lane.b32.xlu0 %v659, 1
      %v688 = vpop.permute.xlu0 %687
      %689 = vrot.lane.b32.xlu0 %v660, 1
      %v690 = vpop.permute.xlu0 %689
      %v691 = vsel %vm439, %v688, %v690
      %v692 = vsel %vm439, %v690, %v688
      %v693 = vmul.f32 %v692, %v445
      %v694 = vmul.f32 %v691, %v449
      %v695 = vmul.f32 %v659, %v455
      %v696 = vmul.f32 %v660, %v459
      %697 = vrot.lane.b32.xlu0 %v659, 127
      %v698 = vpop.permute.xlu0 %697
      %699 = vrot.lane.b32.xlu0 %v660, 127
      %v700 = vpop.permute.xlu0 %699
      %v701 = vsel %vm469, %v698, %v700
      %v702 = vsel %vm469, %v700, %v698
      %v703 = vmul.f32 %v701, %v475
      %v704 = vmul.f32 %v702, %v479
      %705 = vrot.lane.b32.xlu0 %v659, 113
      %v706 = vpop.permute.xlu0 %705
      %707 = vrot.lane.b32.xlu0 %v660, 113
      %v708 = vpop.permute.xlu0 %707
      %v709 = vsel %vm486, %v706, %v708
      %v710 = vsel %vm486, %v708, %v706
      %v711 = vmul.f32 %v709, %v492
      %v712 = vmul.f32 %v710, %v496
      %713 = vrot.lane.b32.xlu0 %v659, 112
      %v714 = vpop.permute.xlu0 %713
      %715 = vrot.lane.b32.xlu0 %v660, 112
      %v716 = vpop.permute.xlu0 %715
      %v717 = vsel %vm503, %v714, %v716
      %v718 = vsel %vm503, %v716, %v714
      %v719 = vmul.f32 %v717, %v509
      %v720 = vmul.f32 %v718, %v513
      %721 = vrot.lane.b32.xlu0 %v659, 111
      %v722 = vpop.permute.xlu0 %721
      %723 = vrot.lane.b32.xlu0 %v660, 111
      %v724 = vpop.permute.xlu0 %723
      %v725 = vsel %vm520, %v722, %v724
      %v726 = vsel %vm520, %v724, %v722
      %v727 = vmul.f32 %v725, %v526
      %v728 = vmul.f32 %v726, %v530
      %v731 = vrot.slane %v677, 4
      %v732 = vrot.slane %v678, 4
      %v737 = vrot.slane %v693, 4
      %v738 = vrot.slane %v694, 4
      %v743 = vrot.slane %v703, 4
      %v744 = vrot.slane %v704, 4
      %v749 = vrot.slane %v719, 4
      %v750 = vrot.slane %v720, 4
      %v753 = vsel %vm581, %v669, %v731
      %v754 = vsel %vm581, %v670, %v732
      %v755 = vsel %vm581, %v685, %v737
      %v756 = vsel %vm581, %v686, %v738
      %v757 = vsel %vm581, %v695, %v743
      %v758 = vsel %vm581, %v696, %v744
      %v759 = vsel %vm581, %v711, %v749
      %v760 = vsel %vm581, %v712, %v750
      %v761 = vpack.c.bf16 %v755, %v753
      %v762 = vpack.c.bf16 %v756, %v754
      %v763 = vpack.c.bf16 %v759, %v757
      %v764 = vpack.c.bf16 %v760, %v758
      %v765 = vpack.c.bf16 %v727, %v727
      %v766 = vpack.c.bf16 %v728, %v728
      %768 = vset.pattern.permute.xlu0 0
      %769 = vperm.xlu0 %768, %v662
      %v770 = vpop.permute.xlu0 %769
      %vm772 = vcmask 293888
      %v774 = vsel %vm772, %v661, 0
      %v777 = vsel %vm587, %v765, 0
      %v780 = vsel %vm587, %v766, 0
      %782 = vmatprep.subr.bf16.mxu0 %v762
      %783 = vmatpush1.bf16.msra.mxu0 %v761
      %784 = vmatprep.subr.bf16.mxu0 %v764
      %785 = vmatpush1.bf16.msra.mxu0 %v763
      %786 = vmatprep.subr.bf16.mxu0 %v780
      %787 = vmatpush1.bf16.msra.mxu0 %v777
      %788 = vmatprep.subr.bf16.mxu0 0
      %789 = vmatpush1.bf16.msra.mxu0 0
      %790 = vmatprep.subr.bf16.mxu0 0
      %791 = vmatpush1.bf16.msra.mxu0 0
      %792 = vmatprep.subr.bf16.mxu0 0
      %793 = vmatpush1.bf16.msra.mxu0 0
      %794 = vmatprep.subr.bf16.mxu0 0
      %795 = vmatpush1.bf16.msra.mxu0 0
      %796 = vmatprep.subr.bf16.mxu0 0
      %797 = vmatpush1.bf16.msra.mxu0 0
      %798 = vmatprep.subr.bf16.mxu0 0
      %799 = vmatpush1.bf16.msra.mxu0 0
      %800 = vmatprep.subr.bf16.mxu0 0
      %801 = vmatpush1.bf16.msra.mxu0 0
      %802 = vmatprep.subr.bf16.mxu0 0
      %803 = vmatpush1.bf16.msra.mxu0 0
      %804 = vmatprep.subr.bf16.mxu0 0
      %805 = vmatpush1.bf16.msra.mxu0 0
      %806 = vmatprep.subr.bf16.mxu0 0
      %807 = vmatpush1.bf16.msra.mxu0 0
      %808 = vmatprep.subr.bf16.mxu0 0
      %809 = vmatpush1.bf16.msra.mxu0 0
      %810 = vmatprep.subr.bf16.mxu0 0
      %811 = vmatpush1.bf16.msra.mxu0 0
      %812 = vmatprep.subr.bf16.mxu0 0
      %813 = vmatpush1.bf16.msra.mxu0 0
      %814 = vmatprep.mubr.bf16.mxu0 0
      %815 = vmatmul.mubr.bf16.gmra.mrb[0].mxu0 %v774
      %v816 = vpop.f32.mrb[0].mxu0
      %v817 = vadd.f32 %v770, %v816
      %v818 = vpop.f32.mrb[0].mxu0
      %v819 = vadd.f32 %v770, %v818
      %v820 = vpop.f32.mrb[0].mxu0
      %v821 = vpop.f32.mrb[0].mxu0
      %822 = vdwg.mxu0
      %vm823 = vcmp.ge.f32.partialorder %v817, 0.0
      %vm824 = vcmp.ge.f32.partialorder %v819, 0.0
      %v825 = vmul.f32 %v817, 0.2
      %v826 = vmul.f32 %v819, 0.2
      %v827 = vsel %vm823, %v817, %v825
      %v828 = vsel %vm824, %v819, %v826
      %v829 = vld [vmem:[%s6] sm:$0x3]
      %v830 = vld [vmem:[%s7] sm:$0xf]
      %831 = vrot.lane.b32.xlu0 %v827, 17
      %v832 = vpop.permute.xlu0 %831
      %833 = vrot.lane.b32.xlu0 %v828, 17
      %v834 = vpop.permute.xlu0 %833
      %v835 = vsel %vm388, %v832, %v834
      %v836 = vsel %vm388, %v834, %v832
      %v837 = vmul.f32 %v836, %v394
      %v838 = vmul.f32 %v835, %v398
      %839 = vrot.lane.b32.xlu0 %v827, 16
      %v840 = vpop.permute.xlu0 %839
      %841 = vrot.lane.b32.xlu0 %v828, 16
      %v842 = vpop.permute.xlu0 %841
      %v843 = vsel %vm405, %v840, %v842
      %v844 = vsel %vm405, %v842, %v840
      %v845 = vmul.f32 %v844, %v411
      %v846 = vmul.f32 %v843, %v415
      %847 = vrot.lane.b32.xlu0 %v827, 15
      %v848 = vpop.permute.xlu0 %847
      %849 = vrot.lane.b32.xlu0 %v828, 15
      %v850 = vpop.permute.xlu0 %849
      %v851 = vsel %vm422, %v848, %v850
      %v852 = vsel %vm422, %v850, %v848
      %v853 = vmul.f32 %v852, %v428
      %v854 = vmul.f32 %v851, %v432
      %855 = vrot.lane.b32.xlu0 %v827, 1
      %v856 = vpop.permute.xlu0 %855
      %857 = vrot.lane.b32.xlu0 %v828, 1
      %v858 = vpop.permute.xlu0 %857
      %v859 = vsel %vm439, %v856, %v858
      %v860 = vsel %vm439, %v858, %v856
      %v861 = vmul.f32 %v860, %v445
      %v862 = vmul.f32 %v859, %v449
      %v863 = vmul.f32 %v827, %v455
      %v864 = vmul.f32 %v828, %v459
      %865 = vrot.lane.b32.xlu0 %v827, 127
      %v866 = vpop.permute.xlu0 %865
      %867 = vrot.lane.b32.xlu0 %v828, 127
      %v868 = vpop.permute.xlu0 %867
      %v869 = vsel %vm469, %v866, %v868
      %v870 = vsel %vm469, %v868, %v866
      %v871 = vmul.f32 %v869, %v475
      %v872 = vmul.f32 %v870, %v479
      %873 = vrot.lane.b32.xlu0 %v827, 113
      %v874 = vpop.permute.xlu0 %873
      %875 = vrot.lane.b32.xlu0 %v828, 113
      %v876 = vpop.permute.xlu0 %875
      %v877 = vsel %vm486, %v874, %v876
      %v878 = vsel %vm486, %v876, %v874
      %v879 = vmul.f32 %v877, %v492
      %v880 = vmul.f32 %v878, %v496
      %881 = vrot.lane.b32.xlu0 %v827, 112
      %v882 = vpop.permute.xlu0 %881
      %883 = vrot.lane.b32.xlu0 %v828, 112
      %v884 = vpop.permute.xlu0 %883
      %v885 = vsel %vm503, %v882, %v884
      %v886 = vsel %vm503, %v884, %v882
      %v887 = vmul.f32 %v885, %v509
      %v888 = vmul.f32 %v886, %v513
      %889 = vrot.lane.b32.xlu0 %v827, 111
      %v890 = vpop.permute.xlu0 %889
      %891 = vrot.lane.b32.xlu0 %v828, 111
      %v892 = vpop.permute.xlu0 %891
      %v893 = vsel %vm520, %v890, %v892
      %v894 = vsel %vm520, %v892, %v890
      %v895 = vmul.f32 %v893, %v526
      %v896 = vmul.f32 %v894, %v530
      %v899 = vrot.slane %v845, 4
      %v900 = vrot.slane %v846, 4
      %v905 = vrot.slane %v861, 4
      %v906 = vrot.slane %v862, 4
      %v911 = vrot.slane %v871, 4
      %v912 = vrot.slane %v872, 4
      %v917 = vrot.slane %v887, 4
      %v918 = vrot.slane %v888, 4
      %v921 = vsel %vm581, %v837, %v899
      %v922 = vsel %vm581, %v838, %v900
      %v923 = vsel %vm581, %v853, %v905
      %v924 = vsel %vm581, %v854, %v906
      %v925 = vsel %vm581, %v863, %v911
      %v926 = vsel %vm581, %v864, %v912
      %v927 = vsel %vm581, %v879, %v917
      %v928 = vsel %vm581, %v880, %v918
      %v929 = vpack.c.bf16 %v923, %v921
      %v930 = vpack.c.bf16 %v924, %v922
      %v931 = vpack.c.bf16 %v927, %v925
      %v932 = vpack.c.bf16 %v928, %v926
      %v933 = vpack.c.bf16 %v895, %v895
      %v934 = vpack.c.bf16 %v896, %v896
      %936 = vset.pattern.permute.xlu0 0
      %937 = vperm.xlu0 %936, %v830
      %v938 = vpop.permute.xlu0 %937
      %v941 = vsel %vm772, %v829, 0
      %v944 = vsel %vm587, %v933, 0
      %v947 = vsel %vm587, %v934, 0
      %949 = vmatprep.subr.bf16.mxu0 %v930
      %950 = vmatpush1.bf16.msra.mxu0 %v929
      %951 = vmatprep.subr.bf16.mxu0 %v932
      %952 = vmatpush1.bf16.msra.mxu0 %v931
      %953 = vmatprep.subr.bf16.mxu0 %v947
      %954 = vmatpush1.bf16.msra.mxu0 %v944
      %955 = vmatprep.subr.bf16.mxu0 0
      %956 = vmatpush1.bf16.msra.mxu0 0
      %957 = vmatprep.subr.bf16.mxu0 0
      %958 = vmatpush1.bf16.msra.mxu0 0
      %959 = vmatprep.subr.bf16.mxu0 0
      %960 = vmatpush1.bf16.msra.mxu0 0
      %961 = vmatprep.subr.bf16.mxu0 0
      %962 = vmatpush1.bf16.msra.mxu0 0
      %963 = vmatprep.subr.bf16.mxu0 0
      %964 = vmatpush1.bf16.msra.mxu0 0
      %965 = vmatprep.subr.bf16.mxu0 0
      %966 = vmatpush1.bf16.msra.mxu0 0
      %967 = vmatprep.subr.bf16.mxu0 0
      %968 = vmatpush1.bf16.msra.mxu0 0
      %969 = vmatprep.subr.bf16.mxu0 0
      %970 = vmatpush1.bf16.msra.mxu0 0
      %971 = vmatprep.subr.bf16.mxu0 0
      %972 = vmatpush1.bf16.msra.mxu0 0
      %973 = vmatprep.subr.bf16.mxu0 0
      %974 = vmatpush1.bf16.msra.mxu0 0
      %975 = vmatprep.subr.bf16.mxu0 0
      %976 = vmatpush1.bf16.msra.mxu0 0
      %977 = vmatprep.subr.bf16.mxu0 0
      %978 = vmatpush1.bf16.msra.mxu0 0
      %979 = vmatprep.subr.bf16.mxu0 0
      %980 = vmatpush1.bf16.msra.mxu0 0
      %981 = vmatprep.mubr.bf16.mxu0 0
      %982 = vmatmul.mubr.bf16.gmra.mrb[0].mxu0 %v941
      %v983 = vpop.f32.mrb[0].mxu0
      %v984 = vadd.f32 %v938, %v983
      %v985 = vpop.f32.mrb[0].mxu0
      %v986 = vadd.f32 %v938, %v985
      %v987 = vpop.f32.mrb[0].mxu0
      %v988 = vpop.f32.mrb[0].mxu0
      %989 = vdwg.mxu0
      %vm990 = vcmp.ge.f32.partialorder %v984, 0.0
      %vm991 = vcmp.ge.f32.partialorder %v986, 0.0
      %v992 = vmul.f32 %v984, 0.2
      %v993 = vmul.f32 %v986, 0.2
      %v994 = vsel %vm990, %v984, %v992
      %v995 = vsel %vm991, %v986, %v993
      %v998 = vcombine.low %v994, %v995
      %1000 = vst [vmem:[%s366] sm:$0xff] %v998
      %v1001 = vpack.c.bf16 %v994, %v994
      %v1002 = vpack.c.bf16 %v995, %v995
      %v1003 = vld [vmem:[%s8] sm:$0xf]
      %v1004 = vld [vmem:[%s8 + $0x4] sm:$0xf]
      %v1005 = vld [vmem:[%s8 + $0x8] sm:$0xf]
      %v1006 = vld [vmem:[%s8 + $0xc] sm:$0xf]
      %v1007 = vld [vmem:[%s8 + $0x10] sm:$0xf]
      %v1008 = vld [vmem:[%s8 + $0x14] sm:$0xf]
      %v1009 = vld [vmem:[%s8 + $0x18] sm:$0xf]
      %v1010 = vld [vmem:[%s8 + $0x1c] sm:$0xf]
      %v1011 = vld [vmem:[%s8 + $0x20] sm:$0xf]
      %v1012 = vld [vmem:[%s8 + $0x24] sm:$0xf]
      %v1013 = vld [vmem:[%s8 + $0x28] sm:$0xf]
      %v1014 = vld [vmem:[%s8 + $0x2c] sm:$0xf]
      %v1015 = vld [vmem:[%s8 + $0x30] sm:$0xf]
      %v1016 = vld [vmem:[%s8 + $0x34] sm:$0xf]
      %v1017 = vld [vmem:[%s8 + $0x38] sm:$0xf]
      %v1018 = vld [vmem:[%s8 + $0x3c] sm:$0xf]
      %v1019 = vld [vmem:[%s8 + $0x40] sm:$0xf]
      %v1020 = vld [vmem:[%s8 + $0x44] sm:$0xf]
      %v1021 = vld [vmem:[%s8 + $0x48] sm:$0xf]
      %v1022 = vld [vmem:[%s8 + $0x4c] sm:$0xf]
      %v1023 = vld [vmem:[%s8 + $0x50] sm:$0xf]
      %v1024 = vld [vmem:[%s8 + $0x54] sm:$0xf]
      %v1025 = vld [vmem:[%s8 + $0x58] sm:$0xf]
      %v1026 = vld [vmem:[%s8 + $0x5c] sm:$0xf]
      %v1027 = vld [vmem:[%s8 + $0x60] sm:$0xf]
      %v1028 = vld [vmem:[%s8 + $0x64] sm:$0xf]
      %v1029 = vld [vmem:[%s8 + $0x68] sm:$0xf]
      %v1030 = vld [vmem:[%s8 + $0x6c] sm:$0xf]
      %v1031 = vld [vmem:[%s8 + $0x70] sm:$0xf]
      %v1032 = vld [vmem:[%s8 + $0x74] sm:$0xf]
      %v1033 = vld [vmem:[%s8 + $0x78] sm:$0xf]
      %v1034 = vld [vmem:[%s8 + $0x7c] sm:$0xf]
      %v1067 = vunpack.c.l.b16 %v1003
      %v1068 = vunpack.c.l.b16 %v1004
      %v1069 = vunpack.c.l.b16 %v1005
      %v1070 = vunpack.c.l.b16 %v1006
      %v1071 = vunpack.c.l.b16 %v1007
      %v1072 = vunpack.c.l.b16 %v1008
      %v1073 = vunpack.c.l.b16 %v1009
      %v1074 = vunpack.c.l.b16 %v1010
      %v1075 = vunpack.c.l.b16 %v1011
      %v1076 = vunpack.c.l.b16 %v1012
      %v1077 = vunpack.c.l.b16 %v1013
      %v1078 = vunpack.c.l.b16 %v1014
      %v1079 = vunpack.c.l.b16 %v1015
      %v1080 = vunpack.c.l.b16 %v1016
      %v1081 = vunpack.c.l.b16 %v1017
      %v1082 = vunpack.c.l.b16 %v1018
      %v1083 = vunpack.c.l.b16 %v1019
      %v1084 = vunpack.c.l.b16 %v1020
      %v1085 = vunpack.c.l.b16 %v1021
      %v1086 = vunpack.c.l.b16 %v1022
      %v1087 = vunpack.c.l.b16 %v1023
      %v1088 = vunpack.c.l.b16 %v1024
      %v1089 = vunpack.c.l.b16 %v1025
      %v1090 = vunpack.c.l.b16 %v1026
      %v1091 = vunpack.c.l.b16 %v1027
      %v1092 = vunpack.c.l.b16 %v1028
      %v1093 = vunpack.c.l.b16 %v1029
      %v1094 = vunpack.c.l.b16 %v1030
      %v1095 = vunpack.c.l.b16 %v1031
      %v1096 = vunpack.c.l.b16 %v1032
      %v1097 = vunpack.c.l.b16 %v1033
      %v1098 = vunpack.c.l.b16 %v1034
      %v1099 = vpack.c.b16 %v1068, %v1067
      %v1100 = vpack.c.b16 %v1070, %v1069
      %v1101 = vpack.c.b16 %v1072, %v1071
      %v1102 = vpack.c.b16 %v1074, %v1073
      %v1103 = vpack.c.b16 %v1076, %v1075
      %v1104 = vpack.c.b16 %v1078, %v1077
      %v1105 = vpack.c.b16 %v1080, %v1079
      %v1106 = vpack.c.b16 %v1082, %v1081
      %v1107 = vpack.c.b16 %v1084, %v1083
      %v1108 = vpack.c.b16 %v1086, %v1085
      %v1109 = vpack.c.b16 %v1088, %v1087
      %v1110 = vpack.c.b16 %v1090, %v1089
      %v1111 = vpack.c.b16 %v1092, %v1091
      %v1112 = vpack.c.b16 %v1094, %v1093
      %v1113 = vpack.c.b16 %v1096, %v1095
      %v1114 = vpack.c.b16 %v1098, %v1097
      %1131 = vmatprep.subr.bf16.mxu0 0
      %1132 = vmatpush1.bf16.msra.mxu0 %v1099
      %1133 = vmatprep.subr.bf16.mxu0 0
      %1134 = vmatpush1.bf16.msra.mxu0 %v1100
      %1135 = vmatprep.subr.bf16.mxu0 0
      %1136 = vmatpush1.bf16.msra.mxu0 %v1101
      %1137 = vmatprep.subr.bf16.mxu0 0
      %1138 = vmatpush1.bf16.msra.mxu0 %v1102
      %1139 = vmatprep.subr.bf16.mxu0 0
      %1140 = vmatpush1.bf16.msra.mxu0 %v1103
      %1141 = vmatprep.subr.bf16.mxu0 0
      %1142 = vmatpush1.bf16.msra.mxu0 %v1104
      %1143 = vmatprep.subr.bf16.mxu0 0
      %1144 = vmatpush1.bf16.msra.mxu0 %v1105
      %1145 = vmatprep.subr.bf16.mxu0 0
      %1146 = vmatpush1.bf16.msra.mxu0 %v1106
      %1147 = vmatprep.subr.bf16.mxu0 0
      %1148 = vmatpush1.bf16.msra.mxu0 %v1107
      %1149 = vmatprep.subr.bf16.mxu0 0
      %1150 = vmatpush1.bf16.msra.mxu0 %v1108
      %1151 = vmatprep.subr.bf16.mxu0 0
      %1152 = vmatpush1.bf16.msra.mxu0 %v1109
      %1153 = vmatprep.subr.bf16.mxu0 0
      %1154 = vmatpush1.bf16.msra.mxu0 %v1110
      %1155 = vmatprep.subr.bf16.mxu0 0
      %1156 = vmatpush1.bf16.msra.mxu0 %v1111
      %1157 = vmatprep.subr.bf16.mxu0 0
      %1158 = vmatpush1.bf16.msra.mxu0 %v1112
      %1159 = vmatprep.subr.bf16.mxu0 0
      %1160 = vmatpush1.bf16.msra.mxu0 %v1113
      %1161 = vmatprep.subr.bf16.mxu0 0
      %1162 = vmatpush1.bf16.msra.mxu0 %v1114
      %1163 = vmatprep.mubr.bf16.mxu0 %v1002
      %1164 = vmatmul.mubr.bf16.gmra.mrb[0].mxu0 %v1001
      %v1165 = vpop.f32.mrb[0].mxu0
      %v1166 = vadd.f32 0.0, %v1165
      %v1167 = vpop.f32.mrb[0].mxu0
      %v1168 = vpop.f32.mrb[0].mxu0
      %v1169 = vpop.f32.mrb[0].mxu0
      %1170 = vdwg.mxu0
      %vm1171 = vcmask 519168
      %1172 = vst.msk [vmem:[%s370] sm:$0xf] %vm1171, %v1166
      %p1173 = scmp.lt.s32.totalorder %s22, 1
      %s1174 = scalar_select %p1173, %s22, 1
      %s1175 = smul.addr %s1174, 2
      %s1176 = smul.addr %s1175, 4
      %s1177 = scalar_lea.vmem %s9, %s1176
      %p1178 = scmp.lt.s32.totalorder %s22, 1
      %s1179 = scalar_select %p1178, %s22, 1
      %s1180 = smul.addr %s1179, 4
      %s1181 = scalar_lea.vmem %s10, %s1180
      // Predicated region
      $region57: #{modnet_star_forward.4} parent=55 // pred_check
        %p1182 = pneg %p234
      $region58: #{modnet_star_forward.4} parent=55 // pred_check_branch
        %1184 = sbr.rel (%p1182) target = $region60
      $region59: #{modnet_star_forward.4} parent=55 // pred_region
        _
      $region60: #{modnet_star_forward.4} parent=55 // pred_fallthru
        _
      // Predicated region
      $region61: #{modnet_star_forward.4} parent=55 // pred_check
        %p1185 = pneg %p260
      $region62: #{modnet_star_forward.4} parent=55 // pred_check_branch
        %1187 = sbr.rel (%p1185) target = $region64
      $region63: #{modnet_star_forward.4} parent=55 // pred_region
        _
      $region64: #{modnet_star_forward.4} parent=55 // pred_fallthru
        _
    $region56: #{modnet_star_forward.4} parent=5 // pred_fallthru
      _
    %p1188 = scmp.le.s32.totalorder 2, %s17
    // Predicated region
    $region65: #{modnet_star_forward.4} parent=5 // pred_check
      %p1189 = pneg %p1188
    $region66: #{modnet_star_forward.4} parent=5 // pred_check_branch
      %1191 = sbr.rel (%p1189) target = $region68
    $region67: #{modnet_star_forward.4} parent=5 // pred_region
      %s1192 = ssub.s32 %s17, 2
      // Predicated region
      $region69: #{modnet_star_forward.4} parent=67 // pred_check
        %p1193 = pneg %p240
      $region70: #{modnet_star_forward.4} parent=67 // pred_check_branch
        %1195 = sbr.rel (%p1193) target = $region72
      $region71: #{modnet_star_forward.4} parent=67 // pred_region
        %p1196 = scmp.lt.s32.totalorder %s23, 1
        %s1197 = scalar_select %p1196, %s23, 1
        %s1198 = smul.addr %s1197, 2
        %s1199 = smul.addr %s1198, 4
        %s1200 = scalar_lea.vmem %s9, %s1199
      $region72: #{modnet_star_forward.4} parent=67 // pred_fallthru
        _
      // Predicated region
      $region73: #{modnet_star_forward.4} parent=67 // pred_check
        %p1201 = pneg %p266
      $region74: #{modnet_star_forward.4} parent=67 // pred_check_branch
        %1203 = sbr.rel (%p1201) target = $region76
      $region75: #{modnet_star_forward.4} parent=67 // pred_region
        %p1204 = scmp.lt.s32.totalorder %s23, 1
        %s1205 = scalar_select %p1204, %s23, 1
        %s1206 = smul.addr %s1205, 4
        %s1207 = scalar_lea.vmem %s10, %s1206
      $region76: #{modnet_star_forward.4} parent=67 // pred_fallthru
        _
    $region68: #{modnet_star_forward.4} parent=5 // pred_fallthru
      _
  $region6: #{modnet_star_forward.4} parent=0 // loop_footer
    %s21 = sadd.s32 1, %s17
  $region7: #{modnet_star_forward.4} parent=0 // loop_footer_branch
    %16 = sbr.rel target = $region3
  $region8: #{modnet_star_forward.4} parent=0 // loop_exit
    _

// kernel: modnet_star_forward.6
$region0: #{modnet_star_forward.6}
  #allocation0 [shape = 'u32[]', space=smem, size = 0x4, offset = 0x4, fixed_abs, tag = 'smem constant byte address 0x4 - core index']
  #allocation1 [shape = 'u32[144,128]{1,0:T(1,128)}', space=vmem, size = 0x12000, scoped, tag = 'internal scratch']
  #allocation2 [shape = 'f32[1,1]{1,0:T(1,128)S(1)}', space=vmem, size = 0x200, scoped, tag = 'scoped memory for modnet_star_forward.6']
  #allocation3 [shape = 'f32[1,1]{1,0:T(1,128)S(1)}', space=vmem, size = 0x200, scoped, tag = 'scoped memory for modnet_star_forward.6']
  #allocation4 [shape = 'f32[1,1]{1,0:T(1,128)S(1)}', space=vmem, size = 0x200, scoped, tag = 'scoped memory for modnet_star_forward.6']
  %s0 = inlined_call_operand.vmem [shape: f32[2,8,16], index: 0, kind: input, shape index: {}]
  %s1 = inlined_call_operand.vmem [shape: f32[2,8,64], index: 1, kind: input, shape index: {}]
  %s2 = inlined_call_operand.vmem [shape: f32[2,1,16], index: 2, kind: input, shape index: {}]
  %s3 = inlined_call_operand.vmem [shape: bf16[16,64], index: 3, kind: input, shape index: {}]
  %s4 = inlined_call_operand.<no memory space> [shape: f32[1,1], index: 4, kind: input, shape index: {}]
  %s5 = inlined_call_operand.vmem [shape: f32[9,64], index: 5, kind: input, shape index: {}]
  %s6 = inlined_call_operand.vmem [shape: f32[16,16], index: 6, kind: input, shape index: {}]
  %s7 = inlined_call_operand.vmem [shape: f32[16,1], index: 7, kind: input, shape index: {}]
  %s8 = inlined_call_operand.<no memory space> [shape: f32[1,1], index: 8, kind: input, shape index: {}]
  %s9 = inlined_call_operand.vmem [shape: bf16[8,144], index: 9, kind: input, shape index: {}]
  %s10 = inlined_call_operand.vmem [shape: f32[8,1], index: 10, kind: input, shape index: {}]
  %s11 = inlined_call_operand.vmem [shape: f32[8,16], index: 11, kind: input, shape index: {}]
  %s12 = inlined_call_operand.vmem [shape: f32[8,16], index: 12, kind: input, shape index: {}]
  %s13 = inlined_call_operand.vmem [shape: f32[8,1], index: 13, kind: input, shape index: {}]
  %s14 = inlined_call_operand.<no memory space> [shape: f32[1,1], index: 14, kind: input, shape index: {}]
  %s15 = inlined_call_operand.vmem [shape: bf16[4,72], index: 15, kind: input, shape index: {}]
  %s16 = inlined_call_operand.vmem [shape: f32[4,1], index: 16, kind: input, shape index: {}]
  %s17 = inlined_call_operand.vmem [shape: f32[4,8], index: 17, kind: input, shape index: {}]
  %s18 = inlined_call_operand.vmem [shape: f32[2,4,64], index: 18, kind: output, shape index: {}]
  %s19 = sld [smem:[#allocation0]]
  $region105: #{modnet_star_forward.6} parent=0
    _
  %s21 = ssub.s32 1, %s19
  %s22 = scalar_select 0, %s21, %s19
  %v23 = vstv %s4
  %24 = vst [vmem:[#allocation2] sm:$0x1] %v23
  %v25 = vstv %s8
  %26 = vst [vmem:[#allocation3] sm:$0x1] %v25
  %v27 = vstv %s14
  %28 = vst [vmem:[#allocation4] sm:$0x1] %v27
  loop: start=0, step=1, limit=4
  $region2: #{modnet_star_forward.6} parent=0 // loop_pre_header
    _
  $region3: #{modnet_star_forward.6} parent=0 // loop_header
    %s30 = sphi 0, %s34
    %p31 = scmp.ge.s32.totalorder %s30, 4
    %s40 = sphi 0, %s42
    %s43 = sphi 0, %s40
    %s44 = sphi 0, %s43
    %s60 = sphi 0, %s44
    %s66 = sphi 0, %s68
    %s69 = sphi 0, %s66
    %s70 = sphi 0, %s69
    %s86 = sphi 0, %s70
    %s92 = sphi 0, %s94
    %s95 = sphi 0, %s92
    %s96 = sphi 0, %s95
    %s112 = sphi 0, %s96
    %s116 = sphi 0, %s116
    %s118 = sphi 0, %s116
    %s119 = sphi 0, %s118
    %s133 = sphi 0, %s119
    %s137 = sphi 0, %s137
    %s139 = sphi 0, %s137
    %s140 = sphi 0, %s139
    %s154 = sphi 0, %s140
    %s158 = sphi 0, %s158
    %s160 = sphi 0, %s158
    %s161 = sphi 0, %s160
    %s175 = sphi 0, %s161
    %s179 = sphi 0, %s179
    %s181 = sphi 0, %s179
    %s182 = sphi 0, %s181
    %s196 = sphi 0, %s182
    %s200 = sphi 0, %s200
    %s202 = sphi 0, %s200
    %s203 = sphi 0, %s202
    %s217 = sphi 0, %s203
    %s221 = sphi 0, %s221
    %s223 = sphi 0, %s221
    %s224 = sphi 0, %s223
    %s238 = sphi 0, %s224
    %s242 = sphi 0, %s242
    %s244 = sphi 0, %s242
    %s245 = sphi 0, %s244
    %s259 = sphi 0, %s245
    %s263 = sphi 0, %s263
    %s265 = sphi 0, %s263
    %s266 = sphi 0, %s265
    %s280 = sphi 0, %s266
    %s284 = sphi 0, %s284
    %s286 = sphi 0, %s284
    %s287 = sphi 0, %s286
    %s301 = sphi 0, %s287
    %s305 = sphi 0, %s305
    %s307 = sphi 0, %s305
    %s308 = sphi 0, %s307
    %s322 = sphi 0, %s308
    %s326 = sphi 0, %s326
    %s328 = sphi 0, %s326
    %s329 = sphi 0, %s328
    %s343 = sphi 0, %s329
    %s347 = sphi 0, %s347
    %s349 = sphi 0, %s347
    %s350 = sphi 0, %s349
    %s364 = sphi 0, %s350
    %s368 = sphi 0, %s368
    %s370 = sphi 0, %s368
    %s371 = sphi 0, %s370
    %s385 = sphi 0, %s371
    %s389 = sphi 0, %s389
    %s391 = sphi 0, %s389
    %s392 = sphi 0, %s391
    %s406 = sphi 0, %s392
    %s410 = sphi 0, %s410
    %s412 = sphi 0, %s410
    %s413 = sphi 0, %s412
    %s427 = sphi 0, %s413
    %s433 = sphi 0, %s435
    %s436 = sphi 0, %s433
    %s437 = sphi 0, %s436
    %s453 = sphi 0, %s437
  $region4: #{modnet_star_forward.6} parent=0 // loop_header_branch
    %33 = sbr.rel (%p31) target = $region8
  $region5: #{modnet_star_forward.6} parent=0 // loop_body
    %s35 = ssub.s32 %s30, 1
    %s36 = ssub.s32 %s30, 2
    %s37 = sadd.s32 %s30, 1
    %s38 = ssub.s32 %s30, %s37
    %p39 = scmp.eq.s32.totalorder %s38, 0
    %s41 = sadd.s32 %s40, 1
    %s42 = scalar_select %p39, %s40, %s41
    %p45 = pneg %p39
    %p46 = scmp.eq.s32.totalorder %s30, 1
    %p47 = por %p45, %p46
    %p48 = scmp.ne.s32.totalorder %s40, %s43
    %p49 = scmp.eq.s32.totalorder %s30, 0
    %p50 = por %p48, %p49
    %p51 = scmp.ne.s32.totalorder %s40, %s43
    %p52 = scmp.eq.s32.totalorder %s35, 1
    %p53 = por %p51, %p52
    %p54 = scmp.ne.s32.totalorder %s43, %s44
    %p55 = scmp.eq.s32.totalorder %s35, 0
    %p56 = por %p54, %p55
    %p57 = scmp.ne.s32.totalorder %s43, %s44
    %p58 = scmp.eq.s32.totalorder %s36, 1
    %p59 = por %p57, %p58
    %p61 = scmp.ne.s32.totalorder %s44, %s60
    %p62 = scmp.eq.s32.totalorder %s36, 0
    %p63 = por %p61, %p62
    %s64 = ssub.s32 %s30, %s37
    %p65 = scmp.eq.s32.totalorder %s64, 0
    %s67 = sadd.s32 %s66, 1
    %s68 = scalar_select %p65, %s66, %s67
    %p71 = pneg %p65
    %p72 = scmp.eq.s32.totalorder %s30, 1
    %p73 = por %p71, %p72
    %p74 = scmp.ne.s32.totalorder %s66, %s69
    %p75 = scmp.eq.s32.totalorder %s30, 0
    %p76 = por %p74, %p75
    %p77 = scmp.ne.s32.totalorder %s66, %s69
    %p78 = scmp.eq.s32.totalorder %s35, 1
    %p79 = por %p77, %p78
    %p80 = scmp.ne.s32.totalorder %s69, %s70
    %p81 = scmp.eq.s32.totalorder %s35, 0
    %p82 = por %p80, %p81
    %p83 = scmp.ne.s32.totalorder %s69, %s70
    %p84 = scmp.eq.s32.totalorder %s36, 1
    %p85 = por %p83, %p84
    %p87 = scmp.ne.s32.totalorder %s70, %s86
    %p88 = scmp.eq.s32.totalorder %s36, 0
    %p89 = por %p87, %p88
    %s90 = ssub.s32 %s30, %s37
    %p91 = scmp.eq.s32.totalorder %s90, 0
    %s93 = sadd.s32 %s92, 1
    %s94 = scalar_select %p91, %s92, %s93
    %p97 = pneg %p91
    %p98 = scmp.eq.s32.totalorder %s30, 1
    %p99 = por %p97, %p98
    %p100 = scmp.ne.s32.totalorder %s92, %s95
    %p101 = scmp.eq.s32.totalorder %s30, 0
    %p102 = por %p100, %p101
    %p103 = scmp.ne.s32.totalorder %s92, %s95
    %p104 = scmp.eq.s32.totalorder %s35, 1
    %p105 = por %p103, %p104
    %p106 = scmp.ne.s32.totalorder %s95, %s96
    %p107 = scmp.eq.s32.totalorder %s35, 0
    %p108 = por %p106, %p107
    %p109 = scmp.ne.s32.totalorder %s95, %s96
    %p110 = scmp.eq.s32.totalorder %s36, 1
    %p111 = por %p109, %p110
    %p113 = scmp.ne.s32.totalorder %s96, %s112
    %p114 = scmp.eq.s32.totalorder %s36, 0
    %p115 = por %p113, %p114
    %s117 = sadd.s32 %s116, 1
    %p120 = scmp.eq.s32.totalorder %s30, 1
    %p121 = scmp.ne.s32.totalorder %s116, %s118
    %p122 = scmp.eq.s32.totalorder %s30, 0
    %p123 = por %p121, %p122
    %p124 = scmp.ne.s32.totalorder %s116, %s118
    %p125 = scmp.eq.s32.totalorder %s35, 1
    %p126 = por %p124, %p125
    %p127 = scmp.ne.s32.totalorder %s118, %s119
    %p128 = scmp.eq.s32.totalorder %s35, 0
    %p129 = por %p127, %p128
    %p130 = scmp.ne.s32.totalorder %s118, %s119
    %p131 = scmp.eq.s32.totalorder %s36, 1
    %p132 = por %p130, %p131
    %p134 = scmp.ne.s32.totalorder %s119, %s133
    %p135 = scmp.eq.s32.totalorder %s36, 0
    %p136 = por %p134, %p135
    %s138 = sadd.s32 %s137, 1
    %p141 = scmp.eq.s32.totalorder %s30, 1
    %p142 = scmp.ne.s32.totalorder %s137, %s139
    %p143 = scmp.eq.s32.totalorder %s30, 0
    %p144 = por %p142, %p143
    %p145 = scmp.ne.s32.totalorder %s137, %s139
    %p146 = scmp.eq.s32.totalorder %s35, 1
    %p147 = por %p145, %p146
    %p148 = scmp.ne.s32.totalorder %s139, %s140
    %p149 = scmp.eq.s32.totalorder %s35, 0
    %p150 = por %p148, %p149
    %p151 = scmp.ne.s32.totalorder %s139, %s140
    %p152 = scmp.eq.s32.totalorder %s36, 1
    %p153 = por %p151, %p152
    %p155 = scmp.ne.s32.totalorder %s140, %s154
    %p156 = scmp.eq.s32.totalorder %s36, 0
    %p157 = por %p155, %p156
    %s159 = sadd.s32 %s158, 1
    %p162 = scmp.eq.s32.totalorder %s30, 1
    %p163 = scmp.ne.s32.totalorder %s158, %s160
    %p164 = scmp.eq.s32.totalorder %s30, 0
    %p165 = por %p163, %p164
    %p166 = scmp.ne.s32.totalorder %s158, %s160
    %p167 = scmp.eq.s32.totalorder %s35, 1
    %p168 = por %p166, %p167
    %p169 = scmp.ne.s32.totalorder %s160, %s161
    %p170 = scmp.eq.s32.totalorder %s35, 0
    %p171 = por %p169, %p170
    %p172 = scmp.ne.s32.totalorder %s160, %s161
    %p173 = scmp.eq.s32.totalorder %s36, 1
    %p174 = por %p172, %p173
    %p176 = scmp.ne.s32.totalorder %s161, %s175
    %p177 = scmp.eq.s32.totalorder %s36, 0
    %p178 = por %p176, %p177
    %s180 = sadd.s32 %s179, 1
    %p183 = scmp.eq.s32.totalorder %s30, 1
    %p184 = scmp.ne.s32.totalorder %s179, %s181
    %p185 = scmp.eq.s32.totalorder %s30, 0
    %p186 = por %p184, %p185
    %p187 = scmp.ne.s32.totalorder %s179, %s181
    %p188 = scmp.eq.s32.totalorder %s35, 1
    %p189 = por %p187, %p188
    %p190 = scmp.ne.s32.totalorder %s181, %s182
    %p191 = scmp.eq.s32.totalorder %s35, 0
    %p192 = por %p190, %p191
    %p193 = scmp.ne.s32.totalorder %s181, %s182
    %p194 = scmp.eq.s32.totalorder %s36, 1
    %p195 = por %p193, %p194
    %p197 = scmp.ne.s32.totalorder %s182, %s196
    %p198 = scmp.eq.s32.totalorder %s36, 0
    %p199 = por %p197, %p198
    %s201 = sadd.s32 %s200, 1
    %p204 = scmp.eq.s32.totalorder %s30, 1
    %p205 = scmp.ne.s32.totalorder %s200, %s202
    %p206 = scmp.eq.s32.totalorder %s30, 0
    %p207 = por %p205, %p206
    %p208 = scmp.ne.s32.totalorder %s200, %s202
    %p209 = scmp.eq.s32.totalorder %s35, 1
    %p210 = por %p208, %p209
    %p211 = scmp.ne.s32.totalorder %s202, %s203
    %p212 = scmp.eq.s32.totalorder %s35, 0
    %p213 = por %p211, %p212
    %p214 = scmp.ne.s32.totalorder %s202, %s203
    %p215 = scmp.eq.s32.totalorder %s36, 1
    %p216 = por %p214, %p215
    %p218 = scmp.ne.s32.totalorder %s203, %s217
    %p219 = scmp.eq.s32.totalorder %s36, 0
    %p220 = por %p218, %p219
    %s222 = sadd.s32 %s221, 1
    %p225 = scmp.eq.s32.totalorder %s30, 1
    %p226 = scmp.ne.s32.totalorder %s221, %s223
    %p227 = scmp.eq.s32.totalorder %s30, 0
    %p228 = por %p226, %p227
    %p229 = scmp.ne.s32.totalorder %s221, %s223
    %p230 = scmp.eq.s32.totalorder %s35, 1
    %p231 = por %p229, %p230
    %p232 = scmp.ne.s32.totalorder %s223, %s224
    %p233 = scmp.eq.s32.totalorder %s35, 0
    %p234 = por %p232, %p233
    %p235 = scmp.ne.s32.totalorder %s223, %s224
    %p236 = scmp.eq.s32.totalorder %s36, 1
    %p237 = por %p235, %p236
    %p239 = scmp.ne.s32.totalorder %s224, %s238
    %p240 = scmp.eq.s32.totalorder %s36, 0
    %p241 = por %p239, %p240
    %s243 = sadd.s32 %s242, 1
    %p246 = scmp.eq.s32.totalorder %s30, 1
    %p247 = scmp.ne.s32.totalorder %s242, %s244
    %p248 = scmp.eq.s32.totalorder %s30, 0
    %p249 = por %p247, %p248
    %p250 = scmp.ne.s32.totalorder %s242, %s244
    %p251 = scmp.eq.s32.totalorder %s35, 1
    %p252 = por %p250, %p251
    %p253 = scmp.ne.s32.totalorder %s244, %s245
    %p254 = scmp.eq.s32.totalorder %s35, 0
    %p255 = por %p253, %p254
    %p256 = scmp.ne.s32.totalorder %s244, %s245
    %p257 = scmp.eq.s32.totalorder %s36, 1
    %p258 = por %p256, %p257
    %p260 = scmp.ne.s32.totalorder %s245, %s259
    %p261 = scmp.eq.s32.totalorder %s36, 0
    %p262 = por %p260, %p261
    %s264 = sadd.s32 %s263, 1
    %p267 = scmp.eq.s32.totalorder %s30, 1
    %p268 = scmp.ne.s32.totalorder %s263, %s265
    %p269 = scmp.eq.s32.totalorder %s30, 0
    %p270 = por %p268, %p269
    %p271 = scmp.ne.s32.totalorder %s263, %s265
    %p272 = scmp.eq.s32.totalorder %s35, 1
    %p273 = por %p271, %p272
    %p274 = scmp.ne.s32.totalorder %s265, %s266
    %p275 = scmp.eq.s32.totalorder %s35, 0
    %p276 = por %p274, %p275
    %p277 = scmp.ne.s32.totalorder %s265, %s266
    %p278 = scmp.eq.s32.totalorder %s36, 1
    %p279 = por %p277, %p278
    %p281 = scmp.ne.s32.totalorder %s266, %s280
    %p282 = scmp.eq.s32.totalorder %s36, 0
    %p283 = por %p281, %p282
    %s285 = sadd.s32 %s284, 1
    %p288 = scmp.eq.s32.totalorder %s30, 1
    %p289 = scmp.ne.s32.totalorder %s284, %s286
    %p290 = scmp.eq.s32.totalorder %s30, 0
    %p291 = por %p289, %p290
    %p292 = scmp.ne.s32.totalorder %s284, %s286
    %p293 = scmp.eq.s32.totalorder %s35, 1
    %p294 = por %p292, %p293
    %p295 = scmp.ne.s32.totalorder %s286, %s287
    %p296 = scmp.eq.s32.totalorder %s35, 0
    %p297 = por %p295, %p296
    %p298 = scmp.ne.s32.totalorder %s286, %s287
    %p299 = scmp.eq.s32.totalorder %s36, 1
    %p300 = por %p298, %p299
    %p302 = scmp.ne.s32.totalorder %s287, %s301
    %p303 = scmp.eq.s32.totalorder %s36, 0
    %p304 = por %p302, %p303
    %s306 = sadd.s32 %s305, 1
    %p309 = scmp.eq.s32.totalorder %s30, 1
    %p310 = scmp.ne.s32.totalorder %s305, %s307
    %p311 = scmp.eq.s32.totalorder %s30, 0
    %p312 = por %p310, %p311
    %p313 = scmp.ne.s32.totalorder %s305, %s307
    %p314 = scmp.eq.s32.totalorder %s35, 1
    %p315 = por %p313, %p314
    %p316 = scmp.ne.s32.totalorder %s307, %s308
    %p317 = scmp.eq.s32.totalorder %s35, 0
    %p318 = por %p316, %p317
    %p319 = scmp.ne.s32.totalorder %s307, %s308
    %p320 = scmp.eq.s32.totalorder %s36, 1
    %p321 = por %p319, %p320
    %p323 = scmp.ne.s32.totalorder %s308, %s322
    %p324 = scmp.eq.s32.totalorder %s36, 0
    %p325 = por %p323, %p324
    %s327 = sadd.s32 %s326, 1
    %p330 = scmp.eq.s32.totalorder %s30, 1
    %p331 = scmp.ne.s32.totalorder %s326, %s328
    %p332 = scmp.eq.s32.totalorder %s30, 0
    %p333 = por %p331, %p332
    %p334 = scmp.ne.s32.totalorder %s326, %s328
    %p335 = scmp.eq.s32.totalorder %s35, 1
    %p336 = por %p334, %p335
    %p337 = scmp.ne.s32.totalorder %s328, %s329
    %p338 = scmp.eq.s32.totalorder %s35, 0
    %p339 = por %p337, %p338
    %p340 = scmp.ne.s32.totalorder %s328, %s329
    %p341 = scmp.eq.s32.totalorder %s36, 1
    %p342 = por %p340, %p341
    %p344 = scmp.ne.s32.totalorder %s329, %s343
    %p345 = scmp.eq.s32.totalorder %s36, 0
    %p346 = por %p344, %p345
    %s348 = sadd.s32 %s347, 1
    %p351 = scmp.eq.s32.totalorder %s30, 1
    %p352 = scmp.ne.s32.totalorder %s347, %s349
    %p353 = scmp.eq.s32.totalorder %s30, 0
    %p354 = por %p352, %p353
    %p355 = scmp.ne.s32.totalorder %s347, %s349
    %p356 = scmp.eq.s32.totalorder %s35, 1
    %p357 = por %p355, %p356
    %p358 = scmp.ne.s32.totalorder %s349, %s350
    %p359 = scmp.eq.s32.totalorder %s35, 0
    %p360 = por %p358, %p359
    %p361 = scmp.ne.s32.totalorder %s349, %s350
    %p362 = scmp.eq.s32.totalorder %s36, 1
    %p363 = por %p361, %p362
    %p365 = scmp.ne.s32.totalorder %s350, %s364
    %p366 = scmp.eq.s32.totalorder %s36, 0
    %p367 = por %p365, %p366
    %s369 = sadd.s32 %s368, 1
    %p372 = scmp.eq.s32.totalorder %s30, 1
    %p373 = scmp.ne.s32.totalorder %s368, %s370
    %p374 = scmp.eq.s32.totalorder %s30, 0
    %p375 = por %p373, %p374
    %p376 = scmp.ne.s32.totalorder %s368, %s370
    %p377 = scmp.eq.s32.totalorder %s35, 1
    %p378 = por %p376, %p377
    %p379 = scmp.ne.s32.totalorder %s370, %s371
    %p380 = scmp.eq.s32.totalorder %s35, 0
    %p381 = por %p379, %p380
    %p382 = scmp.ne.s32.totalorder %s370, %s371
    %p383 = scmp.eq.s32.totalorder %s36, 1
    %p384 = por %p382, %p383
    %p386 = scmp.ne.s32.totalorder %s371, %s385
    %p387 = scmp.eq.s32.totalorder %s36, 0
    %p388 = por %p386, %p387
    %s390 = sadd.s32 %s389, 1
    %p393 = scmp.eq.s32.totalorder %s30, 1
    %p394 = scmp.ne.s32.totalorder %s389, %s391
    %p395 = scmp.eq.s32.totalorder %s30, 0
    %p396 = por %p394, %p395
    %p397 = scmp.ne.s32.totalorder %s389, %s391
    %p398 = scmp.eq.s32.totalorder %s35, 1
    %p399 = por %p397, %p398
    %p400 = scmp.ne.s32.totalorder %s391, %s392
    %p401 = scmp.eq.s32.totalorder %s35, 0
    %p402 = por %p400, %p401
    %p403 = scmp.ne.s32.totalorder %s391, %s392
    %p404 = scmp.eq.s32.totalorder %s36, 1
    %p405 = por %p403, %p404
    %p407 = scmp.ne.s32.totalorder %s392, %s406
    %p408 = scmp.eq.s32.totalorder %s36, 0
    %p409 = por %p407, %p408
    %s411 = sadd.s32 %s410, 1
    %p414 = scmp.eq.s32.totalorder %s30, 1
    %p415 = scmp.ne.s32.totalorder %s410, %s412
    %p416 = scmp.eq.s32.totalorder %s30, 0
    %p417 = por %p415, %p416
    %p418 = scmp.ne.s32.totalorder %s410, %s412
    %p419 = scmp.eq.s32.totalorder %s35, 1
    %p420 = por %p418, %p419
    %p421 = scmp.ne.s32.totalorder %s412, %s413
    %p422 = scmp.eq.s32.totalorder %s35, 0
    %p423 = por %p421, %p422
    %p424 = scmp.ne.s32.totalorder %s412, %s413
    %p425 = scmp.eq.s32.totalorder %s36, 1
    %p426 = por %p424, %p425
    %p428 = scmp.ne.s32.totalorder %s413, %s427
    %p429 = scmp.eq.s32.totalorder %s36, 0
    %p430 = por %p428, %p429
    %s431 = ssub.s32 %s30, %s37
    %p432 = scmp.eq.s32.totalorder %s431, 0
    %s434 = sadd.s32 %s433, 1
    %s435 = scalar_select %p432, %s433, %s434
    %p438 = pneg %p432
    %p439 = scmp.eq.s32.totalorder %s30, 1
    %p440 = por %p438, %p439
    %p441 = scmp.ne.s32.totalorder %s433, %s436
    %p442 = scmp.eq.s32.totalorder %s30, 0
    %p443 = por %p441, %p442
    %p444 = scmp.ne.s32.totalorder %s433, %s436
    %p445 = scmp.eq.s32.totalorder %s35, 1
    %p446 = por %p444, %p445
    %p447 = scmp.ne.s32.totalorder %s436, %s437
    %p448 = scmp.eq.s32.totalorder %s35, 0
    %p449 = por %p447, %p448
    %p450 = scmp.ne.s32.totalorder %s436, %s437
    %p451 = scmp.eq.s32.totalorder %s36, 1
    %p452 = por %p450, %p451
    %p454 = scmp.ne.s32.totalorder %s437, %s453
    %p455 = scmp.eq.s32.totalorder %s36, 0
    %p456 = por %p454, %p455
    %p457 = scmp.le.s32.totalorder 1, %s30
    %p458 = scmp.lt.s32.totalorder %s30, 3
    %p459 = pnand %p457, %p458
    %p460 = pneg %p459
    // Predicated region
    $region9: #{modnet_star_forward.6} parent=5 // pred_check
      _
    $region10: #{modnet_star_forward.6} parent=5 // pred_check_branch
      %462 = sbr.rel (%p459) target = $region12
    $region11: #{modnet_star_forward.6} parent=5 // pred_region
      %s463 = ssub.s32 %s30, 1
      // Predicated region
      $region13: #{modnet_star_forward.6} parent=11 // pred_check
        %p464 = pneg %p129
      $region14: #{modnet_star_forward.6} parent=11 // pred_check_branch
        %466 = sbr.rel (%p464) target = $region16
      $region15: #{modnet_star_forward.6} parent=11 // pred_region
        _
      $region16: #{modnet_star_forward.6} parent=11 // pred_fallthru
        _
      // Predicated region
      $region17: #{modnet_star_forward.6} parent=11 // pred_check
        %p467 = pneg %p150
      $region18: #{modnet_star_forward.6} parent=11 // pred_check_branch
        %469 = sbr.rel (%p467) target = $region20
      $region19: #{modnet_star_forward.6} parent=11 // pred_region
        _
      $region20: #{modnet_star_forward.6} parent=11 // pred_fallthru
        _
      // Predicated region
      $region21: #{modnet_star_forward.6} parent=11 // pred_check
        %p470 = pneg %p171
      $region22: #{modnet_star_forward.6} parent=11 // pred_check_branch
        %472 = sbr.rel (%p470) target = $region24
      $region23: #{modnet_star_forward.6} parent=11 // pred_region
        _
      $region24: #{modnet_star_forward.6} parent=11 // pred_fallthru
        _
      // Predicated region
      $region25: #{modnet_star_forward.6} parent=11 // pred_check
        %p473 = pneg %p192
      $region26: #{modnet_star_forward.6} parent=11 // pred_check_branch
        %475 = sbr.rel (%p473) target = $region28
      $region27: #{modnet_star_forward.6} parent=11 // pred_region
        _
      $region28: #{modnet_star_forward.6} parent=11 // pred_fallthru
        _
      // Predicated region
      $region29: #{modnet_star_forward.6} parent=11 // pred_check
        %p476 = pneg %p213
      $region30: #{modnet_star_forward.6} parent=11 // pred_check_branch
        %478 = sbr.rel (%p476) target = $region32
      $region31: #{modnet_star_forward.6} parent=11 // pred_region
        _
      $region32: #{modnet_star_forward.6} parent=11 // pred_fallthru
        _
      // Predicated region
      $region33: #{modnet_star_forward.6} parent=11 // pred_check
        %p479 = pneg %p234
      $region34: #{modnet_star_forward.6} parent=11 // pred_check_branch
        %481 = sbr.rel (%p479) target = $region36
      $region35: #{modnet_star_forward.6} parent=11 // pred_region
        _
      $region36: #{modnet_star_forward.6} parent=11 // pred_fallthru
        _
      // Predicated region
      $region37: #{modnet_star_forward.6} parent=11 // pred_check
        %p482 = pneg %p255
      $region38: #{modnet_star_forward.6} parent=11 // pred_check_branch
        %484 = sbr.rel (%p482) target = $region40
      $region39: #{modnet_star_forward.6} parent=11 // pred_region
        _
      $region40: #{modnet_star_forward.6} parent=11 // pred_fallthru
        _
      // Predicated region
      $region41: #{modnet_star_forward.6} parent=11 // pred_check
        %p485 = pneg %p276
      $region42: #{modnet_star_forward.6} parent=11 // pred_check_branch
        %487 = sbr.rel (%p485) target = $region44
      $region43: #{modnet_star_forward.6} parent=11 // pred_region
        _
      $region44: #{modnet_star_forward.6} parent=11 // pred_fallthru
        _
      // Predicated region
      $region45: #{modnet_star_forward.6} parent=11 // pred_check
        %p488 = pneg %p297
      $region46: #{modnet_star_forward.6} parent=11 // pred_check_branch
        %490 = sbr.rel (%p488) target = $region48
      $region47: #{modnet_star_forward.6} parent=11 // pred_region
        _
      $region48: #{modnet_star_forward.6} parent=11 // pred_fallthru
        _
      // Predicated region
      $region49: #{modnet_star_forward.6} parent=11 // pred_check
        %p491 = pneg %p318
      $region50: #{modnet_star_forward.6} parent=11 // pred_check_branch
        %493 = sbr.rel (%p491) target = $region52
      $region51: #{modnet_star_forward.6} parent=11 // pred_region
        _
      $region52: #{modnet_star_forward.6} parent=11 // pred_fallthru
        _
      // Predicated region
      $region53: #{modnet_star_forward.6} parent=11 // pred_check
        %p494 = pneg %p339
      $region54: #{modnet_star_forward.6} parent=11 // pred_check_branch
        %496 = sbr.rel (%p494) target = $region56
      $region55: #{modnet_star_forward.6} parent=11 // pred_region
        _
      $region56: #{modnet_star_forward.6} parent=11 // pred_fallthru
        _
      // Predicated region
      $region57: #{modnet_star_forward.6} parent=11 // pred_check
        %p497 = pneg %p360
      $region58: #{modnet_star_forward.6} parent=11 // pred_check_branch
        %499 = sbr.rel (%p497) target = $region60
      $region59: #{modnet_star_forward.6} parent=11 // pred_region
        _
      $region60: #{modnet_star_forward.6} parent=11 // pred_fallthru
        _
      // Predicated region
      $region61: #{modnet_star_forward.6} parent=11 // pred_check
        %p500 = pneg %p381
      $region62: #{modnet_star_forward.6} parent=11 // pred_check_branch
        %502 = sbr.rel (%p500) target = $region64
      $region63: #{modnet_star_forward.6} parent=11 // pred_region
        _
      $region64: #{modnet_star_forward.6} parent=11 // pred_fallthru
        _
      // Predicated region
      $region65: #{modnet_star_forward.6} parent=11 // pred_check
        %p503 = pneg %p402
      $region66: #{modnet_star_forward.6} parent=11 // pred_check_branch
        %505 = sbr.rel (%p503) target = $region68
      $region67: #{modnet_star_forward.6} parent=11 // pred_region
        _
      $region68: #{modnet_star_forward.6} parent=11 // pred_fallthru
        _
      // Predicated region
      $region69: #{modnet_star_forward.6} parent=11 // pred_check
        %p506 = pneg %p423
      $region70: #{modnet_star_forward.6} parent=11 // pred_check_branch
        %508 = sbr.rel (%p506) target = $region72
      $region71: #{modnet_star_forward.6} parent=11 // pred_region
        _
      $region72: #{modnet_star_forward.6} parent=11 // pred_fallthru
        _
    $region12: #{modnet_star_forward.6} parent=5 // pred_fallthru
      _
    %p509 = scmp.lt.s32.totalorder %s30, 2
    // Predicated region
    $region73: #{modnet_star_forward.6} parent=5 // pred_check
      %p510 = pneg %p509
    $region74: #{modnet_star_forward.6} parent=5 // pred_check_branch
      %512 = sbr.rel (%p510) target = $region76
    $region75: #{modnet_star_forward.6} parent=5 // pred_region
      // Predicated region
      $region77: #{modnet_star_forward.6} parent=75 // pred_check
        %p513 = pneg %p50
      $region78: #{modnet_star_forward.6} parent=75 // pred_check_branch
        %515 = sbr.rel (%p513) target = $region80
      $region79: #{modnet_star_forward.6} parent=75 // pred_region
        %p516 = scmp.lt.s32.totalorder %s30, 1
        %s517 = scalar_select %p516, %s30, 1
        %s518 = smul.addr %s517, 8
        %s519 = scalar_lea.vmem %s0, %s518
      $region80: #{modnet_star_forward.6} parent=75 // pred_fallthru
        _
      // Predicated region
      $region81: #{modnet_star_forward.6} parent=75 // pred_check
        %p520 = pneg %p76
      $region82: #{modnet_star_forward.6} parent=75 // pred_check_branch
        %522 = sbr.rel (%p520) target = $region84
      $region83: #{modnet_star_forward.6} parent=75 // pred_region
        %p523 = scmp.lt.s32.totalorder %s30, 1
        %s524 = scalar_select %p523, %s30, 1
        %s525 = smul.addr %s524, 8
        %s526 = scalar_lea.vmem %s1, %s525
      $region84: #{modnet_star_forward.6} parent=75 // pred_fallthru
        _
      // Predicated region
      $region85: #{modnet_star_forward.6} parent=75 // pred_check
        %p527 = pneg %p102
      $region86: #{modnet_star_forward.6} parent=75 // pred_check_branch
        %529 = sbr.rel (%p527) target = $region88
      $region87: #{modnet_star_forward.6} parent=75 // pred_region
        %p530 = scmp.lt.s32.totalorder %s30, 1
        %s531 = scalar_select %p530, %s30, 1
        %s532 = scalar_lea.vmem %s2, %s531
      $region88: #{modnet_star_forward.6} parent=75 // pred_fallthru
        _
    $region76: #{modnet_star_forward.6} parent=5 // pred_fallthru
      _
    %p533 = scmp.le.s32.totalorder 1, %s30
    %p534 = scmp.lt.s32.totalorder %s30, 3
    %p535 = pnand %p533, %p534
    %p536 = pneg %p535
    // Predicated region
    $region89: #{modnet_star_forward.6} parent=5 // pred_check
      _
    $region90: #{modnet_star_forward.6} parent=5 // pred_check_branch
      %538 = sbr.rel (%p535) target = $region92
    $region91: #{modnet_star_forward.6} parent=5 // pred_region
      %s539 = ssub.s32 %s30, 1
      %p540 = scmp.lt.s32.totalorder %s35, 1
      %s541 = scalar_select %p540, %s35, 1
      %s542 = smul.addr %s541, 8
      %s543 = scalar_lea.vmem %s0, %s542
      %p544 = pneg %p56
      %p545 = pneg %p53
      %p546 = scmp.lt.s32.totalorder %s35, 1
      %s547 = scalar_select %p546, %s35, 1
      %s548 = smul.addr %s547, 8
      %s549 = scalar_lea.vmem %s1, %s548
      %p550 = pneg %p82
      %p551 = pneg %p79
      %p552 = scmp.lt.s32.totalorder %s35, 1
      %s553 = scalar_select %p552, %s35, 1
      %s554 = scalar_lea.vmem %s2, %s553
      %p555 = pneg %p108
      %p556 = pneg %p105
      %p557 = pneg %p129
      %p558 = pneg %p126
      %p559 = pneg %p150
      %p560 = pneg %p147
      %p561 = pneg %p171
      %p562 = pneg %p168
      %p563 = pneg %p192
      %p564 = pneg %p189
      %p565 = pneg %p213
      %p566 = pneg %p210
      %p567 = pneg %p234
      %p568 = pneg %p231
      %p569 = pneg %p255
      %p570 = pneg %p252
      %p571 = pneg %p276
      %p572 = pneg %p273
      %p573 = pneg %p297
      %p574 = pneg %p294
      %p575 = pneg %p318
      %p576 = pneg %p315
      %p577 = pneg %p339
      %p578 = pneg %p336
      %p579 = pneg %p360
      %p580 = pneg %p357
      %p581 = pneg %p381
      %p582 = pneg %p378
      %p583 = pneg %p402
      %p584 = pneg %p399
      %p585 = pneg %p423
      %p586 = pneg %p420
      %p587 = pneg %p449
      %p588 = pneg %p446
      %p589 = scmp.lt.s32.totalorder %s35, 1
      %s590 = scalar_select %p589, %s35, 1
      %s591 = smul.addr %s590, 4
      %s592 = scalar_lea.vmem %s18, %s591
      %p593 = scmp.lt.s32.totalorder %s35, 1
      %s594 = scalar_select %p593, %s35, 1
      %s595 = smul.addr %s594, 8
      %s596 = scalar_lea.vmem %s0, %s595
      %p597 = scmp.lt.s32.totalorder %s35, 1
      %s598 = scalar_select %p597, %s35, 1
      %s599 = smul.addr %s598, 8
      %s600 = scalar_lea.vmem %s1, %s599
      %p601 = scmp.lt.s32.totalorder %s35, 1
      %s602 = scalar_select %p601, %s35, 1
      %s603 = scalar_lea.vmem %s2, %s602
      %p604 = scmp.lt.s32.totalorder %s35, 1
      %s605 = scalar_select %p604, %s35, 1
      %s606 = smul.addr %s605, 4
      %s607 = scalar_lea.vmem %s18, %s606
      %v609 = vld [vmem:[%s5] sm:$0xff]
      %v610 = vld [vmem:[%s5 + $0x8] sm:$0x1]
      %v611 = vld [vmem:[%s603] sm:$0x1]
      %v612 = vld [vmem:[%s596] sm:$0xff]
      %v613 = vpack.c.bf16 %v612, %v612
      %v614 = vld [vmem:[%s3] sm:$0xf]
      %v615 = vld [vmem:[%s3 + $0x4] sm:$0xf]
      %v618 = vunpack.c.l.b16 %v614
      %v619 = vunpack.c.l.b16 %v615
      %v620 = vpack.c.b16 %v619, %v618
      %vm622 = vcmask 130048
      %v624 = vsel %vm622, %v613, 0
      %626 = vmatprep.subr.bf16.mxu0 0
      %627 = vmatpush1.bf16.msra.mxu0 %v620
      %628 = vmatprep.subr.bf16.mxu0 0
      %629 = vmatpush1.bf16.msra.mxu0 0
      %630 = vmatprep.subr.bf16.mxu0 0
      %631 = vmatpush1.bf16.msra.mxu0 0
      %632 = vmatprep.subr.bf16.mxu0 0
      %633 = vmatpush1.bf16.msra.mxu0 0
      %634 = vmatprep.subr.bf16.mxu0 0
      %635 = vmatpush1.bf16.msra.mxu0 0
      %636 = vmatprep.subr.bf16.mxu0 0
      %637 = vmatpush1.bf16.msra.mxu0 0
      %638 = vmatprep.subr.bf16.mxu0 0
      %639 = vmatpush1.bf16.msra.mxu0 0
      %640 = vmatprep.subr.bf16.mxu0 0
      %641 = vmatpush1.bf16.msra.mxu0 0
      %642 = vmatprep.subr.bf16.mxu0 0
      %643 = vmatpush1.bf16.msra.mxu0 0
      %644 = vmatprep.subr.bf16.mxu0 0
      %645 = vmatpush1.bf16.msra.mxu0 0
      %646 = vmatprep.subr.bf16.mxu0 0
      %647 = vmatpush1.bf16.msra.mxu0 0
      %648 = vmatprep.subr.bf16.mxu0 0
      %649 = vmatpush1.bf16.msra.mxu0 0
      %650 = vmatprep.subr.bf16.mxu0 0
      %651 = vmatpush1.bf16.msra.mxu0 0
      %652 = vmatprep.subr.bf16.mxu0 0
      %653 = vmatpush1.bf16.msra.mxu0 0
      %654 = vmatprep.subr.bf16.mxu0 0
      %655 = vmatpush1.bf16.msra.mxu0 0
      %656 = vmatprep.subr.bf16.mxu0 0
      %657 = vmatpush1.bf16.msra.mxu0 0
      %658 = vmatprep.mubr.bf16.mxu0 0
      %659 = vmatmul.mubr.bf16.gmra.mrb[0].mxu0 %v624
      %v660 = vpop.f32.mrb[0].mxu0
      %v661 = vadd.f32 0.0, %v660
      %v662 = vpop.f32.mrb[0].mxu0
      %v663 = vpop.f32.mrb[0].mxu0
      %v664 = vpop.f32.mrb[0].mxu0
      %665 = vdwg.mxu0
      %v666 = vld [vmem:[#allocation2] sm:$0x1]
      %v668 = vlaneseq
      %v669 = vshrl.u32 %v668, 7
      %v670 = vsub.s32 0, %v669
      %v671 = vrot.slane %v666, %v670
      %672 = vset.pattern.permute.xlu0 0
      %673 = vperm.xlu0 %672, %v671
      %v674 = vpop.permute.xlu0 %673
      %v676 = vmul.f32 %v674, %v661
      %v677 = vld [vmem:[%s600] sm:$0xff]
      %v678 = vld [vmem:[%s6] sm:$0xff]
      %v679 = vld [vmem:[%s6 + $0x8] sm:$0xff]
      %v681 = vlaneseq
      %v682 = vshrl.u32 %v681, 7
      %v683 = vsub.s32 0, %v682
      %v684 = vrot.slane %v611, %v683
      %v686 = vmul.f32 %v678, %v684
      %v687 = vmul.f32 %v679, %v684
      %v688 = vsel %vm622, %v686, 0.0
      %689 = vadd.xlane.f32.xlu0 %v688
      %v690 = vpop.xlane.xlu0 %689
      %v691 = vsel %vm622, %v687, 0.0
      %692 = vadd.xlane.f32.xlu0 %v691
      %v693 = vpop.xlane.xlu0 %692
      %v694 = vld [vmem:[%s7] sm:$0xff]
      %v695 = vld [vmem:[%s7 + $0x8] sm:$0xff]
      %v696 = vadd.f32 %v690, %v694
      %v697 = vadd.f32 %v693, %v695
      %v698 = vld [vmem:[#allocation3] sm:$0x1]
      %v700 = vlaneseq
      %v701 = vshrl.u32 %v700, 7
      %v702 = vsub.s32 0, %v701
      %v703 = vrot.slane %v698, %v702
      %v705 = vmul.f32 %v703, %v696
      %v706 = vmul.f32 %v703, %v697
      %v707 = vadd.f32 %v705, 1.0
      %v708 = vadd.f32 %v706, 1.0
      %710 = vset.pattern.permute.xlu0 0
      %711 = vperm.xlu0 %710, %v707
      %v712 = vpop.permute.xlu0 %711
      %715 = vset.pattern.permute.xlu0 0
      %716 = vperm.xlu0 %715, %v708
      %v717 = vpop.permute.xlu0 %716
      %v719 = vmul.f32 %v676, %v712
      %v720 = vmul.f32 %v677, %v717
      %v721 = vld [vmem:[%s9] sm:$0xff]
      %v722 = vld [vmem:[%s10] sm:$0xff]
      %vm723 = vcmask 1048064
      %724 = vrot.lane.b32.xlu0 %v719, 64
      %v725 = vpop.permute.xlu0 %724
      %v726 = vsel %vm723, %v725, %v719
      %727 = vrot.lane.b32.xlu0 %v720, 64
      %v728 = vpop.permute.xlu0 %727
      %v729 = vsel %vm723, %v728, %v720
      %730 = vrot.lane.b32.xlu0 %v726, 64
      %v731 = vpop.permute.xlu0 %730
      %732 = vrot.lane.b32.xlu0 %v729, 64
      %v733 = vpop.permute.xlu0 %732
      %v734 = vsel %vm723, %v731, %v719
      %v735 = vsel %vm723, %v733, %v720
      %v736 = vlaneseq
      %v737 = vshrl.u32 %v736, 7
      %v738 = vsub.s32 0, %v737
      %v739 = vrot.slane %v609, %v738
      %741 = vrot.lane.b32.xlu0 %v739, 55
      %v742 = vpop.permute.xlu0 %741
      %v744 = vmul.f32 %v734, %v742
      %v745 = vmul.f32 %v735, %v742
      %v746 = vlaneseq
      %v747 = vshrl.u32 %v746, 7
      %v748 = vsub.s32 1, %v747
      %v749 = vrot.slane %v609, %v748
      %751 = vrot.lane.b32.xlu0 %v749, 56
      %v752 = vpop.permute.xlu0 %751
      %v754 = vmul.f32 %v734, %v752
      %v755 = vmul.f32 %v735, %v752
      %v756 = vlaneseq
      %v757 = vshrl.u32 %v756, 7
      %v758 = vsub.s32 2, %v757
      %v759 = vrot.slane %v609, %v758
      %761 = vrot.lane.b32.xlu0 %v759, 57
      %v762 = vpop.permute.xlu0 %761
      %v764 = vmul.f32 %v734, %v762
      %v765 = vmul.f32 %v735, %v762
      %v766 = vlaneseq
      %v767 = vshrl.u32 %v766, 7
      %v768 = vsub.s32 3, %v767
      %v769 = vrot.slane %v609, %v768
      %771 = vrot.lane.b32.xlu0 %v769, 63
      %v772 = vpop.permute.xlu0 %771
      %v774 = vmul.f32 %v734, %v772
      %v775 = vmul.f32 %v735, %v772
      %v776 = vlaneseq
      %v777 = vshrl.u32 %v776, 7
      %v778 = vsub.s32 4, %v777
      %v779 = vrot.slane %v609, %v778
      %v780 = vmul.f32 %v719, %v779
      %v781 = vmul.f32 %v720, %v779
      %v782 = vlaneseq
      %v783 = vshrl.u32 %v782, 7
      %v784 = vsub.s32 5, %v783
      %v785 = vrot.slane %v609, %v784
      %787 = vrot.lane.b32.xlu0 %v785, 1
      %v788 = vpop.permute.xlu0 %787
      %v790 = vmul.f32 %v734, %v788
      %v791 = vmul.f32 %v735, %v788
      %v792 = vlaneseq
      %v793 = vshrl.u32 %v792, 7
      %v794 = vsub.s32 6, %v793
      %v795 = vrot.slane %v609, %v794
      %797 = vrot.lane.b32.xlu0 %v795, 7
      %v798 = vpop.permute.xlu0 %797
      %v800 = vmul.f32 %v734, %v798
      %v801 = vmul.f32 %v735, %v798
      %v802 = vlaneseq
      %v803 = vshrl.u32 %v802, 7
      %v804 = vsub.s32 7, %v803
      %v805 = vrot.slane %v609, %v804
      %807 = vrot.lane.b32.xlu0 %v805, 8
      %v808 = vpop.permute.xlu0 %807
      %v810 = vmul.f32 %v734, %v808
      %v811 = vmul.f32 %v735, %v808
      %v812 = vlaneseq
      %v813 = vshrl.u32 %v812, 7
      %v814 = vsub.s32 0, %v813
      %v815 = vrot.slane %v610, %v814
      %817 = vrot.lane.b32.xlu0 %v815, 9
      %v818 = vpop.permute.xlu0 %817
      %v820 = vmul.f32 %v734, %v818
      %v821 = vmul.f32 %v735, %v818
      %824 = vrot.lane.b32.xlu0 %v754, 127
      %v825 = vpop.permute.xlu0 %824
      %826 = vrot.lane.b32.xlu0 %v755, 127
      %v827 = vpop.permute.xlu0 %826
      %832 = vrot.lane.b32.xlu0 %v764, 126
      %v833 = vpop.permute.xlu0 %832
      %834 = vrot.lane.b32.xlu0 %v765, 126
      %v835 = vpop.permute.xlu0 %834
      %840 = vrot.lane.b32.xlu0 %v774, 120
      %v841 = vpop.permute.xlu0 %840
      %842 = vrot.lane.b32.xlu0 %v775, 120
      %v843 = vpop.permute.xlu0 %842
      %848 = vrot.lane.b32.xlu0 %v780, 55
      %v849 = vpop.permute.xlu0 %848
      %850 = vrot.lane.b32.xlu0 %v781, 55
      %v851 = vpop.permute.xlu0 %850
      %856 = vrot.lane.b32.xlu0 %v790, 54
      %v857 = vpop.permute.xlu0 %856
      %858 = vrot.lane.b32.xlu0 %v791, 54
      %v859 = vpop.permute.xlu0 %858
      %864 = vrot.lane.b32.xlu0 %v800, 48
      %v865 = vpop.permute.xlu0 %864
      %866 = vrot.lane.b32.xlu0 %v801, 48
      %v867 = vpop.permute.xlu0 %866
      %872 = vrot.lane.b32.xlu0 %v810, 47
      %v873 = vpop.permute.xlu0 %872
      %874 = vrot.lane.b32.xlu0 %v811, 47
      %v875 = vpop.permute.xlu0 %874
      %880 = vrot.lane.b32.xlu0 %v820, 46
      %v881 = vpop.permute.xlu0 %880
      %882 = vrot.lane.b32.xlu0 %v821, 46
      %v883 = vpop.permute.xlu0 %882
      %v886 = vpack.c.bf16 %v745, %v744
      %v887 = vpack.c.bf16 %v827, %v825
      %v888 = vpack.c.bf16 %v835, %v833
      %v889 = vpack.c.bf16 %v843, %v841
      %v890 = vpack.c.bf16 %v851, %v849
      %v891 = vpack.c.bf16 %v859, %v857
      %v892 = vpack.c.bf16 %v867, %v865
      %v893 = vpack.c.bf16 %v875, %v873
      %v894 = vpack.c.bf16 %v883, %v881
      %896 = vset.pattern.permute.xlu0 0
      %897 = vperm.xlu0 %896, %v722
      %v898 = vpop.permute.xlu0 %897
      %v901 = vunpack.c.l.b16 %v721
      %v902 = vunpack.c.h.b16 %v721
      %v903 = vpack.c.b16 %v901, %v901
      %v904 = vpack.c.b16 %v902, %v902
      %915 = vrot.lane.b32.xlu0 %v886, 73
      %v916 = vpop.permute.xlu0 %915
      %917 = vrot.lane.b32.xlu0 %v887, 73
      %v918 = vpop.permute.xlu0 %917
      %919 = vrot.lane.b32.xlu0 %v888, 73
      %v920 = vpop.permute.xlu0 %919
      %921 = vrot.lane.b32.xlu0 %v889, 73
      %v922 = vpop.permute.xlu0 %921
      %923 = vrot.lane.b32.xlu0 %v890, 73
      %v924 = vpop.permute.xlu0 %923
      %925 = vrot.lane.b32.xlu0 %v891, 73
      %v926 = vpop.permute.xlu0 %925
      %927 = vrot.lane.b32.xlu0 %v892, 73
      %v928 = vpop.permute.xlu0 %927
      %929 = vrot.lane.b32.xlu0 %v893, 73
      %v930 = vpop.permute.xlu0 %929
      %931 = vrot.lane.b32.xlu0 %v894, 73
      %v932 = vpop.permute.xlu0 %931
      %v943 = vsel %vm622, %v904, 0
      %945 = vmatprep.subr.bf16.mxu0 0
      %946 = vmatpush1.bf16.msra.mxu0 %v916
      %947 = vmatprep.subr.bf16.mxu0 0
      %948 = vmatpush1.bf16.msra.mxu0 %v918
      %949 = vmatprep.subr.bf16.mxu0 0
      %950 = vmatpush1.bf16.msra.mxu0 %v920
      %951 = vmatprep.subr.bf16.mxu0 0
      %952 = vmatpush1.bf16.msra.mxu0 %v922
      %953 = vmatprep.subr.bf16.mxu0 0
      %954 = vmatpush1.bf16.msra.mxu0 %v924
      %955 = vmatprep.subr.bf16.mxu0 0
      %956 = vmatpush1.bf16.msra.mxu0 %v926
      %957 = vmatprep.subr.bf16.mxu0 0
      %958 = vmatpush1.bf16.msra.mxu0 %v928
      %959 = vmatprep.subr.bf16.mxu0 0
      %960 = vmatpush1.bf16.msra.mxu0 %v930
      %961 = vmatprep.subr.bf16.mxu0 0
      %962 = vmatpush1.bf16.msra.mxu0 %v932
      %963 = vmatprep.subr.bf16.mxu0 0
      %964 = vmatpush1.bf16.msra.mxu0 0
      %965 = vmatprep.subr.bf16.mxu0 0
      %966 = vmatpush1.bf16.msra.mxu0 0
      %967 = vmatprep.subr.bf16.mxu0 0
      %968 = vmatpush1.bf16.msra.mxu0 0
      %969 = vmatprep.subr.bf16.mxu0 0
      %970 = vmatpush1.bf16.msra.mxu0 0
      %971 = vmatprep.subr.bf16.mxu0 0
      %972 = vmatpush1.bf16.msra.mxu0 0
      %973 = vmatprep.subr.bf16.mxu0 0
      %974 = vmatpush1.bf16.msra.mxu0 0
      %975 = vmatprep.subr.bf16.mxu0 0
      %976 = vmatpush1.bf16.msra.mxu0 0
      %977 = vmatprep.mubr.bf16.mxu0 %v943
      %978 = vmatmul.mubr.bf16.gmra.mrb[0].mxu0 %v903
      %v979 = vpop.f32.mrb[0].mxu0
      %v980 = vadd.f32 %v898, %v979
      %v981 = vpop.f32.mrb[0].mxu0
      %v982 = vpop.f32.mrb[0].mxu0
      %v983 = vpop.f32.mrb[0].mxu0
      %984 = vdwg.mxu0
      %v985 = vld [vmem:[%s11] sm:$0xff]
      %v986 = vmul.f32 %v707, %v707
      %v987 = vmul.f32 %v708, %v708
      %v989 = vsel %vm622, %v985, 0
      %991 = vmatprep.subr.mxu0 0.0
      %992 = vmatpush1.msra.mxu0 %v986
      %993 = vmatprep.subr.mxu0 0.0
      %994 = vmatpush1.msra.mxu0 %v987
      %995 = vmatprep.subr.mxu0 0.0
      %996 = vmatpush1.msra.mxu0 0.0
      %997 = vmatprep.subr.mxu0 0.0
      %998 = vmatpush1.msra.mxu0 0.0
      %999 = vmatprep.subr.mxu0 0.0
      %1000 = vmatpush1.msra.mxu0 0.0
      %1001 = vmatprep.subr.mxu0 0.0
      %1002 = vmatpush1.msra.mxu0 0.0
      %1003 = vmatprep.subr.mxu0 0.0
      %1004 = vmatpush1.msra.mxu0 0.0
      %1005 = vmatprep.subr.mxu0 0.0
      %1006 = vmatpush1.msra.mxu0 0.0
      %1007 = vmatprep.subr.mxu0 0.0
      %1008 = vmatpush1.msra.mxu0 0.0
      %1009 = vmatprep.subr.mxu0 0.0
      %1010 = vmatpush1.msra.mxu0 0.0
      %1011 = vmatprep.subr.mxu0 0.0
      %1012 = vmatpush1.msra.mxu0 0.0
      %1013 = vmatprep.subr.mxu0 0.0
      %1014 = vmatpush1.msra.mxu0 0.0
      %1015 = vmatprep.subr.mxu0 0.0
      %1016 = vmatpush1.msra.mxu0 0.0
      %1017 = vmatprep.subr.mxu0 0.0
      %1018 = vmatpush1.msra.mxu0 0.0
      %1019 = vmatprep.subr.mxu0 0.0
      %1020 = vmatpush1.msra.mxu0 0.0
      %1021 = vmatprep.subr.mxu0 0.0
      %1022 = vmatpush1.msra.mxu0 0.0
      %1023 = vmatprep.subr.mxu0 0.0
      %1024 = vmatpush1.msra.mxu0 0.0
      %1025 = vmatprep.subr.mxu0 0.0
      %1026 = vmatpush1.msra.mxu0 0.0
      %1027 = vmatprep.subr.mxu0 0.0
      %1028 = vmatpush1.msra.mxu0 0.0
      %1029 = vmatprep.subr.mxu0 0.0
      %1030 = vmatpush1.msra.mxu0 0.0
      %1031 = vmatprep.subr.mxu0 0.0
      %1032 = vmatpush1.msra.mxu0 0.0
      %1033 = vmatprep.subr.mxu0 0.0
      %1034 = vmatpush1.msra.mxu0 0.0
      %1035 = vmatprep.subr.mxu0 0.0
      %1036 = vmatpush1.msra.mxu0 0.0
      %1037 = vmatprep.subr.mxu0 0.0
      %1038 = vmatpush1.msra.mxu0 0.0
      %1039 = vmatprep.subr.mxu0 0.0
      %1040 = vmatpush1.msra.mxu0 0.0
      %1041 = vmatprep.subr.mxu0 0.0
      %1042 = vmatpush1.msra.mxu0 0.0
      %1043 = vmatprep.subr.mxu0 0.0
      %1044 = vmatpush1.msra.mxu0 0.0
      %1045 = vmatprep.subr.mxu0 0.0
      %1046 = vmatpush1.msra.mxu0 0.0
      %1047 = vmatprep.subr.mxu0 0.0
      %1048 = vmatpush1.msra.mxu0 0.0
      %1049 = vmatprep.subr.mxu0 0.0
      %1050 = vmatpush1.msra.mxu0 0.0
      %1051 = vmatprep.subr.mxu0 0.0
      %1052 = vmatpush1.msra.mxu0 0.0
      %1053 = vmatprep.subr.mxu0 0.0
      %1054 = vmatpush1.msra.mxu0 0.0
      %1055 = vmatprep.mubr.f32.mxu0 0.0
      %1056 = vmatmul.mubr.f32.gmra.mrb[0].mxu0 %v989
      %v1057 = vpop.f32.mrb[0].mxu0
      %v1058 = vadd.f32 1e-06, %v1057
      %v1059 = vpop.f32.mrb[0].mxu0
      %1060 = vdwg.mxu0
      %v1061 = vrsqrt.pop %v1058
      %1063 = vset.pattern.permute.xlu0 0
      %1064 = vperm.xlu0 %1063, %v1061
      %v1065 = vpop.permute.xlu0 %1064
      %v1067 = vmul.f32 %v980, %v1065
      %vm1068 = vcmp.ge.f32.partialorder %v1067, 0.0
      %v1069 = vmul.f32 %v1067, 0.2
      %v1070 = vsel %vm1068, %v1067, %v1069
      %v1071 = vld [vmem:[%s12] sm:$0xff]
      %v1072 = vmul.f32 %v1071, %v684
      %v1073 = vsel %vm622, %v1072, 0.0
      %1074 = vadd.xlane.f32.xlu0 %v1073
      %v1075 = vpop.xlane.xlu0 %1074
      %v1076 = vld [vmem:[%s13] sm:$0xff]
      %v1077 = vadd.f32 %v1075, %v1076
      %v1078 = vld [vmem:[#allocation4] sm:$0x1]
      %v1080 = vlaneseq
      %v1081 = vshrl.u32 %v1080, 7
      %v1082 = vsub.s32 0, %v1081
      %v1083 = vrot.slane %v1078, %v1082
      %v1085 = vmul.f32 %v1083, %v1077
      %v1086 = vadd.f32 %v1085, 1.0
      %1088 = vset.pattern.permute.xlu0 0
      %1089 = vperm.xlu0 %1088, %v1086
      %v1090 = vpop.permute.xlu0 %1089
      %v1092 = vmul.f32 %v1070, %v1090
      %v1093 = vld [vmem:[%s15] sm:$0x3]
      %v1094 = vld [vmem:[%s16] sm:$0xf]
      %1095 = vrot.lane.b32.xlu0 %v1092, 64
      %v1096 = vpop.permute.xlu0 %1095
      %v1097 = vsel %vm723, %v1096, %v1092
      %1098 = vrot.lane.b32.xlu0 %v1097, 64
      %v1099 = vpop.permute.xlu0 %1098
      %v1100 = vsel %vm723, %v1099, %v1092
      %v1101 = vmul.f32 %v1100, %v742
      %v1102 = vmul.f32 %v1100, %v752
      %v1103 = vmul.f32 %v1100, %v762
      %v1104 = vmul.f32 %v1100, %v772
      %v1105 = vmul.f32 %v1092, %v779
      %v1106 = vmul.f32 %v1100, %v788
      %v1107 = vmul.f32 %v1100, %v798
      %v1108 = vmul.f32 %v1100, %v808
      %v1109 = vmul.f32 %v1100, %v818
      %1111 = vrot.lane.b32.xlu0 %v1102, 127
      %v1112 = vpop.permute.xlu0 %1111
      %1115 = vrot.lane.b32.xlu0 %v1103, 126
      %v1116 = vpop.permute.xlu0 %1115
      %1119 = vrot.lane.b32.xlu0 %v1104, 120
      %v1120 = vpop.permute.xlu0 %1119
      %1123 = vrot.lane.b32.xlu0 %v1105, 55
      %v1124 = vpop.permute.xlu0 %1123
      %1127 = vrot.lane.b32.xlu0 %v1106, 54
      %v1128 = vpop.permute.xlu0 %1127
      %1131 = vrot.lane.b32.xlu0 %v1107, 48
      %v1132 = vpop.permute.xlu0 %1131
      %1135 = vrot.lane.b32.xlu0 %v1108, 47
      %v1136 = vpop.permute.xlu0 %1135
      %1139 = vrot.lane.b32.xlu0 %v1109, 46
      %v1140 = vpop.permute.xlu0 %1139
      %v1142 = vpack.c.bf16 %v1112, %v1101
      %v1143 = vpack.c.bf16 %v1120, %v1116
      %v1144 = vpack.c.bf16 %v1128, %v1124
      %v1145 = vpack.c.bf16 %v1136, %v1132
      %v1146 = vpack.c.bf16 %v1140, %v1140
      %1148 = vset.pattern.permute.xlu0 0
      %1149 = vperm.xlu0 %1148, %v1094
      %v1150 = vpop.permute.xlu0 %1149
      %1157 = vrot.lane.b32.xlu0 %v1142, 73
      %v1158 = vpop.permute.xlu0 %1157
      %1159 = vrot.lane.b32.xlu0 %v1143, 73
      %v1160 = vpop.permute.xlu0 %1159
      %1161 = vrot.lane.b32.xlu0 %v1144, 73
      %v1162 = vpop.permute.xlu0 %1161
      %1163 = vrot.lane.b32.xlu0 %v1145, 73
      %v1164 = vpop.permute.xlu0 %1163
      %1165 = vrot.lane.b32.xlu0 %v1146, 73
      %v1166 = vpop.permute.xlu0 %1165
      %vm1171 = vcmask 588800
      %v1173 = vsel %vm1171, %v1093, 0
      %vm1175 = vcmask 1043456
      %v1177 = vsel %vm1175, %v1166, 0
      %1179 = vmatprep.subr.bf16.mxu0 0
      %1180 = vmatpush1.bf16.msra.mxu0 %v1158
      %1181 = vmatprep.subr.bf16.mxu0 0
      %1182 = vmatpush1.bf16.msra.mxu0 %v1160
      %1183 = vmatprep.subr.bf16.mxu0 0
      %1184 = vmatpush1.bf16.msra.mxu0 %v1162
      %1185 = vmatprep.subr.bf16.mxu0 0
      %1186 = vmatpush1.bf16.msra.mxu0 %v1164
      %1187 = vmatprep.subr.bf16.mxu0 0
      %1188 = vmatpush1.bf16.msra.mxu0 %v1177
      %1189 = vmatprep.subr.bf16.mxu0 0
      %1190 = vmatpush1.bf16.msra.mxu0 0
      %1191 = vmatprep.subr.bf16.mxu0 0
      %1192 = vmatpush1.bf16.msra.mxu0 0
      %1193 = vmatprep.subr.bf16.mxu0 0
      %1194 = vmatpush1.bf16.msra.mxu0 0
      %1195 = vmatprep.subr.bf16.mxu0 0
      %1196 = vmatpush1.bf16.msra.mxu0 0
      %1197 = vmatprep.subr.bf16.mxu0 0
      %1198 = vmatpush1.bf16.msra.mxu0 0
      %1199 = vmatprep.subr.bf16.mxu0 0
      %1200 = vmatpush1.bf16.msra.mxu0 0
      %1201 = vmatprep.subr.bf16.mxu0 0
      %1202 = vmatpush1.bf16.msra.mxu0 0
      %1203 = vmatprep.subr.bf16.mxu0 0
      %1204 = vmatpush1.bf16.msra.mxu0 0
      %1205 = vmatprep.subr.bf16.mxu0 0
      %1206 = vmatpush1.bf16.msra.mxu0 0
      %1207 = vmatprep.subr.bf16.mxu0 0
      %1208 = vmatpush1.bf16.msra.mxu0 0
      %1209 = vmatprep.subr.bf16.mxu0 0
      %1210 = vmatpush1.bf16.msra.mxu0 0
      %1211 = vmatprep.mubr.bf16.mxu0 0
      %1212 = vmatmul.mubr.bf16.gmra.mrb[0].mxu0 %v1173
      %v1213 = vpop.f32.mrb[0].mxu0
      %v1214 = vadd.f32 %v1150, %v1213
      %v1215 = vpop.f32.mrb[0].mxu0
      %v1216 = vpop.f32.mrb[0].mxu0
      %v1217 = vpop.f32.mrb[0].mxu0
      %1218 = vdwg.mxu0
      %v1219 = vld [vmem:[%s17] sm:$0xf]
      %v1220 = vmul.f32 %v1086, %v1086
      %vm1221 = vcmask 64512
      %v1223 = vsel %vm1221, %v1219, 0
      %1225 = vmatprep.subr.mxu0 0.0
      %1226 = vmatpush1.msra.mxu0 %v1220
      %1227 = vmatprep.subr.mxu0 0.0
      %1228 = vmatpush1.msra.mxu0 0.0
      %1229 = vmatprep.subr.mxu0 0.0
      %1230 = vmatpush1.msra.mxu0 0.0
      %1231 = vmatprep.subr.mxu0 0.0
      %1232 = vmatpush1.msra.mxu0 0.0
      %1233 = vmatprep.subr.mxu0 0.0
      %1234 = vmatpush1.msra.mxu0 0.0
      %1235 = vmatprep.subr.mxu0 0.0
      %1236 = vmatpush1.msra.mxu0 0.0
      %1237 = vmatprep.subr.mxu0 0.0
      %1238 = vmatpush1.msra.mxu0 0.0
      %1239 = vmatprep.subr.mxu0 0.0
      %1240 = vmatpush1.msra.mxu0 0.0
      %1241 = vmatprep.subr.mxu0 0.0
      %1242 = vmatpush1.msra.mxu0 0.0
      %1243 = vmatprep.subr.mxu0 0.0
      %1244 = vmatpush1.msra.mxu0 0.0
      %1245 = vmatprep.subr.mxu0 0.0
      %1246 = vmatpush1.msra.mxu0 0.0
      %1247 = vmatprep.subr.mxu0 0.0
      %1248 = vmatpush1.msra.mxu0 0.0
      %1249 = vmatprep.subr.mxu0 0.0
      %1250 = vmatpush1.msra.mxu0 0.0
      %1251 = vmatprep.subr.mxu0 0.0
      %1252 = vmatpush1.msra.mxu0 0.0
      %1253 = vmatprep.subr.mxu0 0.0
      %1254 = vmatpush1.msra.mxu0 0.0
      %1255 = vmatprep.subr.mxu0 0.0
      %1256 = vmatpush1.msra.mxu0 0.0
      %1257 = vmatprep.subr.mxu0 0.0
      %1258 = vmatpush1.msra.mxu0 0.0
      %1259 = vmatprep.subr.mxu0 0.0
      %1260 = vmatpush1.msra.mxu0 0.0
      %1261 = vmatprep.subr.mxu0 0.0
      %1262 = vmatpush1.msra.mxu0 0.0
      %1263 = vmatprep.subr.mxu0 0.0
      %1264 = vmatpush1.msra.mxu0 0.0
      %1265 = vmatprep.subr.mxu0 0.0
      %1266 = vmatpush1.msra.mxu0 0.0
      %1267 = vmatprep.subr.mxu0 0.0
      %1268 = vmatpush1.msra.mxu0 0.0
      %1269 = vmatprep.subr.mxu0 0.0
      %1270 = vmatpush1.msra.mxu0 0.0
      %1271 = vmatprep.subr.mxu0 0.0
      %1272 = vmatpush1.msra.mxu0 0.0
      %1273 = vmatprep.subr.mxu0 0.0
      %1274 = vmatpush1.msra.mxu0 0.0
      %1275 = vmatprep.subr.mxu0 0.0
      %1276 = vmatpush1.msra.mxu0 0.0
      %1277 = vmatprep.subr.mxu0 0.0
      %1278 = vmatpush1.msra.mxu0 0.0
      %1279 = vmatprep.subr.mxu0 0.0
      %1280 = vmatpush1.msra.mxu0 0.0
      %1281 = vmatprep.subr.mxu0 0.0
      %1282 = vmatpush1.msra.mxu0 0.0
      %1283 = vmatprep.subr.mxu0 0.0
      %1284 = vmatpush1.msra.mxu0 0.0
      %1285 = vmatprep.subr.mxu0 0.0
      %1286 = vmatpush1.msra.mxu0 0.0
      %1287 = vmatprep.subr.mxu0 0.0
      %1288 = vmatpush1.msra.mxu0 0.0
      %1289 = vmatprep.mubr.f32.mxu0 0.0
      %1290 = vmatmul.mubr.f32.gmra.mrb[0].mxu0 %v1223
      %v1291 = vpop.f32.mrb[0].mxu0
      %v1292 = vadd.f32 1e-06, %v1291
      %v1293 = vpop.f32.mrb[0].mxu0
      %1294 = vdwg.mxu0
      %v1295 = vrsqrt.pop %v1292
      %1297 = vset.pattern.permute.xlu0 0
      %1298 = vperm.xlu0 %1297, %v1295
      %v1299 = vpop.permute.xlu0 %1298
      %v1301 = vmul.f32 %v1214, %v1299
      %vm1302 = vcmp.ge.f32.partialorder %v1301, 0.0
      %v1303 = vmul.f32 %v1301, 0.2
      %v1304 = vsel %vm1302, %v1301, %v1303
      %vm1305 = vcmask 519168
      %1306 = vst.msk [vmem:[%s607] sm:$0xf] %vm1305, %v1304
      %p1307 = scmp.lt.s32.totalorder %s35, 1
      %s1308 = scalar_select %p1307, %s35, 1
      %s1309 = smul.addr %s1308, 4
      %s1310 = scalar_lea.vmem %s18, %s1309
      // Predicated region
      $region93: #{modnet_star_forward.6} parent=91 // pred_check
        %p1311 = pneg %p446
      $region94: #{modnet_star_forward.6} parent=91 // pred_check_branch
        %1313 = sbr.rel (%p1311) target = $region96
      $region95: #{modnet_star_forward.6} parent=91 // pred_region
        _
      $region96: #{modnet_star_forward.6} parent=91 // pred_fallthru
        _
    $region92: #{modnet_star_forward.6} parent=5 // pred_fallthru
      _
    %p1314 = scmp.le.s32.totalorder 2, %s30
    // Predicated region
    $region97: #{modnet_star_forward.6} parent=5 // pred_check
      %p1315 = pneg %p1314
    $region98: #{modnet_star_forward.6} parent=5 // pred_check_branch
      %1317 = sbr.rel (%p1315) target = $region100
    $region99: #{modnet_star_forward.6} parent=5 // pred_region
      %s1318 = ssub.s32 %s30, 2
      // Predicated region
      $region101: #{modnet_star_forward.6} parent=99 // pred_check
        %p1319 = pneg %p452
      $region102: #{modnet_star_forward.6} parent=99 // pred_check_branch
        %1321 = sbr.rel (%p1319) target = $region104
      $region103: #{modnet_star_forward.6} parent=99 // pred_region
        %p1322 = scmp.lt.s32.totalorder %s36, 1
        %s1323 = scalar_select %p1322, %s36, 1
        %s1324 = smul.addr %s1323, 4
        %s1325 = scalar_lea.vmem %s18, %s1324
      $region104: #{modnet_star_forward.6} parent=99 // pred_fallthru
        _
    $region100: #{modnet_star_forward.6} parent=5 // pred_fallthru
      _
  $region6: #{modnet_star_forward.6} parent=0 // loop_footer
    %s34 = sadd.s32 1, %s30
  $region7: #{modnet_star_forward.6} parent=0 // loop_footer_branch
    %29 = sbr.rel target = $region3
  $region8: #{modnet_star_forward.6} parent=0 // loop_exit
    _

// kernel: modnet_star_forward.7
$region0: #{modnet_star_forward.7}
  #allocation0 [shape = 'u32[]', space=smem, size = 0x4, offset = 0x4, fixed_abs, tag = 'smem constant byte address 0x4 - core index']
  #allocation1 [shape = 'u32[144,128]{1,0:T(1,128)}', space=vmem, size = 0x12000, scoped, tag = 'internal scratch']
  #allocation2 [shape = 'f32[1,1]{1,0:T(1,128)S(1)}', space=vmem, size = 0x200, scoped, tag = 'scoped memory for modnet_star_forward.7']
  #allocation3 [shape = 'f32[1,1]{1,0:T(1,128)S(1)}', space=vmem, size = 0x200, scoped, tag = 'scoped memory for modnet_star_forward.7']
  #allocation4 [shape = 'f32[1,1]{1,0:T(1,128)S(1)}', space=vmem, size = 0x200, scoped, tag = 'scoped memory for modnet_star_forward.7']
  %s0 = inlined_call_operand.vmem [shape: f32[2,4,64], index: 0, kind: input, shape index: {}]
  %s1 = inlined_call_operand.vmem [shape: f32[2,4,256], index: 1, kind: input, shape index: {}]
  %s2 = inlined_call_operand.vmem [shape: f32[2,1,16], index: 2, kind: input, shape index: {}]
  %s3 = inlined_call_operand.vmem [shape: bf16[64,256], index: 3, kind: input, shape index: {}]
  %s4 = inlined_call_operand.<no memory space> [shape: f32[1,1], index: 4, kind: input, shape index: {}]
  %s5 = inlined_call_operand.vmem [shape: f32[9,256], index: 5, kind: input, shape index: {}]
  %s6 = inlined_call_operand.vmem [shape: f32[8,16], index: 6, kind: input, shape index: {}]
  %s7 = inlined_call_operand.vmem [shape: f32[8,1], index: 7, kind: input, shape index: {}]
  %s8 = inlined_call_operand.<no memory space> [shape: f32[1,1], index: 8, kind: input, shape index: {}]
  %s9 = inlined_call_operand.vmem [shape: bf16[4,72], index: 9, kind: input, shape index: {}]
  %s10 = inlined_call_operand.vmem [shape: f32[4,1], index: 10, kind: input, shape index: {}]
  %s11 = inlined_call_operand.vmem [shape: f32[4,8], index: 11, kind: input, shape index: {}]
  %s12 = inlined_call_operand.vmem [shape: f32[4,16], index: 12, kind: input, shape index: {}]
  %s13 = inlined_call_operand.vmem [shape: f32[4,1], index: 13, kind: input, shape index: {}]
  %s14 = inlined_call_operand.<no memory space> [shape: f32[1,1], index: 14, kind: input, shape index: {}]
  %s15 = inlined_call_operand.vmem [shape: bf16[4,36], index: 15, kind: input, shape index: {}]
  %s16 = inlined_call_operand.vmem [shape: f32[4,1], index: 16, kind: input, shape index: {}]
  %s17 = inlined_call_operand.vmem [shape: f32[4,4], index: 17, kind: input, shape index: {}]
  %s18 = inlined_call_operand.vmem [shape: bf16[3,4], index: 18, kind: input, shape index: {}]
  %s19 = inlined_call_operand.vmem [shape: f32[3,1], index: 19, kind: input, shape index: {}]
  %s20 = inlined_call_operand.vmem [shape: f32[2,3,256], index: 20, kind: output, shape index: {}]
  %s21 = sld [smem:[#allocation0]]
  $region113: #{modnet_star_forward.7} parent=0
    _
  %s23 = ssub.s32 1, %s21
  %s24 = scalar_select 0, %s23, %s21
  %v25 = vstv %s4
  %26 = vst [vmem:[#allocation2] sm:$0x1] %v25
  %v27 = vstv %s8
  %28 = vst [vmem:[#allocation3] sm:$0x1] %v27
  %v29 = vstv %s14
  %30 = vst [vmem:[#allocation4] sm:$0x1] %v29
  loop: start=0, step=1, limit=4
  $region2: #{modnet_star_forward.7} parent=0 // loop_pre_header
    _
  $region3: #{modnet_star_forward.7} parent=0 // loop_header
    %s32 = sphi 0, %s36
    %p33 = scmp.ge.s32.totalorder %s32, 4
    %s42 = sphi 0, %s44
    %s45 = sphi 0, %s42
    %s46 = sphi 0, %s45
    %s62 = sphi 0, %s46
    %s68 = sphi 0, %s70
    %s71 = sphi 0, %s68
    %s72 = sphi 0, %s71
    %s88 = sphi 0, %s72
    %s94 = sphi 0, %s96
    %s97 = sphi 0, %s94
    %s98 = sphi 0, %s97
    %s114 = sphi 0, %s98
    %s118 = sphi 0, %s118
    %s120 = sphi 0, %s118
    %s121 = sphi 0, %s120
    %s135 = sphi 0, %s121
    %s139 = sphi 0, %s139
    %s141 = sphi 0, %s139
    %s142 = sphi 0, %s141
    %s156 = sphi 0, %s142
    %s160 = sphi 0, %s160
    %s162 = sphi 0, %s160
    %s163 = sphi 0, %s162
    %s177 = sphi 0, %s163
    %s181 = sphi 0, %s181
    %s183 = sphi 0, %s181
    %s184 = sphi 0, %s183
    %s198 = sphi 0, %s184
    %s202 = sphi 0, %s202
    %s204 = sphi 0, %s202
    %s205 = sphi 0, %s204
    %s219 = sphi 0, %s205
    %s223 = sphi 0, %s223
    %s225 = sphi 0, %s223
    %s226 = sphi 0, %s225
    %s240 = sphi 0, %s226
    %s244 = sphi 0, %s244
    %s246 = sphi 0, %s244
    %s247 = sphi 0, %s246
    %s261 = sphi 0, %s247
    %s265 = sphi 0, %s265
    %s267 = sphi 0, %s265
    %s268 = sphi 0, %s267
    %s282 = sphi 0, %s268
    %s286 = sphi 0, %s286
    %s288 = sphi 0, %s286
    %s289 = sphi 0, %s288
    %s303 = sphi 0, %s289
    %s307 = sphi 0, %s307
    %s309 = sphi 0, %s307
    %s310 = sphi 0, %s309
    %s324 = sphi 0, %s310
    %s328 = sphi 0, %s328
    %s330 = sphi 0, %s328
    %s331 = sphi 0, %s330
    %s345 = sphi 0, %s331
    %s349 = sphi 0, %s349
    %s351 = sphi 0, %s349
    %s352 = sphi 0, %s351
    %s366 = sphi 0, %s352
    %s370 = sphi 0, %s370
    %s372 = sphi 0, %s370
    %s373 = sphi 0, %s372
    %s387 = sphi 0, %s373
    %s391 = sphi 0, %s391
    %s393 = sphi 0, %s391
    %s394 = sphi 0, %s393
    %s408 = sphi 0, %s394
    %s412 = sphi 0, %s412
    %s414 = sphi 0, %s412
    %s415 = sphi 0, %s414
    %s429 = sphi 0, %s415
    %s433 = sphi 0, %s433
    %s435 = sphi 0, %s433
    %s436 = sphi 0, %s435
    %s450 = sphi 0, %s436
    %s454 = sphi 0, %s454
    %s456 = sphi 0, %s454
    %s457 = sphi 0, %s456
    %s471 = sphi 0, %s457
    %s477 = sphi 0, %s479
    %s480 = sphi 0, %s477
    %s481 = sphi 0, %s480
    %s497 = sphi 0, %s481
  $region4: #{modnet_star_forward.7} parent=0 // loop_header_branch
    %35 = sbr.rel (%p33) target = $region8
  $region5: #{modnet_star_forward.7} parent=0 // loop_body
    %s37 = ssub.s32 %s32, 1
    %s38 = ssub.s32 %s32, 2
    %s39 = sadd.s32 %s32, 1
    %s40 = ssub.s32 %s32, %s39
    %p41 = scmp.eq.s32.totalorder %s40, 0
    %s43 = sadd.s32 %s42, 1
    %s44 = scalar_select %p41, %s42, %s43
    %p47 = pneg %p41
    %p48 = scmp.eq.s32.totalorder %s32, 1
    %p49 = por %p47, %p48
    %p50 = scmp.ne.s32.totalorder %s42, %s45
    %p51 = scmp.eq.s32.totalorder %s32, 0
    %p52 = por %p50, %p51
    %p53 = scmp.ne.s32.totalorder %s42, %s45
    %p54 = scmp.eq.s32.totalorder %s37, 1
    %p55 = por %p53, %p54
    %p56 = scmp.ne.s32.totalorder %s45, %s46
    %p57 = scmp.eq.s32.totalorder %s37, 0
    %p58 = por %p56, %p57
    %p59 = scmp.ne.s32.totalorder %s45, %s46
    %p60 = scmp.eq.s32.totalorder %s38, 1
    %p61 = por %p59, %p60
    %p63 = scmp.ne.s32.totalorder %s46, %s62
    %p64 = scmp.eq.s32.totalorder %s38, 0
    %p65 = por %p63, %p64
    %s66 = ssub.s32 %s32, %s39
    %p67 = scmp.eq.s32.totalorder %s66, 0
    %s69 = sadd.s32 %s68, 1
    %s70 = scalar_select %p67, %s68, %s69
    %p73 = pneg %p67
    %p74 = scmp.eq.s32.totalorder %s32, 1
    %p75 = por %p73, %p74
    %p76 = scmp.ne.s32.totalorder %s68, %s71
    %p77 = scmp.eq.s32.totalorder %s32, 0
    %p78 = por %p76, %p77
    %p79 = scmp.ne.s32.totalorder %s68, %s71
    %p80 = scmp.eq.s32.totalorder %s37, 1
    %p81 = por %p79, %p80
    %p82 = scmp.ne.s32.totalorder %s71, %s72
    %p83 = scmp.eq.s32.totalorder %s37, 0
    %p84 = por %p82, %p83
    %p85 = scmp.ne.s32.totalorder %s71, %s72
    %p86 = scmp.eq.s32.totalorder %s38, 1
    %p87 = por %p85, %p86
    %p89 = scmp.ne.s32.totalorder %s72, %s88
    %p90 = scmp.eq.s32.totalorder %s38, 0
    %p91 = por %p89, %p90
    %s92 = ssub.s32 %s32, %s39
    %p93 = scmp.eq.s32.totalorder %s92, 0
    %s95 = sadd.s32 %s94, 1
    %s96 = scalar_select %p93, %s94, %s95
    %p99 = pneg %p93
    %p100 = scmp.eq.s32.totalorder %s32, 1
    %p101 = por %p99, %p100
    %p102 = scmp.ne.s32.totalorder %s94, %s97
    %p103 = scmp.eq.s32.totalorder %s32, 0
    %p104 = por %p102, %p103
    %p105 = scmp.ne.s32.totalorder %s94, %s97
    %p106 = scmp.eq.s32.totalorder %s37, 1
    %p107 = por %p105, %p106
    %p108 = scmp.ne.s32.totalorder %s97, %s98
    %p109 = scmp.eq.s32.totalorder %s37, 0
    %p110 = por %p108, %p109
    %p111 = scmp.ne.s32.totalorder %s97, %s98
    %p112 = scmp.eq.s32.totalorder %s38, 1
    %p113 = por %p111, %p112
    %p115 = scmp.ne.s32.totalorder %s98, %s114
    %p116 = scmp.eq.s32.totalorder %s38, 0
    %p117 = por %p115, %p116
    %s119 = sadd.s32 %s118, 1
    %p122 = scmp.eq.s32.totalorder %s32, 1
    %p123 = scmp.ne.s32.totalorder %s118, %s120
    %p124 = scmp.eq.s32.totalorder %s32, 0
    %p125 = por %p123, %p124
    %p126 = scmp.ne.s32.totalorder %s118, %s120
    %p127 = scmp.eq.s32.totalorder %s37, 1
    %p128 = por %p126, %p127
    %p129 = scmp.ne.s32.totalorder %s120, %s121
    %p130 = scmp.eq.s32.totalorder %s37, 0
    %p131 = por %p129, %p130
    %p132 = scmp.ne.s32.totalorder %s120, %s121
    %p133 = scmp.eq.s32.totalorder %s38, 1
    %p134 = por %p132, %p133
    %p136 = scmp.ne.s32.totalorder %s121, %s135
    %p137 = scmp.eq.s32.totalorder %s38, 0
    %p138 = por %p136, %p137
    %s140 = sadd.s32 %s139, 1
    %p143 = scmp.eq.s32.totalorder %s32, 1
    %p144 = scmp.ne.s32.totalorder %s139, %s141
    %p145 = scmp.eq.s32.totalorder %s32, 0
    %p146 = por %p144, %p145
    %p147 = scmp.ne.s32.totalorder %s139, %s141
    %p148 = scmp.eq.s32.totalorder %s37, 1
    %p149 = por %p147, %p148
    %p150 = scmp.ne.s32.totalorder %s141, %s142
    %p151 = scmp.eq.s32.totalorder %s37, 0
    %p152 = por %p150, %p151
    %p153 = scmp.ne.s32.totalorder %s141, %s142
    %p154 = scmp.eq.s32.totalorder %s38, 1
    %p155 = por %p153, %p154
    %p157 = scmp.ne.s32.totalorder %s142, %s156
    %p158 = scmp.eq.s32.totalorder %s38, 0
    %p159 = por %p157, %p158
    %s161 = sadd.s32 %s160, 1
    %p164 = scmp.eq.s32.totalorder %s32, 1
    %p165 = scmp.ne.s32.totalorder %s160, %s162
    %p166 = scmp.eq.s32.totalorder %s32, 0
    %p167 = por %p165, %p166
    %p168 = scmp.ne.s32.totalorder %s160, %s162
    %p169 = scmp.eq.s32.totalorder %s37, 1
    %p170 = por %p168, %p169
    %p171 = scmp.ne.s32.totalorder %s162, %s163
    %p172 = scmp.eq.s32.totalorder %s37, 0
    %p173 = por %p171, %p172
    %p174 = scmp.ne.s32.totalorder %s162, %s163
    %p175 = scmp.eq.s32.totalorder %s38, 1
    %p176 = por %p174, %p175
    %p178 = scmp.ne.s32.totalorder %s163, %s177
    %p179 = scmp.eq.s32.totalorder %s38, 0
    %p180 = por %p178, %p179
    %s182 = sadd.s32 %s181, 1
    %p185 = scmp.eq.s32.totalorder %s32, 1
    %p186 = scmp.ne.s32.totalorder %s181, %s183
    %p187 = scmp.eq.s32.totalorder %s32, 0
    %p188 = por %p186, %p187
    %p189 = scmp.ne.s32.totalorder %s181, %s183
    %p190 = scmp.eq.s32.totalorder %s37, 1
    %p191 = por %p189, %p190
    %p192 = scmp.ne.s32.totalorder %s183, %s184
    %p193 = scmp.eq.s32.totalorder %s37, 0
    %p194 = por %p192, %p193
    %p195 = scmp.ne.s32.totalorder %s183, %s184
    %p196 = scmp.eq.s32.totalorder %s38, 1
    %p197 = por %p195, %p196
    %p199 = scmp.ne.s32.totalorder %s184, %s198
    %p200 = scmp.eq.s32.totalorder %s38, 0
    %p201 = por %p199, %p200
    %s203 = sadd.s32 %s202, 1
    %p206 = scmp.eq.s32.totalorder %s32, 1
    %p207 = scmp.ne.s32.totalorder %s202, %s204
    %p208 = scmp.eq.s32.totalorder %s32, 0
    %p209 = por %p207, %p208
    %p210 = scmp.ne.s32.totalorder %s202, %s204
    %p211 = scmp.eq.s32.totalorder %s37, 1
    %p212 = por %p210, %p211
    %p213 = scmp.ne.s32.totalorder %s204, %s205
    %p214 = scmp.eq.s32.totalorder %s37, 0
    %p215 = por %p213, %p214
    %p216 = scmp.ne.s32.totalorder %s204, %s205
    %p217 = scmp.eq.s32.totalorder %s38, 1
    %p218 = por %p216, %p217
    %p220 = scmp.ne.s32.totalorder %s205, %s219
    %p221 = scmp.eq.s32.totalorder %s38, 0
    %p222 = por %p220, %p221
    %s224 = sadd.s32 %s223, 1
    %p227 = scmp.eq.s32.totalorder %s32, 1
    %p228 = scmp.ne.s32.totalorder %s223, %s225
    %p229 = scmp.eq.s32.totalorder %s32, 0
    %p230 = por %p228, %p229
    %p231 = scmp.ne.s32.totalorder %s223, %s225
    %p232 = scmp.eq.s32.totalorder %s37, 1
    %p233 = por %p231, %p232
    %p234 = scmp.ne.s32.totalorder %s225, %s226
    %p235 = scmp.eq.s32.totalorder %s37, 0
    %p236 = por %p234, %p235
    %p237 = scmp.ne.s32.totalorder %s225, %s226
    %p238 = scmp.eq.s32.totalorder %s38, 1
    %p239 = por %p237, %p238
    %p241 = scmp.ne.s32.totalorder %s226, %s240
    %p242 = scmp.eq.s32.totalorder %s38, 0
    %p243 = por %p241, %p242
    %s245 = sadd.s32 %s244, 1
    %p248 = scmp.eq.s32.totalorder %s32, 1
    %p249 = scmp.ne.s32.totalorder %s244, %s246
    %p250 = scmp.eq.s32.totalorder %s32, 0
    %p251 = por %p249, %p250
    %p252 = scmp.ne.s32.totalorder %s244, %s246
    %p253 = scmp.eq.s32.totalorder %s37, 1
    %p254 = por %p252, %p253
    %p255 = scmp.ne.s32.totalorder %s246, %s247
    %p256 = scmp.eq.s32.totalorder %s37, 0
    %p257 = por %p255, %p256
    %p258 = scmp.ne.s32.totalorder %s246, %s247
    %p259 = scmp.eq.s32.totalorder %s38, 1
    %p260 = por %p258, %p259
    %p262 = scmp.ne.s32.totalorder %s247, %s261
    %p263 = scmp.eq.s32.totalorder %s38, 0
    %p264 = por %p262, %p263
    %s266 = sadd.s32 %s265, 1
    %p269 = scmp.eq.s32.totalorder %s32, 1
    %p270 = scmp.ne.s32.totalorder %s265, %s267
    %p271 = scmp.eq.s32.totalorder %s32, 0
    %p272 = por %p270, %p271
    %p273 = scmp.ne.s32.totalorder %s265, %s267
    %p274 = scmp.eq.s32.totalorder %s37, 1
    %p275 = por %p273, %p274
    %p276 = scmp.ne.s32.totalorder %s267, %s268
    %p277 = scmp.eq.s32.totalorder %s37, 0
    %p278 = por %p276, %p277
    %p279 = scmp.ne.s32.totalorder %s267, %s268
    %p280 = scmp.eq.s32.totalorder %s38, 1
    %p281 = por %p279, %p280
    %p283 = scmp.ne.s32.totalorder %s268, %s282
    %p284 = scmp.eq.s32.totalorder %s38, 0
    %p285 = por %p283, %p284
    %s287 = sadd.s32 %s286, 1
    %p290 = scmp.eq.s32.totalorder %s32, 1
    %p291 = scmp.ne.s32.totalorder %s286, %s288
    %p292 = scmp.eq.s32.totalorder %s32, 0
    %p293 = por %p291, %p292
    %p294 = scmp.ne.s32.totalorder %s286, %s288
    %p295 = scmp.eq.s32.totalorder %s37, 1
    %p296 = por %p294, %p295
    %p297 = scmp.ne.s32.totalorder %s288, %s289
    %p298 = scmp.eq.s32.totalorder %s37, 0
    %p299 = por %p297, %p298
    %p300 = scmp.ne.s32.totalorder %s288, %s289
    %p301 = scmp.eq.s32.totalorder %s38, 1
    %p302 = por %p300, %p301
    %p304 = scmp.ne.s32.totalorder %s289, %s303
    %p305 = scmp.eq.s32.totalorder %s38, 0
    %p306 = por %p304, %p305
    %s308 = sadd.s32 %s307, 1
    %p311 = scmp.eq.s32.totalorder %s32, 1
    %p312 = scmp.ne.s32.totalorder %s307, %s309
    %p313 = scmp.eq.s32.totalorder %s32, 0
    %p314 = por %p312, %p313
    %p315 = scmp.ne.s32.totalorder %s307, %s309
    %p316 = scmp.eq.s32.totalorder %s37, 1
    %p317 = por %p315, %p316
    %p318 = scmp.ne.s32.totalorder %s309, %s310
    %p319 = scmp.eq.s32.totalorder %s37, 0
    %p320 = por %p318, %p319
    %p321 = scmp.ne.s32.totalorder %s309, %s310
    %p322 = scmp.eq.s32.totalorder %s38, 1
    %p323 = por %p321, %p322
    %p325 = scmp.ne.s32.totalorder %s310, %s324
    %p326 = scmp.eq.s32.totalorder %s38, 0
    %p327 = por %p325, %p326
    %s329 = sadd.s32 %s328, 1
    %p332 = scmp.eq.s32.totalorder %s32, 1
    %p333 = scmp.ne.s32.totalorder %s328, %s330
    %p334 = scmp.eq.s32.totalorder %s32, 0
    %p335 = por %p333, %p334
    %p336 = scmp.ne.s32.totalorder %s328, %s330
    %p337 = scmp.eq.s32.totalorder %s37, 1
    %p338 = por %p336, %p337
    %p339 = scmp.ne.s32.totalorder %s330, %s331
    %p340 = scmp.eq.s32.totalorder %s37, 0
    %p341 = por %p339, %p340
    %p342 = scmp.ne.s32.totalorder %s330, %s331
    %p343 = scmp.eq.s32.totalorder %s38, 1
    %p344 = por %p342, %p343
    %p346 = scmp.ne.s32.totalorder %s331, %s345
    %p347 = scmp.eq.s32.totalorder %s38, 0
    %p348 = por %p346, %p347
    %s350 = sadd.s32 %s349, 1
    %p353 = scmp.eq.s32.totalorder %s32, 1
    %p354 = scmp.ne.s32.totalorder %s349, %s351
    %p355 = scmp.eq.s32.totalorder %s32, 0
    %p356 = por %p354, %p355
    %p357 = scmp.ne.s32.totalorder %s349, %s351
    %p358 = scmp.eq.s32.totalorder %s37, 1
    %p359 = por %p357, %p358
    %p360 = scmp.ne.s32.totalorder %s351, %s352
    %p361 = scmp.eq.s32.totalorder %s37, 0
    %p362 = por %p360, %p361
    %p363 = scmp.ne.s32.totalorder %s351, %s352
    %p364 = scmp.eq.s32.totalorder %s38, 1
    %p365 = por %p363, %p364
    %p367 = scmp.ne.s32.totalorder %s352, %s366
    %p368 = scmp.eq.s32.totalorder %s38, 0
    %p369 = por %p367, %p368
    %s371 = sadd.s32 %s370, 1
    %p374 = scmp.eq.s32.totalorder %s32, 1
    %p375 = scmp.ne.s32.totalorder %s370, %s372
    %p376 = scmp.eq.s32.totalorder %s32, 0
    %p377 = por %p375, %p376
    %p378 = scmp.ne.s32.totalorder %s370, %s372
    %p379 = scmp.eq.s32.totalorder %s37, 1
    %p380 = por %p378, %p379
    %p381 = scmp.ne.s32.totalorder %s372, %s373
    %p382 = scmp.eq.s32.totalorder %s37, 0
    %p383 = por %p381, %p382
    %p384 = scmp.ne.s32.totalorder %s372, %s373
    %p385 = scmp.eq.s32.totalorder %s38, 1
    %p386 = por %p384, %p385
    %p388 = scmp.ne.s32.totalorder %s373, %s387
    %p389 = scmp.eq.s32.totalorder %s38, 0
    %p390 = por %p388, %p389
    %s392 = sadd.s32 %s391, 1
    %p395 = scmp.eq.s32.totalorder %s32, 1
    %p396 = scmp.ne.s32.totalorder %s391, %s393
    %p397 = scmp.eq.s32.totalorder %s32, 0
    %p398 = por %p396, %p397
    %p399 = scmp.ne.s32.totalorder %s391, %s393
    %p400 = scmp.eq.s32.totalorder %s37, 1
    %p401 = por %p399, %p400
    %p402 = scmp.ne.s32.totalorder %s393, %s394
    %p403 = scmp.eq.s32.totalorder %s37, 0
    %p404 = por %p402, %p403
    %p405 = scmp.ne.s32.totalorder %s393, %s394
    %p406 = scmp.eq.s32.totalorder %s38, 1
    %p407 = por %p405, %p406
    %p409 = scmp.ne.s32.totalorder %s394, %s408
    %p410 = scmp.eq.s32.totalorder %s38, 0
    %p411 = por %p409, %p410
    %s413 = sadd.s32 %s412, 1
    %p416 = scmp.eq.s32.totalorder %s32, 1
    %p417 = scmp.ne.s32.totalorder %s412, %s414
    %p418 = scmp.eq.s32.totalorder %s32, 0
    %p419 = por %p417, %p418
    %p420 = scmp.ne.s32.totalorder %s412, %s414
    %p421 = scmp.eq.s32.totalorder %s37, 1
    %p422 = por %p420, %p421
    %p423 = scmp.ne.s32.totalorder %s414, %s415
    %p424 = scmp.eq.s32.totalorder %s37, 0
    %p425 = por %p423, %p424
    %p426 = scmp.ne.s32.totalorder %s414, %s415
    %p427 = scmp.eq.s32.totalorder %s38, 1
    %p428 = por %p426, %p427
    %p430 = scmp.ne.s32.totalorder %s415, %s429
    %p431 = scmp.eq.s32.totalorder %s38, 0
    %p432 = por %p430, %p431
    %s434 = sadd.s32 %s433, 1
    %p437 = scmp.eq.s32.totalorder %s32, 1
    %p438 = scmp.ne.s32.totalorder %s433, %s435
    %p439 = scmp.eq.s32.totalorder %s32, 0
    %p440 = por %p438, %p439
    %p441 = scmp.ne.s32.totalorder %s433, %s435
    %p442 = scmp.eq.s32.totalorder %s37, 1
    %p443 = por %p441, %p442
    %p444 = scmp.ne.s32.totalorder %s435, %s436
    %p445 = scmp.eq.s32.totalorder %s37, 0
    %p446 = por %p444, %p445
    %p447 = scmp.ne.s32.totalorder %s435, %s436
    %p448 = scmp.eq.s32.totalorder %s38, 1
    %p449 = por %p447, %p448
    %p451 = scmp.ne.s32.totalorder %s436, %s450
    %p452 = scmp.eq.s32.totalorder %s38, 0
    %p453 = por %p451, %p452
    %s455 = sadd.s32 %s454, 1
    %p458 = scmp.eq.s32.totalorder %s32, 1
    %p459 = scmp.ne.s32.totalorder %s454, %s456
    %p460 = scmp.eq.s32.totalorder %s32, 0
    %p461 = por %p459, %p460
    %p462 = scmp.ne.s32.totalorder %s454, %s456
    %p463 = scmp.eq.s32.totalorder %s37, 1
    %p464 = por %p462, %p463
    %p465 = scmp.ne.s32.totalorder %s456, %s457
    %p466 = scmp.eq.s32.totalorder %s37, 0
    %p467 = por %p465, %p466
    %p468 = scmp.ne.s32.totalorder %s456, %s457
    %p469 = scmp.eq.s32.totalorder %s38, 1
    %p470 = por %p468, %p469
    %p472 = scmp.ne.s32.totalorder %s457, %s471
    %p473 = scmp.eq.s32.totalorder %s38, 0
    %p474 = por %p472, %p473
    %s475 = ssub.s32 %s32, %s39
    %p476 = scmp.eq.s32.totalorder %s475, 0
    %s478 = sadd.s32 %s477, 1
    %s479 = scalar_select %p476, %s477, %s478
    %p482 = pneg %p476
    %p483 = scmp.eq.s32.totalorder %s32, 1
    %p484 = por %p482, %p483
    %p485 = scmp.ne.s32.totalorder %s477, %s480
    %p486 = scmp.eq.s32.totalorder %s32, 0
    %p487 = por %p485, %p486
    %p488 = scmp.ne.s32.totalorder %s477, %s480
    %p489 = scmp.eq.s32.totalorder %s37, 1
    %p490 = por %p488, %p489
    %p491 = scmp.ne.s32.totalorder %s480, %s481
    %p492 = scmp.eq.s32.totalorder %s37, 0
    %p493 = por %p491, %p492
    %p494 = scmp.ne.s32.totalorder %s480, %s481
    %p495 = scmp.eq.s32.totalorder %s38, 1
    %p496 = por %p494, %p495
    %p498 = scmp.ne.s32.totalorder %s481, %s497
    %p499 = scmp.eq.s32.totalorder %s38, 0
    %p500 = por %p498, %p499
    %p501 = scmp.le.s32.totalorder 1, %s32
    %p502 = scmp.lt.s32.totalorder %s32, 3
    %p503 = pnand %p501, %p502
    %p504 = pneg %p503
    // Predicated region
    $region9: #{modnet_star_forward.7} parent=5 // pred_check
      _
    $region10: #{modnet_star_forward.7} parent=5 // pred_check_branch
      %506 = sbr.rel (%p503) target = $region12
    $region11: #{modnet_star_forward.7} parent=5 // pred_region
      %s507 = ssub.s32 %s32, 1
      // Predicated region
      $region13: #{modnet_star_forward.7} parent=11 // pred_check
        %p508 = pneg %p131
      $region14: #{modnet_star_forward.7} parent=11 // pred_check_branch
        %510 = sbr.rel (%p508) target = $region16
      $region15: #{modnet_star_forward.7} parent=11 // pred_region
        _
      $region16: #{modnet_star_forward.7} parent=11 // pred_fallthru
        _
      // Predicated region
      $region17: #{modnet_star_forward.7} parent=11 // pred_check
        %p511 = pneg %p152
      $region18: #{modnet_star_forward.7} parent=11 // pred_check_branch
        %513 = sbr.rel (%p511) target = $region20
      $region19: #{modnet_star_forward.7} parent=11 // pred_region
        _
      $region20: #{modnet_star_forward.7} parent=11 // pred_fallthru
        _
      // Predicated region
      $region21: #{modnet_star_forward.7} parent=11 // pred_check
        %p514 = pneg %p173
      $region22: #{modnet_star_forward.7} parent=11 // pred_check_branch
        %516 = sbr.rel (%p514) target = $region24
      $region23: #{modnet_star_forward.7} parent=11 // pred_region
        _
      $region24: #{modnet_star_forward.7} parent=11 // pred_fallthru
        _
      // Predicated region
      $region25: #{modnet_star_forward.7} parent=11 // pred_check
        %p517 = pneg %p194
      $region26: #{modnet_star_forward.7} parent=11 // pred_check_branch
        %519 = sbr.rel (%p517) target = $region28
      $region27: #{modnet_star_forward.7} parent=11 // pred_region
        _
      $region28: #{modnet_star_forward.7} parent=11 // pred_fallthru
        _
      // Predicated region
      $region29: #{modnet_star_forward.7} parent=11 // pred_check
        %p520 = pneg %p215
      $region30: #{modnet_star_forward.7} parent=11 // pred_check_branch
        %522 = sbr.rel (%p520) target = $region32
      $region31: #{modnet_star_forward.7} parent=11 // pred_region
        _
      $region32: #{modnet_star_forward.7} parent=11 // pred_fallthru
        _
      // Predicated region
      $region33: #{modnet_star_forward.7} parent=11 // pred_check
        %p523 = pneg %p236
      $region34: #{modnet_star_forward.7} parent=11 // pred_check_branch
        %525 = sbr.rel (%p523) target = $region36
      $region35: #{modnet_star_forward.7} parent=11 // pred_region
        _
      $region36: #{modnet_star_forward.7} parent=11 // pred_fallthru
        _
      // Predicated region
      $region37: #{modnet_star_forward.7} parent=11 // pred_check
        %p526 = pneg %p257
      $region38: #{modnet_star_forward.7} parent=11 // pred_check_branch
        %528 = sbr.rel (%p526) target = $region40
      $region39: #{modnet_star_forward.7} parent=11 // pred_region
        _
      $region40: #{modnet_star_forward.7} parent=11 // pred_fallthru
        _
      // Predicated region
      $region41: #{modnet_star_forward.7} parent=11 // pred_check
        %p529 = pneg %p278
      $region42: #{modnet_star_forward.7} parent=11 // pred_check_branch
        %531 = sbr.rel (%p529) target = $region44
      $region43: #{modnet_star_forward.7} parent=11 // pred_region
        _
      $region44: #{modnet_star_forward.7} parent=11 // pred_fallthru
        _
      // Predicated region
      $region45: #{modnet_star_forward.7} parent=11 // pred_check
        %p532 = pneg %p299
      $region46: #{modnet_star_forward.7} parent=11 // pred_check_branch
        %534 = sbr.rel (%p532) target = $region48
      $region47: #{modnet_star_forward.7} parent=11 // pred_region
        _
      $region48: #{modnet_star_forward.7} parent=11 // pred_fallthru
        _
      // Predicated region
      $region49: #{modnet_star_forward.7} parent=11 // pred_check
        %p535 = pneg %p320
      $region50: #{modnet_star_forward.7} parent=11 // pred_check_branch
        %537 = sbr.rel (%p535) target = $region52
      $region51: #{modnet_star_forward.7} parent=11 // pred_region
        _
      $region52: #{modnet_star_forward.7} parent=11 // pred_fallthru
        _
      // Predicated region
      $region53: #{modnet_star_forward.7} parent=11 // pred_check
        %p538 = pneg %p341
      $region54: #{modnet_star_forward.7} parent=11 // pred_check_branch
        %540 = sbr.rel (%p538) target = $region56
      $region55: #{modnet_star_forward.7} parent=11 // pred_region
        _
      $region56: #{modnet_star_forward.7} parent=11 // pred_fallthru
        _
      // Predicated region
      $region57: #{modnet_star_forward.7} parent=11 // pred_check
        %p541 = pneg %p362
      $region58: #{modnet_star_forward.7} parent=11 // pred_check_branch
        %543 = sbr.rel (%p541) target = $region60
      $region59: #{modnet_star_forward.7} parent=11 // pred_region
        _
      $region60: #{modnet_star_forward.7} parent=11 // pred_fallthru
        _
      // Predicated region
      $region61: #{modnet_star_forward.7} parent=11 // pred_check
        %p544 = pneg %p383
      $region62: #{modnet_star_forward.7} parent=11 // pred_check_branch
        %546 = sbr.rel (%p544) target = $region64
      $region63: #{modnet_star_forward.7} parent=11 // pred_region
        _
      $region64: #{modnet_star_forward.7} parent=11 // pred_fallthru
        _
      // Predicated region
      $region65: #{modnet_star_forward.7} parent=11 // pred_check
        %p547 = pneg %p404
      $region66: #{modnet_star_forward.7} parent=11 // pred_check_branch
        %549 = sbr.rel (%p547) target = $region68
      $region67: #{modnet_star_forward.7} parent=11 // pred_region
        _
      $region68: #{modnet_star_forward.7} parent=11 // pred_fallthru
        _
      // Predicated region
      $region69: #{modnet_star_forward.7} parent=11 // pred_check
        %p550 = pneg %p425
      $region70: #{modnet_star_forward.7} parent=11 // pred_check_branch
        %552 = sbr.rel (%p550) target = $region72
      $region71: #{modnet_star_forward.7} parent=11 // pred_region
        _
      $region72: #{modnet_star_forward.7} parent=11 // pred_fallthru
        _
      // Predicated region
      $region73: #{modnet_star_forward.7} parent=11 // pred_check
        %p553 = pneg %p446
      $region74: #{modnet_star_forward.7} parent=11 // pred_check_branch
        %555 = sbr.rel (%p553) target = $region76
      $region75: #{modnet_star_forward.7} parent=11 // pred_region
        _
      $region76: #{modnet_star_forward.7} parent=11 // pred_fallthru
        _
      // Predicated region
      $region77: #{modnet_star_forward.7} parent=11 // pred_check
        %p556 = pneg %p467
      $region78: #{modnet_star_forward.7} parent=11 // pred_check_branch
        %558 = sbr.rel (%p556) target = $region80
      $region79: #{modnet_star_forward.7} parent=11 // pred_region
        _
      $region80: #{modnet_star_forward.7} parent=11 // pred_fallthru
        _
    $region12: #{modnet_star_forward.7} parent=5 // pred_fallthru
      _
    %p559 = scmp.lt.s32.totalorder %s32, 2
    // Predicated region
    $region81: #{modnet_star_forward.7} parent=5 // pred_check
      %p560 = pneg %p559
    $region82: #{modnet_star_forward.7} parent=5 // pred_check_branch
      %562 = sbr.rel (%p560) target = $region84
    $region83: #{modnet_star_forward.7} parent=5 // pred_region
      // Predicated region
      $region85: #{modnet_star_forward.7} parent=83 // pred_check
        %p563 = pneg %p52
      $region86: #{modnet_star_forward.7} parent=83 // pred_check_branch
        %565 = sbr.rel (%p563) target = $region88
      $region87: #{modnet_star_forward.7} parent=83 // pred_region
        %p566 = scmp.lt.s32.totalorder %s32, 1
        %s567 = scalar_select %p566, %s32, 1
        %s568 = smul.addr %s567, 4
        %s569 = scalar_lea.vmem %s0, %s568
      $region88: #{modnet_star_forward.7} parent=83 // pred_fallthru
        _
      // Predicated region
      $region89: #{modnet_star_forward.7} parent=83 // pred_check
        %p570 = pneg %p78
      $region90: #{modnet_star_forward.7} parent=83 // pred_check_branch
        %572 = sbr.rel (%p570) target = $region92
      $region91: #{modnet_star_forward.7} parent=83 // pred_region
        %p573 = scmp.lt.s32.totalorder %s32, 1
        %s574 = scalar_select %p573, %s32, 1
        %s575 = smul.addr %s574, 2
        %s576 = smul.addr %s575, 4
        %s577 = scalar_lea.vmem %s1, %s576
      $region92: #{modnet_star_forward.7} parent=83 // pred_fallthru
        _
      // Predicated region
      $region93: #{modnet_star_forward.7} parent=83 // pred_check
        %p578 = pneg %p104
      $region94: #{modnet_star_forward.7} parent=83 // pred_check_branch
        %580 = sbr.rel (%p578) target = $region96
      $region95: #{modnet_star_forward.7} parent=83 // pred_region
        %p581 = scmp.lt.s32.totalorder %s32, 1
        %s582 = scalar_select %p581, %s32, 1
        %s583 = scalar_lea.vmem %s2, %s582
      $region96: #{modnet_star_forward.7} parent=83 // pred_fallthru
        _
    $region84: #{modnet_star_forward.7} parent=5 // pred_fallthru
      _
    %p584 = scmp.le.s32.totalorder 1, %s32
    %p585 = scmp.lt.s32.totalorder %s32, 3
    %p586 = pnand %p584, %p585
    %p587 = pneg %p586
    // Predicated region
    $region97: #{modnet_star_forward.7} parent=5 // pred_check
      _
    $region98: #{modnet_star_forward.7} parent=5 // pred_check_branch
      %589 = sbr.rel (%p586) target = $region100
    $region99: #{modnet_star_forward.7} parent=5 // pred_region
      %s590 = ssub.s32 %s32, 1
      %p591 = scmp.lt.s32.totalorder %s37, 1
      %s592 = scalar_select %p591, %s37, 1
      %s593 = smul.addr %s592, 4
      %s594 = scalar_lea.vmem %s0, %s593
      %p595 = pneg %p58
      %p596 = pneg %p55
      %p597 = scmp.lt.s32.totalorder %s37, 1
      %s598 = scalar_select %p597, %s37, 1
      %s599 = smul.addr %s598, 2
      %s600 = smul.addr %s599, 4
      %s601 = scalar_lea.vmem %s1, %s600
      %p602 = pneg %p84
      %p603 = pneg %p81
      %p604 = scmp.lt.s32.totalorder %s37, 1
      %s605 = scalar_select %p604, %s37, 1
      %s606 = scalar_lea.vmem %s2, %s605
      %p607 = pneg %p110
      %p608 = pneg %p107
      %p609 = pneg %p131
      %p610 = pneg %p128
      %p611 = pneg %p152
      %p612 = pneg %p149
      %p613 = pneg %p173
      %p614 = pneg %p170
      %p615 = pneg %p194
      %p616 = pneg %p191
      %p617 = pneg %p215
      %p618 = pneg %p212
      %p619 = pneg %p236
      %p620 = pneg %p233
      %p621 = pneg %p257
      %p622 = pneg %p254
      %p623 = pneg %p278
      %p624 = pneg %p275
      %p625 = pneg %p299
      %p626 = pneg %p296
      %p627 = pneg %p320
      %p628 = pneg %p317
      %p629 = pneg %p341
      %p630 = pneg %p338
      %p631 = pneg %p362
      %p632 = pneg %p359
      %p633 = pneg %p383
      %p634 = pneg %p380
      %p635 = pneg %p404
      %p636 = pneg %p401
      %p637 = pneg %p425
      %p638 = pneg %p422
      %p639 = pneg %p446
      %p640 = pneg %p443
      %p641 = pneg %p467
      %p642 = pneg %p464
      %p643 = pneg %p493
      %p644 = pneg %p490
      %p645 = scmp.lt.s32.totalorder %s37, 1
      %s646 = scalar_select %p645, %s37, 1
      %s647 = smul.addr %s646, 2
      %s648 = smul.addr %s647, 4
      %s649 = scalar_lea.vmem %s20, %s648
      %p650 = scmp.lt.s32.totalorder %s37, 1
      %s651 = scalar_select %p650, %s37, 1
      %s652 = smul.addr %s651, 4
      %s653 = scalar_lea.vmem %s0, %s652
      %p654 = scmp.lt.s32.totalorder %s37, 1
      %s655 = scalar_select %p654, %s37, 1
      %s656 = smul.addr %s655, 2
      %s657 = smul.addr %s656, 4
      %s658 = scalar_lea.vmem %s1, %s657
      %p659 = scmp.lt.s32.totalorder %s37, 1
      %s660 = scalar_select %p659, %s37, 1
      %s661 = scalar_lea.vmem %s2, %s660
      %p662 = scmp.lt.s32.totalorder %s37, 1
      %s663 = scalar_select %p662, %s37, 1
      %s664 = smul.addr %s663, 2
      %s665 = smul.addr %s664, 4
      %s666 = scalar_lea.vmem %s20, %s665
      %v668 = vld [vmem:[%s5] sm:$0xff]
      %v669 = vld [vmem:[%s5 + $0x8] sm:$0xff]
      %v670 = vld [vmem:[%s5 + $0x10] sm:$0x1]
      %v671 = vld [vmem:[%s5 + $0x18] sm:$0x1]
      %v672 = vld [vmem:[%s661] sm:$0x1]
      %v673 = vld [vmem:[%s653] sm:$0xf]
      %v674 = vpack.c.bf16 %v673, %v673
      %v675 = vld [vmem:[%s3] sm:$0xff]
      %v676 = vld [vmem:[%s3 + $0x8] sm:$0xff]
      %v677 = vld [vmem:[%s3 + $0x10] sm:$0xff]
      %v678 = vld [vmem:[%s3 + $0x18] sm:$0xff]
      %v679 = vld [vmem:[%s3 + $0x20] sm:$0xff]
      %v680 = vld [vmem:[%s3 + $0x28] sm:$0xff]
      %v681 = vld [vmem:[%s3 + $0x30] sm:$0xff]
      %v682 = vld [vmem:[%s3 + $0x38] sm:$0xff]
      %v691 = vunpack.c.l.b16 %v675
      %v692 = vunpack.c.h.b16 %v675
      %v693 = vunpack.c.l.b16 %v676
      %v694 = vunpack.c.h.b16 %v676
      %v695 = vunpack.c.l.b16 %v677
      %v696 = vunpack.c.h.b16 %v677
      %v697 = vunpack.c.l.b16 %v678
      %v698 = vunpack.c.h.b16 %v678
      %v699 = vunpack.c.l.b16 %v679
      %v700 = vunpack.c.h.b16 %v679
      %v701 = vunpack.c.l.b16 %v680
      %v702 = vunpack.c.h.b16 %v680
      %v703 = vunpack.c.l.b16 %v681
      %v704 = vunpack.c.h.b16 %v681
      %v705 = vunpack.c.l.b16 %v682
      %v706 = vunpack.c.h.b16 %v682
      %v707 = vpack.c.b16 %v693, %v691
      %v708 = vpack.c.b16 %v694, %v692
      %v709 = vpack.c.b16 %v697, %v695
      %v710 = vpack.c.b16 %v698, %v696
      %v711 = vpack.c.b16 %v701, %v699
      %v712 = vpack.c.b16 %v702, %v700
      %v713 = vpack.c.b16 %v705, %v703
      %v714 = vpack.c.b16 %v706, %v704
      %vm723 = vcmask 523264
      %v725 = vsel %vm723, %v674, 0
      %727 = vmatprep.subr.bf16.mxu0 %v708
      %728 = vmatpush1.bf16.msra.mxu0 %v707
      %729 = vmatprep.subr.bf16.mxu0 %v710
      %730 = vmatpush1.bf16.msra.mxu0 %v709
      %731 = vmatprep.subr.bf16.mxu0 %v712
      %732 = vmatpush1.bf16.msra.mxu0 %v711
      %733 = vmatprep.subr.bf16.mxu0 %v714
      %734 = vmatpush1.bf16.msra.mxu0 %v713
      %735 = vmatprep.subr.bf16.mxu0 0
      %736 = vmatpush1.bf16.msra.mxu0 0
      %737 = vmatprep.subr.bf16.mxu0 0
      %738 = vmatpush1.bf16.msra.mxu0 0
      %739 = vmatprep.subr.bf16.mxu0 0
      %740 = vmatpush1.bf16.msra.mxu0 0
      %741 = vmatprep.subr.bf16.mxu0 0
      %742 = vmatpush1.bf16.msra.mxu0 0
      %743 = vmatprep.subr.bf16.mxu0 0
      %744 = vmatpush1.bf16.msra.mxu0 0
      %745 = vmatprep.subr.bf16.mxu0 0
      %746 = vmatpush1.bf16.msra.mxu0 0
      %747 = vmatprep.subr.bf16.mxu0 0
      %748 = vmatpush1.bf16.msra.mxu0 0
      %749 = vmatprep.subr.bf16.mxu0 0
      %750 = vmatpush1.bf16.msra.mxu0 0
      %751 = vmatprep.subr.bf16.mxu0 0
      %752 = vmatpush1.bf16.msra.mxu0 0
      %753 = vmatprep.subr.bf16.mxu0 0
      %754 = vmatpush1.bf16.msra.mxu0 0
      %755 = vmatprep.subr.bf16.mxu0 0
      %756 = vmatpush1.bf16.msra.mxu0 0
      %757 = vmatprep.subr.bf16.mxu0 0
      %758 = vmatpush1.bf16.msra.mxu0 0
      %759 = vmatprep.mubr.bf16.mxu0 0
      %760 = vmatmul.mubr.bf16.gmra.mrb[0].mxu0 %v725
      %v761 = vpop.f32.mrb[0].mxu0
      %v762 = vadd.f32 0.0, %v761
      %v763 = vpop.f32.mrb[0].mxu0
      %v764 = vadd.f32 0.0, %v763
      %v765 = vpop.f32.mrb[0].mxu0
      %v766 = vpop.f32.mrb[0].mxu0
      %767 = vdwg.mxu0
      %v768 = vld [vmem:[#allocation2] sm:$0x1]
      %v770 = vlaneseq
      %v771 = vshrl.u32 %v770, 7
      %v772 = vsub.s32 0, %v771
      %v773 = vrot.slane %v768, %v772
      %774 = vset.pattern.permute.xlu0 0
      %775 = vperm.xlu0 %774, %v773
      %v776 = vpop.permute.xlu0 %775
      %v778 = vmul.f32 %v776, %v762
      %v779 = vmul.f32 %v776, %v764
      %v780 = vld [vmem:[%s658] sm:$0xff]
      %v782 = vcombine.low %v780, %v780
      %vm784 = vcmask 1043456
      %v785 = vsel %vm784, %v778, %v782
      %v786 = vsel %vm784, %v779, %v780
      %v787 = vld [vmem:[%s6] sm:$0xff]
      %v789 = vlaneseq
      %v790 = vshrl.u32 %v789, 7
      %v791 = vsub.s32 0, %v790
      %v792 = vrot.slane %v672, %v791
      %v794 = vmul.f32 %v787, %v792
      %vm795 = vcmask 130048
      %v796 = vsel %vm795, %v794, 0.0
      %797 = vadd.xlane.f32.xlu0 %v796
      %v798 = vpop.xlane.xlu0 %797
      %v799 = vld [vmem:[%s7] sm:$0xff]
      %v800 = vadd.f32 %v798, %v799
      %v801 = vld [vmem:[#allocation3] sm:$0x1]
      %v803 = vlaneseq
      %v804 = vshrl.u32 %v803, 7
      %v805 = vsub.s32 0, %v804
      %v806 = vrot.slane %v801, %v805
      %v808 = vmul.f32 %v806, %v800
      %v809 = vadd.f32 %v808, 1.0
      %811 = vset.pattern.permute.xlu0 0
      %812 = vperm.xlu0 %811, %v809
      %v813 = vpop.permute.xlu0 %812
      %v815 = vmul.f32 %v785, %v813
      %v816 = vmul.f32 %v786, %v813
      %v817 = vld [vmem:[%s9] sm:$0x3]
      %v818 = vld [vmem:[%s10] sm:$0xf]
      %819 = vrot.lane.b32.xlu0 %v815, 17
      %v820 = vpop.permute.xlu0 %819
      %821 = vrot.lane.b32.xlu0 %v816, 17
      %v822 = vpop.permute.xlu0 %821
      %v823 = vlaneseq
      %v824 = vand.u32 %v823, 127
      %vm825 = vcmp.lt.s32.totalorder %v824, 17
      %v826 = vsel %vm825, %v820, %v822
      %v827 = vsel %vm825, %v822, %v820
      %v828 = vlaneseq
      %v829 = vshrl.u32 %v828, 7
      %v830 = vsub.s32 0, %v829
      %v831 = vrot.slane %v668, %v830
      %v832 = vlaneseq
      %v833 = vshrl.u32 %v832, 7
      %v834 = vsub.s32 0, %v833
      %v835 = vrot.slane %v669, %v834
      %v836 = vmul.f32 %v827, %v831
      %v837 = vmul.f32 %v826, %v835
      %838 = vrot.lane.b32.xlu0 %v815, 16
      %v839 = vpop.permute.xlu0 %838
      %840 = vrot.lane.b32.xlu0 %v816, 16
      %v841 = vpop.permute.xlu0 %840
      %vm842 = vcmp.lt.s32.totalorder %v824, 16
      %v843 = vsel %vm842, %v839, %v841
      %v844 = vsel %vm842, %v841, %v839
      %v845 = vlaneseq
      %v846 = vshrl.u32 %v845, 7
      %v847 = vsub.s32 1, %v846
      %v848 = vrot.slane %v668, %v847
      %v849 = vlaneseq
      %v850 = vshrl.u32 %v849, 7
      %v851 = vsub.s32 1, %v850
      %v852 = vrot.slane %v669, %v851
      %v853 = vmul.f32 %v844, %v848
      %v854 = vmul.f32 %v843, %v852
      %855 = vrot.lane.b32.xlu0 %v815, 15
      %v856 = vpop.permute.xlu0 %855
      %857 = vrot.lane.b32.xlu0 %v816, 15
      %v858 = vpop.permute.xlu0 %857
      %vm859 = vcmp.lt.s32.totalorder %v824, 15
      %v860 = vsel %vm859, %v856, %v858
      %v861 = vsel %vm859, %v858, %v856
      %v862 = vlaneseq
      %v863 = vshrl.u32 %v862, 7
      %v864 = vsub.s32 2, %v863
      %v865 = vrot.slane %v668, %v864
      %v866 = vlaneseq
      %v867 = vshrl.u32 %v866, 7
      %v868 = vsub.s32 2, %v867
      %v869 = vrot.slane %v669, %v868
      %v870 = vmul.f32 %v861, %v865
      %v871 = vmul.f32 %v860, %v869
      %872 = vrot.lane.b32.xlu0 %v815, 1
      %v873 = vpop.permute.xlu0 %872
      %874 = vrot.lane.b32.xlu0 %v816, 1
      %v875 = vpop.permute.xlu0 %874
      %vm876 = vcmp.lt.s32.totalorder %v824, 1
      %v877 = vsel %vm876, %v873, %v875
      %v878 = vsel %vm876, %v875, %v873
      %v879 = vlaneseq
      %v880 = vshrl.u32 %v879, 7
      %v881 = vsub.s32 3, %v880
      %v882 = vrot.slane %v668, %v881
      %v883 = vlaneseq
      %v884 = vshrl.u32 %v883, 7
      %v885 = vsub.s32 3, %v884
      %v886 = vrot.slane %v669, %v885
      %v887 = vmul.f32 %v878, %v882
      %v888 = vmul.f32 %v877, %v886
      %v889 = vlaneseq
      %v890 = vshrl.u32 %v889, 7
      %v891 = vsub.s32 4, %v890
      %v892 = vrot.slane %v668, %v891
      %v893 = vlaneseq
      %v894 = vshrl.u32 %v893, 7
      %v895 = vsub.s32 4, %v894
      %v896 = vrot.slane %v669, %v895
      %v897 = vmul.f32 %v815, %v892
      %v898 = vmul.f32 %v816, %v896
      %899 = vrot.lane.b32.xlu0 %v815, 127
      %v900 = vpop.permute.xlu0 %899
      %901 = vrot.lane.b32.xlu0 %v816, 127
      %v902 = vpop.permute.xlu0 %901
      %vm903 = vcmp.lt.s32.totalorder %v824, 127
      %v904 = vsel %vm903, %v900, %v902
      %v905 = vsel %vm903, %v902, %v900
      %v906 = vlaneseq
      %v907 = vshrl.u32 %v906, 7
      %v908 = vsub.s32 5, %v907
      %v909 = vrot.slane %v668, %v908
      %v910 = vlaneseq
      %v911 = vshrl.u32 %v910, 7
      %v912 = vsub.s32 5, %v911
      %v913 = vrot.slane %v669, %v912
      %v914 = vmul.f32 %v904, %v909
      %v915 = vmul.f32 %v905, %v913
      %916 = vrot.lane.b32.xlu0 %v815, 113
      %v917 = vpop.permute.xlu0 %916
      %918 = vrot.lane.b32.xlu0 %v816, 113
      %v919 = vpop.permute.xlu0 %918
      %vm920 = vcmp.lt.s32.totalorder %v824, 113
      %v921 = vsel %vm920, %v917, %v919
      %v922 = vsel %vm920, %v919, %v917
      %v923 = vlaneseq
      %v924 = vshrl.u32 %v923, 7
      %v925 = vsub.s32 6, %v924
      %v926 = vrot.slane %v668, %v925
      %v927 = vlaneseq
      %v928 = vshrl.u32 %v927, 7
      %v929 = vsub.s32 6, %v928
      %v930 = vrot.slane %v669, %v929
      %v931 = vmul.f32 %v921, %v926
      %v932 = vmul.f32 %v922, %v930
      %933 = vrot.lane.b32.xlu0 %v815, 112
      %v934 = vpop.permute.xlu0 %933
      %935 = vrot.lane.b32.xlu0 %v816, 112
      %v936 = vpop.permute.xlu0 %935
      %vm937 = vcmp.lt.s32.totalorder %v824, 112
      %v938 = vsel %vm937, %v934, %v936
      %v939 = vsel %vm937, %v936, %v934
      %v940 = vlaneseq
      %v941 = vshrl.u32 %v940, 7
      %v942 = vsub.s32 7, %v941
      %v943 = vrot.slane %v668, %v942
      %v944 = vlaneseq
      %v945 = vshrl.u32 %v944, 7
      %v946 = vsub.s32 7, %v945
      %v947 = vrot.slane %v669, %v946
      %v948 = vmul.f32 %v938, %v943
      %v949 = vmul.f32 %v939, %v947
      %950 = vrot.lane.b32.xlu0 %v815, 111
      %v951 = vpop.permute.xlu0 %950
      %952 = vrot.lane.b32.xlu0 %v816, 111
      %v953 = vpop.permute.xlu0 %952
      %vm954 = vcmp.lt.s32.totalorder %v824, 111
      %v955 = vsel %vm954, %v951, %v953
      %v956 = vsel %vm954, %v953, %v951
      %v957 = vlaneseq
      %v958 = vshrl.u32 %v957, 7
      %v959 = vsub.s32 0, %v958
      %v960 = vrot.slane %v670, %v959
      %v961 = vlaneseq
      %v962 = vshrl.u32 %v961, 7
      %v963 = vsub.s32 0, %v962
      %v964 = vrot.slane %v671, %v963
      %v965 = vmul.f32 %v955, %v960
      %v966 = vmul.f32 %v956, %v964
      %v967 = vpack.c.bf16 %v853, %v836
      %v968 = vpack.c.bf16 %v854, %v837
      %v969 = vpack.c.bf16 %v887, %v870
      %v970 = vpack.c.bf16 %v888, %v871
      %v971 = vpack.c.bf16 %v914, %v897
      %v972 = vpack.c.bf16 %v915, %v898
      %v973 = vpack.c.bf16 %v948, %v931
      %v974 = vpack.c.bf16 %v949, %v932
      %v975 = vpack.c.bf16 %v965, %v965
      %v976 = vpack.c.bf16 %v966, %v966
      %978 = vset.pattern.permute.xlu0 0
      %979 = vperm.xlu0 %978, %v818
      %v980 = vpop.permute.xlu0 %979
      %vm982 = vcmask 588800
      %v984 = vsel %vm982, %v817, 0
      %v987 = vsel %vm784, %v975, 0
      %v990 = vsel %vm784, %v976, 0
      %992 = vmatprep.subr.bf16.mxu0 %v968
      %993 = vmatpush1.bf16.msra.mxu0 %v967
      %994 = vmatprep.subr.bf16.mxu0 %v970
      %995 = vmatpush1.bf16.msra.mxu0 %v969
      %996 = vmatprep.subr.bf16.mxu0 %v972
      %997 = vmatpush1.bf16.msra.mxu0 %v971
      %998 = vmatprep.subr.bf16.mxu0 %v974
      %999 = vmatpush1.bf16.msra.mxu0 %v973
      %1000 = vmatprep.subr.bf16.mxu0 %v990
      %1001 = vmatpush1.bf16.msra.mxu0 %v987
      %1002 = vmatprep.subr.bf16.mxu0 0
      %1003 = vmatpush1.bf16.msra.mxu0 0
      %1004 = vmatprep.subr.bf16.mxu0 0
      %1005 = vmatpush1.bf16.msra.mxu0 0
      %1006 = vmatprep.subr.bf16.mxu0 0
      %1007 = vmatpush1.bf16.msra.mxu0 0
      %1008 = vmatprep.subr.bf16.mxu0 0
      %1009 = vmatpush1.bf16.msra.mxu0 0
      %1010 = vmatprep.subr.bf16.mxu0 0
      %1011 = vmatpush1.bf16.msra.mxu0 0
      %1012 = vmatprep.subr.bf16.mxu0 0
      %1013 = vmatpush1.bf16.msra.mxu0 0
      %1014 = vmatprep.subr.bf16.mxu0 0
      %1015 = vmatpush1.bf16.msra.mxu0 0
      %1016 = vmatprep.subr.bf16.mxu0 0
      %1017 = vmatpush1.bf16.msra.mxu0 0
      %1018 = vmatprep.subr.bf16.mxu0 0
      %1019 = vmatpush1.bf16.msra.mxu0 0
      %1020 = vmatprep.subr.bf16.mxu0 0
      %1021 = vmatpush1.bf16.msra.mxu0 0
      %1022 = vmatprep.subr.bf16.mxu0 0
      %1023 = vmatpush1.bf16.msra.mxu0 0
      %1024 = vmatprep.mubr.bf16.mxu0 0
      %1025 = vmatmul.mubr.bf16.gmra.mrb[0].mxu0 %v984
      %v1026 = vpop.f32.mrb[0].mxu0
      %v1027 = vadd.f32 %v980, %v1026
      %v1028 = vpop.f32.mrb[0].mxu0
      %v1029 = vadd.f32 %v980, %v1028
      %v1030 = vpop.f32.mrb[0].mxu0
      %v1031 = vpop.f32.mrb[0].mxu0
      %1032 = vdwg.mxu0
      %v1033 = vld [vmem:[%s11] sm:$0xf]
      %v1034 = vmul.f32 %v809, %v809
      %vm1035 = vcmask 64512
      %v1037 = vsel %vm1035, %v1033, 0
      %1039 = vmatprep.subr.mxu0 0.0
      %1040 = vmatpush1.msra.mxu0 %v1034
      %1041 = vmatprep.subr.mxu0 0.0
      %1042 = vmatpush1.msra.mxu0 0.0
      %1043 = vmatprep.subr.mxu0 0.0
      %1044 = vmatpush1.msra.mxu0 0.0
      %1045 = vmatprep.subr.mxu0 0.0
      %1046 = vmatpush1.msra.mxu0 0.0
      %1047 = vmatprep.subr.mxu0 0.0
      %1048 = vmatpush1.msra.mxu0 0.0
      %1049 = vmatprep.subr.mxu0 0.0
      %1050 = vmatpush1.msra.mxu0 0.0
      %1051 = vmatprep.subr.mxu0 0.0
      %1052 = vmatpush1.msra.mxu0 0.0
      %1053 = vmatprep.subr.mxu0 0.0
      %1054 = vmatpush1.msra.mxu0 0.0
      %1055 = vmatprep.subr.mxu0 0.0
      %1056 = vmatpush1.msra.mxu0 0.0
      %1057 = vmatprep.subr.mxu0 0.0
      %1058 = vmatpush1.msra.mxu0 0.0
      %1059 = vmatprep.subr.mxu0 0.0
      %1060 = vmatpush1.msra.mxu0 0.0
      %1061 = vmatprep.subr.mxu0 0.0
      %1062 = vmatpush1.msra.mxu0 0.0
      %1063 = vmatprep.subr.mxu0 0.0
      %1064 = vmatpush1.msra.mxu0 0.0
      %1065 = vmatprep.subr.mxu0 0.0
      %1066 = vmatpush1.msra.mxu0 0.0
      %1067 = vmatprep.subr.mxu0 0.0
      %1068 = vmatpush1.msra.mxu0 0.0
      %1069 = vmatprep.subr.mxu0 0.0
      %1070 = vmatpush1.msra.mxu0 0.0
      %1071 = vmatprep.subr.mxu0 0.0
      %1072 = vmatpush1.msra.mxu0 0.0
      %1073 = vmatprep.subr.mxu0 0.0
      %1074 = vmatpush1.msra.mxu0 0.0
      %1075 = vmatprep.subr.mxu0 0.0
      %1076 = vmatpush1.msra.mxu0 0.0
      %1077 = vmatprep.subr.mxu0 0.0
      %1078 = vmatpush1.msra.mxu0 0.0
      %1079 = vmatprep.subr.mxu0 0.0
      %1080 = vmatpush1.msra.mxu0 0.0
      %1081 = vmatprep.subr.mxu0 0.0
      %1082 = vmatpush1.msra.mxu0 0.0
      %1083 = vmatprep.subr.mxu0 0.0
      %1084 = vmatpush1.msra.mxu0 0.0
      %1085 = vmatprep.subr.mxu0 0.0
      %1086 = vmatpush1.msra.mxu0 0.0
      %1087 = vmatprep.subr.mxu0 0.0
      %1088 = vmatpush1.msra.mxu0 0.0
      %1089 = vmatprep.subr.mxu0 0.0
      %1090 = vmatpush1.msra.mxu0 0.0
      %1091 = vmatprep.subr.mxu0 0.0
      %1092 = vmatpush1.msra.mxu0 0.0
      %1093 = vmatprep.subr.mxu0 0.0
      %1094 = vmatpush1.msra.mxu0 0.0
      %1095 = vmatprep.subr.mxu0 0.0
      %1096 = vmatpush1.msra.mxu0 0.0
      %1097 = vmatprep.subr.mxu0 0.0
      %1098 = vmatpush1.msra.mxu0 0.0
      %1099 = vmatprep.subr.mxu0 0.0
      %1100 = vmatpush1.msra.mxu0 0.0
      %1101 = vmatprep.subr.mxu0 0.0
      %1102 = vmatpush1.msra.mxu0 0.0
      %1103 = vmatprep.mubr.f32.mxu0 0.0
      %1104 = vmatmul.mubr.f32.gmra.mrb[0].mxu0 %v1037
      %v1105 = vpop.f32.mrb[0].mxu0
      %v1106 = vadd.f32 1e-06, %v1105
      %v1107 = vpop.f32.mrb[0].mxu0
      %1108 = vdwg.mxu0
      %v1109 = vrsqrt.pop %v1106
      %1111 = vset.pattern.permute.xlu0 0
      %1112 = vperm.xlu0 %1111, %v1109
      %v1113 = vpop.permute.xlu0 %1112
      %v1115 = vmul.f32 %v1027, %v1113
      %v1116 = vmul.f32 %v1029, %v1113
      %vm1117 = vcmp.ge.f32.partialorder %v1115, 0.0
      %vm1118 = vcmp.ge.f32.partialorder %v1116, 0.0
      %v1119 = vmul.f32 %v1115, 0.2
      %v1120 = vmul.f32 %v1116, 0.2
      %v1121 = vsel %vm1117, %v1115, %v1119
      %v1122 = vsel %vm1118, %v1116, %v1120
      %v1123 = vld [vmem:[%s12] sm:$0xf]
      %v1124 = vmul.f32 %v1123, %v792
      %vm1125 = vcmask 125952
      %v1126 = vsel %vm1125, %v1124, 0.0
      %1127 = vadd.xlane.f32.xlu0 %v1126
      %v1128 = vpop.xlane.xlu0 %1127
      %v1129 = vld [vmem:[%s13] sm:$0xf]
      %v1130 = vadd.f32 %v1128, %v1129
      %v1131 = vld [vmem:[#allocation4] sm:$0x1]
      %v1133 = vlaneseq
      %v1134 = vshrl.u32 %v1133, 7
      %v1135 = vsub.s32 0, %v1134
      %v1136 = vrot.slane %v1131, %v1135
      %v1138 = vmul.f32 %v1136, %v1130
      %v1139 = vadd.f32 %v1138, 1.0
      %1141 = vset.pattern.permute.xlu0 0
      %1142 = vperm.xlu0 %1141, %v1139
      %v1143 = vpop.permute.xlu0 %1142
      %v1145 = vmul.f32 %v1121, %v1143
      %v1146 = vmul.f32 %v1122, %v1143
      %v1147 = vld [vmem:[%s15] sm:$0x3]
      %v1148 = vld [vmem:[%s16] sm:$0xf]
      %1149 = vrot.lane.b32.xlu0 %v1145, 17
      %v1150 = vpop.permute.xlu0 %1149
      %1151 = vrot.lane.b32.xlu0 %v1146, 17
      %v1152 = vpop.permute.xlu0 %1151
      %v1153 = vsel %vm825, %v1150, %v1152
      %v1154 = vsel %vm825, %v1152, %v1150
      %v1155 = vmul.f32 %v1154, %v831
      %v1156 = vmul.f32 %v1153, %v835
      %1157 = vrot.lane.b32.xlu0 %v1145, 16
      %v1158 = vpop.permute.xlu0 %1157
      %1159 = vrot.lane.b32.xlu0 %v1146, 16
      %v1160 = vpop.permute.xlu0 %1159
      %v1161 = vsel %vm842, %v1158, %v1160
      %v1162 = vsel %vm842, %v1160, %v1158
      %v1163 = vmul.f32 %v1162, %v848
      %v1164 = vmul.f32 %v1161, %v852
      %1165 = vrot.lane.b32.xlu0 %v1145, 15
      %v1166 = vpop.permute.xlu0 %1165
      %1167 = vrot.lane.b32.xlu0 %v1146, 15
      %v1168 = vpop.permute.xlu0 %1167
      %v1169 = vsel %vm859, %v1166, %v1168
      %v1170 = vsel %vm859, %v1168, %v1166
      %v1171 = vmul.f32 %v1170, %v865
      %v1172 = vmul.f32 %v1169, %v869
      %1173 = vrot.lane.b32.xlu0 %v1145, 1
      %v1174 = vpop.permute.xlu0 %1173
      %1175 = vrot.lane.b32.xlu0 %v1146, 1
      %v1176 = vpop.permute.xlu0 %1175
      %v1177 = vsel %vm876, %v1174, %v1176
      %v1178 = vsel %vm876, %v1176, %v1174
      %v1179 = vmul.f32 %v1178, %v882
      %v1180 = vmul.f32 %v1177, %v886
      %v1181 = vmul.f32 %v1145, %v892
      %v1182 = vmul.f32 %v1146, %v896
      %1183 = vrot.lane.b32.xlu0 %v1145, 127
      %v1184 = vpop.permute.xlu0 %1183
      %1185 = vrot.lane.b32.xlu0 %v1146, 127
      %v1186 = vpop.permute.xlu0 %1185
      %v1187 = vsel %vm903, %v1184, %v1186
      %v1188 = vsel %vm903, %v1186, %v1184
      %v1189 = vmul.f32 %v1187, %v909
      %v1190 = vmul.f32 %v1188, %v913
      %1191 = vrot.lane.b32.xlu0 %v1145, 113
      %v1192 = vpop.permute.xlu0 %1191
      %1193 = vrot.lane.b32.xlu0 %v1146, 113
      %v1194 = vpop.permute.xlu0 %1193
      %v1195 = vsel %vm920, %v1192, %v1194
      %v1196 = vsel %vm920, %v1194, %v1192
      %v1197 = vmul.f32 %v1195, %v926
      %v1198 = vmul.f32 %v1196, %v930
      %1199 = vrot.lane.b32.xlu0 %v1145, 112
      %v1200 = vpop.permute.xlu0 %1199
      %1201 = vrot.lane.b32.xlu0 %v1146, 112
      %v1202 = vpop.permute.xlu0 %1201
      %v1203 = vsel %vm937, %v1200, %v1202
      %v1204 = vsel %vm937, %v1202, %v1200
      %v1205 = vmul.f32 %v1203, %v943
      %v1206 = vmul.f32 %v1204, %v947
      %1207 = vrot.lane.b32.xlu0 %v1145, 111
      %v1208 = vpop.permute.xlu0 %1207
      %1209 = vrot.lane.b32.xlu0 %v1146, 111
      %v1210 = vpop.permute.xlu0 %1209
      %v1211 = vsel %vm954, %v1208, %v1210
      %v1212 = vsel %vm954, %v1210, %v1208
      %v1213 = vmul.f32 %v1211, %v960
      %v1214 = vmul.f32 %v1212, %v964
      %v1217 = vrot.slane %v1163, 4
      %v1218 = vrot.slane %v1164, 4
      %v1223 = vrot.slane %v1179, 4
      %v1224 = vrot.slane %v1180, 4
      %v1229 = vrot.slane %v1189, 4
      %v1230 = vrot.slane %v1190, 4
      %v1235 = vrot.slane %v1205, 4
      %v1236 = vrot.slane %v1206, 4
      %v1239 = vsel %vm784, %v1155, %v1217
      %v1240 = vsel %vm784, %v1156, %v1218
      %v1241 = vsel %vm784, %v1171, %v1223
      %v1242 = vsel %vm784, %v1172, %v1224
      %v1243 = vsel %vm784, %v1181, %v1229
      %v1244 = vsel %vm784, %v1182, %v1230
      %v1245 = vsel %vm784, %v1197, %v1235
      %v1246 = vsel %vm784, %v1198, %v1236
      %v1247 = vpack.c.bf16 %v1241, %v1239
      %v1248 = vpack.c.bf16 %v1242, %v1240
      %v1249 = vpack.c.bf16 %v1245, %v1243
      %v1250 = vpack.c.bf16 %v1246, %v1244
      %v1251 = vpack.c.bf16 %v1213, %v1213
      %v1252 = vpack.c.bf16 %v1214, %v1214
      %1254 = vset.pattern.permute.xlu0 0
      %1255 = vperm.xlu0 %1254, %v1148
      %v1256 = vpop.permute.xlu0 %1255
      %vm1258 = vcmask 293888
      %v1260 = vsel %vm1258, %v1147, 0
      %vm1262 = vcmask 1041408
      %v1264 = vsel %vm1262, %v1251, 0
      %v1267 = vsel %vm1262, %v1252, 0
      %1269 = vmatprep.subr.bf16.mxu0 %v1248
      %1270 = vmatpush1.bf16.msra.mxu0 %v1247
      %1271 = vmatprep.subr.bf16.mxu0 %v1250
      %1272 = vmatpush1.bf16.msra.mxu0 %v1249
      %1273 = vmatprep.subr.bf16.mxu0 %v1267
      %1274 = vmatpush1.bf16.msra.mxu0 %v1264
      %1275 = vmatprep.subr.bf16.mxu0 0
      %1276 = vmatpush1.bf16.msra.mxu0 0
      %1277 = vmatprep.subr.bf16.mxu0 0
      %1278 = vmatpush1.bf16.msra.mxu0 0
      %1279 = vmatprep.subr.bf16.mxu0 0
      %1280 = vmatpush1.bf16.msra.mxu0 0
      %1281 = vmatprep.subr.bf16.mxu0 0
      %1282 = vmatpush1.bf16.msra.mxu0 0
      %1283 = vmatprep.subr.bf16.mxu0 0
      %1284 = vmatpush1.bf16.msra.mxu0 0
      %1285 = vmatprep.subr.bf16.mxu0 0
      %1286 = vmatpush1.bf16.msra.mxu0 0
      %1287 = vmatprep.subr.bf16.mxu0 0
      %1288 = vmatpush1.bf16.msra.mxu0 0
      %1289 = vmatprep.subr.bf16.mxu0 0
      %1290 = vmatpush1.bf16.msra.mxu0 0
      %1291 = vmatprep.subr.bf16.mxu0 0
      %1292 = vmatpush1.bf16.msra.mxu0 0
      %1293 = vmatprep.subr.bf16.mxu0 0
      %1294 = vmatpush1.bf16.msra.mxu0 0
      %1295 = vmatprep.subr.bf16.mxu0 0
      %1296 = vmatpush1.bf16.msra.mxu0 0
      %1297 = vmatprep.subr.bf16.mxu0 0
      %1298 = vmatpush1.bf16.msra.mxu0 0
      %1299 = vmatprep.subr.bf16.mxu0 0
      %1300 = vmatpush1.bf16.msra.mxu0 0
      %1301 = vmatprep.mubr.bf16.mxu0 0
      %1302 = vmatmul.mubr.bf16.gmra.mrb[0].mxu0 %v1260
      %v1303 = vpop.f32.mrb[0].mxu0
      %v1304 = vadd.f32 %v1256, %v1303
      %v1305 = vpop.f32.mrb[0].mxu0
      %v1306 = vadd.f32 %v1256, %v1305
      %v1307 = vpop.f32.mrb[0].mxu0
      %v1308 = vpop.f32.mrb[0].mxu0
      %1309 = vdwg.mxu0
      %v1310 = vld [vmem:[%s17] sm:$0xf]
      %v1311 = vmul.f32 %v1139, %v1139
      %vm1312 = vcmask 31744
      %v1314 = vsel %vm1312, %v1310, 0
      %v1317 = vsel %vm784, %v1311, 0
      %1319 = vmatprep.subr.mxu0 0.0
      %1320 = vmatpush1.msra.mxu0 %v1317
      %1321 = vmatprep.subr.mxu0 0.0
      %1322 = vmatpush1.msra.mxu0 0.0
      %1323 = vmatprep.subr.mxu0 0.0
      %1324 = vmatpush1.msra.mxu0 0.0
      %1325 = vmatprep.subr.mxu0 0.0
      %1326 = vmatpush1.msra.mxu0 0.0
      %1327 = vmatprep.subr.mxu0 0.0
      %1328 = vmatpush1.msra.mxu0 0.0
      %1329 = vmatprep.subr.mxu0 0.0
      %1330 = vmatpush1.msra.mxu0 0.0
      %1331 = vmatprep.subr.mxu0 0.0
      %1332 = vmatpush1.msra.mxu0 0.0
      %1333 = vmatprep.subr.mxu0 0.0
      %1334 = vmatpush1.msra.mxu0 0.0
      %1335 = vmatprep.subr.mxu0 0.0
      %1336 = vmatpush1.msra.mxu0 0.0
      %1337 = vmatprep.subr.mxu0 0.0
      %1338 = vmatpush1.msra.mxu0 0.0
      %1339 = vmatprep.subr.mxu0 0.0
      %1340 = vmatpush1.msra.mxu0 0.0
      %1341 = vmatprep.subr.mxu0 0.0
      %1342 = vmatpush1.msra.mxu0 0.0
      %1343 = vmatprep.subr.mxu0 0.0
      %1344 = vmatpush1.msra.mxu0 0.0
      %1345 = vmatprep.subr.mxu0 0.0
      %1346 = vmatpush1.msra.mxu0 0.0
      %1347 = vmatprep.subr.mxu0 0.0
      %1348 = vmatpush1.msra.mxu0 0.0
      %1349 = vmatprep.subr.mxu0 0.0
      %1350 = vmatpush1.msra.mxu0 0.0
      %1351 = vmatprep.subr.mxu0 0.0
      %1352 = vmatpush1.msra.mxu0 0.0
      %1353 = vmatprep.subr.mxu0 0.0
      %1354 = vmatpush1.msra.mxu0 0.0
      %1355 = vmatprep.subr.mxu0 0.0
      %1356 = vmatpush1.msra.mxu0 0.0
      %1357 = vmatprep.subr.mxu0 0.0
      %1358 = vmatpush1.msra.mxu0 0.0
      %1359 = vmatprep.subr.mxu0 0.0
      %1360 = vmatpush1.msra.mxu0 0.0
      %1361 = vmatprep.subr.mxu0 0.0
      %1362 = vmatpush1.msra.mxu0 0.0
      %1363 = vmatprep.subr.mxu0 0.0
      %1364 = vmatpush1.msra.mxu0 0.0
      %1365 = vmatprep.subr.mxu0 0.0
      %1366 = vmatpush1.msra.mxu0 0.0
      %1367 = vmatprep.subr.mxu0 0.0
      %1368 = vmatpush1.msra.mxu0 0.0
      %1369 = vmatprep.subr.mxu0 0.0
      %1370 = vmatpush1.msra.mxu0 0.0
      %1371 = vmatprep.subr.mxu0 0.0
      %1372 = vmatpush1.msra.mxu0 0.0
      %1373 = vmatprep.subr.mxu0 0.0
      %1374 = vmatpush1.msra.mxu0 0.0
      %1375 = vmatprep.subr.mxu0 0.0
      %1376 = vmatpush1.msra.mxu0 0.0
      %1377 = vmatprep.subr.mxu0 0.0
      %1378 = vmatpush1.msra.mxu0 0.0
      %1379 = vmatprep.subr.mxu0 0.0
      %1380 = vmatpush1.msra.mxu0 0.0
      %1381 = vmatprep.subr.mxu0 0.0
      %1382 = vmatpush1.msra.mxu0 0.0
      %1383 = vmatprep.mubr.f32.mxu0 0.0
      %1384 = vmatmul.mubr.f32.gmra.mrb[0].mxu0 %v1314
      %v1385 = vpop.f32.mrb[0].mxu0
      %v1386 = vadd.f32 1e-06, %v1385
      %v1387 = vpop.f32.mrb[0].mxu0
      %1388 = vdwg.mxu0
      %v1389 = vrsqrt.pop %v1386
      %1391 = vset.pattern.permute.xlu0 0
      %1392 = vperm.xlu0 %1391, %v1389
      %v1393 = vpop.permute.xlu0 %1392
      %v1395 = vmul.f32 %v1304, %v1393
      %v1396 = vmul.f32 %v1306, %v1393
      %vm1397 = vcmp.ge.f32.partialorder %v1395, 0.0
      %vm1398 = vcmp.ge.f32.partialorder %v1396, 0.0
      %v1399 = vmul.f32 %v1395, 0.2
      %v1400 = vmul.f32 %v1396, 0.2
      %v1401 = vsel %vm1397, %v1395, %v1399
      %v1402 = vsel %vm1398, %v1396, %v1400
      %v1403 = vld [vmem:[%s18] sm:$0x3]
      %v1404 = vpack.c.bf16 %v1401, %v1401
      %v1405 = vpack.c.bf16 %v1402, %v1402
      %v1406 = vld [vmem:[%s19] sm:$0x7]
      %1408 = vset.pattern.permute.xlu0 0
      %1409 = vperm.xlu0 %1408, %v1406
      %v1410 = vpop.permute.xlu0 %1409
      %v1413 = vsel %vm1312, %v1403, 0
      %v1416 = vsel %vm1262, %v1404, 0
      %v1419 = vsel %vm1262, %v1405, 0
      %1421 = vmatprep.subr.bf16.mxu0 %v1419
      %1422 = vmatpush1.bf16.msra.mxu0 %v1416
      %1423 = vmatprep.subr.bf16.mxu0 0
      %1424 = vmatpush1.bf16.msra.mxu0 0
      %1425 = vmatprep.subr.bf16.mxu0 0
      %1426 = vmatpush1.bf16.msra.mxu0 0
      %1427 = vmatprep.subr.bf16.mxu0 0
      %1428 = vmatpush1.bf16.msra.mxu0 0
      %1429 = vmatprep.subr.bf16.mxu0 0
      %1430 = vmatpush1.bf16.msra.mxu0 0
      %1431 = vmatprep.subr.bf16.mxu0 0
      %1432 = vmatpush1.bf16.msra.mxu0 0
      %1433 = vmatprep.subr.bf16.mxu0 0
      %1434 = vmatpush1.bf16.msra.mxu0 0
      %1435 = vmatprep.subr.bf16.mxu0 0
      %1436 = vmatpush1.bf16.msra.mxu0 0
      %1437 = vmatprep.subr.bf16.mxu0 0
      %1438 = vmatpush1.bf16.msra.mxu0 0
      %1439 = vmatprep.subr.bf16.mxu0 0
      %1440 = vmatpush1.bf16.msra.mxu0 0
      %1441 = vmatprep.subr.bf16.mxu0 0
      %1442 = vmatpush1.bf16.msra.mxu0 0
      %1443 = vmatprep.subr.bf16.mxu0 0
      %1444 = vmatpush1.bf16.msra.mxu0 0
      %1445 = vmatprep.subr.bf16.mxu0 0
      %1446 = vmatpush1.bf16.msra.mxu0 0
      %1447 = vmatprep.subr.bf16.mxu0 0
      %1448 = vmatpush1.bf16.msra.mxu0 0
      %1449 = vmatprep.subr.bf16.mxu0 0
      %1450 = vmatpush1.bf16.msra.mxu0 0
      %1451 = vmatprep.subr.bf16.mxu0 0
      %1452 = vmatpush1.bf16.msra.mxu0 0
      %1453 = vmatprep.mubr.bf16.mxu0 0
      %1454 = vmatmul.mubr.bf16.gmra.mrb[0].mxu0 %v1413
      %v1455 = vpop.f32.mrb[0].mxu0
      %v1456 = vadd.f32 %v1410, %v1455
      %v1457 = vpop.f32.mrb[0].mxu0
      %v1458 = vadd.f32 %v1410, %v1457
      %v1459 = vpop.f32.mrb[0].mxu0
      %v1460 = vpop.f32.mrb[0].mxu0
      %1461 = vdwg.mxu0
      %v1464 = vcombine.low %v1456, %v1458
      %1466 = vst [vmem:[%s666] sm:$0x77] %v1464
      %p1467 = scmp.lt.s32.totalorder %s37, 1
      %s1468 = scalar_select %p1467, %s37, 1
      %s1469 = smul.addr %s1468, 2
      %s1470 = smul.addr %s1469, 4
      %s1471 = scalar_lea.vmem %s20, %s1470
      // Predicated region
      $region101: #{modnet_star_forward.7} parent=99 // pred_check
        %p1472 = pneg %p490
      $region102: #{modnet_star_forward.7} parent=99 // pred_check_branch
        %1474 = sbr.rel (%p1472) target = $region104
      $region103: #{modnet_star_forward.7} parent=99 // pred_region
        _
      $region104: #{modnet_star_forward.7} parent=99 // pred_fallthru
        _
    $region100: #{modnet_star_forward.7} parent=5 // pred_fallthru
      _
    %p1475 = scmp.le.s32.totalorder 2, %s32
    // Predicated region
    $region105: #{modnet_star_forward.7} parent=5 // pred_check
      %p1476 = pneg %p1475
    $region106: #{modnet_star_forward.7} parent=5 // pred_check_branch
      %1478 = sbr.rel (%p1476) target = $region108
    $region107: #{modnet_star_forward.7} parent=5 // pred_region
      %s1479 = ssub.s32 %s32, 2
      // Predicated region
      $region109: #{modnet_star_forward.7} parent=107 // pred_check
        %p1480 = pneg %p496
      $region110: #{modnet_star_forward.7} parent=107 // pred_check_branch
        %1482 = sbr.rel (%p1480) target = $region112
      $region111: #{modnet_star_forward.7} parent=107 // pred_region
        %p1483 = scmp.lt.s32.totalorder %s38, 1
        %s1484 = scalar_select %p1483, %s38, 1
        %s1485 = smul.addr %s1484, 2
        %s1486 = smul.addr %s1485, 4
        %s1487 = scalar_lea.vmem %s20, %s1486
      $region112: #{modnet_star_forward.7} parent=107 // pred_fallthru
        _
    $region108: #{modnet_star_forward.7} parent=5 // pred_fallthru
      _
  $region6: #{modnet_star_forward.7} parent=0 // loop_footer
    %s36 = sadd.s32 1, %s32
  $region7: #{modnet_star_forward.7} parent=0 // loop_footer_branch
    %31 = sbr.rel target = $region3
  $region8: #{modnet_star_forward.7} parent=0 // loop_exit
    _

</llo_original>
